<compile_context>
chip_gen: v6e
topology: v6e:2x2x1
jax: 0.10.0
libtpu: 0.0.40
codegen_flags: <defaults>
</compile_context>

<pallas_src>
import functools

import jax
import jax.numpy as jnp
from jax.experimental import pallas as pl
from jax.experimental.pallas import tpu as pltpu

IMG_SIZE = 84


# ----------------------------------------------------------------------------
# Pallas kernels
# ----------------------------------------------------------------------------
def conv_bn_relu_pool_kernel(taps_ref, w_ref, sb_ref, o_ref):
    """Fused conv3x3 + BN + ReLU + MaxPool2x2 for one image.

    taps_ref: (1, NQ, 9*Cin, P) bf16   quadrant-grouped im2col columns
                                       (NQ=4 with maxpool, 1 without; P = pooled H*W)
    w_ref:    (Cout, 9*Cin)     bf16   packed conv weight
    sb_ref:   (Cout, 2)         f32    [:,0]=BN scale, [:,1]=BN shift (conv bias folded)
    o_ref:    (1, Cout, P)      bf16   channel-major, lane-dense output
    """
    nq = taps_ref.shape[1]
    scale = sb_ref[:, 0:1]          # (Cout, 1) broadcast over lanes
    shift = sb_ref[:, 1:2]
    w = w_ref[...]                  # (Cout, 9*Cin) bf16
    m = None
    for q in range(nq):             # static unroll over the 2x2 pooling quadrants
        # Single K=9*Cin MXU matmul; lane axis of the result is the pooled H*W.
        z = jnp.dot(w, taps_ref[0, q], preferred_element_type=jnp.float32)
        z = z * scale + shift       # folded BatchNorm affine (f32)
        m = z if m is None else jnp.maximum(m, z)   # MaxPool (max commutes w/ ReLU)
    o_ref[0] = jnp.maximum(m, 0.0).astype(o_ref.dtype)


def mlp_head_kernel(*refs, n_layers):
    """Fused FC head: x -> [Linear -> ReLU]*(L-1) -> Linear.  Dropout = identity."""
    x_ref = refs[0]
    o_ref = refs[-1]
    h = x_ref[...]
    for li in range(n_layers):
        w_ref = refs[1 + 2 * li]
        b_ref = refs[2 + 2 * li]
        h = jnp.dot(h.astype(w_ref.dtype), w_ref[...],
                    preferred_element_type=jnp.float32) + b_ref[...]
        if li < n_layers - 1:
            h = jnp.maximum(h, 0.0)
            # TODO(synk): nn.Dropout is identity at inference; train-mode masking not implemented.
    o_ref[...] = h


# ----------------------------------------------------------------------------
# Pallas wrappers
# ----------------------------------------------------------------------------
def conv_block_call(taps, w2d, sb):
    n, nq, k9, p = taps.shape
    cout = w2d.shape[0]
    return pl.pallas_call(
        conv_bn_relu_pool_kernel,
        out_shape=jax.ShapeDtypeStruct((n, cout, p), jnp.bfloat16),
        grid=(n,),
        in_specs=[
            pl.BlockSpec((1, nq, k9, p), lambda i: (i, 0, 0, 0)),
            pl.BlockSpec((cout, k9), lambda i: (0, 0)),     # weight: grid-invariant
            pl.BlockSpec((cout, 2), lambda i: (0, 0)),      # BN scale/shift: invariant
        ],
        out_specs=pl.BlockSpec((1, cout, p), lambda i: (i, 0, 0)),
        compiler_params=pltpu.CompilerParams(
            dimension_semantics=("parallel",)),
    )(taps, w2d, sb)


def mlp_head(x, fc_params):
    n_layers = len(fc_params)
    num_out = fc_params[-1][0].shape[1]
    args = [x]
    for w, b in fc_params:
        args += [w, b]
    return pl.pallas_call(
        functools.partial(mlp_head_kernel, n_layers=n_layers),
        out_shape=jax.ShapeDtypeStruct((x.shape[0], num_out), jnp.float32),
    )(*args)


# ----------------------------------------------------------------------------
# Glue: quadrant-grouped im2col, forward pass, parameter init
# ----------------------------------------------------------------------------
def build_taps(x, s, use_maxpool):
    """x: (N, Cin, H, W) -> taps (N, NQ, 9*Cin, P) bf16.

    Output columns are grouped by 2x2-pooling quadrant (qy,qx) so the kernel can
    fuse MaxPool as a 4-way max; inside each quadrant columns are row-major over
    the pooled grid, which keeps the final flatten identical to torch.flatten(NCHW, 1).
    """
    n, cin, h, w = x.shape
    ho = (h - 1) // s + 1           # conv output size (k=3, pad=1, stride=s)
    wo = (w - 1) // s + 1
    xp = jnp.pad(x, ((0, 0), (0, 0), (1, 1), (1, 1))).astype(jnp.bfloat16)
    if use_maxpool:
        hh, wh = ho // 2, wo // 2
        quad_offsets = [(qy, qx) for qy in range(2) for qx in range(2)]
        step = 2 * s
    else:
        hh, wh = ho, wo
        quad_offsets = [(0, 0)]
        step = s
    quads = []
    for (qy, qx) in quad_offsets:
        tps = []
        for dy in range(3):
            for dx in range(3):
                ys = qy * s + dy
                xs = qx * s + dx
                patch = xp[:, :,
                           ys: ys + step * (hh - 1) + 1: step,
                           xs: xs + step * (wh - 1) + 1: step]   # (N, Cin, hh, wh)
                tps.append(patch.reshape(n, cin, hh * wh))
        quads.append(jnp.concatenate(tps, axis=1))               # (N, 9*Cin, P)
    taps = jnp.stack(quads, axis=1)                              # (N, NQ, 9*Cin, P)
    return taps, hh, wh


def forward(params, x_nchw, stride, use_maxpool=True):
    x = x_nchw                      # channel-major carry: no NHWC<->NCHW transposes
    for i, (w2d, sb) in enumerate(params["conv"]):
        s = stride[i] if isinstance(stride, list) else stride
        taps, hh, wh = build_taps(x, s, use_maxpool)
        y = conv_block_call(taps, w2d, sb)                       # (N, Cout, hh*wh) bf16
        x = y.reshape(y.shape[0], y.shape[1], hh, wh)
    xflat = x.reshape(x.shape[0], -1)                            # == torch.flatten(x, 1)
    return mlp_head(xflat, params["fc"])


def init_params(key, conv_config, fc_config, num_classes,
                use_maxpool=True, stride=1, use_batchnorm=True):
    eps = 1e-5
    params = {"conv": [], "fc": []}
    in_c = 3
    for out_c in conv_config:
        key, k1, k2 = jax.random.split(key, 3)
        fan_in = in_c * 9
        bound = 1.0 / (fan_in ** 0.5)
        w = jax.random.uniform(k1, (out_c, in_c, 3, 3), jnp.float32, -bound, bound)
        b = jax.random.uniform(k2, (out_c,), jnp.float32, -bound, bound)
        if use_batchnorm:
            # BatchNorm2d inference, PyTorch default init: gamma=1, beta=0, mean=0, var=1
            gamma = jnp.ones((out_c,), jnp.float32)
            beta = jnp.zeros((out_c,), jnp.float32)
            mean = jnp.zeros((out_c,), jnp.float32)
            var = jnp.ones((out_c,), jnp.float32)
            scale = gamma / jnp.sqrt(var + eps)
            shift = scale * (b - mean) + beta        # conv bias folded into BN shift
        else:
            scale = jnp.ones((out_c,), jnp.float32)
            shift = b
        # pack (Cout, Cin, 3, 3) -> (Cout, 9*Cin) with k = (dy*3+dx)*Cin + ci
        w2d = jnp.transpose(w, (0, 2, 3, 1)).reshape(out_c, 9 * in_c).astype(jnp.bfloat16)
        sb = jnp.stack([scale, shift], axis=1)       # (Cout, 2) f32
        params["conv"].append((w2d, sb))
        in_c = out_c

    # flatten_dim exactly as in the PyTorch module
    conv_output_size = IMG_SIZE
    for i in range(len(conv_config)):
        s = stride[i] if isinstance(stride, list) else stride
        conv_output_size //= s
        if use_maxpool:
            conv_output_size //= 2
    flatten_dim = in_c * conv_output_size * conv_output_size

    dims = [flatten_dim] + list(fc_config) + [num_classes]
    for d_in, d_out in zip(dims[:-1], dims[1:]):
        key, k1, k2 = jax.random.split(key, 3)
        bound = 1.0 / (d_in ** 0.5)
        w = jax.random.uniform(k1, (d_in, d_out), jnp.float32, -bound, bound)
        b = jax.random.uniform(k2, (d_out,), jnp.float32, -bound, bound)
        params["fc"].append((w.astype(jnp.bfloat16), b.reshape(1, d_out)))
    return params


if __name__ == "__main__":
    conv_config = [8, 16]
    fc_config = [32]
    num_classes = 10
    stride = 1
    use_maxpool = True
    batch = 2

    key = jax.random.PRNGKey(0)
    key, kx = jax.random.split(key)
    x = jax.random.normal(kx, (batch, 3, IMG_SIZE, IMG_SIZE), jnp.float32)  # NCHW

    params = init_params(key, conv_config, fc_config, num_classes,
                         use_maxpool=use_maxpool, stride=stride)

    fwd = jax.jit(functools.partial(forward, stride=stride, use_maxpool=use_maxpool))
    out = fwd(params, x)
    out = jax.block_until_ready(out)
    assert out.shape == (batch, num_classes), out.shape
    assert out.dtype == jnp.float32
    print("KERNEL_OK")
</pallas_src>

<mosaic_0001>
module attributes {stable_mosaic.version = 11 : i64} {
  func.func @conv_bn_relu_pool_kernel(%arg0: i32, %arg1: memref<1x4x27x1764xbf16, #tpu.memory_space<vmem>>, %arg2: memref<8x27xbf16, #tpu.memory_space<vmem>>, %arg3: memref<8x2xf32, #tpu.memory_space<vmem>>, %arg4: memref<1x8x1764xbf16, #tpu.memory_space<vmem>>) attributes {dimension_semantics = [#tpu.dimension_semantics<parallel>], iteration_bounds = array<i64: 2>, scalar_prefetch = 0 : i64, scratch_operands = 0 : i64, tpu.core_type = #tpu.core_type<tc>, window_params = [{transform_indices = @transform_0, window_bounds = array<i64: 1, 4, 27, 1764>}, {pipeline_mode = #tpu.pipeline_mode<synchronous>, transform_indices = @transform_1, window_bounds = array<i64: 8, 27>}, {pipeline_mode = #tpu.pipeline_mode<synchronous>, transform_indices = @transform_2, window_bounds = array<i64: 8, 2>}, {transform_indices = @transform_3, window_bounds = array<i64: 1, 8, 1764>}]} {
    %c0 = arith.constant 0 : index
    %c0_0 = arith.constant 0 : index
    %0 = vector.load %arg3[%c0, %c0_0] : memref<8x2xf32, #tpu.memory_space<vmem>>, vector<8x1xf32>
    %c0_1 = arith.constant 0 : index
    %c1 = arith.constant 1 : index
    %1 = vector.load %arg3[%c0_1, %c1] : memref<8x2xf32, #tpu.memory_space<vmem>>, vector<8x1xf32>
    %c0_2 = arith.constant 0 : index
    %c0_3 = arith.constant 0 : index
    %2 = vector.load %arg2[%c0_2, %c0_3] : memref<8x27xbf16, #tpu.memory_space<vmem>>, vector<8x27xbf16>
    %c0_4 = arith.constant 0 : index
    %c0_5 = arith.constant 0 : index
    %c0_6 = arith.constant 0 : index
    %c0_7 = arith.constant 0 : index
    %3 = vector.load %arg1[%c0_4, %c0_5, %c0_6, %c0_7] : memref<1x4x27x1764xbf16, #tpu.memory_space<vmem>>, vector<1x1x27x1764xbf16>
    %4 = vector.shape_cast %3 : vector<1x1x27x1764xbf16> to vector<27x1764xbf16>
    %cst = arith.constant dense<0.000000e+00> : vector<8x1764xf32>
    %5 = tpu.matmul %2, %4, %cst {dimension_numbers = #tpu.dot_dimension_numbers<[1], [0], [0], [1], [0, 0, 1, 1], [], []>} : vector<8x27xbf16>, vector<27x1764xbf16>, vector<8x1764xf32> -> vector<8x1764xf32>
    %6 = vector.broadcast %0 : vector<8x1xf32> to vector<8x1764xf32>
    %7 = arith.mulf %5, %6 : vector<8x1764xf32>
    %8 = vector.broadcast %1 : vector<8x1xf32> to vector<8x1764xf32>
    %9 = arith.addf %7, %8 : vector<8x1764xf32>
    %c0_8 = arith.constant 0 : index
    %c1_9 = arith.constant 1 : index
    %c0_10 = arith.constant 0 : index
    %c0_11 = arith.constant 0 : index
    %10 = vector.load %arg1[%c0_8, %c1_9, %c0_10, %c0_11] : memref<1x4x27x1764xbf16, #tpu.memory_space<vmem>>, vector<1x1x27x1764xbf16>
    %11 = vector.shape_cast %10 : vector<1x1x27x1764xbf16> to vector<27x1764xbf16>
    %cst_12 = arith.constant dense<0.000000e+00> : vector<8x1764xf32>
    %12 = tpu.matmul %2, %11, %cst_12 {dimension_numbers = #tpu.dot_dimension_numbers<[1], [0], [0], [1], [0, 0, 1, 1], [], []>} : vector<8x27xbf16>, vector<27x1764xbf16>, vector<8x1764xf32> -> vector<8x1764xf32>
    %13 = vector.broadcast %0 : vector<8x1xf32> to vector<8x1764xf32>
    %14 = arith.mulf %12, %13 : vector<8x1764xf32>
    %15 = vector.broadcast %1 : vector<8x1xf32> to vector<8x1764xf32>
    %16 = arith.addf %14, %15 : vector<8x1764xf32>
    %17 = arith.maximumf %9, %16 : vector<8x1764xf32>
    %c0_13 = arith.constant 0 : index
    %c2 = arith.constant 2 : index
    %c0_14 = arith.constant 0 : index
    %c0_15 = arith.constant 0 : index
    %18 = vector.load %arg1[%c0_13, %c2, %c0_14, %c0_15] : memref<1x4x27x1764xbf16, #tpu.memory_space<vmem>>, vector<1x1x27x1764xbf16>
    %19 = vector.shape_cast %18 : vector<1x1x27x1764xbf16> to vector<27x1764xbf16>
    %cst_16 = arith.constant dense<0.000000e+00> : vector<8x1764xf32>
    %20 = tpu.matmul %2, %19, %cst_16 {dimension_numbers = #tpu.dot_dimension_numbers<[1], [0], [0], [1], [0, 0, 1, 1], [], []>} : vector<8x27xbf16>, vector<27x1764xbf16>, vector<8x1764xf32> -> vector<8x1764xf32>
    %21 = vector.broadcast %0 : vector<8x1xf32> to vector<8x1764xf32>
    %22 = arith.mulf %20, %21 : vector<8x1764xf32>
    %23 = vector.broadcast %1 : vector<8x1xf32> to vector<8x1764xf32>
    %24 = arith.addf %22, %23 : vector<8x1764xf32>
    %25 = arith.maximumf %17, %24 : vector<8x1764xf32>
    %c0_17 = arith.constant 0 : index
    %c3 = arith.constant 3 : index
    %c0_18 = arith.constant 0 : index
    %c0_19 = arith.constant 0 : index
    %26 = vector.load %arg1[%c0_17, %c3, %c0_18, %c0_19] : memref<1x4x27x1764xbf16, #tpu.memory_space<vmem>>, vector<1x1x27x1764xbf16>
    %27 = vector.shape_cast %26 : vector<1x1x27x1764xbf16> to vector<27x1764xbf16>
    %cst_20 = arith.constant dense<0.000000e+00> : vector<8x1764xf32>
    %28 = tpu.matmul %2, %27, %cst_20 {dimension_numbers = #tpu.dot_dimension_numbers<[1], [0], [0], [1], [0, 0, 1, 1], [], []>} : vector<8x27xbf16>, vector<27x1764xbf16>, vector<8x1764xf32> -> vector<8x1764xf32>
    %29 = vector.broadcast %0 : vector<8x1xf32> to vector<8x1764xf32>
    %30 = arith.mulf %28, %29 : vector<8x1764xf32>
    %31 = vector.broadcast %1 : vector<8x1xf32> to vector<8x1764xf32>
    %32 = arith.addf %30, %31 : vector<8x1764xf32>
    %33 = arith.maximumf %25, %32 : vector<8x1764xf32>
    %cst_21 = arith.constant 0.000000e+00 : f32
    %34 = vector.broadcast %cst_21 : f32 to vector<8x1764xf32>
    %35 = arith.maximumf %33, %34 : vector<8x1764xf32>
    %36 = arith.truncf %35 : vector<8x1764xf32> to vector<8x1764xbf16>
    %c0_22 = arith.constant 0 : index
    %c0_23 = arith.constant 0 : index
    %c0_24 = arith.constant 0 : index
    %37 = vector.load %arg4[%c0_22, %c0_23, %c0_24] : memref<1x8x1764xbf16, #tpu.memory_space<vmem>>, vector<1x8x1764xbf16>
    %38 = vector.shape_cast %37 : vector<1x8x1764xbf16> to vector<8x1764xbf16>
    %39 = vector.shape_cast %36 : vector<8x1764xbf16> to vector<1x8x1764xbf16>
    tpu.vector_store %arg4[%c0_22, %c0_23, %c0_24], %39 {strides = array<i32>} : memref<1x8x1764xbf16, #tpu.memory_space<vmem>>, vector<1x8x1764xbf16>,
    return
  }
  func.func @transform_0(%arg0: i32) -> (i32, i32, i32, i32) {
    %c0_i32 = arith.constant 0 : i32
    %c0_i32_0 = arith.constant 0 : i32
    %c0_i32_1 = arith.constant 0 : i32
    %c0_i32_2 = arith.constant 0 : i32
    return %arg0, %c0_i32, %c0_i32_0, %c0_i32_1 : i32, i32, i32, i32
  }
  func.func @transform_1(%arg0: i32) -> (i32, i32) {
    %c0_i32 = arith.constant 0 : i32
    %c0_i32_0 = arith.constant 0 : i32
    %c0_i32_1 = arith.constant 0 : i32
    return %c0_i32, %c0_i32_0 : i32, i32
  }
  func.func @transform_2(%arg0: i32) -> (i32, i32) {
    %c0_i32 = arith.constant 0 : i32
    %c0_i32_0 = arith.constant 0 : i32
    %c0_i32_1 = arith.constant 0 : i32
    return %c0_i32, %c0_i32_0 : i32, i32
  }
  func.func @transform_3(%arg0: i32) -> (i32, i32, i32) {
    %c0_i32 = arith.constant 0 : i32
    %c0_i32_0 = arith.constant 0 : i32
    %c0_i32_1 = arith.constant 0 : i32
    return %arg0, %c0_i32, %c0_i32_0 : i32, i32, i32
  }
}

module attributes {stable_mosaic.version = 11 : i64} {
  func.func @conv_bn_relu_pool_kernel(%arg0: i32, %arg1: memref<1x4x72x441xbf16, #tpu.memory_space<vmem>>, %arg2: memref<16x72xbf16, #tpu.memory_space<vmem>>, %arg3: memref<16x2xf32, #tpu.memory_space<vmem>>, %arg4: memref<1x16x441xbf16, #tpu.memory_space<vmem>>) attributes {dimension_semantics = [#tpu.dimension_semantics<parallel>], iteration_bounds = array<i64: 2>, scalar_prefetch = 0 : i64, scratch_operands = 0 : i64, tpu.core_type = #tpu.core_type<tc>, window_params = [{transform_indices = @transform_0, window_bounds = array<i64: 1, 4, 72, 441>}, {pipeline_mode = #tpu.pipeline_mode<synchronous>, transform_indices = @transform_1, window_bounds = array<i64: 16, 72>}, {pipeline_mode = #tpu.pipeline_mode<synchronous>, transform_indices = @transform_2, window_bounds = array<i64: 16, 2>}, {transform_indices = @transform_3, window_bounds = array<i64: 1, 16, 441>}]} {
    %c0 = arith.constant 0 : index
    %c0_0 = arith.constant 0 : index
    %0 = vector.load %arg3[%c0, %c0_0] : memref<16x2xf32, #tpu.memory_space<vmem>>, vector<16x1xf32>
    %c0_1 = arith.constant 0 : index
    %c1 = arith.constant 1 : index
    %1 = vector.load %arg3[%c0_1, %c1] : memref<16x2xf32, #tpu.memory_space<vmem>>, vector<16x1xf32>
    %c0_2 = arith.constant 0 : index
    %c0_3 = arith.constant 0 : index
    %2 = vector.load %arg2[%c0_2, %c0_3] : memref<16x72xbf16, #tpu.memory_space<vmem>>, vector<16x72xbf16>
    %c0_4 = arith.constant 0 : index
    %c0_5 = arith.constant 0 : index
    %c0_6 = arith.constant 0 : index
    %c0_7 = arith.constant 0 : index
    %3 = vector.load %arg1[%c0_4, %c0_5, %c0_6, %c0_7] : memref<1x4x72x441xbf16, #tpu.memory_space<vmem>>, vector<1x1x72x441xbf16>
    %4 = vector.shape_cast %3 : vector<1x1x72x441xbf16> to vector<72x441xbf16>
    %cst = arith.constant dense<0.000000e+00> : vector<16x441xf32>
    %5 = tpu.matmul %2, %4, %cst {dimension_numbers = #tpu.dot_dimension_numbers<[1], [0], [0], [1], [0, 0, 1, 1], [], []>} : vector<16x72xbf16>, vector<72x441xbf16>, vector<16x441xf32> -> vector<16x441xf32>
    %6 = vector.broadcast %0 : vector<16x1xf32> to vector<16x441xf32>
    %7 = arith.mulf %5, %6 : vector<16x441xf32>
    %8 = vector.broadcast %1 : vector<16x1xf32> to vector<16x441xf32>
    %9 = arith.addf %7, %8 : vector<16x441xf32>
    %c0_8 = arith.constant 0 : index
    %c1_9 = arith.constant 1 : index
    %c0_10 = arith.constant 0 : index
    %c0_11 = arith.constant 0 : index
    %10 = vector.load %arg1[%c0_8, %c1_9, %c0_10, %c0_11] : memref<1x4x72x441xbf16, #tpu.memory_space<vmem>>, vector<1x1x72x441xbf16>
    %11 = vector.shape_cast %10 : vector<1x1x72x441xbf16> to vector<72x441xbf16>
    %cst_12 = arith.constant dense<0.000000e+00> : vector<16x441xf32>
    %12 = tpu.matmul %2, %11, %cst_12 {dimension_numbers = #tpu.dot_dimension_numbers<[1], [0], [0], [1], [0, 0, 1, 1], [], []>} : vector<16x72xbf16>, vector<72x441xbf16>, vector<16x441xf32> -> vector<16x441xf32>
    %13 = vector.broadcast %0 : vector<16x1xf32> to vector<16x441xf32>
    %14 = arith.mulf %12, %13 : vector<16x441xf32>
    %15 = vector.broadcast %1 : vector<16x1xf32> to vector<16x441xf32>
    %16 = arith.addf %14, %15 : vector<16x441xf32>
    %17 = arith.maximumf %9, %16 : vector<16x441xf32>
    %c0_13 = arith.constant 0 : index
    %c2 = arith.constant 2 : index
    %c0_14 = arith.constant 0 : index
    %c0_15 = arith.constant 0 : index
    %18 = vector.load %arg1[%c0_13, %c2, %c0_14, %c0_15] : memref<1x4x72x441xbf16, #tpu.memory_space<vmem>>, vector<1x1x72x441xbf16>
    %19 = vector.shape_cast %18 : vector<1x1x72x441xbf16> to vector<72x441xbf16>
    %cst_16 = arith.constant dense<0.000000e+00> : vector<16x441xf32>
    %20 = tpu.matmul %2, %19, %cst_16 {dimension_numbers = #tpu.dot_dimension_numbers<[1], [0], [0], [1], [0, 0, 1, 1], [], []>} : vector<16x72xbf16>, vector<72x441xbf16>, vector<16x441xf32> -> vector<16x441xf32>
    %21 = vector.broadcast %0 : vector<16x1xf32> to vector<16x441xf32>
    %22 = arith.mulf %20, %21 : vector<16x441xf32>
    %23 = vector.broadcast %1 : vector<16x1xf32> to vector<16x441xf32>
    %24 = arith.addf %22, %23 : vector<16x441xf32>
    %25 = arith.maximumf %17, %24 : vector<16x441xf32>
    %c0_17 = arith.constant 0 : index
    %c3 = arith.constant 3 : index
    %c0_18 = arith.constant 0 : index
    %c0_19 = arith.constant 0 : index
    %26 = vector.load %arg1[%c0_17, %c3, %c0_18, %c0_19] : memref<1x4x72x441xbf16, #tpu.memory_space<vmem>>, vector<1x1x72x441xbf16>
    %27 = vector.shape_cast %26 : vector<1x1x72x441xbf16> to vector<72x441xbf16>
    %cst_20 = arith.constant dense<0.000000e+00> : vector<16x441xf32>
    %28 = tpu.matmul %2, %27, %cst_20 {dimension_numbers = #tpu.dot_dimension_numbers<[1], [0], [0], [1], [0, 0, 1, 1], [], []>} : vector<16x72xbf16>, vector<72x441xbf16>, vector<16x441xf32> -> vector<16x441xf32>
    %29 = vector.broadcast %0 : vector<16x1xf32> to vector<16x441xf32>
    %30 = arith.mulf %28, %29 : vector<16x441xf32>
    %31 = vector.broadcast %1 : vector<16x1xf32> to vector<16x441xf32>
    %32 = arith.addf %30, %31 : vector<16x441xf32>
    %33 = arith.maximumf %25, %32 : vector<16x441xf32>
    %cst_21 = arith.constant 0.000000e+00 : f32
    %34 = vector.broadcast %cst_21 : f32 to vector<16x441xf32>
    %35 = arith.maximumf %33, %34 : vector<16x441xf32>
    %36 = arith.truncf %35 : vector<16x441xf32> to vector<16x441xbf16>
    %c0_22 = arith.constant 0 : index
    %c0_23 = arith.constant 0 : index
    %c0_24 = arith.constant 0 : index
    %37 = vector.load %arg4[%c0_22, %c0_23, %c0_24] : memref<1x16x441xbf16, #tpu.memory_space<vmem>>, vector<1x16x441xbf16>
    %38 = vector.shape_cast %37 : vector<1x16x441xbf16> to vector<16x441xbf16>
    %39 = vector.shape_cast %36 : vector<16x441xbf16> to vector<1x16x441xbf16>
    tpu.vector_store %arg4[%c0_22, %c0_23, %c0_24], %39 {strides = array<i32>} : memref<1x16x441xbf16, #tpu.memory_space<vmem>>, vector<1x16x441xbf16>,
    return
  }
  func.func @transform_0(%arg0: i32) -> (i32, i32, i32, i32) {
    %c0_i32 = arith.constant 0 : i32
    %c0_i32_0 = arith.constant 0 : i32
    %c0_i32_1 = arith.constant 0 : i32
    %c0_i32_2 = arith.constant 0 : i32
    return %arg0, %c0_i32, %c0_i32_0, %c0_i32_1 : i32, i32, i32, i32
  }
  func.func @transform_1(%arg0: i32) -> (i32, i32) {
    %c0_i32 = arith.constant 0 : i32
    %c0_i32_0 = arith.constant 0 : i32
    %c0_i32_1 = arith.constant 0 : i32
    return %c0_i32, %c0_i32_0 : i32, i32
  }
  func.func @transform_2(%arg0: i32) -> (i32, i32) {
    %c0_i32 = arith.constant 0 : i32
    %c0_i32_0 = arith.constant 0 : i32
    %c0_i32_1 = arith.constant 0 : i32
    return %c0_i32, %c0_i32_0 : i32, i32
  }
  func.func @transform_3(%arg0: i32) -> (i32, i32, i32) {
    %c0_i32 = arith.constant 0 : i32
    %c0_i32_0 = arith.constant 0 : i32
    %c0_i32_1 = arith.constant 0 : i32
    return %arg0, %c0_i32, %c0_i32_0 : i32, i32, i32
  }
}

module attributes {stable_mosaic.version = 11 : i64} {
  func.func @mlp_head_kernel(%arg0: memref<2x7056xbf16, #tpu.memory_space<vmem>>, %arg1: memref<7056x32xbf16, #tpu.memory_space<vmem>>, %arg2: memref<1x32xf32, #tpu.memory_space<vmem>>, %arg3: memref<32x10xbf16, #tpu.memory_space<vmem>>, %arg4: memref<1x10xf32, #tpu.memory_space<vmem>>, %arg5: memref<2x10xf32, #tpu.memory_space<vmem>>) attributes {dimension_semantics = [], scalar_prefetch = 0 : i64, scratch_operands = 0 : i64, tpu.core_type = #tpu.core_type<tc>} {
    %c0 = arith.constant 0 : index
    %c0_0 = arith.constant 0 : index
    %0 = vector.load %arg0[%c0, %c0_0] : memref<2x7056xbf16, #tpu.memory_space<vmem>>, vector<2x7056xbf16>
    %c0_1 = arith.constant 0 : index
    %c0_2 = arith.constant 0 : index
    %1 = vector.load %arg1[%c0_1, %c0_2] : memref<7056x32xbf16, #tpu.memory_space<vmem>>, vector<7056x32xbf16>
    %cst = arith.constant dense<0.000000e+00> : vector<2x32xf32>
    %2 = tpu.matmul %0, %1, %cst {dimension_numbers = #tpu.dot_dimension_numbers<[1], [0], [0], [1], [0, 0, 1, 1], [], []>} : vector<2x7056xbf16>, vector<7056x32xbf16>, vector<2x32xf32> -> vector<2x32xf32>
    %c0_3 = arith.constant 0 : index
    %c0_4 = arith.constant 0 : index
    %3 = vector.load %arg2[%c0_3, %c0_4] : memref<1x32xf32, #tpu.memory_space<vmem>>, vector<1x32xf32>
    %4 = vector.broadcast %3 : vector<1x32xf32> to vector<2x32xf32>
    %5 = arith.addf %2, %4 : vector<2x32xf32>
    %cst_5 = arith.constant 0.000000e+00 : f32
    %6 = vector.broadcast %cst_5 : f32 to vector<2x32xf32>
    %7 = arith.maximumf %5, %6 : vector<2x32xf32>
    %8 = arith.truncf %7 : vector<2x32xf32> to vector<2x32xbf16>
    %c0_6 = arith.constant 0 : index
    %c0_7 = arith.constant 0 : index
    %9 = vector.load %arg3[%c0_6, %c0_7] : memref<32x10xbf16, #tpu.memory_space<vmem>>, vector<32x10xbf16>
    %cst_8 = arith.constant dense<0.000000e+00> : vector<2x10xf32>
    %10 = tpu.matmul %8, %9, %cst_8 {dimension_numbers = #tpu.dot_dimension_numbers<[1], [0], [0], [1], [0, 0, 1, 1], [], []>} : vector<2x32xbf16>, vector<32x10xbf16>, vector<2x10xf32> -> vector<2x10xf32>
    %c0_9 = arith.constant 0 : index
    %c0_10 = arith.constant 0 : index
    %11 = vector.load %arg4[%c0_9, %c0_10] : memref<1x10xf32, #tpu.memory_space<vmem>>, vector<1x10xf32>
    %12 = vector.broadcast %11 : vector<1x10xf32> to vector<2x10xf32>
    %13 = arith.addf %10, %12 : vector<2x10xf32>
    %c0_11 = arith.constant 0 : index
    %c0_12 = arith.constant 0 : index
    %14 = vector.load %arg5[%c0_11, %c0_12] : memref<2x10xf32, #tpu.memory_space<vmem>>, vector<2x10xf32>
    tpu.vector_store %arg5[%c0_11, %c0_12], %13 {strides = array<i32>} : memref<2x10xf32, #tpu.memory_space<vmem>>, vector<2x10xf32>,
    return
  }
}

</mosaic_0001>

<llo_original>
// kernel: forward.3
$region0: #{forward.3}
  #allocation0 [shape = 'u32[]', space=smem, size = 0x4, offset = 0x4, fixed_abs, tag = 'smem constant byte address 0x4 - core index']
  #allocation1 [shape = 'u32[144,128]{1,0:T(1,128)}', space=vmem, size = 0x12000, scoped, tag = 'internal scratch']
  %s0 = inlined_call_operand.vmem [shape: bf16[2,4,27,1764], index: 0, kind: input, shape index: {}]
  %s1 = inlined_call_operand.vmem [shape: bf16[8,27], index: 1, kind: input, shape index: {}]
  %s2 = inlined_call_operand.vmem [shape: f32[8,2], index: 2, kind: input, shape index: {}]
  %s3 = inlined_call_operand.vmem [shape: bf16[2,8,1764], index: 3, kind: output, shape index: {}]
  %s4 = sld [smem:[#allocation0]]
  $region45: #{forward.3} parent=0
    _
  %s6 = ssub.s32 1, %s4
  %s7 = scalar_select 0, %s6, %s4
  loop: start=0, step=1, limit=4
  $region2: #{forward.3} parent=0 // loop_pre_header
    _
  $region3: #{forward.3} parent=0 // loop_header
    %s9 = sphi 0, %s13
    %p10 = scmp.ge.s32.totalorder %s9, 4
    %s19 = sphi 0, %s21
    %s22 = sphi 0, %s19
    %s23 = sphi 0, %s22
    %s39 = sphi 0, %s23
    %s43 = sphi 0, %s43
    %s45 = sphi 0, %s43
    %s46 = sphi 0, %s45
    %s60 = sphi 0, %s46
    %s64 = sphi 0, %s64
    %s66 = sphi 0, %s64
    %s67 = sphi 0, %s66
    %s81 = sphi 0, %s67
    %s87 = sphi 0, %s89
    %s90 = sphi 0, %s87
    %s91 = sphi 0, %s90
    %s107 = sphi 0, %s91
  $region4: #{forward.3} parent=0 // loop_header_branch
    %12 = sbr.rel (%p10) target = $region8
  $region5: #{forward.3} parent=0 // loop_body
    %s14 = ssub.s32 %s9, 1
    %s15 = ssub.s32 %s9, 2
    %s16 = sadd.s32 %s9, 1
    %s17 = ssub.s32 %s9, %s16
    %p18 = scmp.eq.s32.totalorder %s17, 0
    %s20 = sadd.s32 %s19, 1
    %s21 = scalar_select %p18, %s19, %s20
    %p24 = pneg %p18
    %p25 = scmp.eq.s32.totalorder %s9, 1
    %p26 = por %p24, %p25
    %p27 = scmp.ne.s32.totalorder %s19, %s22
    %p28 = scmp.eq.s32.totalorder %s9, 0
    %p29 = por %p27, %p28
    %p30 = scmp.ne.s32.totalorder %s19, %s22
    %p31 = scmp.eq.s32.totalorder %s14, 1
    %p32 = por %p30, %p31
    %p33 = scmp.ne.s32.totalorder %s22, %s23
    %p34 = scmp.eq.s32.totalorder %s14, 0
    %p35 = por %p33, %p34
    %p36 = scmp.ne.s32.totalorder %s22, %s23
    %p37 = scmp.eq.s32.totalorder %s15, 1
    %p38 = por %p36, %p37
    %p40 = scmp.ne.s32.totalorder %s23, %s39
    %p41 = scmp.eq.s32.totalorder %s15, 0
    %p42 = por %p40, %p41
    %s44 = sadd.s32 %s43, 1
    %p47 = scmp.eq.s32.totalorder %s9, 1
    %p48 = scmp.ne.s32.totalorder %s43, %s45
    %p49 = scmp.eq.s32.totalorder %s9, 0
    %p50 = por %p48, %p49
    %p51 = scmp.ne.s32.totalorder %s43, %s45
    %p52 = scmp.eq.s32.totalorder %s14, 1
    %p53 = por %p51, %p52
    %p54 = scmp.ne.s32.totalorder %s45, %s46
    %p55 = scmp.eq.s32.totalorder %s14, 0
    %p56 = por %p54, %p55
    %p57 = scmp.ne.s32.totalorder %s45, %s46
    %p58 = scmp.eq.s32.totalorder %s15, 1
    %p59 = por %p57, %p58
    %p61 = scmp.ne.s32.totalorder %s46, %s60
    %p62 = scmp.eq.s32.totalorder %s15, 0
    %p63 = por %p61, %p62
    %s65 = sadd.s32 %s64, 1
    %p68 = scmp.eq.s32.totalorder %s9, 1
    %p69 = scmp.ne.s32.totalorder %s64, %s66
    %p70 = scmp.eq.s32.totalorder %s9, 0
    %p71 = por %p69, %p70
    %p72 = scmp.ne.s32.totalorder %s64, %s66
    %p73 = scmp.eq.s32.totalorder %s14, 1
    %p74 = por %p72, %p73
    %p75 = scmp.ne.s32.totalorder %s66, %s67
    %p76 = scmp.eq.s32.totalorder %s14, 0
    %p77 = por %p75, %p76
    %p78 = scmp.ne.s32.totalorder %s66, %s67
    %p79 = scmp.eq.s32.totalorder %s15, 1
    %p80 = por %p78, %p79
    %p82 = scmp.ne.s32.totalorder %s67, %s81
    %p83 = scmp.eq.s32.totalorder %s15, 0
    %p84 = por %p82, %p83
    %s85 = ssub.s32 %s9, %s16
    %p86 = scmp.eq.s32.totalorder %s85, 0
    %s88 = sadd.s32 %s87, 1
    %s89 = scalar_select %p86, %s87, %s88
    %p92 = pneg %p86
    %p93 = scmp.eq.s32.totalorder %s9, 1
    %p94 = por %p92, %p93
    %p95 = scmp.ne.s32.totalorder %s87, %s90
    %p96 = scmp.eq.s32.totalorder %s9, 0
    %p97 = por %p95, %p96
    %p98 = scmp.ne.s32.totalorder %s87, %s90
    %p99 = scmp.eq.s32.totalorder %s14, 1
    %p100 = por %p98, %p99
    %p101 = scmp.ne.s32.totalorder %s90, %s91
    %p102 = scmp.eq.s32.totalorder %s14, 0
    %p103 = por %p101, %p102
    %p104 = scmp.ne.s32.totalorder %s90, %s91
    %p105 = scmp.eq.s32.totalorder %s15, 1
    %p106 = por %p104, %p105
    %p108 = scmp.ne.s32.totalorder %s91, %s107
    %p109 = scmp.eq.s32.totalorder %s15, 0
    %p110 = por %p108, %p109
    %p111 = scmp.le.s32.totalorder 1, %s9
    %p112 = scmp.lt.s32.totalorder %s9, 3
    %p113 = pnand %p111, %p112
    %p114 = pneg %p113
    // Predicated region
    $region9: #{forward.3} parent=5 // pred_check
      _
    $region10: #{forward.3} parent=5 // pred_check_branch
      %116 = sbr.rel (%p113) target = $region12
    $region11: #{forward.3} parent=5 // pred_region
      %s117 = ssub.s32 %s9, 1
      // Predicated region
      $region13: #{forward.3} parent=11 // pred_check
        %p118 = pneg %p56
      $region14: #{forward.3} parent=11 // pred_check_branch
        %120 = sbr.rel (%p118) target = $region16
      $region15: #{forward.3} parent=11 // pred_region
        _
      $region16: #{forward.3} parent=11 // pred_fallthru
        _
      // Predicated region
      $region17: #{forward.3} parent=11 // pred_check
        %p121 = pneg %p77
      $region18: #{forward.3} parent=11 // pred_check_branch
        %123 = sbr.rel (%p121) target = $region20
      $region19: #{forward.3} parent=11 // pred_region
        _
      $region20: #{forward.3} parent=11 // pred_fallthru
        _
    $region12: #{forward.3} parent=5 // pred_fallthru
      _
    %p124 = scmp.lt.s32.totalorder %s9, 2
    // Predicated region
    $region21: #{forward.3} parent=5 // pred_check
      %p125 = pneg %p124
    $region22: #{forward.3} parent=5 // pred_check_branch
      %127 = sbr.rel (%p125) target = $region24
    $region23: #{forward.3} parent=5 // pred_region
      // Predicated region
      $region25: #{forward.3} parent=23 // pred_check
        %p128 = pneg %p29
      $region26: #{forward.3} parent=23 // pred_check_branch
        %130 = sbr.rel (%p128) target = $region28
      $region27: #{forward.3} parent=23 // pred_region
        %p131 = scmp.lt.s32.totalorder %s9, 1
        %s132 = scalar_select %p131, %s9, 1
        %s133 = smul.addr %s132, 224
        %s134 = smul.addr %s133, 4
        %s135 = scalar_lea.vmem %s0, %s134
      $region28: #{forward.3} parent=23 // pred_fallthru
        _
    $region24: #{forward.3} parent=5 // pred_fallthru
      _
    %p136 = scmp.le.s32.totalorder 1, %s9
    %p137 = scmp.lt.s32.totalorder %s9, 3
    %p138 = pnand %p136, %p137
    %p139 = pneg %p138
    // Predicated region
    $region29: #{forward.3} parent=5 // pred_check
      _
    $region30: #{forward.3} parent=5 // pred_check_branch
      %141 = sbr.rel (%p138) target = $region32
    $region31: #{forward.3} parent=5 // pred_region
      %s142 = ssub.s32 %s9, 1
      %p143 = scmp.lt.s32.totalorder %s14, 1
      %s144 = scalar_select %p143, %s14, 1
      %s145 = smul.addr %s144, 224
      %s146 = smul.addr %s145, 4
      %s147 = scalar_lea.vmem %s0, %s146
      %p148 = pneg %p35
      %p149 = pneg %p32
      %p150 = pneg %p56
      %p151 = pneg %p53
      %p152 = pneg %p77
      %p153 = pneg %p74
      %p154 = pneg %p103
      %p155 = pneg %p100
      %p156 = scmp.lt.s32.totalorder %s14, 1
      %s157 = scalar_select %p156, %s14, 1
      %s158 = smul.addr %s157, 14
      %s159 = smul.addr %s158, 4
      %s160 = scalar_lea.vmem %s3, %s159
      %p161 = scmp.lt.s32.totalorder %s14, 1
      %s162 = scalar_select %p161, %s14, 1
      %s163 = smul.addr %s162, 224
      %s164 = smul.addr %s163, 4
      %s165 = scalar_lea.vmem %s0, %s164
      %p166 = scmp.lt.s32.totalorder %s14, 1
      %s167 = scalar_select %p166, %s14, 1
      %s168 = smul.addr %s167, 14
      %s169 = smul.addr %s168, 4
      %s170 = scalar_lea.vmem %s3, %s169
      %v172 = vld [vmem:[%s2] sm:$0xff]
      %v173 = vld [vmem:[%s1] sm:$0xf]
      %v174 = vld [vmem:[%s165] sm:$0xff]
      %v175 = vld [vmem:[%s165 + $0x8] sm:$0xff]
      %v176 = vld [vmem:[%s165 + $0x10] sm:$0xff]
      %v177 = vld [vmem:[%s165 + $0x18] sm:$0xff]
      %v178 = vld [vmem:[%s165 + $0x20] sm:$0xff]
      %v179 = vld [vmem:[%s165 + $0x28] sm:$0xff]
      %v180 = vld [vmem:[%s165 + $0x30] sm:$0xff]
      %v181 = vld [vmem:[%s165 + $0x38] sm:$0xff]
      %v182 = vld [vmem:[%s165 + $0x40] sm:$0xff]
      %v183 = vld [vmem:[%s165 + $0x48] sm:$0xff]
      %v184 = vld [vmem:[%s165 + $0x50] sm:$0xff]
      %v185 = vld [vmem:[%s165 + $0x58] sm:$0xff]
      %v186 = vld [vmem:[%s165 + $0x60] sm:$0xff]
      %v187 = vld [vmem:[%s165 + $0x68] sm:$0xff]
      %v188 = vld [vmem:[%s165 + $0x70] sm:$0xff]
      %v189 = vld [vmem:[%s165 + $0x78] sm:$0xff]
      %v190 = vld [vmem:[%s165 + $0x80] sm:$0xff]
      %v191 = vld [vmem:[%s165 + $0x88] sm:$0xff]
      %v192 = vld [vmem:[%s165 + $0x90] sm:$0xff]
      %v193 = vld [vmem:[%s165 + $0x98] sm:$0xff]
      %v194 = vld [vmem:[%s165 + $0xa0] sm:$0xff]
      %v195 = vld [vmem:[%s165 + $0xa8] sm:$0x33]
      %v196 = vld [vmem:[%s165 + $0xb0] sm:$0x33]
      %v197 = vld [vmem:[%s165 + $0xb8] sm:$0x33]
      %v198 = vld [vmem:[%s165 + $0xc0] sm:$0x33]
      %v199 = vld [vmem:[%s165 + $0xc8] sm:$0x33]
      %v200 = vld [vmem:[%s165 + $0xd0] sm:$0x33]
      %v201 = vld [vmem:[%s165 + $0xd8] sm:$0x33]
      %v230 = vunpack.c.l.b16 %v174
      %v231 = vunpack.c.h.b16 %v174
      %v232 = vunpack.c.l.b16 %v175
      %v233 = vunpack.c.h.b16 %v175
      %v234 = vunpack.c.l.b16 %v176
      %v235 = vunpack.c.h.b16 %v176
      %v236 = vunpack.c.l.b16 %v177
      %v237 = vunpack.c.h.b16 %v177
      %v238 = vunpack.c.l.b16 %v178
      %v239 = vunpack.c.h.b16 %v178
      %v240 = vunpack.c.l.b16 %v179
      %v241 = vunpack.c.h.b16 %v179
      %v242 = vunpack.c.l.b16 %v180
      %v243 = vunpack.c.h.b16 %v180
      %v244 = vunpack.c.l.b16 %v181
      %v245 = vunpack.c.h.b16 %v181
      %v246 = vunpack.c.l.b16 %v182
      %v247 = vunpack.c.h.b16 %v182
      %v248 = vunpack.c.l.b16 %v183
      %v249 = vunpack.c.h.b16 %v183
      %v250 = vunpack.c.l.b16 %v184
      %v251 = vunpack.c.h.b16 %v184
      %v252 = vunpack.c.l.b16 %v185
      %v253 = vunpack.c.h.b16 %v185
      %v254 = vunpack.c.l.b16 %v186
      %v255 = vunpack.c.h.b16 %v186
      %v256 = vunpack.c.l.b16 %v187
      %v257 = vunpack.c.h.b16 %v187
      %v258 = vunpack.c.l.b16 %v188
      %v259 = vunpack.c.h.b16 %v188
      %v260 = vunpack.c.l.b16 %v189
      %v261 = vunpack.c.h.b16 %v189
      %v262 = vunpack.c.l.b16 %v190
      %v263 = vunpack.c.h.b16 %v190
      %v264 = vunpack.c.l.b16 %v191
      %v265 = vunpack.c.h.b16 %v191
      %v266 = vunpack.c.l.b16 %v192
      %v267 = vunpack.c.h.b16 %v192
      %v268 = vunpack.c.l.b16 %v193
      %v269 = vunpack.c.h.b16 %v193
      %v270 = vunpack.c.l.b16 %v194
      %v271 = vunpack.c.h.b16 %v194
      %v272 = vunpack.c.l.b16 %v195
      %v273 = vunpack.c.h.b16 %v195
      %v274 = vunpack.c.l.b16 %v196
      %v275 = vunpack.c.h.b16 %v196
      %v276 = vunpack.c.l.b16 %v197
      %v277 = vunpack.c.h.b16 %v197
      %v278 = vunpack.c.l.b16 %v198
      %v279 = vunpack.c.h.b16 %v198
      %v280 = vunpack.c.l.b16 %v199
      %v281 = vunpack.c.h.b16 %v199
      %v282 = vunpack.c.l.b16 %v200
      %v283 = vunpack.c.h.b16 %v200
      %v284 = vunpack.c.l.b16 %v201
      %v285 = vunpack.c.h.b16 %v201
      %v286 = vpack.c.b16 %v244, %v230
      %v287 = vpack.c.b16 %v245, %v231
      %v288 = vpack.c.b16 %v246, %v232
      %v289 = vpack.c.b16 %v247, %v233
      %v290 = vpack.c.b16 %v248, %v234
      %v291 = vpack.c.b16 %v249, %v235
      %v292 = vpack.c.b16 %v250, %v236
      %v293 = vpack.c.b16 %v251, %v237
      %v294 = vpack.c.b16 %v252, %v238
      %v295 = vpack.c.b16 %v253, %v239
      %v296 = vpack.c.b16 %v254, %v240
      %v297 = vpack.c.b16 %v255, %v241
      %v298 = vpack.c.b16 %v256, %v242
      %v299 = vpack.c.b16 %v257, %v243
      %v300 = vpack.c.b16 %v272, %v258
      %v301 = vpack.c.b16 %v273, %v259
      %v302 = vpack.c.b16 %v274, %v260
      %v303 = vpack.c.b16 %v275, %v261
      %v304 = vpack.c.b16 %v276, %v262
      %v305 = vpack.c.b16 %v277, %v263
      %v306 = vpack.c.b16 %v278, %v264
      %v307 = vpack.c.b16 %v279, %v265
      %v308 = vpack.c.b16 %v280, %v266
      %v309 = vpack.c.b16 %v281, %v267
      %v310 = vpack.c.b16 %v282, %v268
      %v311 = vpack.c.b16 %v283, %v269
      %v312 = vpack.c.b16 %v284, %v270
      %v313 = vpack.c.b16 %v285, %v271
      %vm328 = vcmask 220160
      %v330 = vsel %vm328, %v173, 0
      %vm332 = vcmask 1044480
      %vm333 = vcmask 1045504
      %v334 = vsel %vm332, 4294967295, 65535
      %v335 = vsel %vm333, %v334, 0
      %v337 = vand.u32 %v300, %v335
      %v340 = vand.u32 %v301, %v335
      %v343 = vand.u32 %v302, %v335
      %v346 = vand.u32 %v303, %v335
      %v349 = vand.u32 %v304, %v335
      %v352 = vand.u32 %v305, %v335
      %v355 = vand.u32 %v306, %v335
      %v358 = vand.u32 %v307, %v335
      %v361 = vand.u32 %v308, %v335
      %v364 = vand.u32 %v309, %v335
      %v367 = vand.u32 %v310, %v335
      %v370 = vand.u32 %v311, %v335
      %v373 = vand.u32 %v312, %v335
      %v376 = vand.u32 %v313, %v335
      %378 = vmatprep.subr.bf16.mxu0 0
      %379 = vmatpush1.bf16.msra.mxu0 0
      %380 = vmatprep.subr.bf16.mxu0 0
      %381 = vmatpush1.bf16.msra.mxu0 0
      %382 = vmatprep.subr.bf16.mxu0 0
      %383 = vmatpush1.bf16.msra.mxu0 0
      %384 = vmatprep.subr.bf16.mxu0 0
      %385 = vmatpush1.bf16.msra.mxu0 0
      %386 = vmatprep.subr.bf16.mxu0 0
      %387 = vmatpush1.bf16.msra.mxu0 0
      %388 = vmatprep.subr.bf16.mxu0 0
      %389 = vmatpush1.bf16.msra.mxu0 0
      %390 = vmatprep.subr.bf16.mxu0 %v340
      %391 = vmatpush1.bf16.msra.mxu0 %v337
      %392 = vmatprep.subr.bf16.mxu0 %v287
      %393 = vmatpush1.bf16.msra.mxu0 %v286
      %394 = vmatprep.subr.bf16.mxu0 0
      %395 = vmatpush2.bf16.msra.mxu0 0
      %396 = vmatprep.subr.bf16.mxu0 0
      %397 = vmatpush2.bf16.msra.mxu0 0
      %398 = vmatprep.subr.bf16.mxu0 0
      %399 = vmatpush2.bf16.msra.mxu0 0
      %400 = vmatprep.subr.bf16.mxu0 0
      %401 = vmatpush2.bf16.msra.mxu0 0
      %402 = vmatprep.subr.bf16.mxu0 0
      %403 = vmatpush2.bf16.msra.mxu0 0
      %404 = vmatprep.subr.bf16.mxu0 0
      %405 = vmatpush2.bf16.msra.mxu0 0
      %406 = vmatprep.subr.bf16.mxu0 0
      %407 = vmatpush2.bf16.msra.mxu0 0
      %408 = vmatprep.subr.bf16.mxu0 0
      %409 = vmatpush2.bf16.msra.mxu0 0
      %410 = vmatprep.mubr.bf16.mxu0 0
      %411 = vmatmul.mubr.bf16.gmra.mxu0 %v330
      %v412 = vpop.f32.mrf.mxu0
      %v413 = vadd.f32 0.0, %v412
      %v414 = vpop.f32.mrf.mxu0
      %v415 = vadd.f32 0.0, %v414
      %v416 = vpop.f32.mrf.mxu0
      %v417 = vpop.f32.mrf.mxu0
      %418 = vdwg.mxu0
      %419 = vmatprep.subr.bf16.mxu0 0
      %420 = vmatpush1.bf16.msra.mxu0 0
      %421 = vmatprep.subr.bf16.mxu0 0
      %422 = vmatpush1.bf16.msra.mxu0 0
      %423 = vmatprep.subr.bf16.mxu0 0
      %424 = vmatpush1.bf16.msra.mxu0 0
      %425 = vmatprep.subr.bf16.mxu0 0
      %426 = vmatpush1.bf16.msra.mxu0 0
      %427 = vmatprep.subr.bf16.mxu0 0
      %428 = vmatpush1.bf16.msra.mxu0 0
      %429 = vmatprep.subr.bf16.mxu0 0
      %430 = vmatpush1.bf16.msra.mxu0 0
      %431 = vmatprep.subr.bf16.mxu0 %v346
      %432 = vmatpush1.bf16.msra.mxu0 %v343
      %433 = vmatprep.subr.bf16.mxu0 %v289
      %434 = vmatpush1.bf16.msra.mxu0 %v288
      %435 = vmatprep.subr.bf16.mxu0 0
      %436 = vmatpush2.bf16.msra.mxu0 0
      %437 = vmatprep.subr.bf16.mxu0 0
      %438 = vmatpush2.bf16.msra.mxu0 0
      %439 = vmatprep.subr.bf16.mxu0 0
      %440 = vmatpush2.bf16.msra.mxu0 0
      %441 = vmatprep.subr.bf16.mxu0 0
      %442 = vmatpush2.bf16.msra.mxu0 0
      %443 = vmatprep.subr.bf16.mxu0 0
      %444 = vmatpush2.bf16.msra.mxu0 0
      %445 = vmatprep.subr.bf16.mxu0 0
      %446 = vmatpush2.bf16.msra.mxu0 0
      %447 = vmatprep.subr.bf16.mxu0 0
      %448 = vmatpush2.bf16.msra.mxu0 0
      %449 = vmatprep.subr.bf16.mxu0 0
      %450 = vmatpush2.bf16.msra.mxu0 0
      %451 = vmatprep.mubr.bf16.mxu0 0
      %452 = vmatmul.mubr.bf16.gmra.mxu0 %v330
      %v453 = vpop.f32.mrf.mxu0
      %v454 = vadd.f32 0.0, %v453
      %v455 = vpop.f32.mrf.mxu0
      %v456 = vadd.f32 0.0, %v455
      %v457 = vpop.f32.mrf.mxu0
      %v458 = vpop.f32.mrf.mxu0
      %459 = vdwg.mxu0
      %460 = vmatprep.subr.bf16.mxu0 0
      %461 = vmatpush1.bf16.msra.mxu0 0
      %462 = vmatprep.subr.bf16.mxu0 0
      %463 = vmatpush1.bf16.msra.mxu0 0
      %464 = vmatprep.subr.bf16.mxu0 0
      %465 = vmatpush1.bf16.msra.mxu0 0
      %466 = vmatprep.subr.bf16.mxu0 0
      %467 = vmatpush1.bf16.msra.mxu0 0
      %468 = vmatprep.subr.bf16.mxu0 0
      %469 = vmatpush1.bf16.msra.mxu0 0
      %470 = vmatprep.subr.bf16.mxu0 0
      %471 = vmatpush1.bf16.msra.mxu0 0
      %472 = vmatprep.subr.bf16.mxu0 %v352
      %473 = vmatpush1.bf16.msra.mxu0 %v349
      %474 = vmatprep.subr.bf16.mxu0 %v291
      %475 = vmatpush1.bf16.msra.mxu0 %v290
      %476 = vmatprep.subr.bf16.mxu0 0
      %477 = vmatpush2.bf16.msra.mxu0 0
      %478 = vmatprep.subr.bf16.mxu0 0
      %479 = vmatpush2.bf16.msra.mxu0 0
      %480 = vmatprep.subr.bf16.mxu0 0
      %481 = vmatpush2.bf16.msra.mxu0 0
      %482 = vmatprep.subr.bf16.mxu0 0
      %483 = vmatpush2.bf16.msra.mxu0 0
      %484 = vmatprep.subr.bf16.mxu0 0
      %485 = vmatpush2.bf16.msra.mxu0 0
      %486 = vmatprep.subr.bf16.mxu0 0
      %487 = vmatpush2.bf16.msra.mxu0 0
      %488 = vmatprep.subr.bf16.mxu0 0
      %489 = vmatpush2.bf16.msra.mxu0 0
      %490 = vmatprep.subr.bf16.mxu0 0
      %491 = vmatpush2.bf16.msra.mxu0 0
      %492 = vmatprep.mubr.bf16.mxu0 0
      %493 = vmatmul.mubr.bf16.gmra.mxu0 %v330
      %v494 = vpop.f32.mrf.mxu0
      %v495 = vadd.f32 0.0, %v494
      %v496 = vpop.f32.mrf.mxu0
      %v497 = vadd.f32 0.0, %v496
      %v498 = vpop.f32.mrf.mxu0
      %v499 = vpop.f32.mrf.mxu0
      %500 = vdwg.mxu0
      %501 = vmatprep.subr.bf16.mxu0 0
      %502 = vmatpush1.bf16.msra.mxu0 0
      %503 = vmatprep.subr.bf16.mxu0 0
      %504 = vmatpush1.bf16.msra.mxu0 0
      %505 = vmatprep.subr.bf16.mxu0 0
      %506 = vmatpush1.bf16.msra.mxu0 0
      %507 = vmatprep.subr.bf16.mxu0 0
      %508 = vmatpush1.bf16.msra.mxu0 0
      %509 = vmatprep.subr.bf16.mxu0 0
      %510 = vmatpush1.bf16.msra.mxu0 0
      %511 = vmatprep.subr.bf16.mxu0 0
      %512 = vmatpush1.bf16.msra.mxu0 0
      %513 = vmatprep.subr.bf16.mxu0 %v358
      %514 = vmatpush1.bf16.msra.mxu0 %v355
      %515 = vmatprep.subr.bf16.mxu0 %v293
      %516 = vmatpush1.bf16.msra.mxu0 %v292
      %517 = vmatprep.subr.bf16.mxu0 0
      %518 = vmatpush2.bf16.msra.mxu0 0
      %519 = vmatprep.subr.bf16.mxu0 0
      %520 = vmatpush2.bf16.msra.mxu0 0
      %521 = vmatprep.subr.bf16.mxu0 0
      %522 = vmatpush2.bf16.msra.mxu0 0
      %523 = vmatprep.subr.bf16.mxu0 0
      %524 = vmatpush2.bf16.msra.mxu0 0
      %525 = vmatprep.subr.bf16.mxu0 0
      %526 = vmatpush2.bf16.msra.mxu0 0
      %527 = vmatprep.subr.bf16.mxu0 0
      %528 = vmatpush2.bf16.msra.mxu0 0
      %529 = vmatprep.subr.bf16.mxu0 0
      %530 = vmatpush2.bf16.msra.mxu0 0
      %531 = vmatprep.subr.bf16.mxu0 0
      %532 = vmatpush2.bf16.msra.mxu0 0
      %533 = vmatprep.mubr.bf16.mxu0 0
      %534 = vmatmul.mubr.bf16.gmra.mxu0 %v330
      %v535 = vpop.f32.mrf.mxu0
      %v536 = vadd.f32 0.0, %v535
      %v537 = vpop.f32.mrf.mxu0
      %v538 = vadd.f32 0.0, %v537
      %v539 = vpop.f32.mrf.mxu0
      %v540 = vpop.f32.mrf.mxu0
      %541 = vdwg.mxu0
      %542 = vmatprep.subr.bf16.mxu0 0
      %543 = vmatpush1.bf16.msra.mxu0 0
      %544 = vmatprep.subr.bf16.mxu0 0
      %545 = vmatpush1.bf16.msra.mxu0 0
      %546 = vmatprep.subr.bf16.mxu0 0
      %547 = vmatpush1.bf16.msra.mxu0 0
      %548 = vmatprep.subr.bf16.mxu0 0
      %549 = vmatpush1.bf16.msra.mxu0 0
      %550 = vmatprep.subr.bf16.mxu0 0
      %551 = vmatpush1.bf16.msra.mxu0 0
      %552 = vmatprep.subr.bf16.mxu0 0
      %553 = vmatpush1.bf16.msra.mxu0 0
      %554 = vmatprep.subr.bf16.mxu0 %v364
      %555 = vmatpush1.bf16.msra.mxu0 %v361
      %556 = vmatprep.subr.bf16.mxu0 %v295
      %557 = vmatpush1.bf16.msra.mxu0 %v294
      %558 = vmatprep.subr.bf16.mxu0 0
      %559 = vmatpush2.bf16.msra.mxu0 0
      %560 = vmatprep.subr.bf16.mxu0 0
      %561 = vmatpush2.bf16.msra.mxu0 0
      %562 = vmatprep.subr.bf16.mxu0 0
      %563 = vmatpush2.bf16.msra.mxu0 0
      %564 = vmatprep.subr.bf16.mxu0 0
      %565 = vmatpush2.bf16.msra.mxu0 0
      %566 = vmatprep.subr.bf16.mxu0 0
      %567 = vmatpush2.bf16.msra.mxu0 0
      %568 = vmatprep.subr.bf16.mxu0 0
      %569 = vmatpush2.bf16.msra.mxu0 0
      %570 = vmatprep.subr.bf16.mxu0 0
      %571 = vmatpush2.bf16.msra.mxu0 0
      %572 = vmatprep.subr.bf16.mxu0 0
      %573 = vmatpush2.bf16.msra.mxu0 0
      %574 = vmatprep.mubr.bf16.mxu0 0
      %575 = vmatmul.mubr.bf16.gmra.mxu0 %v330
      %v576 = vpop.f32.mrf.mxu0
      %v577 = vadd.f32 0.0, %v576
      %v578 = vpop.f32.mrf.mxu0
      %v579 = vadd.f32 0.0, %v578
      %v580 = vpop.f32.mrf.mxu0
      %v581 = vpop.f32.mrf.mxu0
      %582 = vdwg.mxu0
      %583 = vmatprep.subr.bf16.mxu0 0
      %584 = vmatpush1.bf16.msra.mxu0 0
      %585 = vmatprep.subr.bf16.mxu0 0
      %586 = vmatpush1.bf16.msra.mxu0 0
      %587 = vmatprep.subr.bf16.mxu0 0
      %588 = vmatpush1.bf16.msra.mxu0 0
      %589 = vmatprep.subr.bf16.mxu0 0
      %590 = vmatpush1.bf16.msra.mxu0 0
      %591 = vmatprep.subr.bf16.mxu0 0
      %592 = vmatpush1.bf16.msra.mxu0 0
      %593 = vmatprep.subr.bf16.mxu0 0
      %594 = vmatpush1.bf16.msra.mxu0 0
      %595 = vmatprep.subr.bf16.mxu0 %v370
      %596 = vmatpush1.bf16.msra.mxu0 %v367
      %597 = vmatprep.subr.bf16.mxu0 %v297
      %598 = vmatpush1.bf16.msra.mxu0 %v296
      %599 = vmatprep.subr.bf16.mxu0 0
      %600 = vmatpush2.bf16.msra.mxu0 0
      %601 = vmatprep.subr.bf16.mxu0 0
      %602 = vmatpush2.bf16.msra.mxu0 0
      %603 = vmatprep.subr.bf16.mxu0 0
      %604 = vmatpush2.bf16.msra.mxu0 0
      %605 = vmatprep.subr.bf16.mxu0 0
      %606 = vmatpush2.bf16.msra.mxu0 0
      %607 = vmatprep.subr.bf16.mxu0 0
      %608 = vmatpush2.bf16.msra.mxu0 0
      %609 = vmatprep.subr.bf16.mxu0 0
      %610 = vmatpush2.bf16.msra.mxu0 0
      %611 = vmatprep.subr.bf16.mxu0 0
      %612 = vmatpush2.bf16.msra.mxu0 0
      %613 = vmatprep.subr.bf16.mxu0 0
      %614 = vmatpush2.bf16.msra.mxu0 0
      %615 = vmatprep.mubr.bf16.mxu0 0
      %616 = vmatmul.mubr.bf16.gmra.mxu0 %v330
      %v617 = vpop.f32.mrf.mxu0
      %v618 = vadd.f32 0.0, %v617
      %v619 = vpop.f32.mrf.mxu0
      %v620 = vadd.f32 0.0, %v619
      %v621 = vpop.f32.mrf.mxu0
      %v622 = vpop.f32.mrf.mxu0
      %623 = vdwg.mxu0
      %624 = vmatprep.subr.bf16.mxu0 0
      %625 = vmatpush1.bf16.msra.mxu0 0
      %626 = vmatprep.subr.bf16.mxu0 0
      %627 = vmatpush1.bf16.msra.mxu0 0
      %628 = vmatprep.subr.bf16.mxu0 0
      %629 = vmatpush1.bf16.msra.mxu0 0
      %630 = vmatprep.subr.bf16.mxu0 0
      %631 = vmatpush1.bf16.msra.mxu0 0
      %632 = vmatprep.subr.bf16.mxu0 0
      %633 = vmatpush1.bf16.msra.mxu0 0
      %634 = vmatprep.subr.bf16.mxu0 0
      %635 = vmatpush1.bf16.msra.mxu0 0
      %636 = vmatprep.subr.bf16.mxu0 %v376
      %637 = vmatpush1.bf16.msra.mxu0 %v373
      %638 = vmatprep.subr.bf16.mxu0 %v299
      %639 = vmatpush1.bf16.msra.mxu0 %v298
      %640 = vmatprep.subr.bf16.mxu0 0
      %641 = vmatpush2.bf16.msra.mxu0 0
      %642 = vmatprep.subr.bf16.mxu0 0
      %643 = vmatpush2.bf16.msra.mxu0 0
      %644 = vmatprep.subr.bf16.mxu0 0
      %645 = vmatpush2.bf16.msra.mxu0 0
      %646 = vmatprep.subr.bf16.mxu0 0
      %647 = vmatpush2.bf16.msra.mxu0 0
      %648 = vmatprep.subr.bf16.mxu0 0
      %649 = vmatpush2.bf16.msra.mxu0 0
      %650 = vmatprep.subr.bf16.mxu0 0
      %651 = vmatpush2.bf16.msra.mxu0 0
      %652 = vmatprep.subr.bf16.mxu0 0
      %653 = vmatpush2.bf16.msra.mxu0 0
      %654 = vmatprep.subr.bf16.mxu0 0
      %655 = vmatpush2.bf16.msra.mxu0 0
      %656 = vmatprep.mubr.bf16.mxu0 0
      %657 = vmatmul.mubr.bf16.gmra.mxu0 %v330
      %v658 = vpop.f32.mrf.mxu0
      %v659 = vadd.f32 0.0, %v658
      %v660 = vpop.f32.mrf.mxu0
      %v661 = vadd.f32 0.0, %v660
      %v662 = vpop.f32.mrf.mxu0
      %v663 = vpop.f32.mrf.mxu0
      %664 = vdwg.mxu0
      %666 = vset.pattern.permute.xlu0 0
      %667 = vperm.xlu0 %666, %v172
      %v668 = vpop.permute.xlu0 %667
      %v670 = vmul.f32 %v413, %v668
      %v671 = vmul.f32 %v415, %v668
      %v672 = vmul.f32 %v454, %v668
      %v673 = vmul.f32 %v456, %v668
      %v674 = vmul.f32 %v495, %v668
      %v675 = vmul.f32 %v497, %v668
      %v676 = vmul.f32 %v536, %v668
      %v677 = vmul.f32 %v538, %v668
      %v678 = vmul.f32 %v577, %v668
      %v679 = vmul.f32 %v579, %v668
      %v680 = vmul.f32 %v618, %v668
      %v681 = vmul.f32 %v620, %v668
      %v682 = vmul.f32 %v659, %v668
      %v683 = vmul.f32 %v661, %v668
      %684 = vset.pattern.permute.xlu0 1
      %685 = vperm.xlu0 %684, %v172
      %v686 = vpop.permute.xlu0 %685
      %v688 = vadd.f32 %v670, %v686
      %v689 = vadd.f32 %v671, %v686
      %v690 = vadd.f32 %v672, %v686
      %v691 = vadd.f32 %v673, %v686
      %v692 = vadd.f32 %v674, %v686
      %v693 = vadd.f32 %v675, %v686
      %v694 = vadd.f32 %v676, %v686
      %v695 = vadd.f32 %v677, %v686
      %v696 = vadd.f32 %v678, %v686
      %v697 = vadd.f32 %v679, %v686
      %v698 = vadd.f32 %v680, %v686
      %v699 = vadd.f32 %v681, %v686
      %v700 = vadd.f32 %v682, %v686
      %v701 = vadd.f32 %v683, %v686
      %s702 = scalar_lea.vmem %s165, 224
      %v703 = vld [vmem:[%s702] sm:$0xff]
      %v704 = vld [vmem:[%s702 + $0x8] sm:$0xff]
      %v705 = vld [vmem:[%s702 + $0x10] sm:$0xff]
      %v706 = vld [vmem:[%s702 + $0x18] sm:$0xff]
      %v707 = vld [vmem:[%s702 + $0x20] sm:$0xff]
      %v708 = vld [vmem:[%s702 + $0x28] sm:$0xff]
      %v709 = vld [vmem:[%s702 + $0x30] sm:$0xff]
      %v710 = vld [vmem:[%s702 + $0x38] sm:$0xff]
      %v711 = vld [vmem:[%s702 + $0x40] sm:$0xff]
      %v712 = vld [vmem:[%s702 + $0x48] sm:$0xff]
      %v713 = vld [vmem:[%s702 + $0x50] sm:$0xff]
      %v714 = vld [vmem:[%s702 + $0x58] sm:$0xff]
      %v715 = vld [vmem:[%s702 + $0x60] sm:$0xff]
      %v716 = vld [vmem:[%s702 + $0x68] sm:$0xff]
      %v717 = vld [vmem:[%s702 + $0x70] sm:$0xff]
      %v718 = vld [vmem:[%s702 + $0x78] sm:$0xff]
      %v719 = vld [vmem:[%s702 + $0x80] sm:$0xff]
      %v720 = vld [vmem:[%s702 + $0x88] sm:$0xff]
      %v721 = vld [vmem:[%s702 + $0x90] sm:$0xff]
      %v722 = vld [vmem:[%s702 + $0x98] sm:$0xff]
      %v723 = vld [vmem:[%s702 + $0xa0] sm:$0xff]
      %v724 = vld [vmem:[%s702 + $0xa8] sm:$0x33]
      %v725 = vld [vmem:[%s702 + $0xb0] sm:$0x33]
      %v726 = vld [vmem:[%s702 + $0xb8] sm:$0x33]
      %v727 = vld [vmem:[%s702 + $0xc0] sm:$0x33]
      %v728 = vld [vmem:[%s702 + $0xc8] sm:$0x33]
      %v729 = vld [vmem:[%s702 + $0xd0] sm:$0x33]
      %v730 = vld [vmem:[%s702 + $0xd8] sm:$0x33]
      %v759 = vunpack.c.l.b16 %v703
      %v760 = vunpack.c.h.b16 %v703
      %v761 = vunpack.c.l.b16 %v704
      %v762 = vunpack.c.h.b16 %v704
      %v763 = vunpack.c.l.b16 %v705
      %v764 = vunpack.c.h.b16 %v705
      %v765 = vunpack.c.l.b16 %v706
      %v766 = vunpack.c.h.b16 %v706
      %v767 = vunpack.c.l.b16 %v707
      %v768 = vunpack.c.h.b16 %v707
      %v769 = vunpack.c.l.b16 %v708
      %v770 = vunpack.c.h.b16 %v708
      %v771 = vunpack.c.l.b16 %v709
      %v772 = vunpack.c.h.b16 %v709
      %v773 = vunpack.c.l.b16 %v710
      %v774 = vunpack.c.h.b16 %v710
      %v775 = vunpack.c.l.b16 %v711
      %v776 = vunpack.c.h.b16 %v711
      %v777 = vunpack.c.l.b16 %v712
      %v778 = vunpack.c.h.b16 %v712
      %v779 = vunpack.c.l.b16 %v713
      %v780 = vunpack.c.h.b16 %v713
      %v781 = vunpack.c.l.b16 %v714
      %v782 = vunpack.c.h.b16 %v714
      %v783 = vunpack.c.l.b16 %v715
      %v784 = vunpack.c.h.b16 %v715
      %v785 = vunpack.c.l.b16 %v716
      %v786 = vunpack.c.h.b16 %v716
      %v787 = vunpack.c.l.b16 %v717
      %v788 = vunpack.c.h.b16 %v717
      %v789 = vunpack.c.l.b16 %v718
      %v790 = vunpack.c.h.b16 %v718
      %v791 = vunpack.c.l.b16 %v719
      %v792 = vunpack.c.h.b16 %v719
      %v793 = vunpack.c.l.b16 %v720
      %v794 = vunpack.c.h.b16 %v720
      %v795 = vunpack.c.l.b16 %v721
      %v796 = vunpack.c.h.b16 %v721
      %v797 = vunpack.c.l.b16 %v722
      %v798 = vunpack.c.h.b16 %v722
      %v799 = vunpack.c.l.b16 %v723
      %v800 = vunpack.c.h.b16 %v723
      %v801 = vunpack.c.l.b16 %v724
      %v802 = vunpack.c.h.b16 %v724
      %v803 = vunpack.c.l.b16 %v725
      %v804 = vunpack.c.h.b16 %v725
      %v805 = vunpack.c.l.b16 %v726
      %v806 = vunpack.c.h.b16 %v726
      %v807 = vunpack.c.l.b16 %v727
      %v808 = vunpack.c.h.b16 %v727
      %v809 = vunpack.c.l.b16 %v728
      %v810 = vunpack.c.h.b16 %v728
      %v811 = vunpack.c.l.b16 %v729
      %v812 = vunpack.c.h.b16 %v729
      %v813 = vunpack.c.l.b16 %v730
      %v814 = vunpack.c.h.b16 %v730
      %v815 = vpack.c.b16 %v773, %v759
      %v816 = vpack.c.b16 %v774, %v760
      %v817 = vpack.c.b16 %v775, %v761
      %v818 = vpack.c.b16 %v776, %v762
      %v819 = vpack.c.b16 %v777, %v763
      %v820 = vpack.c.b16 %v778, %v764
      %v821 = vpack.c.b16 %v779, %v765
      %v822 = vpack.c.b16 %v780, %v766
      %v823 = vpack.c.b16 %v781, %v767
      %v824 = vpack.c.b16 %v782, %v768
      %v825 = vpack.c.b16 %v783, %v769
      %v826 = vpack.c.b16 %v784, %v770
      %v827 = vpack.c.b16 %v785, %v771
      %v828 = vpack.c.b16 %v786, %v772
      %v829 = vpack.c.b16 %v801, %v787
      %v830 = vpack.c.b16 %v802, %v788
      %v831 = vpack.c.b16 %v803, %v789
      %v832 = vpack.c.b16 %v804, %v790
      %v833 = vpack.c.b16 %v805, %v791
      %v834 = vpack.c.b16 %v806, %v792
      %v835 = vpack.c.b16 %v807, %v793
      %v836 = vpack.c.b16 %v808, %v794
      %v837 = vpack.c.b16 %v809, %v795
      %v838 = vpack.c.b16 %v810, %v796
      %v839 = vpack.c.b16 %v811, %v797
      %v840 = vpack.c.b16 %v812, %v798
      %v841 = vpack.c.b16 %v813, %v799
      %v842 = vpack.c.b16 %v814, %v800
      %v858 = vand.u32 %v829, %v335
      %v861 = vand.u32 %v830, %v335
      %v864 = vand.u32 %v831, %v335
      %v867 = vand.u32 %v832, %v335
      %v870 = vand.u32 %v833, %v335
      %v873 = vand.u32 %v834, %v335
      %v876 = vand.u32 %v835, %v335
      %v879 = vand.u32 %v836, %v335
      %v882 = vand.u32 %v837, %v335
      %v885 = vand.u32 %v838, %v335
      %v888 = vand.u32 %v839, %v335
      %v891 = vand.u32 %v840, %v335
      %v894 = vand.u32 %v841, %v335
      %v897 = vand.u32 %v842, %v335
      %899 = vmatprep.subr.bf16.mxu0 0
      %900 = vmatpush1.bf16.msra.mxu0 0
      %901 = vmatprep.subr.bf16.mxu0 0
      %902 = vmatpush1.bf16.msra.mxu0 0
      %903 = vmatprep.subr.bf16.mxu0 0
      %904 = vmatpush1.bf16.msra.mxu0 0
      %905 = vmatprep.subr.bf16.mxu0 0
      %906 = vmatpush1.bf16.msra.mxu0 0
      %907 = vmatprep.subr.bf16.mxu0 0
      %908 = vmatpush1.bf16.msra.mxu0 0
      %909 = vmatprep.subr.bf16.mxu0 0
      %910 = vmatpush1.bf16.msra.mxu0 0
      %911 = vmatprep.subr.bf16.mxu0 %v861
      %912 = vmatpush1.bf16.msra.mxu0 %v858
      %913 = vmatprep.subr.bf16.mxu0 %v816
      %914 = vmatpush1.bf16.msra.mxu0 %v815
      %915 = vmatprep.subr.bf16.mxu0 0
      %916 = vmatpush2.bf16.msra.mxu0 0
      %917 = vmatprep.subr.bf16.mxu0 0
      %918 = vmatpush2.bf16.msra.mxu0 0
      %919 = vmatprep.subr.bf16.mxu0 0
      %920 = vmatpush2.bf16.msra.mxu0 0
      %921 = vmatprep.subr.bf16.mxu0 0
      %922 = vmatpush2.bf16.msra.mxu0 0
      %923 = vmatprep.subr.bf16.mxu0 0
      %924 = vmatpush2.bf16.msra.mxu0 0
      %925 = vmatprep.subr.bf16.mxu0 0
      %926 = vmatpush2.bf16.msra.mxu0 0
      %927 = vmatprep.subr.bf16.mxu0 0
      %928 = vmatpush2.bf16.msra.mxu0 0
      %929 = vmatprep.subr.bf16.mxu0 0
      %930 = vmatpush2.bf16.msra.mxu0 0
      %931 = vmatprep.mubr.bf16.mxu0 0
      %932 = vmatmul.mubr.bf16.gmra.mxu0 %v330
      %v933 = vpop.f32.mrf.mxu0
      %v934 = vadd.f32 0.0, %v933
      %v935 = vpop.f32.mrf.mxu0
      %v936 = vadd.f32 0.0, %v935
      %v937 = vpop.f32.mrf.mxu0
      %v938 = vpop.f32.mrf.mxu0
      %939 = vdwg.mxu0
      %940 = vmatprep.subr.bf16.mxu0 0
      %941 = vmatpush1.bf16.msra.mxu0 0
      %942 = vmatprep.subr.bf16.mxu0 0
      %943 = vmatpush1.bf16.msra.mxu0 0
      %944 = vmatprep.subr.bf16.mxu0 0
      %945 = vmatpush1.bf16.msra.mxu0 0
      %946 = vmatprep.subr.bf16.mxu0 0
      %947 = vmatpush1.bf16.msra.mxu0 0
      %948 = vmatprep.subr.bf16.mxu0 0
      %949 = vmatpush1.bf16.msra.mxu0 0
      %950 = vmatprep.subr.bf16.mxu0 0
      %951 = vmatpush1.bf16.msra.mxu0 0
      %952 = vmatprep.subr.bf16.mxu0 %v867
      %953 = vmatpush1.bf16.msra.mxu0 %v864
      %954 = vmatprep.subr.bf16.mxu0 %v818
      %955 = vmatpush1.bf16.msra.mxu0 %v817
      %956 = vmatprep.subr.bf16.mxu0 0
      %957 = vmatpush2.bf16.msra.mxu0 0
      %958 = vmatprep.subr.bf16.mxu0 0
      %959 = vmatpush2.bf16.msra.mxu0 0
      %960 = vmatprep.subr.bf16.mxu0 0
      %961 = vmatpush2.bf16.msra.mxu0 0
      %962 = vmatprep.subr.bf16.mxu0 0
      %963 = vmatpush2.bf16.msra.mxu0 0
      %964 = vmatprep.subr.bf16.mxu0 0
      %965 = vmatpush2.bf16.msra.mxu0 0
      %966 = vmatprep.subr.bf16.mxu0 0
      %967 = vmatpush2.bf16.msra.mxu0 0
      %968 = vmatprep.subr.bf16.mxu0 0
      %969 = vmatpush2.bf16.msra.mxu0 0
      %970 = vmatprep.subr.bf16.mxu0 0
      %971 = vmatpush2.bf16.msra.mxu0 0
      %972 = vmatprep.mubr.bf16.mxu0 0
      %973 = vmatmul.mubr.bf16.gmra.mxu0 %v330
      %v974 = vpop.f32.mrf.mxu0
      %v975 = vadd.f32 0.0, %v974
      %v976 = vpop.f32.mrf.mxu0
      %v977 = vadd.f32 0.0, %v976
      %v978 = vpop.f32.mrf.mxu0
      %v979 = vpop.f32.mrf.mxu0
      %980 = vdwg.mxu0
      %981 = vmatprep.subr.bf16.mxu0 0
      %982 = vmatpush1.bf16.msra.mxu0 0
      %983 = vmatprep.subr.bf16.mxu0 0
      %984 = vmatpush1.bf16.msra.mxu0 0
      %985 = vmatprep.subr.bf16.mxu0 0
      %986 = vmatpush1.bf16.msra.mxu0 0
      %987 = vmatprep.subr.bf16.mxu0 0
      %988 = vmatpush1.bf16.msra.mxu0 0
      %989 = vmatprep.subr.bf16.mxu0 0
      %990 = vmatpush1.bf16.msra.mxu0 0
      %991 = vmatprep.subr.bf16.mxu0 0
      %992 = vmatpush1.bf16.msra.mxu0 0
      %993 = vmatprep.subr.bf16.mxu0 %v873
      %994 = vmatpush1.bf16.msra.mxu0 %v870
      %995 = vmatprep.subr.bf16.mxu0 %v820
      %996 = vmatpush1.bf16.msra.mxu0 %v819
      %997 = vmatprep.subr.bf16.mxu0 0
      %998 = vmatpush2.bf16.msra.mxu0 0
      %999 = vmatprep.subr.bf16.mxu0 0
      %1000 = vmatpush2.bf16.msra.mxu0 0
      %1001 = vmatprep.subr.bf16.mxu0 0
      %1002 = vmatpush2.bf16.msra.mxu0 0
      %1003 = vmatprep.subr.bf16.mxu0 0
      %1004 = vmatpush2.bf16.msra.mxu0 0
      %1005 = vmatprep.subr.bf16.mxu0 0
      %1006 = vmatpush2.bf16.msra.mxu0 0
      %1007 = vmatprep.subr.bf16.mxu0 0
      %1008 = vmatpush2.bf16.msra.mxu0 0
      %1009 = vmatprep.subr.bf16.mxu0 0
      %1010 = vmatpush2.bf16.msra.mxu0 0
      %1011 = vmatprep.subr.bf16.mxu0 0
      %1012 = vmatpush2.bf16.msra.mxu0 0
      %1013 = vmatprep.mubr.bf16.mxu0 0
      %1014 = vmatmul.mubr.bf16.gmra.mxu0 %v330
      %v1015 = vpop.f32.mrf.mxu0
      %v1016 = vadd.f32 0.0, %v1015
      %v1017 = vpop.f32.mrf.mxu0
      %v1018 = vadd.f32 0.0, %v1017
      %v1019 = vpop.f32.mrf.mxu0
      %v1020 = vpop.f32.mrf.mxu0
      %1021 = vdwg.mxu0
      %1022 = vmatprep.subr.bf16.mxu0 0
      %1023 = vmatpush1.bf16.msra.mxu0 0
      %1024 = vmatprep.subr.bf16.mxu0 0
      %1025 = vmatpush1.bf16.msra.mxu0 0
      %1026 = vmatprep.subr.bf16.mxu0 0
      %1027 = vmatpush1.bf16.msra.mxu0 0
      %1028 = vmatprep.subr.bf16.mxu0 0
      %1029 = vmatpush1.bf16.msra.mxu0 0
      %1030 = vmatprep.subr.bf16.mxu0 0
      %1031 = vmatpush1.bf16.msra.mxu0 0
      %1032 = vmatprep.subr.bf16.mxu0 0
      %1033 = vmatpush1.bf16.msra.mxu0 0
      %1034 = vmatprep.subr.bf16.mxu0 %v879
      %1035 = vmatpush1.bf16.msra.mxu0 %v876
      %1036 = vmatprep.subr.bf16.mxu0 %v822
      %1037 = vmatpush1.bf16.msra.mxu0 %v821
      %1038 = vmatprep.subr.bf16.mxu0 0
      %1039 = vmatpush2.bf16.msra.mxu0 0
      %1040 = vmatprep.subr.bf16.mxu0 0
      %1041 = vmatpush2.bf16.msra.mxu0 0
      %1042 = vmatprep.subr.bf16.mxu0 0
      %1043 = vmatpush2.bf16.msra.mxu0 0
      %1044 = vmatprep.subr.bf16.mxu0 0
      %1045 = vmatpush2.bf16.msra.mxu0 0
      %1046 = vmatprep.subr.bf16.mxu0 0
      %1047 = vmatpush2.bf16.msra.mxu0 0
      %1048 = vmatprep.subr.bf16.mxu0 0
      %1049 = vmatpush2.bf16.msra.mxu0 0
      %1050 = vmatprep.subr.bf16.mxu0 0
      %1051 = vmatpush2.bf16.msra.mxu0 0
      %1052 = vmatprep.subr.bf16.mxu0 0
      %1053 = vmatpush2.bf16.msra.mxu0 0
      %1054 = vmatprep.mubr.bf16.mxu0 0
      %1055 = vmatmul.mubr.bf16.gmra.mxu0 %v330
      %v1056 = vpop.f32.mrf.mxu0
      %v1057 = vadd.f32 0.0, %v1056
      %v1058 = vpop.f32.mrf.mxu0
      %v1059 = vadd.f32 0.0, %v1058
      %v1060 = vpop.f32.mrf.mxu0
      %v1061 = vpop.f32.mrf.mxu0
      %1062 = vdwg.mxu0
      %1063 = vmatprep.subr.bf16.mxu0 0
      %1064 = vmatpush1.bf16.msra.mxu0 0
      %1065 = vmatprep.subr.bf16.mxu0 0
      %1066 = vmatpush1.bf16.msra.mxu0 0
      %1067 = vmatprep.subr.bf16.mxu0 0
      %1068 = vmatpush1.bf16.msra.mxu0 0
      %1069 = vmatprep.subr.bf16.mxu0 0
      %1070 = vmatpush1.bf16.msra.mxu0 0
      %1071 = vmatprep.subr.bf16.mxu0 0
      %1072 = vmatpush1.bf16.msra.mxu0 0
      %1073 = vmatprep.subr.bf16.mxu0 0
      %1074 = vmatpush1.bf16.msra.mxu0 0
      %1075 = vmatprep.subr.bf16.mxu0 %v885
      %1076 = vmatpush1.bf16.msra.mxu0 %v882
      %1077 = vmatprep.subr.bf16.mxu0 %v824
      %1078 = vmatpush1.bf16.msra.mxu0 %v823
      %1079 = vmatprep.subr.bf16.mxu0 0
      %1080 = vmatpush2.bf16.msra.mxu0 0
      %1081 = vmatprep.subr.bf16.mxu0 0
      %1082 = vmatpush2.bf16.msra.mxu0 0
      %1083 = vmatprep.subr.bf16.mxu0 0
      %1084 = vmatpush2.bf16.msra.mxu0 0
      %1085 = vmatprep.subr.bf16.mxu0 0
      %1086 = vmatpush2.bf16.msra.mxu0 0
      %1087 = vmatprep.subr.bf16.mxu0 0
      %1088 = vmatpush2.bf16.msra.mxu0 0
      %1089 = vmatprep.subr.bf16.mxu0 0
      %1090 = vmatpush2.bf16.msra.mxu0 0
      %1091 = vmatprep.subr.bf16.mxu0 0
      %1092 = vmatpush2.bf16.msra.mxu0 0
      %1093 = vmatprep.subr.bf16.mxu0 0
      %1094 = vmatpush2.bf16.msra.mxu0 0
      %1095 = vmatprep.mubr.bf16.mxu0 0
      %1096 = vmatmul.mubr.bf16.gmra.mxu0 %v330
      %v1097 = vpop.f32.mrf.mxu0
      %v1098 = vadd.f32 0.0, %v1097
      %v1099 = vpop.f32.mrf.mxu0
      %v1100 = vadd.f32 0.0, %v1099
      %v1101 = vpop.f32.mrf.mxu0
      %v1102 = vpop.f32.mrf.mxu0
      %1103 = vdwg.mxu0
      %1104 = vmatprep.subr.bf16.mxu0 0
      %1105 = vmatpush1.bf16.msra.mxu0 0
      %1106 = vmatprep.subr.bf16.mxu0 0
      %1107 = vmatpush1.bf16.msra.mxu0 0
      %1108 = vmatprep.subr.bf16.mxu0 0
      %1109 = vmatpush1.bf16.msra.mxu0 0
      %1110 = vmatprep.subr.bf16.mxu0 0
      %1111 = vmatpush1.bf16.msra.mxu0 0
      %1112 = vmatprep.subr.bf16.mxu0 0
      %1113 = vmatpush1.bf16.msra.mxu0 0
      %1114 = vmatprep.subr.bf16.mxu0 0
      %1115 = vmatpush1.bf16.msra.mxu0 0
      %1116 = vmatprep.subr.bf16.mxu0 %v891
      %1117 = vmatpush1.bf16.msra.mxu0 %v888
      %1118 = vmatprep.subr.bf16.mxu0 %v826
      %1119 = vmatpush1.bf16.msra.mxu0 %v825
      %1120 = vmatprep.subr.bf16.mxu0 0
      %1121 = vmatpush2.bf16.msra.mxu0 0
      %1122 = vmatprep.subr.bf16.mxu0 0
      %1123 = vmatpush2.bf16.msra.mxu0 0
      %1124 = vmatprep.subr.bf16.mxu0 0
      %1125 = vmatpush2.bf16.msra.mxu0 0
      %1126 = vmatprep.subr.bf16.mxu0 0
      %1127 = vmatpush2.bf16.msra.mxu0 0
      %1128 = vmatprep.subr.bf16.mxu0 0
      %1129 = vmatpush2.bf16.msra.mxu0 0
      %1130 = vmatprep.subr.bf16.mxu0 0
      %1131 = vmatpush2.bf16.msra.mxu0 0
      %1132 = vmatprep.subr.bf16.mxu0 0
      %1133 = vmatpush2.bf16.msra.mxu0 0
      %1134 = vmatprep.subr.bf16.mxu0 0
      %1135 = vmatpush2.bf16.msra.mxu0 0
      %1136 = vmatprep.mubr.bf16.mxu0 0
      %1137 = vmatmul.mubr.bf16.gmra.mxu0 %v330
      %v1138 = vpop.f32.mrf.mxu0
      %v1139 = vadd.f32 0.0, %v1138
      %v1140 = vpop.f32.mrf.mxu0
      %v1141 = vadd.f32 0.0, %v1140
      %v1142 = vpop.f32.mrf.mxu0
      %v1143 = vpop.f32.mrf.mxu0
      %1144 = vdwg.mxu0
      %1145 = vmatprep.subr.bf16.mxu0 0
      %1146 = vmatpush1.bf16.msra.mxu0 0
      %1147 = vmatprep.subr.bf16.mxu0 0
      %1148 = vmatpush1.bf16.msra.mxu0 0
      %1149 = vmatprep.subr.bf16.mxu0 0
      %1150 = vmatpush1.bf16.msra.mxu0 0
      %1151 = vmatprep.subr.bf16.mxu0 0
      %1152 = vmatpush1.bf16.msra.mxu0 0
      %1153 = vmatprep.subr.bf16.mxu0 0
      %1154 = vmatpush1.bf16.msra.mxu0 0
      %1155 = vmatprep.subr.bf16.mxu0 0
      %1156 = vmatpush1.bf16.msra.mxu0 0
      %1157 = vmatprep.subr.bf16.mxu0 %v897
      %1158 = vmatpush1.bf16.msra.mxu0 %v894
      %1159 = vmatprep.subr.bf16.mxu0 %v828
      %1160 = vmatpush1.bf16.msra.mxu0 %v827
      %1161 = vmatprep.subr.bf16.mxu0 0
      %1162 = vmatpush2.bf16.msra.mxu0 0
      %1163 = vmatprep.subr.bf16.mxu0 0
      %1164 = vmatpush2.bf16.msra.mxu0 0
      %1165 = vmatprep.subr.bf16.mxu0 0
      %1166 = vmatpush2.bf16.msra.mxu0 0
      %1167 = vmatprep.subr.bf16.mxu0 0
      %1168 = vmatpush2.bf16.msra.mxu0 0
      %1169 = vmatprep.subr.bf16.mxu0 0
      %1170 = vmatpush2.bf16.msra.mxu0 0
      %1171 = vmatprep.subr.bf16.mxu0 0
      %1172 = vmatpush2.bf16.msra.mxu0 0
      %1173 = vmatprep.subr.bf16.mxu0 0
      %1174 = vmatpush2.bf16.msra.mxu0 0
      %1175 = vmatprep.subr.bf16.mxu0 0
      %1176 = vmatpush2.bf16.msra.mxu0 0
      %1177 = vmatprep.mubr.bf16.mxu0 0
      %1178 = vmatmul.mubr.bf16.gmra.mxu0 %v330
      %v1179 = vpop.f32.mrf.mxu0
      %v1180 = vadd.f32 0.0, %v1179
      %v1181 = vpop.f32.mrf.mxu0
      %v1182 = vadd.f32 0.0, %v1181
      %v1183 = vpop.f32.mrf.mxu0
      %v1184 = vpop.f32.mrf.mxu0
      %1185 = vdwg.mxu0
      %v1186 = vmul.f32 %v934, %v668
      %v1187 = vmul.f32 %v936, %v668
      %v1188 = vmul.f32 %v975, %v668
      %v1189 = vmul.f32 %v977, %v668
      %v1190 = vmul.f32 %v1016, %v668
      %v1191 = vmul.f32 %v1018, %v668
      %v1192 = vmul.f32 %v1057, %v668
      %v1193 = vmul.f32 %v1059, %v668
      %v1194 = vmul.f32 %v1098, %v668
      %v1195 = vmul.f32 %v1100, %v668
      %v1196 = vmul.f32 %v1139, %v668
      %v1197 = vmul.f32 %v1141, %v668
      %v1198 = vmul.f32 %v1180, %v668
      %v1199 = vmul.f32 %v1182, %v668
      %v1200 = vadd.f32 %v1186, %v686
      %v1201 = vadd.f32 %v1187, %v686
      %v1202 = vadd.f32 %v1188, %v686
      %v1203 = vadd.f32 %v1189, %v686
      %v1204 = vadd.f32 %v1190, %v686
      %v1205 = vadd.f32 %v1191, %v686
      %v1206 = vadd.f32 %v1192, %v686
      %v1207 = vadd.f32 %v1193, %v686
      %v1208 = vadd.f32 %v1194, %v686
      %v1209 = vadd.f32 %v1195, %v686
      %v1210 = vadd.f32 %v1196, %v686
      %v1211 = vadd.f32 %v1197, %v686
      %v1212 = vadd.f32 %v1198, %v686
      %v1213 = vadd.f32 %v1199, %v686
      %v1214 = vmax.f32 %v688, %v1200
      %v1215 = vmax.f32 %v689, %v1201
      %v1216 = vmax.f32 %v690, %v1202
      %v1217 = vmax.f32 %v691, %v1203
      %v1218 = vmax.f32 %v692, %v1204
      %v1219 = vmax.f32 %v693, %v1205
      %v1220 = vmax.f32 %v694, %v1206
      %v1221 = vmax.f32 %v695, %v1207
      %v1222 = vmax.f32 %v696, %v1208
      %v1223 = vmax.f32 %v697, %v1209
      %v1224 = vmax.f32 %v698, %v1210
      %v1225 = vmax.f32 %v699, %v1211
      %v1226 = vmax.f32 %v700, %v1212
      %v1227 = vmax.f32 %v701, %v1213
      %s1228 = scalar_lea.vmem %s165, 448
      %v1229 = vld [vmem:[%s1228] sm:$0xff]
      %v1230 = vld [vmem:[%s1228 + $0x8] sm:$0xff]
      %v1231 = vld [vmem:[%s1228 + $0x10] sm:$0xff]
      %v1232 = vld [vmem:[%s1228 + $0x18] sm:$0xff]
      %v1233 = vld [vmem:[%s1228 + $0x20] sm:$0xff]
      %v1234 = vld [vmem:[%s1228 + $0x28] sm:$0xff]
      %v1235 = vld [vmem:[%s1228 + $0x30] sm:$0xff]
      %v1236 = vld [vmem:[%s1228 + $0x38] sm:$0xff]
      %v1237 = vld [vmem:[%s1228 + $0x40] sm:$0xff]
      %v1238 = vld [vmem:[%s1228 + $0x48] sm:$0xff]
      %v1239 = vld [vmem:[%s1228 + $0x50] sm:$0xff]
      %v1240 = vld [vmem:[%s1228 + $0x58] sm:$0xff]
      %v1241 = vld [vmem:[%s1228 + $0x60] sm:$0xff]
      %v1242 = vld [vmem:[%s1228 + $0x68] sm:$0xff]
      %v1243 = vld [vmem:[%s1228 + $0x70] sm:$0xff]
      %v1244 = vld [vmem:[%s1228 + $0x78] sm:$0xff]
      %v1245 = vld [vmem:[%s1228 + $0x80] sm:$0xff]
      %v1246 = vld [vmem:[%s1228 + $0x88] sm:$0xff]
      %v1247 = vld [vmem:[%s1228 + $0x90] sm:$0xff]
      %v1248 = vld [vmem:[%s1228 + $0x98] sm:$0xff]
      %v1249 = vld [vmem:[%s1228 + $0xa0] sm:$0xff]
      %v1250 = vld [vmem:[%s1228 + $0xa8] sm:$0x33]
      %v1251 = vld [vmem:[%s1228 + $0xb0] sm:$0x33]
      %v1252 = vld [vmem:[%s1228 + $0xb8] sm:$0x33]
      %v1253 = vld [vmem:[%s1228 + $0xc0] sm:$0x33]
      %v1254 = vld [vmem:[%s1228 + $0xc8] sm:$0x33]
      %v1255 = vld [vmem:[%s1228 + $0xd0] sm:$0x33]
      %v1256 = vld [vmem:[%s1228 + $0xd8] sm:$0x33]
      %v1285 = vunpack.c.l.b16 %v1229
      %v1286 = vunpack.c.h.b16 %v1229
      %v1287 = vunpack.c.l.b16 %v1230
      %v1288 = vunpack.c.h.b16 %v1230
      %v1289 = vunpack.c.l.b16 %v1231
      %v1290 = vunpack.c.h.b16 %v1231
      %v1291 = vunpack.c.l.b16 %v1232
      %v1292 = vunpack.c.h.b16 %v1232
      %v1293 = vunpack.c.l.b16 %v1233
      %v1294 = vunpack.c.h.b16 %v1233
      %v1295 = vunpack.c.l.b16 %v1234
      %v1296 = vunpack.c.h.b16 %v1234
      %v1297 = vunpack.c.l.b16 %v1235
      %v1298 = vunpack.c.h.b16 %v1235
      %v1299 = vunpack.c.l.b16 %v1236
      %v1300 = vunpack.c.h.b16 %v1236
      %v1301 = vunpack.c.l.b16 %v1237
      %v1302 = vunpack.c.h.b16 %v1237
      %v1303 = vunpack.c.l.b16 %v1238
      %v1304 = vunpack.c.h.b16 %v1238
      %v1305 = vunpack.c.l.b16 %v1239
      %v1306 = vunpack.c.h.b16 %v1239
      %v1307 = vunpack.c.l.b16 %v1240
      %v1308 = vunpack.c.h.b16 %v1240
      %v1309 = vunpack.c.l.b16 %v1241
      %v1310 = vunpack.c.h.b16 %v1241
      %v1311 = vunpack.c.l.b16 %v1242
      %v1312 = vunpack.c.h.b16 %v1242
      %v1313 = vunpack.c.l.b16 %v1243
      %v1314 = vunpack.c.h.b16 %v1243
      %v1315 = vunpack.c.l.b16 %v1244
      %v1316 = vunpack.c.h.b16 %v1244
      %v1317 = vunpack.c.l.b16 %v1245
      %v1318 = vunpack.c.h.b16 %v1245
      %v1319 = vunpack.c.l.b16 %v1246
      %v1320 = vunpack.c.h.b16 %v1246
      %v1321 = vunpack.c.l.b16 %v1247
      %v1322 = vunpack.c.h.b16 %v1247
      %v1323 = vunpack.c.l.b16 %v1248
      %v1324 = vunpack.c.h.b16 %v1248
      %v1325 = vunpack.c.l.b16 %v1249
      %v1326 = vunpack.c.h.b16 %v1249
      %v1327 = vunpack.c.l.b16 %v1250
      %v1328 = vunpack.c.h.b16 %v1250
      %v1329 = vunpack.c.l.b16 %v1251
      %v1330 = vunpack.c.h.b16 %v1251
      %v1331 = vunpack.c.l.b16 %v1252
      %v1332 = vunpack.c.h.b16 %v1252
      %v1333 = vunpack.c.l.b16 %v1253
      %v1334 = vunpack.c.h.b16 %v1253
      %v1335 = vunpack.c.l.b16 %v1254
      %v1336 = vunpack.c.h.b16 %v1254
      %v1337 = vunpack.c.l.b16 %v1255
      %v1338 = vunpack.c.h.b16 %v1255
      %v1339 = vunpack.c.l.b16 %v1256
      %v1340 = vunpack.c.h.b16 %v1256
      %v1341 = vpack.c.b16 %v1299, %v1285
      %v1342 = vpack.c.b16 %v1300, %v1286
      %v1343 = vpack.c.b16 %v1301, %v1287
      %v1344 = vpack.c.b16 %v1302, %v1288
      %v1345 = vpack.c.b16 %v1303, %v1289
      %v1346 = vpack.c.b16 %v1304, %v1290
      %v1347 = vpack.c.b16 %v1305, %v1291
      %v1348 = vpack.c.b16 %v1306, %v1292
      %v1349 = vpack.c.b16 %v1307, %v1293
      %v1350 = vpack.c.b16 %v1308, %v1294
      %v1351 = vpack.c.b16 %v1309, %v1295
      %v1352 = vpack.c.b16 %v1310, %v1296
      %v1353 = vpack.c.b16 %v1311, %v1297
      %v1354 = vpack.c.b16 %v1312, %v1298
      %v1355 = vpack.c.b16 %v1327, %v1313
      %v1356 = vpack.c.b16 %v1328, %v1314
      %v1357 = vpack.c.b16 %v1329, %v1315
      %v1358 = vpack.c.b16 %v1330, %v1316
      %v1359 = vpack.c.b16 %v1331, %v1317
      %v1360 = vpack.c.b16 %v1332, %v1318
      %v1361 = vpack.c.b16 %v1333, %v1319
      %v1362 = vpack.c.b16 %v1334, %v1320
      %v1363 = vpack.c.b16 %v1335, %v1321
      %v1364 = vpack.c.b16 %v1336, %v1322
      %v1365 = vpack.c.b16 %v1337, %v1323
      %v1366 = vpack.c.b16 %v1338, %v1324
      %v1367 = vpack.c.b16 %v1339, %v1325
      %v1368 = vpack.c.b16 %v1340, %v1326
      %v1384 = vand.u32 %v1355, %v335
      %v1387 = vand.u32 %v1356, %v335
      %v1390 = vand.u32 %v1357, %v335
      %v1393 = vand.u32 %v1358, %v335
      %v1396 = vand.u32 %v1359, %v335
      %v1399 = vand.u32 %v1360, %v335
      %v1402 = vand.u32 %v1361, %v335
      %v1405 = vand.u32 %v1362, %v335
      %v1408 = vand.u32 %v1363, %v335
      %v1411 = vand.u32 %v1364, %v335
      %v1414 = vand.u32 %v1365, %v335
      %v1417 = vand.u32 %v1366, %v335
      %v1420 = vand.u32 %v1367, %v335
      %v1423 = vand.u32 %v1368, %v335
      %1425 = vmatprep.subr.bf16.mxu0 0
      %1426 = vmatpush1.bf16.msra.mxu0 0
      %1427 = vmatprep.subr.bf16.mxu0 0
      %1428 = vmatpush1.bf16.msra.mxu0 0
      %1429 = vmatprep.subr.bf16.mxu0 0
      %1430 = vmatpush1.bf16.msra.mxu0 0
      %1431 = vmatprep.subr.bf16.mxu0 0
      %1432 = vmatpush1.bf16.msra.mxu0 0
      %1433 = vmatprep.subr.bf16.mxu0 0
      %1434 = vmatpush1.bf16.msra.mxu0 0
      %1435 = vmatprep.subr.bf16.mxu0 0
      %1436 = vmatpush1.bf16.msra.mxu0 0
      %1437 = vmatprep.subr.bf16.mxu0 %v1387
      %1438 = vmatpush1.bf16.msra.mxu0 %v1384
      %1439 = vmatprep.subr.bf16.mxu0 %v1342
      %1440 = vmatpush1.bf16.msra.mxu0 %v1341
      %1441 = vmatprep.subr.bf16.mxu0 0
      %1442 = vmatpush2.bf16.msra.mxu0 0
      %1443 = vmatprep.subr.bf16.mxu0 0
      %1444 = vmatpush2.bf16.msra.mxu0 0
      %1445 = vmatprep.subr.bf16.mxu0 0
      %1446 = vmatpush2.bf16.msra.mxu0 0
      %1447 = vmatprep.subr.bf16.mxu0 0
      %1448 = vmatpush2.bf16.msra.mxu0 0
      %1449 = vmatprep.subr.bf16.mxu0 0
      %1450 = vmatpush2.bf16.msra.mxu0 0
      %1451 = vmatprep.subr.bf16.mxu0 0
      %1452 = vmatpush2.bf16.msra.mxu0 0
      %1453 = vmatprep.subr.bf16.mxu0 0
      %1454 = vmatpush2.bf16.msra.mxu0 0
      %1455 = vmatprep.subr.bf16.mxu0 0
      %1456 = vmatpush2.bf16.msra.mxu0 0
      %1457 = vmatprep.mubr.bf16.mxu0 0
      %1458 = vmatmul.mubr.bf16.gmra.mxu0 %v330
      %v1459 = vpop.f32.mrf.mxu0
      %v1460 = vadd.f32 0.0, %v1459
      %v1461 = vpop.f32.mrf.mxu0
      %v1462 = vadd.f32 0.0, %v1461
      %v1463 = vpop.f32.mrf.mxu0
      %v1464 = vpop.f32.mrf.mxu0
      %1465 = vdwg.mxu0
      %1466 = vmatprep.subr.bf16.mxu0 0
      %1467 = vmatpush1.bf16.msra.mxu0 0
      %1468 = vmatprep.subr.bf16.mxu0 0
      %1469 = vmatpush1.bf16.msra.mxu0 0
      %1470 = vmatprep.subr.bf16.mxu0 0
      %1471 = vmatpush1.bf16.msra.mxu0 0
      %1472 = vmatprep.subr.bf16.mxu0 0
      %1473 = vmatpush1.bf16.msra.mxu0 0
      %1474 = vmatprep.subr.bf16.mxu0 0
      %1475 = vmatpush1.bf16.msra.mxu0 0
      %1476 = vmatprep.subr.bf16.mxu0 0
      %1477 = vmatpush1.bf16.msra.mxu0 0
      %1478 = vmatprep.subr.bf16.mxu0 %v1393
      %1479 = vmatpush1.bf16.msra.mxu0 %v1390
      %1480 = vmatprep.subr.bf16.mxu0 %v1344
      %1481 = vmatpush1.bf16.msra.mxu0 %v1343
      %1482 = vmatprep.subr.bf16.mxu0 0
      %1483 = vmatpush2.bf16.msra.mxu0 0
      %1484 = vmatprep.subr.bf16.mxu0 0
      %1485 = vmatpush2.bf16.msra.mxu0 0
      %1486 = vmatprep.subr.bf16.mxu0 0
      %1487 = vmatpush2.bf16.msra.mxu0 0
      %1488 = vmatprep.subr.bf16.mxu0 0
      %1489 = vmatpush2.bf16.msra.mxu0 0
      %1490 = vmatprep.subr.bf16.mxu0 0
      %1491 = vmatpush2.bf16.msra.mxu0 0
      %1492 = vmatprep.subr.bf16.mxu0 0
      %1493 = vmatpush2.bf16.msra.mxu0 0
      %1494 = vmatprep.subr.bf16.mxu0 0
      %1495 = vmatpush2.bf16.msra.mxu0 0
      %1496 = vmatprep.subr.bf16.mxu0 0
      %1497 = vmatpush2.bf16.msra.mxu0 0
      %1498 = vmatprep.mubr.bf16.mxu0 0
      %1499 = vmatmul.mubr.bf16.gmra.mxu0 %v330
      %v1500 = vpop.f32.mrf.mxu0
      %v1501 = vadd.f32 0.0, %v1500
      %v1502 = vpop.f32.mrf.mxu0
      %v1503 = vadd.f32 0.0, %v1502
      %v1504 = vpop.f32.mrf.mxu0
      %v1505 = vpop.f32.mrf.mxu0
      %1506 = vdwg.mxu0
      %1507 = vmatprep.subr.bf16.mxu0 0
      %1508 = vmatpush1.bf16.msra.mxu0 0
      %1509 = vmatprep.subr.bf16.mxu0 0
      %1510 = vmatpush1.bf16.msra.mxu0 0
      %1511 = vmatprep.subr.bf16.mxu0 0
      %1512 = vmatpush1.bf16.msra.mxu0 0
      %1513 = vmatprep.subr.bf16.mxu0 0
      %1514 = vmatpush1.bf16.msra.mxu0 0
      %1515 = vmatprep.subr.bf16.mxu0 0
      %1516 = vmatpush1.bf16.msra.mxu0 0
      %1517 = vmatprep.subr.bf16.mxu0 0
      %1518 = vmatpush1.bf16.msra.mxu0 0
      %1519 = vmatprep.subr.bf16.mxu0 %v1399
      %1520 = vmatpush1.bf16.msra.mxu0 %v1396
      %1521 = vmatprep.subr.bf16.mxu0 %v1346
      %1522 = vmatpush1.bf16.msra.mxu0 %v1345
      %1523 = vmatprep.subr.bf16.mxu0 0
      %1524 = vmatpush2.bf16.msra.mxu0 0
      %1525 = vmatprep.subr.bf16.mxu0 0
      %1526 = vmatpush2.bf16.msra.mxu0 0
      %1527 = vmatprep.subr.bf16.mxu0 0
      %1528 = vmatpush2.bf16.msra.mxu0 0
      %1529 = vmatprep.subr.bf16.mxu0 0
      %1530 = vmatpush2.bf16.msra.mxu0 0
      %1531 = vmatprep.subr.bf16.mxu0 0
      %1532 = vmatpush2.bf16.msra.mxu0 0
      %1533 = vmatprep.subr.bf16.mxu0 0
      %1534 = vmatpush2.bf16.msra.mxu0 0
      %1535 = vmatprep.subr.bf16.mxu0 0
      %1536 = vmatpush2.bf16.msra.mxu0 0
      %1537 = vmatprep.subr.bf16.mxu0 0
      %1538 = vmatpush2.bf16.msra.mxu0 0
      %1539 = vmatprep.mubr.bf16.mxu0 0
      %1540 = vmatmul.mubr.bf16.gmra.mxu0 %v330
      %v1541 = vpop.f32.mrf.mxu0
      %v1542 = vadd.f32 0.0, %v1541
      %v1543 = vpop.f32.mrf.mxu0
      %v1544 = vadd.f32 0.0, %v1543
      %v1545 = vpop.f32.mrf.mxu0
      %v1546 = vpop.f32.mrf.mxu0
      %1547 = vdwg.mxu0
      %1548 = vmatprep.subr.bf16.mxu0 0
      %1549 = vmatpush1.bf16.msra.mxu0 0
      %1550 = vmatprep.subr.bf16.mxu0 0
      %1551 = vmatpush1.bf16.msra.mxu0 0
      %1552 = vmatprep.subr.bf16.mxu0 0
      %1553 = vmatpush1.bf16.msra.mxu0 0
      %1554 = vmatprep.subr.bf16.mxu0 0
      %1555 = vmatpush1.bf16.msra.mxu0 0
      %1556 = vmatprep.subr.bf16.mxu0 0
      %1557 = vmatpush1.bf16.msra.mxu0 0
      %1558 = vmatprep.subr.bf16.mxu0 0
      %1559 = vmatpush1.bf16.msra.mxu0 0
      %1560 = vmatprep.subr.bf16.mxu0 %v1405
      %1561 = vmatpush1.bf16.msra.mxu0 %v1402
      %1562 = vmatprep.subr.bf16.mxu0 %v1348
      %1563 = vmatpush1.bf16.msra.mxu0 %v1347
      %1564 = vmatprep.subr.bf16.mxu0 0
      %1565 = vmatpush2.bf16.msra.mxu0 0
      %1566 = vmatprep.subr.bf16.mxu0 0
      %1567 = vmatpush2.bf16.msra.mxu0 0
      %1568 = vmatprep.subr.bf16.mxu0 0
      %1569 = vmatpush2.bf16.msra.mxu0 0
      %1570 = vmatprep.subr.bf16.mxu0 0
      %1571 = vmatpush2.bf16.msra.mxu0 0
      %1572 = vmatprep.subr.bf16.mxu0 0
      %1573 = vmatpush2.bf16.msra.mxu0 0
      %1574 = vmatprep.subr.bf16.mxu0 0
      %1575 = vmatpush2.bf16.msra.mxu0 0
      %1576 = vmatprep.subr.bf16.mxu0 0
      %1577 = vmatpush2.bf16.msra.mxu0 0
      %1578 = vmatprep.subr.bf16.mxu0 0
      %1579 = vmatpush2.bf16.msra.mxu0 0
      %1580 = vmatprep.mubr.bf16.mxu0 0
      %1581 = vmatmul.mubr.bf16.gmra.mxu0 %v330
      %v1582 = vpop.f32.mrf.mxu0
      %v1583 = vadd.f32 0.0, %v1582
      %v1584 = vpop.f32.mrf.mxu0
      %v1585 = vadd.f32 0.0, %v1584
      %v1586 = vpop.f32.mrf.mxu0
      %v1587 = vpop.f32.mrf.mxu0
      %1588 = vdwg.mxu0
      %1589 = vmatprep.subr.bf16.mxu0 0
      %1590 = vmatpush1.bf16.msra.mxu0 0
      %1591 = vmatprep.subr.bf16.mxu0 0
      %1592 = vmatpush1.bf16.msra.mxu0 0
      %1593 = vmatprep.subr.bf16.mxu0 0
      %1594 = vmatpush1.bf16.msra.mxu0 0
      %1595 = vmatprep.subr.bf16.mxu0 0
      %1596 = vmatpush1.bf16.msra.mxu0 0
      %1597 = vmatprep.subr.bf16.mxu0 0
      %1598 = vmatpush1.bf16.msra.mxu0 0
      %1599 = vmatprep.subr.bf16.mxu0 0
      %1600 = vmatpush1.bf16.msra.mxu0 0
      %1601 = vmatprep.subr.bf16.mxu0 %v1411
      %1602 = vmatpush1.bf16.msra.mxu0 %v1408
      %1603 = vmatprep.subr.bf16.mxu0 %v1350
      %1604 = vmatpush1.bf16.msra.mxu0 %v1349
      %1605 = vmatprep.subr.bf16.mxu0 0
      %1606 = vmatpush2.bf16.msra.mxu0 0
      %1607 = vmatprep.subr.bf16.mxu0 0
      %1608 = vmatpush2.bf16.msra.mxu0 0
      %1609 = vmatprep.subr.bf16.mxu0 0
      %1610 = vmatpush2.bf16.msra.mxu0 0
      %1611 = vmatprep.subr.bf16.mxu0 0
      %1612 = vmatpush2.bf16.msra.mxu0 0
      %1613 = vmatprep.subr.bf16.mxu0 0
      %1614 = vmatpush2.bf16.msra.mxu0 0
      %1615 = vmatprep.subr.bf16.mxu0 0
      %1616 = vmatpush2.bf16.msra.mxu0 0
      %1617 = vmatprep.subr.bf16.mxu0 0
      %1618 = vmatpush2.bf16.msra.mxu0 0
      %1619 = vmatprep.subr.bf16.mxu0 0
      %1620 = vmatpush2.bf16.msra.mxu0 0
      %1621 = vmatprep.mubr.bf16.mxu0 0
      %1622 = vmatmul.mubr.bf16.gmra.mxu0 %v330
      %v1623 = vpop.f32.mrf.mxu0
      %v1624 = vadd.f32 0.0, %v1623
      %v1625 = vpop.f32.mrf.mxu0
      %v1626 = vadd.f32 0.0, %v1625
      %v1627 = vpop.f32.mrf.mxu0
      %v1628 = vpop.f32.mrf.mxu0
      %1629 = vdwg.mxu0
      %1630 = vmatprep.subr.bf16.mxu0 0
      %1631 = vmatpush1.bf16.msra.mxu0 0
      %1632 = vmatprep.subr.bf16.mxu0 0
      %1633 = vmatpush1.bf16.msra.mxu0 0
      %1634 = vmatprep.subr.bf16.mxu0 0
      %1635 = vmatpush1.bf16.msra.mxu0 0
      %1636 = vmatprep.subr.bf16.mxu0 0
      %1637 = vmatpush1.bf16.msra.mxu0 0
      %1638 = vmatprep.subr.bf16.mxu0 0
      %1639 = vmatpush1.bf16.msra.mxu0 0
      %1640 = vmatprep.subr.bf16.mxu0 0
      %1641 = vmatpush1.bf16.msra.mxu0 0
      %1642 = vmatprep.subr.bf16.mxu0 %v1417
      %1643 = vmatpush1.bf16.msra.mxu0 %v1414
      %1644 = vmatprep.subr.bf16.mxu0 %v1352
      %1645 = vmatpush1.bf16.msra.mxu0 %v1351
      %1646 = vmatprep.subr.bf16.mxu0 0
      %1647 = vmatpush2.bf16.msra.mxu0 0
      %1648 = vmatprep.subr.bf16.mxu0 0
      %1649 = vmatpush2.bf16.msra.mxu0 0
      %1650 = vmatprep.subr.bf16.mxu0 0
      %1651 = vmatpush2.bf16.msra.mxu0 0
      %1652 = vmatprep.subr.bf16.mxu0 0
      %1653 = vmatpush2.bf16.msra.mxu0 0
      %1654 = vmatprep.subr.bf16.mxu0 0
      %1655 = vmatpush2.bf16.msra.mxu0 0
      %1656 = vmatprep.subr.bf16.mxu0 0
      %1657 = vmatpush2.bf16.msra.mxu0 0
      %1658 = vmatprep.subr.bf16.mxu0 0
      %1659 = vmatpush2.bf16.msra.mxu0 0
      %1660 = vmatprep.subr.bf16.mxu0 0
      %1661 = vmatpush2.bf16.msra.mxu0 0
      %1662 = vmatprep.mubr.bf16.mxu0 0
      %1663 = vmatmul.mubr.bf16.gmra.mxu0 %v330
      %v1664 = vpop.f32.mrf.mxu0
      %v1665 = vadd.f32 0.0, %v1664
      %v1666 = vpop.f32.mrf.mxu0
      %v1667 = vadd.f32 0.0, %v1666
      %v1668 = vpop.f32.mrf.mxu0
      %v1669 = vpop.f32.mrf.mxu0
      %1670 = vdwg.mxu0
      %1671 = vmatprep.subr.bf16.mxu0 0
      %1672 = vmatpush1.bf16.msra.mxu0 0
      %1673 = vmatprep.subr.bf16.mxu0 0
      %1674 = vmatpush1.bf16.msra.mxu0 0
      %1675 = vmatprep.subr.bf16.mxu0 0
      %1676 = vmatpush1.bf16.msra.mxu0 0
      %1677 = vmatprep.subr.bf16.mxu0 0
      %1678 = vmatpush1.bf16.msra.mxu0 0
      %1679 = vmatprep.subr.bf16.mxu0 0
      %1680 = vmatpush1.bf16.msra.mxu0 0
      %1681 = vmatprep.subr.bf16.mxu0 0
      %1682 = vmatpush1.bf16.msra.mxu0 0
      %1683 = vmatprep.subr.bf16.mxu0 %v1423
      %1684 = vmatpush1.bf16.msra.mxu0 %v1420
      %1685 = vmatprep.subr.bf16.mxu0 %v1354
      %1686 = vmatpush1.bf16.msra.mxu0 %v1353
      %1687 = vmatprep.subr.bf16.mxu0 0
      %1688 = vmatpush2.bf16.msra.mxu0 0
      %1689 = vmatprep.subr.bf16.mxu0 0
      %1690 = vmatpush2.bf16.msra.mxu0 0
      %1691 = vmatprep.subr.bf16.mxu0 0
      %1692 = vmatpush2.bf16.msra.mxu0 0
      %1693 = vmatprep.subr.bf16.mxu0 0
      %1694 = vmatpush2.bf16.msra.mxu0 0
      %1695 = vmatprep.subr.bf16.mxu0 0
      %1696 = vmatpush2.bf16.msra.mxu0 0
      %1697 = vmatprep.subr.bf16.mxu0 0
      %1698 = vmatpush2.bf16.msra.mxu0 0
      %1699 = vmatprep.subr.bf16.mxu0 0
      %1700 = vmatpush2.bf16.msra.mxu0 0
      %1701 = vmatprep.subr.bf16.mxu0 0
      %1702 = vmatpush2.bf16.msra.mxu0 0
      %1703 = vmatprep.mubr.bf16.mxu0 0
      %1704 = vmatmul.mubr.bf16.gmra.mxu0 %v330
      %v1705 = vpop.f32.mrf.mxu0
      %v1706 = vadd.f32 0.0, %v1705
      %v1707 = vpop.f32.mrf.mxu0
      %v1708 = vadd.f32 0.0, %v1707
      %v1709 = vpop.f32.mrf.mxu0
      %v1710 = vpop.f32.mrf.mxu0
      %1711 = vdwg.mxu0
      %v1712 = vmul.f32 %v1460, %v668
      %v1713 = vmul.f32 %v1462, %v668
      %v1714 = vmul.f32 %v1501, %v668
      %v1715 = vmul.f32 %v1503, %v668
      %v1716 = vmul.f32 %v1542, %v668
      %v1717 = vmul.f32 %v1544, %v668
      %v1718 = vmul.f32 %v1583, %v668
      %v1719 = vmul.f32 %v1585, %v668
      %v1720 = vmul.f32 %v1624, %v668
      %v1721 = vmul.f32 %v1626, %v668
      %v1722 = vmul.f32 %v1665, %v668
      %v1723 = vmul.f32 %v1667, %v668
      %v1724 = vmul.f32 %v1706, %v668
      %v1725 = vmul.f32 %v1708, %v668
      %v1726 = vadd.f32 %v1712, %v686
      %v1727 = vadd.f32 %v1713, %v686
      %v1728 = vadd.f32 %v1714, %v686
      %v1729 = vadd.f32 %v1715, %v686
      %v1730 = vadd.f32 %v1716, %v686
      %v1731 = vadd.f32 %v1717, %v686
      %v1732 = vadd.f32 %v1718, %v686
      %v1733 = vadd.f32 %v1719, %v686
      %v1734 = vadd.f32 %v1720, %v686
      %v1735 = vadd.f32 %v1721, %v686
      %v1736 = vadd.f32 %v1722, %v686
      %v1737 = vadd.f32 %v1723, %v686
      %v1738 = vadd.f32 %v1724, %v686
      %v1739 = vadd.f32 %v1725, %v686
      %v1740 = vmax.f32 %v1214, %v1726
      %v1741 = vmax.f32 %v1215, %v1727
      %v1742 = vmax.f32 %v1216, %v1728
      %v1743 = vmax.f32 %v1217, %v1729
      %v1744 = vmax.f32 %v1218, %v1730
      %v1745 = vmax.f32 %v1219, %v1731
      %v1746 = vmax.f32 %v1220, %v1732
      %v1747 = vmax.f32 %v1221, %v1733
      %v1748 = vmax.f32 %v1222, %v1734
      %v1749 = vmax.f32 %v1223, %v1735
      %v1750 = vmax.f32 %v1224, %v1736
      %v1751 = vmax.f32 %v1225, %v1737
      %v1752 = vmax.f32 %v1226, %v1738
      %v1753 = vmax.f32 %v1227, %v1739
      %s1754 = scalar_lea.vmem %s165, 672
      %v1755 = vld [vmem:[%s1754] sm:$0xff]
      %v1756 = vld [vmem:[%s1754 + $0x8] sm:$0xff]
      %v1757 = vld [vmem:[%s1754 + $0x10] sm:$0xff]
      %v1758 = vld [vmem:[%s1754 + $0x18] sm:$0xff]
      %v1759 = vld [vmem:[%s1754 + $0x20] sm:$0xff]
      %v1760 = vld [vmem:[%s1754 + $0x28] sm:$0xff]
      %v1761 = vld [vmem:[%s1754 + $0x30] sm:$0xff]
      %v1762 = vld [vmem:[%s1754 + $0x38] sm:$0xff]
      %v1763 = vld [vmem:[%s1754 + $0x40] sm:$0xff]
      %v1764 = vld [vmem:[%s1754 + $0x48] sm:$0xff]
      %v1765 = vld [vmem:[%s1754 + $0x50] sm:$0xff]
      %v1766 = vld [vmem:[%s1754 + $0x58] sm:$0xff]
      %v1767 = vld [vmem:[%s1754 + $0x60] sm:$0xff]
      %v1768 = vld [vmem:[%s1754 + $0x68] sm:$0xff]
      %v1769 = vld [vmem:[%s1754 + $0x70] sm:$0xff]
      %v1770 = vld [vmem:[%s1754 + $0x78] sm:$0xff]
      %v1771 = vld [vmem:[%s1754 + $0x80] sm:$0xff]
      %v1772 = vld [vmem:[%s1754 + $0x88] sm:$0xff]
      %v1773 = vld [vmem:[%s1754 + $0x90] sm:$0xff]
      %v1774 = vld [vmem:[%s1754 + $0x98] sm:$0xff]
      %v1775 = vld [vmem:[%s1754 + $0xa0] sm:$0xff]
      %v1776 = vld [vmem:[%s1754 + $0xa8] sm:$0x33]
      %v1777 = vld [vmem:[%s1754 + $0xb0] sm:$0x33]
      %v1778 = vld [vmem:[%s1754 + $0xb8] sm:$0x33]
      %v1779 = vld [vmem:[%s1754 + $0xc0] sm:$0x33]
      %v1780 = vld [vmem:[%s1754 + $0xc8] sm:$0x33]
      %v1781 = vld [vmem:[%s1754 + $0xd0] sm:$0x33]
      %v1782 = vld [vmem:[%s1754 + $0xd8] sm:$0x33]
      %v1811 = vunpack.c.l.b16 %v1755
      %v1812 = vunpack.c.h.b16 %v1755
      %v1813 = vunpack.c.l.b16 %v1756
      %v1814 = vunpack.c.h.b16 %v1756
      %v1815 = vunpack.c.l.b16 %v1757
      %v1816 = vunpack.c.h.b16 %v1757
      %v1817 = vunpack.c.l.b16 %v1758
      %v1818 = vunpack.c.h.b16 %v1758
      %v1819 = vunpack.c.l.b16 %v1759
      %v1820 = vunpack.c.h.b16 %v1759
      %v1821 = vunpack.c.l.b16 %v1760
      %v1822 = vunpack.c.h.b16 %v1760
      %v1823 = vunpack.c.l.b16 %v1761
      %v1824 = vunpack.c.h.b16 %v1761
      %v1825 = vunpack.c.l.b16 %v1762
      %v1826 = vunpack.c.h.b16 %v1762
      %v1827 = vunpack.c.l.b16 %v1763
      %v1828 = vunpack.c.h.b16 %v1763
      %v1829 = vunpack.c.l.b16 %v1764
      %v1830 = vunpack.c.h.b16 %v1764
      %v1831 = vunpack.c.l.b16 %v1765
      %v1832 = vunpack.c.h.b16 %v1765
      %v1833 = vunpack.c.l.b16 %v1766
      %v1834 = vunpack.c.h.b16 %v1766
      %v1835 = vunpack.c.l.b16 %v1767
      %v1836 = vunpack.c.h.b16 %v1767
      %v1837 = vunpack.c.l.b16 %v1768
      %v1838 = vunpack.c.h.b16 %v1768
      %v1839 = vunpack.c.l.b16 %v1769
      %v1840 = vunpack.c.h.b16 %v1769
      %v1841 = vunpack.c.l.b16 %v1770
      %v1842 = vunpack.c.h.b16 %v1770
      %v1843 = vunpack.c.l.b16 %v1771
      %v1844 = vunpack.c.h.b16 %v1771
      %v1845 = vunpack.c.l.b16 %v1772
      %v1846 = vunpack.c.h.b16 %v1772
      %v1847 = vunpack.c.l.b16 %v1773
      %v1848 = vunpack.c.h.b16 %v1773
      %v1849 = vunpack.c.l.b16 %v1774
      %v1850 = vunpack.c.h.b16 %v1774
      %v1851 = vunpack.c.l.b16 %v1775
      %v1852 = vunpack.c.h.b16 %v1775
      %v1853 = vunpack.c.l.b16 %v1776
      %v1854 = vunpack.c.h.b16 %v1776
      %v1855 = vunpack.c.l.b16 %v1777
      %v1856 = vunpack.c.h.b16 %v1777
      %v1857 = vunpack.c.l.b16 %v1778
      %v1858 = vunpack.c.h.b16 %v1778
      %v1859 = vunpack.c.l.b16 %v1779
      %v1860 = vunpack.c.h.b16 %v1779
      %v1861 = vunpack.c.l.b16 %v1780
      %v1862 = vunpack.c.h.b16 %v1780
      %v1863 = vunpack.c.l.b16 %v1781
      %v1864 = vunpack.c.h.b16 %v1781
      %v1865 = vunpack.c.l.b16 %v1782
      %v1866 = vunpack.c.h.b16 %v1782
      %v1867 = vpack.c.b16 %v1825, %v1811
      %v1868 = vpack.c.b16 %v1826, %v1812
      %v1869 = vpack.c.b16 %v1827, %v1813
      %v1870 = vpack.c.b16 %v1828, %v1814
      %v1871 = vpack.c.b16 %v1829, %v1815
      %v1872 = vpack.c.b16 %v1830, %v1816
      %v1873 = vpack.c.b16 %v1831, %v1817
      %v1874 = vpack.c.b16 %v1832, %v1818
      %v1875 = vpack.c.b16 %v1833, %v1819
      %v1876 = vpack.c.b16 %v1834, %v1820
      %v1877 = vpack.c.b16 %v1835, %v1821
      %v1878 = vpack.c.b16 %v1836, %v1822
      %v1879 = vpack.c.b16 %v1837, %v1823
      %v1880 = vpack.c.b16 %v1838, %v1824
      %v1881 = vpack.c.b16 %v1853, %v1839
      %v1882 = vpack.c.b16 %v1854, %v1840
      %v1883 = vpack.c.b16 %v1855, %v1841
      %v1884 = vpack.c.b16 %v1856, %v1842
      %v1885 = vpack.c.b16 %v1857, %v1843
      %v1886 = vpack.c.b16 %v1858, %v1844
      %v1887 = vpack.c.b16 %v1859, %v1845
      %v1888 = vpack.c.b16 %v1860, %v1846
      %v1889 = vpack.c.b16 %v1861, %v1847
      %v1890 = vpack.c.b16 %v1862, %v1848
      %v1891 = vpack.c.b16 %v1863, %v1849
      %v1892 = vpack.c.b16 %v1864, %v1850
      %v1893 = vpack.c.b16 %v1865, %v1851
      %v1894 = vpack.c.b16 %v1866, %v1852
      %v1910 = vand.u32 %v1881, %v335
      %v1913 = vand.u32 %v1882, %v335
      %v1916 = vand.u32 %v1883, %v335
      %v1919 = vand.u32 %v1884, %v335
      %v1922 = vand.u32 %v1885, %v335
      %v1925 = vand.u32 %v1886, %v335
      %v1928 = vand.u32 %v1887, %v335
      %v1931 = vand.u32 %v1888, %v335
      %v1934 = vand.u32 %v1889, %v335
      %v1937 = vand.u32 %v1890, %v335
      %v1940 = vand.u32 %v1891, %v335
      %v1943 = vand.u32 %v1892, %v335
      %v1946 = vand.u32 %v1893, %v335
      %v1949 = vand.u32 %v1894, %v335
      %1951 = vmatprep.subr.bf16.mxu0 0
      %1952 = vmatpush1.bf16.msra.mxu0 0
      %1953 = vmatprep.subr.bf16.mxu0 0
      %1954 = vmatpush1.bf16.msra.mxu0 0
      %1955 = vmatprep.subr.bf16.mxu0 0
      %1956 = vmatpush1.bf16.msra.mxu0 0
      %1957 = vmatprep.subr.bf16.mxu0 0
      %1958 = vmatpush1.bf16.msra.mxu0 0
      %1959 = vmatprep.subr.bf16.mxu0 0
      %1960 = vmatpush1.bf16.msra.mxu0 0
      %1961 = vmatprep.subr.bf16.mxu0 0
      %1962 = vmatpush1.bf16.msra.mxu0 0
      %1963 = vmatprep.subr.bf16.mxu0 %v1913
      %1964 = vmatpush1.bf16.msra.mxu0 %v1910
      %1965 = vmatprep.subr.bf16.mxu0 %v1868
      %1966 = vmatpush1.bf16.msra.mxu0 %v1867
      %1967 = vmatprep.subr.bf16.mxu0 0
      %1968 = vmatpush2.bf16.msra.mxu0 0
      %1969 = vmatprep.subr.bf16.mxu0 0
      %1970 = vmatpush2.bf16.msra.mxu0 0
      %1971 = vmatprep.subr.bf16.mxu0 0
      %1972 = vmatpush2.bf16.msra.mxu0 0
      %1973 = vmatprep.subr.bf16.mxu0 0
      %1974 = vmatpush2.bf16.msra.mxu0 0
      %1975 = vmatprep.subr.bf16.mxu0 0
      %1976 = vmatpush2.bf16.msra.mxu0 0
      %1977 = vmatprep.subr.bf16.mxu0 0
      %1978 = vmatpush2.bf16.msra.mxu0 0
      %1979 = vmatprep.subr.bf16.mxu0 0
      %1980 = vmatpush2.bf16.msra.mxu0 0
      %1981 = vmatprep.subr.bf16.mxu0 0
      %1982 = vmatpush2.bf16.msra.mxu0 0
      %1983 = vmatprep.mubr.bf16.mxu0 0
      %1984 = vmatmul.mubr.bf16.gmra.mxu0 %v330
      %v1985 = vpop.f32.mrf.mxu0
      %v1986 = vadd.f32 0.0, %v1985
      %v1987 = vpop.f32.mrf.mxu0
      %v1988 = vadd.f32 0.0, %v1987
      %v1989 = vpop.f32.mrf.mxu0
      %v1990 = vpop.f32.mrf.mxu0
      %1991 = vdwg.mxu0
      %1992 = vmatprep.subr.bf16.mxu0 0
      %1993 = vmatpush1.bf16.msra.mxu0 0
      %1994 = vmatprep.subr.bf16.mxu0 0
      %1995 = vmatpush1.bf16.msra.mxu0 0
      %1996 = vmatprep.subr.bf16.mxu0 0
      %1997 = vmatpush1.bf16.msra.mxu0 0
      %1998 = vmatprep.subr.bf16.mxu0 0
      %1999 = vmatpush1.bf16.msra.mxu0 0
      %2000 = vmatprep.subr.bf16.mxu0 0
      %2001 = vmatpush1.bf16.msra.mxu0 0
      %2002 = vmatprep.subr.bf16.mxu0 0
      %2003 = vmatpush1.bf16.msra.mxu0 0
      %2004 = vmatprep.subr.bf16.mxu0 %v1919
      %2005 = vmatpush1.bf16.msra.mxu0 %v1916
      %2006 = vmatprep.subr.bf16.mxu0 %v1870
      %2007 = vmatpush1.bf16.msra.mxu0 %v1869
      %2008 = vmatprep.subr.bf16.mxu0 0
      %2009 = vmatpush2.bf16.msra.mxu0 0
      %2010 = vmatprep.subr.bf16.mxu0 0
      %2011 = vmatpush2.bf16.msra.mxu0 0
      %2012 = vmatprep.subr.bf16.mxu0 0
      %2013 = vmatpush2.bf16.msra.mxu0 0
      %2014 = vmatprep.subr.bf16.mxu0 0
      %2015 = vmatpush2.bf16.msra.mxu0 0
      %2016 = vmatprep.subr.bf16.mxu0 0
      %2017 = vmatpush2.bf16.msra.mxu0 0
      %2018 = vmatprep.subr.bf16.mxu0 0
      %2019 = vmatpush2.bf16.msra.mxu0 0
      %2020 = vmatprep.subr.bf16.mxu0 0
      %2021 = vmatpush2.bf16.msra.mxu0 0
      %2022 = vmatprep.subr.bf16.mxu0 0
      %2023 = vmatpush2.bf16.msra.mxu0 0
      %2024 = vmatprep.mubr.bf16.mxu0 0
      %2025 = vmatmul.mubr.bf16.gmra.mxu0 %v330
      %v2026 = vpop.f32.mrf.mxu0
      %v2027 = vadd.f32 0.0, %v2026
      %v2028 = vpop.f32.mrf.mxu0
      %v2029 = vadd.f32 0.0, %v2028
      %v2030 = vpop.f32.mrf.mxu0
      %v2031 = vpop.f32.mrf.mxu0
      %2032 = vdwg.mxu0
      %2033 = vmatprep.subr.bf16.mxu0 0
      %2034 = vmatpush1.bf16.msra.mxu0 0
      %2035 = vmatprep.subr.bf16.mxu0 0
      %2036 = vmatpush1.bf16.msra.mxu0 0
      %2037 = vmatprep.subr.bf16.mxu0 0
      %2038 = vmatpush1.bf16.msra.mxu0 0
      %2039 = vmatprep.subr.bf16.mxu0 0
      %2040 = vmatpush1.bf16.msra.mxu0 0
      %2041 = vmatprep.subr.bf16.mxu0 0
      %2042 = vmatpush1.bf16.msra.mxu0 0
      %2043 = vmatprep.subr.bf16.mxu0 0
      %2044 = vmatpush1.bf16.msra.mxu0 0
      %2045 = vmatprep.subr.bf16.mxu0 %v1925
      %2046 = vmatpush1.bf16.msra.mxu0 %v1922
      %2047 = vmatprep.subr.bf16.mxu0 %v1872
      %2048 = vmatpush1.bf16.msra.mxu0 %v1871
      %2049 = vmatprep.subr.bf16.mxu0 0
      %2050 = vmatpush2.bf16.msra.mxu0 0
      %2051 = vmatprep.subr.bf16.mxu0 0
      %2052 = vmatpush2.bf16.msra.mxu0 0
      %2053 = vmatprep.subr.bf16.mxu0 0
      %2054 = vmatpush2.bf16.msra.mxu0 0
      %2055 = vmatprep.subr.bf16.mxu0 0
      %2056 = vmatpush2.bf16.msra.mxu0 0
      %2057 = vmatprep.subr.bf16.mxu0 0
      %2058 = vmatpush2.bf16.msra.mxu0 0
      %2059 = vmatprep.subr.bf16.mxu0 0
      %2060 = vmatpush2.bf16.msra.mxu0 0
      %2061 = vmatprep.subr.bf16.mxu0 0
      %2062 = vmatpush2.bf16.msra.mxu0 0
      %2063 = vmatprep.subr.bf16.mxu0 0
      %2064 = vmatpush2.bf16.msra.mxu0 0
      %2065 = vmatprep.mubr.bf16.mxu0 0
      %2066 = vmatmul.mubr.bf16.gmra.mxu0 %v330
      %v2067 = vpop.f32.mrf.mxu0
      %v2068 = vadd.f32 0.0, %v2067
      %v2069 = vpop.f32.mrf.mxu0
      %v2070 = vadd.f32 0.0, %v2069
      %v2071 = vpop.f32.mrf.mxu0
      %v2072 = vpop.f32.mrf.mxu0
      %2073 = vdwg.mxu0
      %2074 = vmatprep.subr.bf16.mxu0 0
      %2075 = vmatpush1.bf16.msra.mxu0 0
      %2076 = vmatprep.subr.bf16.mxu0 0
      %2077 = vmatpush1.bf16.msra.mxu0 0
      %2078 = vmatprep.subr.bf16.mxu0 0
      %2079 = vmatpush1.bf16.msra.mxu0 0
      %2080 = vmatprep.subr.bf16.mxu0 0
      %2081 = vmatpush1.bf16.msra.mxu0 0
      %2082 = vmatprep.subr.bf16.mxu0 0
      %2083 = vmatpush1.bf16.msra.mxu0 0
      %2084 = vmatprep.subr.bf16.mxu0 0
      %2085 = vmatpush1.bf16.msra.mxu0 0
      %2086 = vmatprep.subr.bf16.mxu0 %v1931
      %2087 = vmatpush1.bf16.msra.mxu0 %v1928
      %2088 = vmatprep.subr.bf16.mxu0 %v1874
      %2089 = vmatpush1.bf16.msra.mxu0 %v1873
      %2090 = vmatprep.subr.bf16.mxu0 0
      %2091 = vmatpush2.bf16.msra.mxu0 0
      %2092 = vmatprep.subr.bf16.mxu0 0
      %2093 = vmatpush2.bf16.msra.mxu0 0
      %2094 = vmatprep.subr.bf16.mxu0 0
      %2095 = vmatpush2.bf16.msra.mxu0 0
      %2096 = vmatprep.subr.bf16.mxu0 0
      %2097 = vmatpush2.bf16.msra.mxu0 0
      %2098 = vmatprep.subr.bf16.mxu0 0
      %2099 = vmatpush2.bf16.msra.mxu0 0
      %2100 = vmatprep.subr.bf16.mxu0 0
      %2101 = vmatpush2.bf16.msra.mxu0 0
      %2102 = vmatprep.subr.bf16.mxu0 0
      %2103 = vmatpush2.bf16.msra.mxu0 0
      %2104 = vmatprep.subr.bf16.mxu0 0
      %2105 = vmatpush2.bf16.msra.mxu0 0
      %2106 = vmatprep.mubr.bf16.mxu0 0
      %2107 = vmatmul.mubr.bf16.gmra.mxu0 %v330
      %v2108 = vpop.f32.mrf.mxu0
      %v2109 = vadd.f32 0.0, %v2108
      %v2110 = vpop.f32.mrf.mxu0
      %v2111 = vadd.f32 0.0, %v2110
      %v2112 = vpop.f32.mrf.mxu0
      %v2113 = vpop.f32.mrf.mxu0
      %2114 = vdwg.mxu0
      %2115 = vmatprep.subr.bf16.mxu0 0
      %2116 = vmatpush1.bf16.msra.mxu0 0
      %2117 = vmatprep.subr.bf16.mxu0 0
      %2118 = vmatpush1.bf16.msra.mxu0 0
      %2119 = vmatprep.subr.bf16.mxu0 0
      %2120 = vmatpush1.bf16.msra.mxu0 0
      %2121 = vmatprep.subr.bf16.mxu0 0
      %2122 = vmatpush1.bf16.msra.mxu0 0
      %2123 = vmatprep.subr.bf16.mxu0 0
      %2124 = vmatpush1.bf16.msra.mxu0 0
      %2125 = vmatprep.subr.bf16.mxu0 0
      %2126 = vmatpush1.bf16.msra.mxu0 0
      %2127 = vmatprep.subr.bf16.mxu0 %v1937
      %2128 = vmatpush1.bf16.msra.mxu0 %v1934
      %2129 = vmatprep.subr.bf16.mxu0 %v1876
      %2130 = vmatpush1.bf16.msra.mxu0 %v1875
      %2131 = vmatprep.subr.bf16.mxu0 0
      %2132 = vmatpush2.bf16.msra.mxu0 0
      %2133 = vmatprep.subr.bf16.mxu0 0
      %2134 = vmatpush2.bf16.msra.mxu0 0
      %2135 = vmatprep.subr.bf16.mxu0 0
      %2136 = vmatpush2.bf16.msra.mxu0 0
      %2137 = vmatprep.subr.bf16.mxu0 0
      %2138 = vmatpush2.bf16.msra.mxu0 0
      %2139 = vmatprep.subr.bf16.mxu0 0
      %2140 = vmatpush2.bf16.msra.mxu0 0
      %2141 = vmatprep.subr.bf16.mxu0 0
      %2142 = vmatpush2.bf16.msra.mxu0 0
      %2143 = vmatprep.subr.bf16.mxu0 0
      %2144 = vmatpush2.bf16.msra.mxu0 0
      %2145 = vmatprep.subr.bf16.mxu0 0
      %2146 = vmatpush2.bf16.msra.mxu0 0
      %2147 = vmatprep.mubr.bf16.mxu0 0
      %2148 = vmatmul.mubr.bf16.gmra.mxu0 %v330
      %v2149 = vpop.f32.mrf.mxu0
      %v2150 = vadd.f32 0.0, %v2149
      %v2151 = vpop.f32.mrf.mxu0
      %v2152 = vadd.f32 0.0, %v2151
      %v2153 = vpop.f32.mrf.mxu0
      %v2154 = vpop.f32.mrf.mxu0
      %2155 = vdwg.mxu0
      %2156 = vmatprep.subr.bf16.mxu0 0
      %2157 = vmatpush1.bf16.msra.mxu0 0
      %2158 = vmatprep.subr.bf16.mxu0 0
      %2159 = vmatpush1.bf16.msra.mxu0 0
      %2160 = vmatprep.subr.bf16.mxu0 0
      %2161 = vmatpush1.bf16.msra.mxu0 0
      %2162 = vmatprep.subr.bf16.mxu0 0
      %2163 = vmatpush1.bf16.msra.mxu0 0
      %2164 = vmatprep.subr.bf16.mxu0 0
      %2165 = vmatpush1.bf16.msra.mxu0 0
      %2166 = vmatprep.subr.bf16.mxu0 0
      %2167 = vmatpush1.bf16.msra.mxu0 0
      %2168 = vmatprep.subr.bf16.mxu0 %v1943
      %2169 = vmatpush1.bf16.msra.mxu0 %v1940
      %2170 = vmatprep.subr.bf16.mxu0 %v1878
      %2171 = vmatpush1.bf16.msra.mxu0 %v1877
      %2172 = vmatprep.subr.bf16.mxu0 0
      %2173 = vmatpush2.bf16.msra.mxu0 0
      %2174 = vmatprep.subr.bf16.mxu0 0
      %2175 = vmatpush2.bf16.msra.mxu0 0
      %2176 = vmatprep.subr.bf16.mxu0 0
      %2177 = vmatpush2.bf16.msra.mxu0 0
      %2178 = vmatprep.subr.bf16.mxu0 0
      %2179 = vmatpush2.bf16.msra.mxu0 0
      %2180 = vmatprep.subr.bf16.mxu0 0
      %2181 = vmatpush2.bf16.msra.mxu0 0
      %2182 = vmatprep.subr.bf16.mxu0 0
      %2183 = vmatpush2.bf16.msra.mxu0 0
      %2184 = vmatprep.subr.bf16.mxu0 0
      %2185 = vmatpush2.bf16.msra.mxu0 0
      %2186 = vmatprep.subr.bf16.mxu0 0
      %2187 = vmatpush2.bf16.msra.mxu0 0
      %2188 = vmatprep.mubr.bf16.mxu0 0
      %2189 = vmatmul.mubr.bf16.gmra.mxu0 %v330
      %v2190 = vpop.f32.mrf.mxu0
      %v2191 = vadd.f32 0.0, %v2190
      %v2192 = vpop.f32.mrf.mxu0
      %v2193 = vadd.f32 0.0, %v2192
      %v2194 = vpop.f32.mrf.mxu0
      %v2195 = vpop.f32.mrf.mxu0
      %2196 = vdwg.mxu0
      %2197 = vmatprep.subr.bf16.mxu0 0
      %2198 = vmatpush1.bf16.msra.mxu0 0
      %2199 = vmatprep.subr.bf16.mxu0 0
      %2200 = vmatpush1.bf16.msra.mxu0 0
      %2201 = vmatprep.subr.bf16.mxu0 0
      %2202 = vmatpush1.bf16.msra.mxu0 0
      %2203 = vmatprep.subr.bf16.mxu0 0
      %2204 = vmatpush1.bf16.msra.mxu0 0
      %2205 = vmatprep.subr.bf16.mxu0 0
      %2206 = vmatpush1.bf16.msra.mxu0 0
      %2207 = vmatprep.subr.bf16.mxu0 0
      %2208 = vmatpush1.bf16.msra.mxu0 0
      %2209 = vmatprep.subr.bf16.mxu0 %v1949
      %2210 = vmatpush1.bf16.msra.mxu0 %v1946
      %2211 = vmatprep.subr.bf16.mxu0 %v1880
      %2212 = vmatpush1.bf16.msra.mxu0 %v1879
      %2213 = vmatprep.subr.bf16.mxu0 0
      %2214 = vmatpush2.bf16.msra.mxu0 0
      %2215 = vmatprep.subr.bf16.mxu0 0
      %2216 = vmatpush2.bf16.msra.mxu0 0
      %2217 = vmatprep.subr.bf16.mxu0 0
      %2218 = vmatpush2.bf16.msra.mxu0 0
      %2219 = vmatprep.subr.bf16.mxu0 0
      %2220 = vmatpush2.bf16.msra.mxu0 0
      %2221 = vmatprep.subr.bf16.mxu0 0
      %2222 = vmatpush2.bf16.msra.mxu0 0
      %2223 = vmatprep.subr.bf16.mxu0 0
      %2224 = vmatpush2.bf16.msra.mxu0 0
      %2225 = vmatprep.subr.bf16.mxu0 0
      %2226 = vmatpush2.bf16.msra.mxu0 0
      %2227 = vmatprep.subr.bf16.mxu0 0
      %2228 = vmatpush2.bf16.msra.mxu0 0
      %2229 = vmatprep.mubr.bf16.mxu0 0
      %2230 = vmatmul.mubr.bf16.gmra.mxu0 %v330
      %v2231 = vpop.f32.mrf.mxu0
      %v2232 = vadd.f32 0.0, %v2231
      %v2233 = vpop.f32.mrf.mxu0
      %v2234 = vadd.f32 0.0, %v2233
      %v2235 = vpop.f32.mrf.mxu0
      %v2236 = vpop.f32.mrf.mxu0
      %2237 = vdwg.mxu0
      %v2238 = vmul.f32 %v1986, %v668
      %v2239 = vmul.f32 %v1988, %v668
      %v2240 = vmul.f32 %v2027, %v668
      %v2241 = vmul.f32 %v2029, %v668
      %v2242 = vmul.f32 %v2068, %v668
      %v2243 = vmul.f32 %v2070, %v668
      %v2244 = vmul.f32 %v2109, %v668
      %v2245 = vmul.f32 %v2111, %v668
      %v2246 = vmul.f32 %v2150, %v668
      %v2247 = vmul.f32 %v2152, %v668
      %v2248 = vmul.f32 %v2191, %v668
      %v2249 = vmul.f32 %v2193, %v668
      %v2250 = vmul.f32 %v2232, %v668
      %v2251 = vmul.f32 %v2234, %v668
      %v2252 = vadd.f32 %v2238, %v686
      %v2253 = vadd.f32 %v2239, %v686
      %v2254 = vadd.f32 %v2240, %v686
      %v2255 = vadd.f32 %v2241, %v686
      %v2256 = vadd.f32 %v2242, %v686
      %v2257 = vadd.f32 %v2243, %v686
      %v2258 = vadd.f32 %v2244, %v686
      %v2259 = vadd.f32 %v2245, %v686
      %v2260 = vadd.f32 %v2246, %v686
      %v2261 = vadd.f32 %v2247, %v686
      %v2262 = vadd.f32 %v2248, %v686
      %v2263 = vadd.f32 %v2249, %v686
      %v2264 = vadd.f32 %v2250, %v686
      %v2265 = vadd.f32 %v2251, %v686
      %v2266 = vmax.f32 %v1740, %v2252
      %v2267 = vmax.f32 %v1741, %v2253
      %v2268 = vmax.f32 %v1742, %v2254
      %v2269 = vmax.f32 %v1743, %v2255
      %v2270 = vmax.f32 %v1744, %v2256
      %v2271 = vmax.f32 %v1745, %v2257
      %v2272 = vmax.f32 %v1746, %v2258
      %v2273 = vmax.f32 %v1747, %v2259
      %v2274 = vmax.f32 %v1748, %v2260
      %v2275 = vmax.f32 %v1749, %v2261
      %v2276 = vmax.f32 %v1750, %v2262
      %v2277 = vmax.f32 %v1751, %v2263
      %v2278 = vmax.f32 %v1752, %v2264
      %v2279 = vmax.f32 %v1753, %v2265
      %v2280 = vmax.f32 %v2266, 0.0
      %v2281 = vmax.f32 %v2267, 0.0
      %v2282 = vmax.f32 %v2268, 0.0
      %v2283 = vmax.f32 %v2269, 0.0
      %v2284 = vmax.f32 %v2270, 0.0
      %v2285 = vmax.f32 %v2271, 0.0
      %v2286 = vmax.f32 %v2272, 0.0
      %v2287 = vmax.f32 %v2273, 0.0
      %v2288 = vmax.f32 %v2274, 0.0
      %v2289 = vmax.f32 %v2275, 0.0
      %v2290 = vmax.f32 %v2276, 0.0
      %v2291 = vmax.f32 %v2277, 0.0
      %v2292 = vmax.f32 %v2278, 0.0
      %v2293 = vmax.f32 %v2279, 0.0
      %v2294 = vpack.c.bf16 %v2280, %v2280
      %v2295 = vpack.c.bf16 %v2281, %v2281
      %v2296 = vpack.c.bf16 %v2282, %v2282
      %v2297 = vpack.c.bf16 %v2283, %v2283
      %v2298 = vpack.c.bf16 %v2284, %v2284
      %v2299 = vpack.c.bf16 %v2285, %v2285
      %v2300 = vpack.c.bf16 %v2286, %v2286
      %v2301 = vpack.c.bf16 %v2287, %v2287
      %v2302 = vpack.c.bf16 %v2288, %v2288
      %v2303 = vpack.c.bf16 %v2289, %v2289
      %v2304 = vpack.c.bf16 %v2290, %v2290
      %v2305 = vpack.c.bf16 %v2291, %v2291
      %v2306 = vpack.c.bf16 %v2292, %v2292
      %v2307 = vpack.c.bf16 %v2293, %v2293
      %v2322 = vunpack.c.l.b16 %v2294
      %v2323 = vunpack.c.l.b16 %v2295
      %v2324 = vunpack.c.l.b16 %v2296
      %v2325 = vunpack.c.l.b16 %v2297
      %v2326 = vunpack.c.l.b16 %v2298
      %v2327 = vunpack.c.l.b16 %v2299
      %v2328 = vunpack.c.l.b16 %v2300
      %v2329 = vunpack.c.l.b16 %v2301
      %v2330 = vunpack.c.l.b16 %v2302
      %v2331 = vunpack.c.l.b16 %v2303
      %v2332 = vunpack.c.l.b16 %v2304
      %v2333 = vunpack.c.l.b16 %v2305
      %v2334 = vunpack.c.l.b16 %v2306
      %v2335 = vunpack.c.l.b16 %v2307
      %v2336 = vpack.c.b16 %v2323, %v2322
      %v2337 = vpack.c.b16 %v2325, %v2324
      %v2338 = vpack.c.b16 %v2327, %v2326
      %v2339 = vpack.c.b16 %v2329, %v2328
      %v2340 = vpack.c.b16 %v2331, %v2330
      %v2341 = vpack.c.b16 %v2333, %v2332
      %v2342 = vpack.c.b16 %v2335, %v2334
      %2350 = vst [vmem:[%s170] sm:$0xff] %v2336
      %2351 = vst [vmem:[%s170 + $0x8] sm:$0xff] %v2337
      %2352 = vst [vmem:[%s170 + $0x10] sm:$0xff] %v2338
      %2353 = vst [vmem:[%s170 + $0x18] sm:$0xff] %v2339
      %2354 = vst [vmem:[%s170 + $0x20] sm:$0xff] %v2340
      %2355 = vst [vmem:[%s170 + $0x28] sm:$0xff] %v2341
      %vm2356 = vcmask 1043456
      %vm2357 = vcmask 818180
      %vm2358 = vmor %vm2357, %vm2356
      %2359 = vst.msk [vmem:[%s170 + $0x30] sm:$0xff] %vm2358, %v2342
      %p2360 = scmp.lt.s32.totalorder %s14, 1
      %s2361 = scalar_select %p2360, %s14, 1
      %s2362 = smul.addr %s2361, 14
      %s2363 = smul.addr %s2362, 4
      %s2364 = scalar_lea.vmem %s3, %s2363
      // Predicated region
      $region33: #{forward.3} parent=31 // pred_check
        %p2365 = pneg %p100
      $region34: #{forward.3} parent=31 // pred_check_branch
        %2367 = sbr.rel (%p2365) target = $region36
      $region35: #{forward.3} parent=31 // pred_region
        _
      $region36: #{forward.3} parent=31 // pred_fallthru
        _
    $region32: #{forward.3} parent=5 // pred_fallthru
      _
    %p2368 = scmp.le.s32.totalorder 2, %s9
    // Predicated region
    $region37: #{forward.3} parent=5 // pred_check
      %p2369 = pneg %p2368
    $region38: #{forward.3} parent=5 // pred_check_branch
      %2371 = sbr.rel (%p2369) target = $region40
    $region39: #{forward.3} parent=5 // pred_region
      %s2372 = ssub.s32 %s9, 2
      // Predicated region
      $region41: #{forward.3} parent=39 // pred_check
        %p2373 = pneg %p106
      $region42: #{forward.3} parent=39 // pred_check_branch
        %2375 = sbr.rel (%p2373) target = $region44
      $region43: #{forward.3} parent=39 // pred_region
        %p2376 = scmp.lt.s32.totalorder %s15, 1
        %s2377 = scalar_select %p2376, %s15, 1
        %s2378 = smul.addr %s2377, 14
        %s2379 = smul.addr %s2378, 4
        %s2380 = scalar_lea.vmem %s3, %s2379
      $region44: #{forward.3} parent=39 // pred_fallthru
        _
    $region40: #{forward.3} parent=5 // pred_fallthru
      _
  $region6: #{forward.3} parent=0 // loop_footer
    %s13 = sadd.s32 1, %s9
  $region7: #{forward.3} parent=0 // loop_footer_branch
    %8 = sbr.rel target = $region3
  $region8: #{forward.3} parent=0 // loop_exit
    _

// kernel: forward.4
$region0: #{forward.4}
  #allocation0 [shape = 'u32[]', space=smem, size = 0x4, offset = 0x4, fixed_abs, tag = 'smem constant byte address 0x4 - core index']
  #allocation1 [shape = 'u32[144,128]{1,0:T(1,128)}', space=vmem, size = 0x12000, scoped, tag = 'internal scratch']
  %s0 = inlined_call_operand.vmem [shape: bf16[2,4,72,441], index: 0, kind: input, shape index: {}]
  %s1 = inlined_call_operand.vmem [shape: bf16[16,72], index: 1, kind: input, shape index: {}]
  %s2 = inlined_call_operand.vmem [shape: f32[16,2], index: 2, kind: input, shape index: {}]
  %s3 = inlined_call_operand.vmem [shape: bf16[2,16,441], index: 3, kind: output, shape index: {}]
  %s4 = sld [smem:[#allocation0]]
  $region45: #{forward.4} parent=0
    _
  %s6 = ssub.s32 1, %s4
  %s7 = scalar_select 0, %s6, %s4
  loop: start=0, step=1, limit=4
  $region2: #{forward.4} parent=0 // loop_pre_header
    _
  $region3: #{forward.4} parent=0 // loop_header
    %s9 = sphi 0, %s13
    %p10 = scmp.ge.s32.totalorder %s9, 4
    %s19 = sphi 0, %s21
    %s22 = sphi 0, %s19
    %s23 = sphi 0, %s22
    %s39 = sphi 0, %s23
    %s43 = sphi 0, %s43
    %s45 = sphi 0, %s43
    %s46 = sphi 0, %s45
    %s60 = sphi 0, %s46
    %s64 = sphi 0, %s64
    %s66 = sphi 0, %s64
    %s67 = sphi 0, %s66
    %s81 = sphi 0, %s67
    %s87 = sphi 0, %s89
    %s90 = sphi 0, %s87
    %s91 = sphi 0, %s90
    %s107 = sphi 0, %s91
  $region4: #{forward.4} parent=0 // loop_header_branch
    %12 = sbr.rel (%p10) target = $region8
  $region5: #{forward.4} parent=0 // loop_body
    %s14 = ssub.s32 %s9, 1
    %s15 = ssub.s32 %s9, 2
    %s16 = sadd.s32 %s9, 1
    %s17 = ssub.s32 %s9, %s16
    %p18 = scmp.eq.s32.totalorder %s17, 0
    %s20 = sadd.s32 %s19, 1
    %s21 = scalar_select %p18, %s19, %s20
    %p24 = pneg %p18
    %p25 = scmp.eq.s32.totalorder %s9, 1
    %p26 = por %p24, %p25
    %p27 = scmp.ne.s32.totalorder %s19, %s22
    %p28 = scmp.eq.s32.totalorder %s9, 0
    %p29 = por %p27, %p28
    %p30 = scmp.ne.s32.totalorder %s19, %s22
    %p31 = scmp.eq.s32.totalorder %s14, 1
    %p32 = por %p30, %p31
    %p33 = scmp.ne.s32.totalorder %s22, %s23
    %p34 = scmp.eq.s32.totalorder %s14, 0
    %p35 = por %p33, %p34
    %p36 = scmp.ne.s32.totalorder %s22, %s23
    %p37 = scmp.eq.s32.totalorder %s15, 1
    %p38 = por %p36, %p37
    %p40 = scmp.ne.s32.totalorder %s23, %s39
    %p41 = scmp.eq.s32.totalorder %s15, 0
    %p42 = por %p40, %p41
    %s44 = sadd.s32 %s43, 1
    %p47 = scmp.eq.s32.totalorder %s9, 1
    %p48 = scmp.ne.s32.totalorder %s43, %s45
    %p49 = scmp.eq.s32.totalorder %s9, 0
    %p50 = por %p48, %p49
    %p51 = scmp.ne.s32.totalorder %s43, %s45
    %p52 = scmp.eq.s32.totalorder %s14, 1
    %p53 = por %p51, %p52
    %p54 = scmp.ne.s32.totalorder %s45, %s46
    %p55 = scmp.eq.s32.totalorder %s14, 0
    %p56 = por %p54, %p55
    %p57 = scmp.ne.s32.totalorder %s45, %s46
    %p58 = scmp.eq.s32.totalorder %s15, 1
    %p59 = por %p57, %p58
    %p61 = scmp.ne.s32.totalorder %s46, %s60
    %p62 = scmp.eq.s32.totalorder %s15, 0
    %p63 = por %p61, %p62
    %s65 = sadd.s32 %s64, 1
    %p68 = scmp.eq.s32.totalorder %s9, 1
    %p69 = scmp.ne.s32.totalorder %s64, %s66
    %p70 = scmp.eq.s32.totalorder %s9, 0
    %p71 = por %p69, %p70
    %p72 = scmp.ne.s32.totalorder %s64, %s66
    %p73 = scmp.eq.s32.totalorder %s14, 1
    %p74 = por %p72, %p73
    %p75 = scmp.ne.s32.totalorder %s66, %s67
    %p76 = scmp.eq.s32.totalorder %s14, 0
    %p77 = por %p75, %p76
    %p78 = scmp.ne.s32.totalorder %s66, %s67
    %p79 = scmp.eq.s32.totalorder %s15, 1
    %p80 = por %p78, %p79
    %p82 = scmp.ne.s32.totalorder %s67, %s81
    %p83 = scmp.eq.s32.totalorder %s15, 0
    %p84 = por %p82, %p83
    %s85 = ssub.s32 %s9, %s16
    %p86 = scmp.eq.s32.totalorder %s85, 0
    %s88 = sadd.s32 %s87, 1
    %s89 = scalar_select %p86, %s87, %s88
    %p92 = pneg %p86
    %p93 = scmp.eq.s32.totalorder %s9, 1
    %p94 = por %p92, %p93
    %p95 = scmp.ne.s32.totalorder %s87, %s90
    %p96 = scmp.eq.s32.totalorder %s9, 0
    %p97 = por %p95, %p96
    %p98 = scmp.ne.s32.totalorder %s87, %s90
    %p99 = scmp.eq.s32.totalorder %s14, 1
    %p100 = por %p98, %p99
    %p101 = scmp.ne.s32.totalorder %s90, %s91
    %p102 = scmp.eq.s32.totalorder %s14, 0
    %p103 = por %p101, %p102
    %p104 = scmp.ne.s32.totalorder %s90, %s91
    %p105 = scmp.eq.s32.totalorder %s15, 1
    %p106 = por %p104, %p105
    %p108 = scmp.ne.s32.totalorder %s91, %s107
    %p109 = scmp.eq.s32.totalorder %s15, 0
    %p110 = por %p108, %p109
    %p111 = scmp.le.s32.totalorder 1, %s9
    %p112 = scmp.lt.s32.totalorder %s9, 3
    %p113 = pnand %p111, %p112
    %p114 = pneg %p113
    // Predicated region
    $region9: #{forward.4} parent=5 // pred_check
      _
    $region10: #{forward.4} parent=5 // pred_check_branch
      %116 = sbr.rel (%p113) target = $region12
    $region11: #{forward.4} parent=5 // pred_region
      %s117 = ssub.s32 %s9, 1
      // Predicated region
      $region13: #{forward.4} parent=11 // pred_check
        %p118 = pneg %p56
      $region14: #{forward.4} parent=11 // pred_check_branch
        %120 = sbr.rel (%p118) target = $region16
      $region15: #{forward.4} parent=11 // pred_region
        _
      $region16: #{forward.4} parent=11 // pred_fallthru
        _
      // Predicated region
      $region17: #{forward.4} parent=11 // pred_check
        %p121 = pneg %p77
      $region18: #{forward.4} parent=11 // pred_check_branch
        %123 = sbr.rel (%p121) target = $region20
      $region19: #{forward.4} parent=11 // pred_region
        _
      $region20: #{forward.4} parent=11 // pred_fallthru
        _
    $region12: #{forward.4} parent=5 // pred_fallthru
      _
    %p124 = scmp.lt.s32.totalorder %s9, 2
    // Predicated region
    $region21: #{forward.4} parent=5 // pred_check
      %p125 = pneg %p124
    $region22: #{forward.4} parent=5 // pred_check_branch
      %127 = sbr.rel (%p125) target = $region24
    $region23: #{forward.4} parent=5 // pred_region
      // Predicated region
      $region25: #{forward.4} parent=23 // pred_check
        %p128 = pneg %p29
      $region26: #{forward.4} parent=23 // pred_check_branch
        %130 = sbr.rel (%p128) target = $region28
      $region27: #{forward.4} parent=23 // pred_region
        %p131 = scmp.lt.s32.totalorder %s9, 1
        %s132 = scalar_select %p131, %s9, 1
        %s133 = smul.addr %s132, 144
        %s134 = smul.addr %s133, 4
        %s135 = scalar_lea.vmem %s0, %s134
      $region28: #{forward.4} parent=23 // pred_fallthru
        _
    $region24: #{forward.4} parent=5 // pred_fallthru
      _
    %p136 = scmp.le.s32.totalorder 1, %s9
    %p137 = scmp.lt.s32.totalorder %s9, 3
    %p138 = pnand %p136, %p137
    %p139 = pneg %p138
    // Predicated region
    $region29: #{forward.4} parent=5 // pred_check
      _
    $region30: #{forward.4} parent=5 // pred_check_branch
      %141 = sbr.rel (%p138) target = $region32
    $region31: #{forward.4} parent=5 // pred_region
      %s142 = ssub.s32 %s9, 1
      %p143 = scmp.lt.s32.totalorder %s14, 1
      %s144 = scalar_select %p143, %s14, 1
      %s145 = smul.addr %s144, 144
      %s146 = smul.addr %s145, 4
      %s147 = scalar_lea.vmem %s0, %s146
      %p148 = pneg %p35
      %p149 = pneg %p32
      %p150 = pneg %p56
      %p151 = pneg %p53
      %p152 = pneg %p77
      %p153 = pneg %p74
      %p154 = pneg %p103
      %p155 = pneg %p100
      %p156 = scmp.lt.s32.totalorder %s14, 1
      %s157 = scalar_select %p156, %s14, 1
      %s158 = smul.addr %s157, 8
      %s159 = smul.addr %s158, 4
      %s160 = scalar_lea.vmem %s3, %s159
      %p161 = scmp.lt.s32.totalorder %s14, 1
      %s162 = scalar_select %p161, %s14, 1
      %s163 = smul.addr %s162, 144
      %s164 = smul.addr %s163, 4
      %s165 = scalar_lea.vmem %s0, %s164
      %p166 = scmp.lt.s32.totalorder %s14, 1
      %s167 = scalar_select %p166, %s14, 1
      %s168 = smul.addr %s167, 8
      %s169 = smul.addr %s168, 4
      %s170 = scalar_lea.vmem %s3, %s169
      %v172 = vld [vmem:[%s2] sm:$0xff]
      %v173 = vld [vmem:[%s2 + $0x8] sm:$0xff]
      %v174 = vld [vmem:[%s1] sm:$0xf]
      %v175 = vld [vmem:[%s1 + $0x4] sm:$0xf]
      %v176 = vld [vmem:[%s165] sm:$0xff]
      %v177 = vld [vmem:[%s165 + $0x8] sm:$0xff]
      %v178 = vld [vmem:[%s165 + $0x10] sm:$0xff]
      %v179 = vld [vmem:[%s165 + $0x18] sm:$0xff]
      %v180 = vld [vmem:[%s165 + $0x20] sm:$0xff]
      %v181 = vld [vmem:[%s165 + $0x28] sm:$0xff]
      %v182 = vld [vmem:[%s165 + $0x30] sm:$0xff]
      %v183 = vld [vmem:[%s165 + $0x38] sm:$0xff]
      %v184 = vld [vmem:[%s165 + $0x40] sm:$0xff]
      %v185 = vld [vmem:[%s165 + $0x48] sm:$0xff]
      %v186 = vld [vmem:[%s165 + $0x50] sm:$0xff]
      %v187 = vld [vmem:[%s165 + $0x58] sm:$0xff]
      %v188 = vld [vmem:[%s165 + $0x60] sm:$0xff]
      %v189 = vld [vmem:[%s165 + $0x68] sm:$0xff]
      %v190 = vld [vmem:[%s165 + $0x70] sm:$0xff]
      %v191 = vld [vmem:[%s165 + $0x78] sm:$0xff]
      %v192 = vld [vmem:[%s165 + $0x80] sm:$0xff]
      %v193 = vld [vmem:[%s165 + $0x88] sm:$0xff]
      %v196 = vunpack.c.l.b16 %v174
      %v197 = vunpack.c.l.b16 %v175
      %v198 = vpack.c.b16 %v197, %v196
      %v217 = vunpack.c.l.b16 %v176
      %v218 = vunpack.c.h.b16 %v176
      %v219 = vunpack.c.l.b16 %v177
      %v220 = vunpack.c.h.b16 %v177
      %v221 = vunpack.c.l.b16 %v178
      %v222 = vunpack.c.h.b16 %v178
      %v223 = vunpack.c.l.b16 %v179
      %v224 = vunpack.c.h.b16 %v179
      %v225 = vunpack.c.l.b16 %v180
      %v226 = vunpack.c.h.b16 %v180
      %v227 = vunpack.c.l.b16 %v181
      %v228 = vunpack.c.h.b16 %v181
      %v229 = vunpack.c.l.b16 %v182
      %v230 = vunpack.c.h.b16 %v182
      %v231 = vunpack.c.l.b16 %v183
      %v232 = vunpack.c.h.b16 %v183
      %v233 = vunpack.c.l.b16 %v184
      %v234 = vunpack.c.h.b16 %v184
      %v235 = vunpack.c.l.b16 %v185
      %v236 = vunpack.c.h.b16 %v185
      %v237 = vunpack.c.l.b16 %v186
      %v238 = vunpack.c.h.b16 %v186
      %v239 = vunpack.c.l.b16 %v187
      %v240 = vunpack.c.h.b16 %v187
      %v241 = vunpack.c.l.b16 %v188
      %v242 = vunpack.c.h.b16 %v188
      %v243 = vunpack.c.l.b16 %v189
      %v244 = vunpack.c.h.b16 %v189
      %v245 = vunpack.c.l.b16 %v190
      %v246 = vunpack.c.h.b16 %v190
      %v247 = vunpack.c.l.b16 %v191
      %v248 = vunpack.c.h.b16 %v191
      %v249 = vunpack.c.l.b16 %v192
      %v250 = vunpack.c.h.b16 %v192
      %v251 = vunpack.c.l.b16 %v193
      %v252 = vunpack.c.h.b16 %v193
      %v253 = vpack.c.b16 %v221, %v217
      %v254 = vpack.c.b16 %v222, %v218
      %v255 = vpack.c.b16 %v223, %v219
      %v256 = vpack.c.b16 %v224, %v220
      %v257 = vpack.c.b16 %v229, %v225
      %v258 = vpack.c.b16 %v230, %v226
      %v259 = vpack.c.b16 %v231, %v227
      %v260 = vpack.c.b16 %v232, %v228
      %v261 = vpack.c.b16 %v237, %v233
      %v262 = vpack.c.b16 %v238, %v234
      %v263 = vpack.c.b16 %v239, %v235
      %v264 = vpack.c.b16 %v240, %v236
      %v265 = vpack.c.b16 %v245, %v241
      %v266 = vpack.c.b16 %v246, %v242
      %v267 = vpack.c.b16 %v247, %v243
      %v268 = vpack.c.b16 %v248, %v244
      %v269 = vpack.c.b16 %v249, %v249
      %v270 = vpack.c.b16 %v250, %v250
      %v271 = vpack.c.b16 %v251, %v251
      %v272 = vpack.c.b16 %v252, %v252
      %vm289 = vcmask 588800
      %v291 = vsel %vm289, %v198, 0
      %vm293 = vcmask 1043456
      %v295 = vsel %vm293, %v269, 0
      %v298 = vsel %vm293, %v270, 0
      %v301 = vsel %vm293, %v271, 0
      %v304 = vsel %vm293, %v272, 0
      %306 = vmatprep.subr.bf16.mxu0 0
      %307 = vmatpush1.bf16.msra.mxu0 0
      %308 = vmatprep.subr.bf16.mxu0 0
      %309 = vmatpush1.bf16.msra.mxu0 0
      %310 = vmatprep.subr.bf16.mxu0 0
      %311 = vmatpush1.bf16.msra.mxu0 0
      %312 = vmatprep.subr.bf16.mxu0 %v298
      %313 = vmatpush1.bf16.msra.mxu0 %v295
      %314 = vmatprep.subr.bf16.mxu0 %v266
      %315 = vmatpush1.bf16.msra.mxu0 %v265
      %316 = vmatprep.subr.bf16.mxu0 %v262
      %317 = vmatpush1.bf16.msra.mxu0 %v261
      %318 = vmatprep.subr.bf16.mxu0 %v258
      %319 = vmatpush1.bf16.msra.mxu0 %v257
      %320 = vmatprep.subr.bf16.mxu0 %v254
      %321 = vmatpush1.bf16.msra.mxu0 %v253
      %322 = vmatprep.subr.bf16.mxu0 0
      %323 = vmatpush2.bf16.msra.mxu0 0
      %324 = vmatprep.subr.bf16.mxu0 0
      %325 = vmatpush2.bf16.msra.mxu0 0
      %326 = vmatprep.subr.bf16.mxu0 0
      %327 = vmatpush2.bf16.msra.mxu0 0
      %328 = vmatprep.subr.bf16.mxu0 0
      %329 = vmatpush2.bf16.msra.mxu0 0
      %330 = vmatprep.subr.bf16.mxu0 0
      %331 = vmatpush2.bf16.msra.mxu0 0
      %332 = vmatprep.subr.bf16.mxu0 0
      %333 = vmatpush2.bf16.msra.mxu0 0
      %334 = vmatprep.subr.bf16.mxu0 0
      %335 = vmatpush2.bf16.msra.mxu0 0
      %336 = vmatprep.subr.bf16.mxu0 0
      %337 = vmatpush2.bf16.msra.mxu0 0
      %338 = vmatprep.mubr.bf16.mxu0 0
      %339 = vmatmul.mubr.bf16.gmra.mxu0 %v291
      %v340 = vpop.f32.mrf.mxu0
      %v341 = vadd.f32 0.0, %v340
      %v342 = vpop.f32.mrf.mxu0
      %v343 = vadd.f32 0.0, %v342
      %v344 = vpop.f32.mrf.mxu0
      %v345 = vadd.f32 0.0, %v344
      %v346 = vpop.f32.mrf.mxu0
      %v347 = vadd.f32 0.0, %v346
      %348 = vdwg.mxu0
      %349 = vmatprep.subr.bf16.mxu0 0
      %350 = vmatpush1.bf16.msra.mxu0 0
      %351 = vmatprep.subr.bf16.mxu0 0
      %352 = vmatpush1.bf16.msra.mxu0 0
      %353 = vmatprep.subr.bf16.mxu0 0
      %354 = vmatpush1.bf16.msra.mxu0 0
      %355 = vmatprep.subr.bf16.mxu0 %v304
      %356 = vmatpush1.bf16.msra.mxu0 %v301
      %357 = vmatprep.subr.bf16.mxu0 %v268
      %358 = vmatpush1.bf16.msra.mxu0 %v267
      %359 = vmatprep.subr.bf16.mxu0 %v264
      %360 = vmatpush1.bf16.msra.mxu0 %v263
      %361 = vmatprep.subr.bf16.mxu0 %v260
      %362 = vmatpush1.bf16.msra.mxu0 %v259
      %363 = vmatprep.subr.bf16.mxu0 %v256
      %364 = vmatpush1.bf16.msra.mxu0 %v255
      %365 = vmatprep.subr.bf16.mxu0 0
      %366 = vmatpush2.bf16.msra.mxu0 0
      %367 = vmatprep.subr.bf16.mxu0 0
      %368 = vmatpush2.bf16.msra.mxu0 0
      %369 = vmatprep.subr.bf16.mxu0 0
      %370 = vmatpush2.bf16.msra.mxu0 0
      %371 = vmatprep.subr.bf16.mxu0 0
      %372 = vmatpush2.bf16.msra.mxu0 0
      %373 = vmatprep.subr.bf16.mxu0 0
      %374 = vmatpush2.bf16.msra.mxu0 0
      %375 = vmatprep.subr.bf16.mxu0 0
      %376 = vmatpush2.bf16.msra.mxu0 0
      %377 = vmatprep.subr.bf16.mxu0 0
      %378 = vmatpush2.bf16.msra.mxu0 0
      %379 = vmatprep.subr.bf16.mxu0 0
      %380 = vmatpush2.bf16.msra.mxu0 0
      %381 = vmatprep.mubr.bf16.mxu0 0
      %382 = vmatmul.mubr.bf16.gmra.mxu0 %v291
      %v383 = vpop.f32.mrf.mxu0
      %v384 = vadd.f32 0.0, %v383
      %v385 = vpop.f32.mrf.mxu0
      %v386 = vadd.f32 0.0, %v385
      %v387 = vpop.f32.mrf.mxu0
      %v388 = vadd.f32 0.0, %v387
      %v389 = vpop.f32.mrf.mxu0
      %v390 = vadd.f32 0.0, %v389
      %391 = vdwg.mxu0
      %393 = vset.pattern.permute.xlu0 0
      %394 = vperm.xlu0 %393, %v172
      %v395 = vpop.permute.xlu0 %394
      %398 = vset.pattern.permute.xlu0 0
      %399 = vperm.xlu0 %398, %v173
      %v400 = vpop.permute.xlu0 %399
      %v402 = vmul.f32 %v341, %v395
      %v403 = vmul.f32 %v343, %v395
      %v404 = vmul.f32 %v384, %v395
      %v405 = vmul.f32 %v386, %v395
      %v406 = vmul.f32 %v345, %v400
      %v407 = vmul.f32 %v347, %v400
      %v408 = vmul.f32 %v388, %v400
      %v409 = vmul.f32 %v390, %v400
      %410 = vset.pattern.permute.xlu0 1
      %411 = vperm.xlu0 %410, %v172
      %v412 = vpop.permute.xlu0 %411
      %414 = vset.pattern.permute.xlu0 1
      %415 = vperm.xlu0 %414, %v173
      %v416 = vpop.permute.xlu0 %415
      %v418 = vadd.f32 %v402, %v412
      %v419 = vadd.f32 %v403, %v412
      %v420 = vadd.f32 %v404, %v412
      %v421 = vadd.f32 %v405, %v412
      %v422 = vadd.f32 %v406, %v416
      %v423 = vadd.f32 %v407, %v416
      %v424 = vadd.f32 %v408, %v416
      %v425 = vadd.f32 %v409, %v416
      %s426 = scalar_lea.vmem %s165, 144
      %v427 = vld [vmem:[%s426] sm:$0xff]
      %v428 = vld [vmem:[%s426 + $0x8] sm:$0xff]
      %v429 = vld [vmem:[%s426 + $0x10] sm:$0xff]
      %v430 = vld [vmem:[%s426 + $0x18] sm:$0xff]
      %v431 = vld [vmem:[%s426 + $0x20] sm:$0xff]
      %v432 = vld [vmem:[%s426 + $0x28] sm:$0xff]
      %v433 = vld [vmem:[%s426 + $0x30] sm:$0xff]
      %v434 = vld [vmem:[%s426 + $0x38] sm:$0xff]
      %v435 = vld [vmem:[%s426 + $0x40] sm:$0xff]
      %v436 = vld [vmem:[%s426 + $0x48] sm:$0xff]
      %v437 = vld [vmem:[%s426 + $0x50] sm:$0xff]
      %v438 = vld [vmem:[%s426 + $0x58] sm:$0xff]
      %v439 = vld [vmem:[%s426 + $0x60] sm:$0xff]
      %v440 = vld [vmem:[%s426 + $0x68] sm:$0xff]
      %v441 = vld [vmem:[%s426 + $0x70] sm:$0xff]
      %v442 = vld [vmem:[%s426 + $0x78] sm:$0xff]
      %v443 = vld [vmem:[%s426 + $0x80] sm:$0xff]
      %v444 = vld [vmem:[%s426 + $0x88] sm:$0xff]
      %v463 = vunpack.c.l.b16 %v427
      %v464 = vunpack.c.h.b16 %v427
      %v465 = vunpack.c.l.b16 %v428
      %v466 = vunpack.c.h.b16 %v428
      %v467 = vunpack.c.l.b16 %v429
      %v468 = vunpack.c.h.b16 %v429
      %v469 = vunpack.c.l.b16 %v430
      %v470 = vunpack.c.h.b16 %v430
      %v471 = vunpack.c.l.b16 %v431
      %v472 = vunpack.c.h.b16 %v431
      %v473 = vunpack.c.l.b16 %v432
      %v474 = vunpack.c.h.b16 %v432
      %v475 = vunpack.c.l.b16 %v433
      %v476 = vunpack.c.h.b16 %v433
      %v477 = vunpack.c.l.b16 %v434
      %v478 = vunpack.c.h.b16 %v434
      %v479 = vunpack.c.l.b16 %v435
      %v480 = vunpack.c.h.b16 %v435
      %v481 = vunpack.c.l.b16 %v436
      %v482 = vunpack.c.h.b16 %v436
      %v483 = vunpack.c.l.b16 %v437
      %v484 = vunpack.c.h.b16 %v437
      %v485 = vunpack.c.l.b16 %v438
      %v486 = vunpack.c.h.b16 %v438
      %v487 = vunpack.c.l.b16 %v439
      %v488 = vunpack.c.h.b16 %v439
      %v489 = vunpack.c.l.b16 %v440
      %v490 = vunpack.c.h.b16 %v440
      %v491 = vunpack.c.l.b16 %v441
      %v492 = vunpack.c.h.b16 %v441
      %v493 = vunpack.c.l.b16 %v442
      %v494 = vunpack.c.h.b16 %v442
      %v495 = vunpack.c.l.b16 %v443
      %v496 = vunpack.c.h.b16 %v443
      %v497 = vunpack.c.l.b16 %v444
      %v498 = vunpack.c.h.b16 %v444
      %v499 = vpack.c.b16 %v467, %v463
      %v500 = vpack.c.b16 %v468, %v464
      %v501 = vpack.c.b16 %v469, %v465
      %v502 = vpack.c.b16 %v470, %v466
      %v503 = vpack.c.b16 %v475, %v471
      %v504 = vpack.c.b16 %v476, %v472
      %v505 = vpack.c.b16 %v477, %v473
      %v506 = vpack.c.b16 %v478, %v474
      %v507 = vpack.c.b16 %v483, %v479
      %v508 = vpack.c.b16 %v484, %v480
      %v509 = vpack.c.b16 %v485, %v481
      %v510 = vpack.c.b16 %v486, %v482
      %v511 = vpack.c.b16 %v491, %v487
      %v512 = vpack.c.b16 %v492, %v488
      %v513 = vpack.c.b16 %v493, %v489
      %v514 = vpack.c.b16 %v494, %v490
      %v515 = vpack.c.b16 %v495, %v495
      %v516 = vpack.c.b16 %v496, %v496
      %v517 = vpack.c.b16 %v497, %v497
      %v518 = vpack.c.b16 %v498, %v498
      %v536 = vsel %vm293, %v515, 0
      %v539 = vsel %vm293, %v516, 0
      %v542 = vsel %vm293, %v517, 0
      %v545 = vsel %vm293, %v518, 0
      %547 = vmatprep.subr.bf16.mxu0 0
      %548 = vmatpush1.bf16.msra.mxu0 0
      %549 = vmatprep.subr.bf16.mxu0 0
      %550 = vmatpush1.bf16.msra.mxu0 0
      %551 = vmatprep.subr.bf16.mxu0 0
      %552 = vmatpush1.bf16.msra.mxu0 0
      %553 = vmatprep.subr.bf16.mxu0 %v539
      %554 = vmatpush1.bf16.msra.mxu0 %v536
      %555 = vmatprep.subr.bf16.mxu0 %v512
      %556 = vmatpush1.bf16.msra.mxu0 %v511
      %557 = vmatprep.subr.bf16.mxu0 %v508
      %558 = vmatpush1.bf16.msra.mxu0 %v507
      %559 = vmatprep.subr.bf16.mxu0 %v504
      %560 = vmatpush1.bf16.msra.mxu0 %v503
      %561 = vmatprep.subr.bf16.mxu0 %v500
      %562 = vmatpush1.bf16.msra.mxu0 %v499
      %563 = vmatprep.subr.bf16.mxu0 0
      %564 = vmatpush2.bf16.msra.mxu0 0
      %565 = vmatprep.subr.bf16.mxu0 0
      %566 = vmatpush2.bf16.msra.mxu0 0
      %567 = vmatprep.subr.bf16.mxu0 0
      %568 = vmatpush2.bf16.msra.mxu0 0
      %569 = vmatprep.subr.bf16.mxu0 0
      %570 = vmatpush2.bf16.msra.mxu0 0
      %571 = vmatprep.subr.bf16.mxu0 0
      %572 = vmatpush2.bf16.msra.mxu0 0
      %573 = vmatprep.subr.bf16.mxu0 0
      %574 = vmatpush2.bf16.msra.mxu0 0
      %575 = vmatprep.subr.bf16.mxu0 0
      %576 = vmatpush2.bf16.msra.mxu0 0
      %577 = vmatprep.subr.bf16.mxu0 0
      %578 = vmatpush2.bf16.msra.mxu0 0
      %579 = vmatprep.mubr.bf16.mxu0 0
      %580 = vmatmul.mubr.bf16.gmra.mxu0 %v291
      %v581 = vpop.f32.mrf.mxu0
      %v582 = vadd.f32 0.0, %v581
      %v583 = vpop.f32.mrf.mxu0
      %v584 = vadd.f32 0.0, %v583
      %v585 = vpop.f32.mrf.mxu0
      %v586 = vadd.f32 0.0, %v585
      %v587 = vpop.f32.mrf.mxu0
      %v588 = vadd.f32 0.0, %v587
      %589 = vdwg.mxu0
      %590 = vmatprep.subr.bf16.mxu0 0
      %591 = vmatpush1.bf16.msra.mxu0 0
      %592 = vmatprep.subr.bf16.mxu0 0
      %593 = vmatpush1.bf16.msra.mxu0 0
      %594 = vmatprep.subr.bf16.mxu0 0
      %595 = vmatpush1.bf16.msra.mxu0 0
      %596 = vmatprep.subr.bf16.mxu0 %v545
      %597 = vmatpush1.bf16.msra.mxu0 %v542
      %598 = vmatprep.subr.bf16.mxu0 %v514
      %599 = vmatpush1.bf16.msra.mxu0 %v513
      %600 = vmatprep.subr.bf16.mxu0 %v510
      %601 = vmatpush1.bf16.msra.mxu0 %v509
      %602 = vmatprep.subr.bf16.mxu0 %v506
      %603 = vmatpush1.bf16.msra.mxu0 %v505
      %604 = vmatprep.subr.bf16.mxu0 %v502
      %605 = vmatpush1.bf16.msra.mxu0 %v501
      %606 = vmatprep.subr.bf16.mxu0 0
      %607 = vmatpush2.bf16.msra.mxu0 0
      %608 = vmatprep.subr.bf16.mxu0 0
      %609 = vmatpush2.bf16.msra.mxu0 0
      %610 = vmatprep.subr.bf16.mxu0 0
      %611 = vmatpush2.bf16.msra.mxu0 0
      %612 = vmatprep.subr.bf16.mxu0 0
      %613 = vmatpush2.bf16.msra.mxu0 0
      %614 = vmatprep.subr.bf16.mxu0 0
      %615 = vmatpush2.bf16.msra.mxu0 0
      %616 = vmatprep.subr.bf16.mxu0 0
      %617 = vmatpush2.bf16.msra.mxu0 0
      %618 = vmatprep.subr.bf16.mxu0 0
      %619 = vmatpush2.bf16.msra.mxu0 0
      %620 = vmatprep.subr.bf16.mxu0 0
      %621 = vmatpush2.bf16.msra.mxu0 0
      %622 = vmatprep.mubr.bf16.mxu0 0
      %623 = vmatmul.mubr.bf16.gmra.mxu0 %v291
      %v624 = vpop.f32.mrf.mxu0
      %v625 = vadd.f32 0.0, %v624
      %v626 = vpop.f32.mrf.mxu0
      %v627 = vadd.f32 0.0, %v626
      %v628 = vpop.f32.mrf.mxu0
      %v629 = vadd.f32 0.0, %v628
      %v630 = vpop.f32.mrf.mxu0
      %v631 = vadd.f32 0.0, %v630
      %632 = vdwg.mxu0
      %v633 = vmul.f32 %v582, %v395
      %v634 = vmul.f32 %v584, %v395
      %v635 = vmul.f32 %v625, %v395
      %v636 = vmul.f32 %v627, %v395
      %v637 = vmul.f32 %v586, %v400
      %v638 = vmul.f32 %v588, %v400
      %v639 = vmul.f32 %v629, %v400
      %v640 = vmul.f32 %v631, %v400
      %v641 = vadd.f32 %v633, %v412
      %v642 = vadd.f32 %v634, %v412
      %v643 = vadd.f32 %v635, %v412
      %v644 = vadd.f32 %v636, %v412
      %v645 = vadd.f32 %v637, %v416
      %v646 = vadd.f32 %v638, %v416
      %v647 = vadd.f32 %v639, %v416
      %v648 = vadd.f32 %v640, %v416
      %v649 = vmax.f32 %v418, %v641
      %v650 = vmax.f32 %v419, %v642
      %v651 = vmax.f32 %v420, %v643
      %v652 = vmax.f32 %v421, %v644
      %v653 = vmax.f32 %v422, %v645
      %v654 = vmax.f32 %v423, %v646
      %v655 = vmax.f32 %v424, %v647
      %v656 = vmax.f32 %v425, %v648
      %s657 = scalar_lea.vmem %s165, 288
      %v658 = vld [vmem:[%s657] sm:$0xff]
      %v659 = vld [vmem:[%s657 + $0x8] sm:$0xff]
      %v660 = vld [vmem:[%s657 + $0x10] sm:$0xff]
      %v661 = vld [vmem:[%s657 + $0x18] sm:$0xff]
      %v662 = vld [vmem:[%s657 + $0x20] sm:$0xff]
      %v663 = vld [vmem:[%s657 + $0x28] sm:$0xff]
      %v664 = vld [vmem:[%s657 + $0x30] sm:$0xff]
      %v665 = vld [vmem:[%s657 + $0x38] sm:$0xff]
      %v666 = vld [vmem:[%s657 + $0x40] sm:$0xff]
      %v667 = vld [vmem:[%s657 + $0x48] sm:$0xff]
      %v668 = vld [vmem:[%s657 + $0x50] sm:$0xff]
      %v669 = vld [vmem:[%s657 + $0x58] sm:$0xff]
      %v670 = vld [vmem:[%s657 + $0x60] sm:$0xff]
      %v671 = vld [vmem:[%s657 + $0x68] sm:$0xff]
      %v672 = vld [vmem:[%s657 + $0x70] sm:$0xff]
      %v673 = vld [vmem:[%s657 + $0x78] sm:$0xff]
      %v674 = vld [vmem:[%s657 + $0x80] sm:$0xff]
      %v675 = vld [vmem:[%s657 + $0x88] sm:$0xff]
      %v694 = vunpack.c.l.b16 %v658
      %v695 = vunpack.c.h.b16 %v658
      %v696 = vunpack.c.l.b16 %v659
      %v697 = vunpack.c.h.b16 %v659
      %v698 = vunpack.c.l.b16 %v660
      %v699 = vunpack.c.h.b16 %v660
      %v700 = vunpack.c.l.b16 %v661
      %v701 = vunpack.c.h.b16 %v661
      %v702 = vunpack.c.l.b16 %v662
      %v703 = vunpack.c.h.b16 %v662
      %v704 = vunpack.c.l.b16 %v663
      %v705 = vunpack.c.h.b16 %v663
      %v706 = vunpack.c.l.b16 %v664
      %v707 = vunpack.c.h.b16 %v664
      %v708 = vunpack.c.l.b16 %v665
      %v709 = vunpack.c.h.b16 %v665
      %v710 = vunpack.c.l.b16 %v666
      %v711 = vunpack.c.h.b16 %v666
      %v712 = vunpack.c.l.b16 %v667
      %v713 = vunpack.c.h.b16 %v667
      %v714 = vunpack.c.l.b16 %v668
      %v715 = vunpack.c.h.b16 %v668
      %v716 = vunpack.c.l.b16 %v669
      %v717 = vunpack.c.h.b16 %v669
      %v718 = vunpack.c.l.b16 %v670
      %v719 = vunpack.c.h.b16 %v670
      %v720 = vunpack.c.l.b16 %v671
      %v721 = vunpack.c.h.b16 %v671
      %v722 = vunpack.c.l.b16 %v672
      %v723 = vunpack.c.h.b16 %v672
      %v724 = vunpack.c.l.b16 %v673
      %v725 = vunpack.c.h.b16 %v673
      %v726 = vunpack.c.l.b16 %v674
      %v727 = vunpack.c.h.b16 %v674
      %v728 = vunpack.c.l.b16 %v675
      %v729 = vunpack.c.h.b16 %v675
      %v730 = vpack.c.b16 %v698, %v694
      %v731 = vpack.c.b16 %v699, %v695
      %v732 = vpack.c.b16 %v700, %v696
      %v733 = vpack.c.b16 %v701, %v697
      %v734 = vpack.c.b16 %v706, %v702
      %v735 = vpack.c.b16 %v707, %v703
      %v736 = vpack.c.b16 %v708, %v704
      %v737 = vpack.c.b16 %v709, %v705
      %v738 = vpack.c.b16 %v714, %v710
      %v739 = vpack.c.b16 %v715, %v711
      %v740 = vpack.c.b16 %v716, %v712
      %v741 = vpack.c.b16 %v717, %v713
      %v742 = vpack.c.b16 %v722, %v718
      %v743 = vpack.c.b16 %v723, %v719
      %v744 = vpack.c.b16 %v724, %v720
      %v745 = vpack.c.b16 %v725, %v721
      %v746 = vpack.c.b16 %v726, %v726
      %v747 = vpack.c.b16 %v727, %v727
      %v748 = vpack.c.b16 %v728, %v728
      %v749 = vpack.c.b16 %v729, %v729
      %v767 = vsel %vm293, %v746, 0
      %v770 = vsel %vm293, %v747, 0
      %v773 = vsel %vm293, %v748, 0
      %v776 = vsel %vm293, %v749, 0
      %778 = vmatprep.subr.bf16.mxu0 0
      %779 = vmatpush1.bf16.msra.mxu0 0
      %780 = vmatprep.subr.bf16.mxu0 0
      %781 = vmatpush1.bf16.msra.mxu0 0
      %782 = vmatprep.subr.bf16.mxu0 0
      %783 = vmatpush1.bf16.msra.mxu0 0
      %784 = vmatprep.subr.bf16.mxu0 %v770
      %785 = vmatpush1.bf16.msra.mxu0 %v767
      %786 = vmatprep.subr.bf16.mxu0 %v743
      %787 = vmatpush1.bf16.msra.mxu0 %v742
      %788 = vmatprep.subr.bf16.mxu0 %v739
      %789 = vmatpush1.bf16.msra.mxu0 %v738
      %790 = vmatprep.subr.bf16.mxu0 %v735
      %791 = vmatpush1.bf16.msra.mxu0 %v734
      %792 = vmatprep.subr.bf16.mxu0 %v731
      %793 = vmatpush1.bf16.msra.mxu0 %v730
      %794 = vmatprep.subr.bf16.mxu0 0
      %795 = vmatpush2.bf16.msra.mxu0 0
      %796 = vmatprep.subr.bf16.mxu0 0
      %797 = vmatpush2.bf16.msra.mxu0 0
      %798 = vmatprep.subr.bf16.mxu0 0
      %799 = vmatpush2.bf16.msra.mxu0 0
      %800 = vmatprep.subr.bf16.mxu0 0
      %801 = vmatpush2.bf16.msra.mxu0 0
      %802 = vmatprep.subr.bf16.mxu0 0
      %803 = vmatpush2.bf16.msra.mxu0 0
      %804 = vmatprep.subr.bf16.mxu0 0
      %805 = vmatpush2.bf16.msra.mxu0 0
      %806 = vmatprep.subr.bf16.mxu0 0
      %807 = vmatpush2.bf16.msra.mxu0 0
      %808 = vmatprep.subr.bf16.mxu0 0
      %809 = vmatpush2.bf16.msra.mxu0 0
      %810 = vmatprep.mubr.bf16.mxu0 0
      %811 = vmatmul.mubr.bf16.gmra.mxu0 %v291
      %v812 = vpop.f32.mrf.mxu0
      %v813 = vadd.f32 0.0, %v812
      %v814 = vpop.f32.mrf.mxu0
      %v815 = vadd.f32 0.0, %v814
      %v816 = vpop.f32.mrf.mxu0
      %v817 = vadd.f32 0.0, %v816
      %v818 = vpop.f32.mrf.mxu0
      %v819 = vadd.f32 0.0, %v818
      %820 = vdwg.mxu0
      %821 = vmatprep.subr.bf16.mxu0 0
      %822 = vmatpush1.bf16.msra.mxu0 0
      %823 = vmatprep.subr.bf16.mxu0 0
      %824 = vmatpush1.bf16.msra.mxu0 0
      %825 = vmatprep.subr.bf16.mxu0 0
      %826 = vmatpush1.bf16.msra.mxu0 0
      %827 = vmatprep.subr.bf16.mxu0 %v776
      %828 = vmatpush1.bf16.msra.mxu0 %v773
      %829 = vmatprep.subr.bf16.mxu0 %v745
      %830 = vmatpush1.bf16.msra.mxu0 %v744
      %831 = vmatprep.subr.bf16.mxu0 %v741
      %832 = vmatpush1.bf16.msra.mxu0 %v740
      %833 = vmatprep.subr.bf16.mxu0 %v737
      %834 = vmatpush1.bf16.msra.mxu0 %v736
      %835 = vmatprep.subr.bf16.mxu0 %v733
      %836 = vmatpush1.bf16.msra.mxu0 %v732
      %837 = vmatprep.subr.bf16.mxu0 0
      %838 = vmatpush2.bf16.msra.mxu0 0
      %839 = vmatprep.subr.bf16.mxu0 0
      %840 = vmatpush2.bf16.msra.mxu0 0
      %841 = vmatprep.subr.bf16.mxu0 0
      %842 = vmatpush2.bf16.msra.mxu0 0
      %843 = vmatprep.subr.bf16.mxu0 0
      %844 = vmatpush2.bf16.msra.mxu0 0
      %845 = vmatprep.subr.bf16.mxu0 0
      %846 = vmatpush2.bf16.msra.mxu0 0
      %847 = vmatprep.subr.bf16.mxu0 0
      %848 = vmatpush2.bf16.msra.mxu0 0
      %849 = vmatprep.subr.bf16.mxu0 0
      %850 = vmatpush2.bf16.msra.mxu0 0
      %851 = vmatprep.subr.bf16.mxu0 0
      %852 = vmatpush2.bf16.msra.mxu0 0
      %853 = vmatprep.mubr.bf16.mxu0 0
      %854 = vmatmul.mubr.bf16.gmra.mxu0 %v291
      %v855 = vpop.f32.mrf.mxu0
      %v856 = vadd.f32 0.0, %v855
      %v857 = vpop.f32.mrf.mxu0
      %v858 = vadd.f32 0.0, %v857
      %v859 = vpop.f32.mrf.mxu0
      %v860 = vadd.f32 0.0, %v859
      %v861 = vpop.f32.mrf.mxu0
      %v862 = vadd.f32 0.0, %v861
      %863 = vdwg.mxu0
      %v864 = vmul.f32 %v813, %v395
      %v865 = vmul.f32 %v815, %v395
      %v866 = vmul.f32 %v856, %v395
      %v867 = vmul.f32 %v858, %v395
      %v868 = vmul.f32 %v817, %v400
      %v869 = vmul.f32 %v819, %v400
      %v870 = vmul.f32 %v860, %v400
      %v871 = vmul.f32 %v862, %v400
      %v872 = vadd.f32 %v864, %v412
      %v873 = vadd.f32 %v865, %v412
      %v874 = vadd.f32 %v866, %v412
      %v875 = vadd.f32 %v867, %v412
      %v876 = vadd.f32 %v868, %v416
      %v877 = vadd.f32 %v869, %v416
      %v878 = vadd.f32 %v870, %v416
      %v879 = vadd.f32 %v871, %v416
      %v880 = vmax.f32 %v649, %v872
      %v881 = vmax.f32 %v650, %v873
      %v882 = vmax.f32 %v651, %v874
      %v883 = vmax.f32 %v652, %v875
      %v884 = vmax.f32 %v653, %v876
      %v885 = vmax.f32 %v654, %v877
      %v886 = vmax.f32 %v655, %v878
      %v887 = vmax.f32 %v656, %v879
      %s888 = scalar_lea.vmem %s165, 432
      %v889 = vld [vmem:[%s888] sm:$0xff]
      %v890 = vld [vmem:[%s888 + $0x8] sm:$0xff]
      %v891 = vld [vmem:[%s888 + $0x10] sm:$0xff]
      %v892 = vld [vmem:[%s888 + $0x18] sm:$0xff]
      %v893 = vld [vmem:[%s888 + $0x20] sm:$0xff]
      %v894 = vld [vmem:[%s888 + $0x28] sm:$0xff]
      %v895 = vld [vmem:[%s888 + $0x30] sm:$0xff]
      %v896 = vld [vmem:[%s888 + $0x38] sm:$0xff]
      %v897 = vld [vmem:[%s888 + $0x40] sm:$0xff]
      %v898 = vld [vmem:[%s888 + $0x48] sm:$0xff]
      %v899 = vld [vmem:[%s888 + $0x50] sm:$0xff]
      %v900 = vld [vmem:[%s888 + $0x58] sm:$0xff]
      %v901 = vld [vmem:[%s888 + $0x60] sm:$0xff]
      %v902 = vld [vmem:[%s888 + $0x68] sm:$0xff]
      %v903 = vld [vmem:[%s888 + $0x70] sm:$0xff]
      %v904 = vld [vmem:[%s888 + $0x78] sm:$0xff]
      %v905 = vld [vmem:[%s888 + $0x80] sm:$0xff]
      %v906 = vld [vmem:[%s888 + $0x88] sm:$0xff]
      %v925 = vunpack.c.l.b16 %v889
      %v926 = vunpack.c.h.b16 %v889
      %v927 = vunpack.c.l.b16 %v890
      %v928 = vunpack.c.h.b16 %v890
      %v929 = vunpack.c.l.b16 %v891
      %v930 = vunpack.c.h.b16 %v891
      %v931 = vunpack.c.l.b16 %v892
      %v932 = vunpack.c.h.b16 %v892
      %v933 = vunpack.c.l.b16 %v893
      %v934 = vunpack.c.h.b16 %v893
      %v935 = vunpack.c.l.b16 %v894
      %v936 = vunpack.c.h.b16 %v894
      %v937 = vunpack.c.l.b16 %v895
      %v938 = vunpack.c.h.b16 %v895
      %v939 = vunpack.c.l.b16 %v896
      %v940 = vunpack.c.h.b16 %v896
      %v941 = vunpack.c.l.b16 %v897
      %v942 = vunpack.c.h.b16 %v897
      %v943 = vunpack.c.l.b16 %v898
      %v944 = vunpack.c.h.b16 %v898
      %v945 = vunpack.c.l.b16 %v899
      %v946 = vunpack.c.h.b16 %v899
      %v947 = vunpack.c.l.b16 %v900
      %v948 = vunpack.c.h.b16 %v900
      %v949 = vunpack.c.l.b16 %v901
      %v950 = vunpack.c.h.b16 %v901
      %v951 = vunpack.c.l.b16 %v902
      %v952 = vunpack.c.h.b16 %v902
      %v953 = vunpack.c.l.b16 %v903
      %v954 = vunpack.c.h.b16 %v903
      %v955 = vunpack.c.l.b16 %v904
      %v956 = vunpack.c.h.b16 %v904
      %v957 = vunpack.c.l.b16 %v905
      %v958 = vunpack.c.h.b16 %v905
      %v959 = vunpack.c.l.b16 %v906
      %v960 = vunpack.c.h.b16 %v906
      %v961 = vpack.c.b16 %v929, %v925
      %v962 = vpack.c.b16 %v930, %v926
      %v963 = vpack.c.b16 %v931, %v927
      %v964 = vpack.c.b16 %v932, %v928
      %v965 = vpack.c.b16 %v937, %v933
      %v966 = vpack.c.b16 %v938, %v934
      %v967 = vpack.c.b16 %v939, %v935
      %v968 = vpack.c.b16 %v940, %v936
      %v969 = vpack.c.b16 %v945, %v941
      %v970 = vpack.c.b16 %v946, %v942
      %v971 = vpack.c.b16 %v947, %v943
      %v972 = vpack.c.b16 %v948, %v944
      %v973 = vpack.c.b16 %v953, %v949
      %v974 = vpack.c.b16 %v954, %v950
      %v975 = vpack.c.b16 %v955, %v951
      %v976 = vpack.c.b16 %v956, %v952
      %v977 = vpack.c.b16 %v957, %v957
      %v978 = vpack.c.b16 %v958, %v958
      %v979 = vpack.c.b16 %v959, %v959
      %v980 = vpack.c.b16 %v960, %v960
      %v998 = vsel %vm293, %v977, 0
      %v1001 = vsel %vm293, %v978, 0
      %v1004 = vsel %vm293, %v979, 0
      %v1007 = vsel %vm293, %v980, 0
      %1009 = vmatprep.subr.bf16.mxu0 0
      %1010 = vmatpush1.bf16.msra.mxu0 0
      %1011 = vmatprep.subr.bf16.mxu0 0
      %1012 = vmatpush1.bf16.msra.mxu0 0
      %1013 = vmatprep.subr.bf16.mxu0 0
      %1014 = vmatpush1.bf16.msra.mxu0 0
      %1015 = vmatprep.subr.bf16.mxu0 %v1001
      %1016 = vmatpush1.bf16.msra.mxu0 %v998
      %1017 = vmatprep.subr.bf16.mxu0 %v974
      %1018 = vmatpush1.bf16.msra.mxu0 %v973
      %1019 = vmatprep.subr.bf16.mxu0 %v970
      %1020 = vmatpush1.bf16.msra.mxu0 %v969
      %1021 = vmatprep.subr.bf16.mxu0 %v966
      %1022 = vmatpush1.bf16.msra.mxu0 %v965
      %1023 = vmatprep.subr.bf16.mxu0 %v962
      %1024 = vmatpush1.bf16.msra.mxu0 %v961
      %1025 = vmatprep.subr.bf16.mxu0 0
      %1026 = vmatpush2.bf16.msra.mxu0 0
      %1027 = vmatprep.subr.bf16.mxu0 0
      %1028 = vmatpush2.bf16.msra.mxu0 0
      %1029 = vmatprep.subr.bf16.mxu0 0
      %1030 = vmatpush2.bf16.msra.mxu0 0
      %1031 = vmatprep.subr.bf16.mxu0 0
      %1032 = vmatpush2.bf16.msra.mxu0 0
      %1033 = vmatprep.subr.bf16.mxu0 0
      %1034 = vmatpush2.bf16.msra.mxu0 0
      %1035 = vmatprep.subr.bf16.mxu0 0
      %1036 = vmatpush2.bf16.msra.mxu0 0
      %1037 = vmatprep.subr.bf16.mxu0 0
      %1038 = vmatpush2.bf16.msra.mxu0 0
      %1039 = vmatprep.subr.bf16.mxu0 0
      %1040 = vmatpush2.bf16.msra.mxu0 0
      %1041 = vmatprep.mubr.bf16.mxu0 0
      %1042 = vmatmul.mubr.bf16.gmra.mxu0 %v291
      %v1043 = vpop.f32.mrf.mxu0
      %v1044 = vadd.f32 0.0, %v1043
      %v1045 = vpop.f32.mrf.mxu0
      %v1046 = vadd.f32 0.0, %v1045
      %v1047 = vpop.f32.mrf.mxu0
      %v1048 = vadd.f32 0.0, %v1047
      %v1049 = vpop.f32.mrf.mxu0
      %v1050 = vadd.f32 0.0, %v1049
      %1051 = vdwg.mxu0
      %1052 = vmatprep.subr.bf16.mxu0 0
      %1053 = vmatpush1.bf16.msra.mxu0 0
      %1054 = vmatprep.subr.bf16.mxu0 0
      %1055 = vmatpush1.bf16.msra.mxu0 0
      %1056 = vmatprep.subr.bf16.mxu0 0
      %1057 = vmatpush1.bf16.msra.mxu0 0
      %1058 = vmatprep.subr.bf16.mxu0 %v1007
      %1059 = vmatpush1.bf16.msra.mxu0 %v1004
      %1060 = vmatprep.subr.bf16.mxu0 %v976
      %1061 = vmatpush1.bf16.msra.mxu0 %v975
      %1062 = vmatprep.subr.bf16.mxu0 %v972
      %1063 = vmatpush1.bf16.msra.mxu0 %v971
      %1064 = vmatprep.subr.bf16.mxu0 %v968
      %1065 = vmatpush1.bf16.msra.mxu0 %v967
      %1066 = vmatprep.subr.bf16.mxu0 %v964
      %1067 = vmatpush1.bf16.msra.mxu0 %v963
      %1068 = vmatprep.subr.bf16.mxu0 0
      %1069 = vmatpush2.bf16.msra.mxu0 0
      %1070 = vmatprep.subr.bf16.mxu0 0
      %1071 = vmatpush2.bf16.msra.mxu0 0
      %1072 = vmatprep.subr.bf16.mxu0 0
      %1073 = vmatpush2.bf16.msra.mxu0 0
      %1074 = vmatprep.subr.bf16.mxu0 0
      %1075 = vmatpush2.bf16.msra.mxu0 0
      %1076 = vmatprep.subr.bf16.mxu0 0
      %1077 = vmatpush2.bf16.msra.mxu0 0
      %1078 = vmatprep.subr.bf16.mxu0 0
      %1079 = vmatpush2.bf16.msra.mxu0 0
      %1080 = vmatprep.subr.bf16.mxu0 0
      %1081 = vmatpush2.bf16.msra.mxu0 0
      %1082 = vmatprep.subr.bf16.mxu0 0
      %1083 = vmatpush2.bf16.msra.mxu0 0
      %1084 = vmatprep.mubr.bf16.mxu0 0
      %1085 = vmatmul.mubr.bf16.gmra.mxu0 %v291
      %v1086 = vpop.f32.mrf.mxu0
      %v1087 = vadd.f32 0.0, %v1086
      %v1088 = vpop.f32.mrf.mxu0
      %v1089 = vadd.f32 0.0, %v1088
      %v1090 = vpop.f32.mrf.mxu0
      %v1091 = vadd.f32 0.0, %v1090
      %v1092 = vpop.f32.mrf.mxu0
      %v1093 = vadd.f32 0.0, %v1092
      %1094 = vdwg.mxu0
      %v1095 = vmul.f32 %v1044, %v395
      %v1096 = vmul.f32 %v1046, %v395
      %v1097 = vmul.f32 %v1087, %v395
      %v1098 = vmul.f32 %v1089, %v395
      %v1099 = vmul.f32 %v1048, %v400
      %v1100 = vmul.f32 %v1050, %v400
      %v1101 = vmul.f32 %v1091, %v400
      %v1102 = vmul.f32 %v1093, %v400
      %v1103 = vadd.f32 %v1095, %v412
      %v1104 = vadd.f32 %v1096, %v412
      %v1105 = vadd.f32 %v1097, %v412
      %v1106 = vadd.f32 %v1098, %v412
      %v1107 = vadd.f32 %v1099, %v416
      %v1108 = vadd.f32 %v1100, %v416
      %v1109 = vadd.f32 %v1101, %v416
      %v1110 = vadd.f32 %v1102, %v416
      %v1111 = vmax.f32 %v880, %v1103
      %v1112 = vmax.f32 %v881, %v1104
      %v1113 = vmax.f32 %v882, %v1105
      %v1114 = vmax.f32 %v883, %v1106
      %v1115 = vmax.f32 %v884, %v1107
      %v1116 = vmax.f32 %v885, %v1108
      %v1117 = vmax.f32 %v886, %v1109
      %v1118 = vmax.f32 %v887, %v1110
      %v1119 = vmax.f32 %v1111, 0.0
      %v1120 = vmax.f32 %v1112, 0.0
      %v1121 = vmax.f32 %v1113, 0.0
      %v1122 = vmax.f32 %v1114, 0.0
      %v1123 = vmax.f32 %v1115, 0.0
      %v1124 = vmax.f32 %v1116, 0.0
      %v1125 = vmax.f32 %v1117, 0.0
      %v1126 = vmax.f32 %v1118, 0.0
      %v1127 = vpack.c.bf16 %v1123, %v1119
      %v1128 = vpack.c.bf16 %v1124, %v1120
      %v1129 = vpack.c.bf16 %v1125, %v1121
      %v1130 = vpack.c.bf16 %v1126, %v1122
      %v1135 = vunpack.c.l.b16 %v1127
      %v1136 = vunpack.c.l.b16 %v1128
      %v1137 = vunpack.c.l.b16 %v1129
      %v1138 = vunpack.c.l.b16 %v1130
      %v1139 = vunpack.c.h.b16 %v1127
      %v1140 = vunpack.c.h.b16 %v1128
      %v1141 = vunpack.c.h.b16 %v1129
      %v1142 = vunpack.c.h.b16 %v1130
      %v1143 = vpack.c.b16 %v1136, %v1135
      %v1144 = vpack.c.b16 %v1138, %v1137
      %v1145 = vpack.c.b16 %v1140, %v1139
      %v1146 = vpack.c.b16 %v1142, %v1141
      %1151 = vst [vmem:[%s170] sm:$0xff] %v1143
      %vm1152 = vcmask 465924
      %vm1153 = vmor %vm1152, %vm293
      %1154 = vst.msk [vmem:[%s170 + $0x8] sm:$0xff] %vm1153, %v1144
      %1155 = vst [vmem:[%s170 + $0x10] sm:$0xff] %v1145
      %1156 = vst.msk [vmem:[%s170 + $0x18] sm:$0xff] %vm1153, %v1146
      %p1157 = scmp.lt.s32.totalorder %s14, 1
      %s1158 = scalar_select %p1157, %s14, 1
      %s1159 = smul.addr %s1158, 8
      %s1160 = smul.addr %s1159, 4
      %s1161 = scalar_lea.vmem %s3, %s1160
      // Predicated region
      $region33: #{forward.4} parent=31 // pred_check
        %p1162 = pneg %p100
      $region34: #{forward.4} parent=31 // pred_check_branch
        %1164 = sbr.rel (%p1162) target = $region36
      $region35: #{forward.4} parent=31 // pred_region
        _
      $region36: #{forward.4} parent=31 // pred_fallthru
        _
    $region32: #{forward.4} parent=5 // pred_fallthru
      _
    %p1165 = scmp.le.s32.totalorder 2, %s9
    // Predicated region
    $region37: #{forward.4} parent=5 // pred_check
      %p1166 = pneg %p1165
    $region38: #{forward.4} parent=5 // pred_check_branch
      %1168 = sbr.rel (%p1166) target = $region40
    $region39: #{forward.4} parent=5 // pred_region
      %s1169 = ssub.s32 %s9, 2
      // Predicated region
      $region41: #{forward.4} parent=39 // pred_check
        %p1170 = pneg %p106
      $region42: #{forward.4} parent=39 // pred_check_branch
        %1172 = sbr.rel (%p1170) target = $region44
      $region43: #{forward.4} parent=39 // pred_region
        %p1173 = scmp.lt.s32.totalorder %s15, 1
        %s1174 = scalar_select %p1173, %s15, 1
        %s1175 = smul.addr %s1174, 8
        %s1176 = smul.addr %s1175, 4
        %s1177 = scalar_lea.vmem %s3, %s1176
      $region44: #{forward.4} parent=39 // pred_fallthru
        _
    $region40: #{forward.4} parent=5 // pred_fallthru
      _
  $region6: #{forward.4} parent=0 // loop_footer
    %s13 = sadd.s32 1, %s9
  $region7: #{forward.4} parent=0 // loop_footer_branch
    %8 = sbr.rel target = $region3
  $region8: #{forward.4} parent=0 // loop_exit
    _

// kernel: forward.5
$region0: #{forward.5}
  #allocation0 [shape = 'u32[]', space=smem, size = 0x4, offset = 0x4, fixed_abs, tag = 'smem constant byte address 0x4 - core index']
  #allocation1 [shape = 'u32[144,128]{1,0:T(1,128)}', space=vmem, size = 0x12000, scoped, tag = 'internal scratch']
  %s0 = inlined_call_operand.vmem [shape: bf16[2,7056], index: 0, kind: input, shape index: {}]
  %s1 = inlined_call_operand.vmem [shape: bf16[7056,32], index: 1, kind: input, shape index: {}]
  %s2 = inlined_call_operand.vmem [shape: f32[1,32], index: 2, kind: input, shape index: {}]
  %s3 = inlined_call_operand.vmem [shape: bf16[32,10], index: 3, kind: input, shape index: {}]
  %s4 = inlined_call_operand.vmem [shape: f32[1,10], index: 4, kind: input, shape index: {}]
  %s5 = inlined_call_operand.hbm [shape: f32[2,10], index: 5, kind: output, shape index: {}]
  %s6 = sld [smem:[#allocation0]]
  $region30: #{forward.5} parent=0
    _
  %s8 = ssub.s32 1, %s6
  %s9 = scalar_select 0, %s8, %s6
  $region1: #{forward.5} parent=0
    #allocation2 [shape = 'u8[1024]{0}', space=vmem, size = 0x400, scoped, tag = 'output window, operand 0, single buffered']
    #allocation3 [shape = 's32[1]{0}', space=sflag, size = 0x4, scoped, tag = 'scoped memory for forward.5']
    %10 = vsyncpa [#allocation3], 0
    // Predicated region
    $region2: #{forward.5} parent=1 // pred_check
      _
    $region3: #{forward.5} parent=1 // pred_check_branch
      %12 = sbr.rel (0) target = $region5
    $region4: #{forward.5} parent=1 // pred_region
      _
    $region5: #{forward.5} parent=1 // pred_fallthru
      _
    // Predicated region
    $region6: #{forward.5} parent=1 // pred_check
      _
    $region7: #{forward.5} parent=1 // pred_check_branch
      %14 = sbr.rel (0) target = $region9
    $region8: #{forward.5} parent=1 // pred_region
      _
    $region9: #{forward.5} parent=1 // pred_fallthru
      _
    // Predicated region
    $region10: #{forward.5} parent=1 // pred_check
      _
    $region11: #{forward.5} parent=1 // pred_check_branch
      %16 = sbr.rel (0) target = $region13
    $region12: #{forward.5} parent=1 // pred_region
      _
    $region13: #{forward.5} parent=1 // pred_fallthru
      _
    // Predicated region
    $region14: #{forward.5} parent=1 // pred_check
      _
    $region15: #{forward.5} parent=1 // pred_check_branch
      %18 = sbr.rel (0) target = $region17
    $region16: #{forward.5} parent=1 // pred_region
      _
    $region17: #{forward.5} parent=1 // pred_fallthru
      _
    // Predicated region
    $region18: #{forward.5} parent=1 // pred_check
      _
    $region19: #{forward.5} parent=1 // pred_check_branch
      %20 = sbr.rel (0) target = $region21
    $region20: #{forward.5} parent=1 // pred_region
      _
    $region21: #{forward.5} parent=1 // pred_fallthru
      _
    %v22 = vld [vmem:[%s0] sm:$0xff]
    %v23 = vld [vmem:[%s0 + $0x8] sm:$0xff]
    %v24 = vld [vmem:[%s0 + $0x10] sm:$0xff]
    %v25 = vld [vmem:[%s0 + $0x18] sm:$0xff]
    %v26 = vld [vmem:[%s0 + $0x20] sm:$0xff]
    %v27 = vld [vmem:[%s0 + $0x28] sm:$0xff]
    %v28 = vld [vmem:[%s0 + $0x30] sm:$0xff]
    %v29 = vld [vmem:[%s1] sm:$0xf]
    %v30 = vld [vmem:[%s1 + $0x4] sm:$0xf]
    %v31 = vld [vmem:[%s1 + $0x8] sm:$0xf]
    %v32 = vld [vmem:[%s1 + $0xc] sm:$0xf]
    %v33 = vld [vmem:[%s1 + $0x10] sm:$0xf]
    %v34 = vld [vmem:[%s1 + $0x14] sm:$0xf]
    %v35 = vld [vmem:[%s1 + $0x18] sm:$0xf]
    %v36 = vld [vmem:[%s1 + $0x1c] sm:$0xf]
    %v37 = vld [vmem:[%s1 + $0x20] sm:$0xf]
    %v38 = vld [vmem:[%s1 + $0x24] sm:$0xf]
    %v39 = vld [vmem:[%s1 + $0x28] sm:$0xf]
    %v40 = vld [vmem:[%s1 + $0x2c] sm:$0xf]
    %v41 = vld [vmem:[%s1 + $0x30] sm:$0xf]
    %v42 = vld [vmem:[%s1 + $0x34] sm:$0xf]
    %v43 = vld [vmem:[%s1 + $0x38] sm:$0xf]
    %v44 = vld [vmem:[%s1 + $0x3c] sm:$0xf]
    %v45 = vld [vmem:[%s1 + $0x40] sm:$0xf]
    %v46 = vld [vmem:[%s1 + $0x44] sm:$0xf]
    %v47 = vld [vmem:[%s1 + $0x48] sm:$0xf]
    %v48 = vld [vmem:[%s1 + $0x4c] sm:$0xf]
    %v49 = vld [vmem:[%s1 + $0x50] sm:$0xf]
    %v50 = vld [vmem:[%s1 + $0x54] sm:$0xf]
    %v51 = vld [vmem:[%s1 + $0x58] sm:$0xf]
    %v52 = vld [vmem:[%s1 + $0x5c] sm:$0xf]
    %v53 = vld [vmem:[%s1 + $0x60] sm:$0xf]
    %v54 = vld [vmem:[%s1 + $0x64] sm:$0xf]
    %v55 = vld [vmem:[%s1 + $0x68] sm:$0xf]
    %v56 = vld [vmem:[%s1 + $0x6c] sm:$0xf]
    %v57 = vld [vmem:[%s1 + $0x70] sm:$0xf]
    %v58 = vld [vmem:[%s1 + $0x74] sm:$0xf]
    %v59 = vld [vmem:[%s1 + $0x78] sm:$0xf]
    %v60 = vld [vmem:[%s1 + $0x7c] sm:$0xf]
    %v61 = vld [vmem:[%s1 + $0x80] sm:$0xf]
    %v62 = vld [vmem:[%s1 + $0x84] sm:$0xf]
    %v63 = vld [vmem:[%s1 + $0x88] sm:$0xf]
    %v64 = vld [vmem:[%s1 + $0x8c] sm:$0xf]
    %v65 = vld [vmem:[%s1 + $0x90] sm:$0xf]
    %v66 = vld [vmem:[%s1 + $0x94] sm:$0xf]
    %v67 = vld [vmem:[%s1 + $0x98] sm:$0xf]
    %v68 = vld [vmem:[%s1 + $0x9c] sm:$0xf]
    %v69 = vld [vmem:[%s1 + $0xa0] sm:$0xf]
    %v70 = vld [vmem:[%s1 + $0xa4] sm:$0xf]
    %v71 = vld [vmem:[%s1 + $0xa8] sm:$0xf]
    %v72 = vld [vmem:[%s1 + $0xac] sm:$0xf]
    %v73 = vld [vmem:[%s1 + $0xb0] sm:$0xf]
    %v74 = vld [vmem:[%s1 + $0xb4] sm:$0xf]
    %v75 = vld [vmem:[%s1 + $0xb8] sm:$0xf]
    %v76 = vld [vmem:[%s1 + $0xbc] sm:$0xf]
    %v77 = vld [vmem:[%s1 + $0xc0] sm:$0xf]
    %v78 = vld [vmem:[%s1 + $0xc4] sm:$0xf]
    %v79 = vld [vmem:[%s1 + $0xc8] sm:$0xf]
    %v80 = vld [vmem:[%s1 + $0xcc] sm:$0xf]
    %v81 = vld [vmem:[%s1 + $0xd0] sm:$0xf]
    %v82 = vld [vmem:[%s1 + $0xd4] sm:$0xf]
    %v83 = vld [vmem:[%s1 + $0xd8] sm:$0xf]
    %v84 = vld [vmem:[%s1 + $0xdc] sm:$0xf]
    %v85 = vld [vmem:[%s1 + $0xe0] sm:$0xf]
    %v86 = vld [vmem:[%s1 + $0xe4] sm:$0xf]
    %v87 = vld [vmem:[%s1 + $0xe8] sm:$0xf]
    %v88 = vld [vmem:[%s1 + $0xec] sm:$0xf]
    %v89 = vld [vmem:[%s1 + $0xf0] sm:$0xf]
    %v90 = vld [vmem:[%s1 + $0xf4] sm:$0xf]
    %v91 = vld [vmem:[%s1 + $0xf8] sm:$0xf]
    %v92 = vld [vmem:[%s1 + $0xfc] sm:$0xf]
    %v93 = vld [vmem:[%s1 + $0x100] sm:$0xf]
    %v94 = vld [vmem:[%s1 + $0x104] sm:$0xf]
    %v95 = vld [vmem:[%s1 + $0x108] sm:$0xf]
    %v96 = vld [vmem:[%s1 + $0x10c] sm:$0xf]
    %v97 = vld [vmem:[%s1 + $0x110] sm:$0xf]
    %v98 = vld [vmem:[%s1 + $0x114] sm:$0xf]
    %v99 = vld [vmem:[%s1 + $0x118] sm:$0xf]
    %v100 = vld [vmem:[%s1 + $0x11c] sm:$0xf]
    %v101 = vld [vmem:[%s1 + $0x120] sm:$0xf]
    %v102 = vld [vmem:[%s1 + $0x124] sm:$0xf]
    %v103 = vld [vmem:[%s1 + $0x128] sm:$0xf]
    %v104 = vld [vmem:[%s1 + $0x12c] sm:$0xf]
    %v105 = vld [vmem:[%s1 + $0x130] sm:$0xf]
    %v106 = vld [vmem:[%s1 + $0x134] sm:$0xf]
    %v107 = vld [vmem:[%s1 + $0x138] sm:$0xf]
    %v108 = vld [vmem:[%s1 + $0x13c] sm:$0xf]
    %v109 = vld [vmem:[%s1 + $0x140] sm:$0xf]
    %v110 = vld [vmem:[%s1 + $0x144] sm:$0xf]
    %v111 = vld [vmem:[%s1 + $0x148] sm:$0xf]
    %v112 = vld [vmem:[%s1 + $0x14c] sm:$0xf]
    %v113 = vld [vmem:[%s1 + $0x150] sm:$0xf]
    %v114 = vld [vmem:[%s1 + $0x154] sm:$0xf]
    %v115 = vld [vmem:[%s1 + $0x158] sm:$0xf]
    %v116 = vld [vmem:[%s1 + $0x15c] sm:$0xf]
    %v117 = vld [vmem:[%s1 + $0x160] sm:$0xf]
    %v118 = vld [vmem:[%s1 + $0x164] sm:$0xf]
    %v119 = vld [vmem:[%s1 + $0x168] sm:$0xf]
    %v120 = vld [vmem:[%s1 + $0x16c] sm:$0xf]
    %v121 = vld [vmem:[%s1 + $0x170] sm:$0xf]
    %v122 = vld [vmem:[%s1 + $0x174] sm:$0xf]
    %v123 = vld [vmem:[%s1 + $0x178] sm:$0xf]
    %v124 = vld [vmem:[%s1 + $0x17c] sm:$0xf]
    %v125 = vld [vmem:[%s1 + $0x180] sm:$0xf]
    %v126 = vld [vmem:[%s1 + $0x184] sm:$0xf]
    %v127 = vld [vmem:[%s1 + $0x188] sm:$0xf]
    %v128 = vld [vmem:[%s1 + $0x18c] sm:$0xf]
    %v129 = vld [vmem:[%s1 + $0x190] sm:$0xf]
    %v130 = vld [vmem:[%s1 + $0x194] sm:$0xf]
    %v131 = vld [vmem:[%s1 + $0x198] sm:$0xf]
    %v132 = vld [vmem:[%s1 + $0x19c] sm:$0xf]
    %v133 = vld [vmem:[%s1 + $0x1a0] sm:$0xf]
    %v134 = vld [vmem:[%s1 + $0x1a4] sm:$0xf]
    %v135 = vld [vmem:[%s1 + $0x1a8] sm:$0xf]
    %v136 = vld [vmem:[%s1 + $0x1ac] sm:$0xf]
    %v137 = vld [vmem:[%s1 + $0x1b0] sm:$0xf]
    %v138 = vld [vmem:[%s1 + $0x1b4] sm:$0xf]
    %v139 = vld [vmem:[%s1 + $0x1b8] sm:$0xf]
    %v140 = vld [vmem:[%s1 + $0x1bc] sm:$0xf]
    %v141 = vld [vmem:[%s1 + $0x1c0] sm:$0xf]
    %v142 = vld [vmem:[%s1 + $0x1c4] sm:$0xf]
    %v143 = vld [vmem:[%s1 + $0x1c8] sm:$0xf]
    %v144 = vld [vmem:[%s1 + $0x1cc] sm:$0xf]
    %v145 = vld [vmem:[%s1 + $0x1d0] sm:$0xf]
    %v146 = vld [vmem:[%s1 + $0x1d4] sm:$0xf]
    %v147 = vld [vmem:[%s1 + $0x1d8] sm:$0xf]
    %v148 = vld [vmem:[%s1 + $0x1dc] sm:$0xf]
    %v149 = vld [vmem:[%s1 + $0x1e0] sm:$0xf]
    %v150 = vld [vmem:[%s1 + $0x1e4] sm:$0xf]
    %v151 = vld [vmem:[%s1 + $0x1e8] sm:$0xf]
    %v152 = vld [vmem:[%s1 + $0x1ec] sm:$0xf]
    %v153 = vld [vmem:[%s1 + $0x1f0] sm:$0xf]
    %v154 = vld [vmem:[%s1 + $0x1f4] sm:$0xf]
    %v155 = vld [vmem:[%s1 + $0x1f8] sm:$0xf]
    %v156 = vld [vmem:[%s1 + $0x1fc] sm:$0xf]
    %v157 = vld [vmem:[%s1 + $0x200] sm:$0xf]
    %v158 = vld [vmem:[%s1 + $0x204] sm:$0xf]
    %v159 = vld [vmem:[%s1 + $0x208] sm:$0xf]
    %v160 = vld [vmem:[%s1 + $0x20c] sm:$0xf]
    %v161 = vld [vmem:[%s1 + $0x210] sm:$0xf]
    %v162 = vld [vmem:[%s1 + $0x214] sm:$0xf]
    %v163 = vld [vmem:[%s1 + $0x218] sm:$0xf]
    %v164 = vld [vmem:[%s1 + $0x21c] sm:$0xf]
    %v165 = vld [vmem:[%s1 + $0x220] sm:$0xf]
    %v166 = vld [vmem:[%s1 + $0x224] sm:$0xf]
    %v167 = vld [vmem:[%s1 + $0x228] sm:$0xf]
    %v168 = vld [vmem:[%s1 + $0x22c] sm:$0xf]
    %v169 = vld [vmem:[%s1 + $0x230] sm:$0xf]
    %v170 = vld [vmem:[%s1 + $0x234] sm:$0xf]
    %v171 = vld [vmem:[%s1 + $0x238] sm:$0xf]
    %v172 = vld [vmem:[%s1 + $0x23c] sm:$0xf]
    %v173 = vld [vmem:[%s1 + $0x240] sm:$0xf]
    %v174 = vld [vmem:[%s1 + $0x244] sm:$0xf]
    %v175 = vld [vmem:[%s1 + $0x248] sm:$0xf]
    %v176 = vld [vmem:[%s1 + $0x24c] sm:$0xf]
    %v177 = vld [vmem:[%s1 + $0x250] sm:$0xf]
    %v178 = vld [vmem:[%s1 + $0x254] sm:$0xf]
    %v179 = vld [vmem:[%s1 + $0x258] sm:$0xf]
    %v180 = vld [vmem:[%s1 + $0x25c] sm:$0xf]
    %v181 = vld [vmem:[%s1 + $0x260] sm:$0xf]
    %v182 = vld [vmem:[%s1 + $0x264] sm:$0xf]
    %v183 = vld [vmem:[%s1 + $0x268] sm:$0xf]
    %v184 = vld [vmem:[%s1 + $0x26c] sm:$0xf]
    %v185 = vld [vmem:[%s1 + $0x270] sm:$0xf]
    %v186 = vld [vmem:[%s1 + $0x274] sm:$0xf]
    %v187 = vld [vmem:[%s1 + $0x278] sm:$0xf]
    %v188 = vld [vmem:[%s1 + $0x27c] sm:$0xf]
    %v189 = vld [vmem:[%s1 + $0x280] sm:$0xf]
    %v190 = vld [vmem:[%s1 + $0x284] sm:$0xf]
    %v191 = vld [vmem:[%s1 + $0x288] sm:$0xf]
    %v192 = vld [vmem:[%s1 + $0x28c] sm:$0xf]
    %v193 = vld [vmem:[%s1 + $0x290] sm:$0xf]
    %v194 = vld [vmem:[%s1 + $0x294] sm:$0xf]
    %v195 = vld [vmem:[%s1 + $0x298] sm:$0xf]
    %v196 = vld [vmem:[%s1 + $0x29c] sm:$0xf]
    %v197 = vld [vmem:[%s1 + $0x2a0] sm:$0xf]
    %v198 = vld [vmem:[%s1 + $0x2a4] sm:$0xf]
    %v199 = vld [vmem:[%s1 + $0x2a8] sm:$0xf]
    %v200 = vld [vmem:[%s1 + $0x2ac] sm:$0xf]
    %v201 = vld [vmem:[%s1 + $0x2b0] sm:$0xf]
    %v202 = vld [vmem:[%s1 + $0x2b4] sm:$0xf]
    %v203 = vld [vmem:[%s1 + $0x2b8] sm:$0xf]
    %v204 = vld [vmem:[%s1 + $0x2bc] sm:$0xf]
    %v205 = vld [vmem:[%s1 + $0x2c0] sm:$0xf]
    %v206 = vld [vmem:[%s1 + $0x2c4] sm:$0xf]
    %v207 = vld [vmem:[%s1 + $0x2c8] sm:$0xf]
    %v208 = vld [vmem:[%s1 + $0x2cc] sm:$0xf]
    %v209 = vld [vmem:[%s1 + $0x2d0] sm:$0xf]
    %v210 = vld [vmem:[%s1 + $0x2d4] sm:$0xf]
    %v211 = vld [vmem:[%s1 + $0x2d8] sm:$0xf]
    %v212 = vld [vmem:[%s1 + $0x2dc] sm:$0xf]
    %v213 = vld [vmem:[%s1 + $0x2e0] sm:$0xf]
    %v214 = vld [vmem:[%s1 + $0x2e4] sm:$0xf]
    %v215 = vld [vmem:[%s1 + $0x2e8] sm:$0xf]
    %v216 = vld [vmem:[%s1 + $0x2ec] sm:$0xf]
    %v217 = vld [vmem:[%s1 + $0x2f0] sm:$0xf]
    %v218 = vld [vmem:[%s1 + $0x2f4] sm:$0xf]
    %v219 = vld [vmem:[%s1 + $0x2f8] sm:$0xf]
    %v220 = vld [vmem:[%s1 + $0x2fc] sm:$0xf]
    %v221 = vld [vmem:[%s1 + $0x300] sm:$0xf]
    %v222 = vld [vmem:[%s1 + $0x304] sm:$0xf]
    %v223 = vld [vmem:[%s1 + $0x308] sm:$0xf]
    %v224 = vld [vmem:[%s1 + $0x30c] sm:$0xf]
    %v225 = vld [vmem:[%s1 + $0x310] sm:$0xf]
    %v226 = vld [vmem:[%s1 + $0x314] sm:$0xf]
    %v227 = vld [vmem:[%s1 + $0x318] sm:$0xf]
    %v228 = vld [vmem:[%s1 + $0x31c] sm:$0xf]
    %v229 = vld [vmem:[%s1 + $0x320] sm:$0xf]
    %v230 = vld [vmem:[%s1 + $0x324] sm:$0xf]
    %v231 = vld [vmem:[%s1 + $0x328] sm:$0xf]
    %v232 = vld [vmem:[%s1 + $0x32c] sm:$0xf]
    %v233 = vld [vmem:[%s1 + $0x330] sm:$0xf]
    %v234 = vld [vmem:[%s1 + $0x334] sm:$0xf]
    %v235 = vld [vmem:[%s1 + $0x338] sm:$0xf]
    %v236 = vld [vmem:[%s1 + $0x33c] sm:$0xf]
    %v237 = vld [vmem:[%s1 + $0x340] sm:$0xf]
    %v238 = vld [vmem:[%s1 + $0x344] sm:$0xf]
    %v239 = vld [vmem:[%s1 + $0x348] sm:$0xf]
    %v240 = vld [vmem:[%s1 + $0x34c] sm:$0xf]
    %v241 = vld [vmem:[%s1 + $0x350] sm:$0xf]
    %v242 = vld [vmem:[%s1 + $0x354] sm:$0xf]
    %v243 = vld [vmem:[%s1 + $0x358] sm:$0xf]
    %v244 = vld [vmem:[%s1 + $0x35c] sm:$0xf]
    %v245 = vld [vmem:[%s1 + $0x360] sm:$0xf]
    %v246 = vld [vmem:[%s1 + $0x364] sm:$0xf]
    %v247 = vld [vmem:[%s1 + $0x368] sm:$0xf]
    %v248 = vld [vmem:[%s1 + $0x36c] sm:$0xf]
    %v249 = vld [vmem:[%s1 + $0x370] sm:$0xf]
    %v250 = vld [vmem:[%s1 + $0x374] sm:$0xf]
    %v251 = vld [vmem:[%s1 + $0x378] sm:$0xf]
    %v252 = vld [vmem:[%s1 + $0x37c] sm:$0xf]
    %v253 = vld [vmem:[%s1 + $0x380] sm:$0xf]
    %v254 = vld [vmem:[%s1 + $0x384] sm:$0xf]
    %v255 = vld [vmem:[%s1 + $0x388] sm:$0xf]
    %v256 = vld [vmem:[%s1 + $0x38c] sm:$0xf]
    %v257 = vld [vmem:[%s1 + $0x390] sm:$0xf]
    %v258 = vld [vmem:[%s1 + $0x394] sm:$0xf]
    %v259 = vld [vmem:[%s1 + $0x398] sm:$0xf]
    %v260 = vld [vmem:[%s1 + $0x39c] sm:$0xf]
    %v261 = vld [vmem:[%s1 + $0x3a0] sm:$0xf]
    %v262 = vld [vmem:[%s1 + $0x3a4] sm:$0xf]
    %v263 = vld [vmem:[%s1 + $0x3a8] sm:$0xf]
    %v264 = vld [vmem:[%s1 + $0x3ac] sm:$0xf]
    %v265 = vld [vmem:[%s1 + $0x3b0] sm:$0xf]
    %v266 = vld [vmem:[%s1 + $0x3b4] sm:$0xf]
    %v267 = vld [vmem:[%s1 + $0x3b8] sm:$0xf]
    %v268 = vld [vmem:[%s1 + $0x3bc] sm:$0xf]
    %v269 = vld [vmem:[%s1 + $0x3c0] sm:$0xf]
    %v270 = vld [vmem:[%s1 + $0x3c4] sm:$0xf]
    %v271 = vld [vmem:[%s1 + $0x3c8] sm:$0xf]
    %v272 = vld [vmem:[%s1 + $0x3cc] sm:$0xf]
    %v273 = vld [vmem:[%s1 + $0x3d0] sm:$0xf]
    %v274 = vld [vmem:[%s1 + $0x3d4] sm:$0xf]
    %v275 = vld [vmem:[%s1 + $0x3d8] sm:$0xf]
    %v276 = vld [vmem:[%s1 + $0x3dc] sm:$0xf]
    %v277 = vld [vmem:[%s1 + $0x3e0] sm:$0xf]
    %v278 = vld [vmem:[%s1 + $0x3e4] sm:$0xf]
    %v279 = vld [vmem:[%s1 + $0x3e8] sm:$0xf]
    %v280 = vld [vmem:[%s1 + $0x3ec] sm:$0xf]
    %v281 = vld [vmem:[%s1 + $0x3f0] sm:$0xf]
    %v282 = vld [vmem:[%s1 + $0x3f4] sm:$0xf]
    %v283 = vld [vmem:[%s1 + $0x3f8] sm:$0xf]
    %v284 = vld [vmem:[%s1 + $0x3fc] sm:$0xf]
    %v285 = vld [vmem:[%s1 + $0x400] sm:$0xf]
    %v286 = vld [vmem:[%s1 + $0x404] sm:$0xf]
    %v287 = vld [vmem:[%s1 + $0x408] sm:$0xf]
    %v288 = vld [vmem:[%s1 + $0x40c] sm:$0xf]
    %v289 = vld [vmem:[%s1 + $0x410] sm:$0xf]
    %v290 = vld [vmem:[%s1 + $0x414] sm:$0xf]
    %v291 = vld [vmem:[%s1 + $0x418] sm:$0xf]
    %v292 = vld [vmem:[%s1 + $0x41c] sm:$0xf]
    %v293 = vld [vmem:[%s1 + $0x420] sm:$0xf]
    %v294 = vld [vmem:[%s1 + $0x424] sm:$0xf]
    %v295 = vld [vmem:[%s1 + $0x428] sm:$0xf]
    %v296 = vld [vmem:[%s1 + $0x42c] sm:$0xf]
    %v297 = vld [vmem:[%s1 + $0x430] sm:$0xf]
    %v298 = vld [vmem:[%s1 + $0x434] sm:$0xf]
    %v299 = vld [vmem:[%s1 + $0x438] sm:$0xf]
    %v300 = vld [vmem:[%s1 + $0x43c] sm:$0xf]
    %v301 = vld [vmem:[%s1 + $0x440] sm:$0xf]
    %v302 = vld [vmem:[%s1 + $0x444] sm:$0xf]
    %v303 = vld [vmem:[%s1 + $0x448] sm:$0xf]
    %v304 = vld [vmem:[%s1 + $0x44c] sm:$0xf]
    %v305 = vld [vmem:[%s1 + $0x450] sm:$0xf]
    %v306 = vld [vmem:[%s1 + $0x454] sm:$0xf]
    %v307 = vld [vmem:[%s1 + $0x458] sm:$0xf]
    %v308 = vld [vmem:[%s1 + $0x45c] sm:$0xf]
    %v309 = vld [vmem:[%s1 + $0x460] sm:$0xf]
    %v310 = vld [vmem:[%s1 + $0x464] sm:$0xf]
    %v311 = vld [vmem:[%s1 + $0x468] sm:$0xf]
    %v312 = vld [vmem:[%s1 + $0x46c] sm:$0xf]
    %v313 = vld [vmem:[%s1 + $0x470] sm:$0xf]
    %v314 = vld [vmem:[%s1 + $0x474] sm:$0xf]
    %v315 = vld [vmem:[%s1 + $0x478] sm:$0xf]
    %v316 = vld [vmem:[%s1 + $0x47c] sm:$0xf]
    %v317 = vld [vmem:[%s1 + $0x480] sm:$0xf]
    %v318 = vld [vmem:[%s1 + $0x484] sm:$0xf]
    %v319 = vld [vmem:[%s1 + $0x488] sm:$0xf]
    %v320 = vld [vmem:[%s1 + $0x48c] sm:$0xf]
    %v321 = vld [vmem:[%s1 + $0x490] sm:$0xf]
    %v322 = vld [vmem:[%s1 + $0x494] sm:$0xf]
    %v323 = vld [vmem:[%s1 + $0x498] sm:$0xf]
    %v324 = vld [vmem:[%s1 + $0x49c] sm:$0xf]
    %v325 = vld [vmem:[%s1 + $0x4a0] sm:$0xf]
    %v326 = vld [vmem:[%s1 + $0x4a4] sm:$0xf]
    %v327 = vld [vmem:[%s1 + $0x4a8] sm:$0xf]
    %v328 = vld [vmem:[%s1 + $0x4ac] sm:$0xf]
    %v329 = vld [vmem:[%s1 + $0x4b0] sm:$0xf]
    %v330 = vld [vmem:[%s1 + $0x4b4] sm:$0xf]
    %v331 = vld [vmem:[%s1 + $0x4b8] sm:$0xf]
    %v332 = vld [vmem:[%s1 + $0x4bc] sm:$0xf]
    %v333 = vld [vmem:[%s1 + $0x4c0] sm:$0xf]
    %v334 = vld [vmem:[%s1 + $0x4c4] sm:$0xf]
    %v335 = vld [vmem:[%s1 + $0x4c8] sm:$0xf]
    %v336 = vld [vmem:[%s1 + $0x4cc] sm:$0xf]
    %v337 = vld [vmem:[%s1 + $0x4d0] sm:$0xf]
    %v338 = vld [vmem:[%s1 + $0x4d4] sm:$0xf]
    %v339 = vld [vmem:[%s1 + $0x4d8] sm:$0xf]
    %v340 = vld [vmem:[%s1 + $0x4dc] sm:$0xf]
    %v341 = vld [vmem:[%s1 + $0x4e0] sm:$0xf]
    %v342 = vld [vmem:[%s1 + $0x4e4] sm:$0xf]
    %v343 = vld [vmem:[%s1 + $0x4e8] sm:$0xf]
    %v344 = vld [vmem:[%s1 + $0x4ec] sm:$0xf]
    %v345 = vld [vmem:[%s1 + $0x4f0] sm:$0xf]
    %v346 = vld [vmem:[%s1 + $0x4f4] sm:$0xf]
    %v347 = vld [vmem:[%s1 + $0x4f8] sm:$0xf]
    %v348 = vld [vmem:[%s1 + $0x4fc] sm:$0xf]
    %v349 = vld [vmem:[%s1 + $0x500] sm:$0xf]
    %v350 = vld [vmem:[%s1 + $0x504] sm:$0xf]
    %v351 = vld [vmem:[%s1 + $0x508] sm:$0xf]
    %v352 = vld [vmem:[%s1 + $0x50c] sm:$0xf]
    %v353 = vld [vmem:[%s1 + $0x510] sm:$0xf]
    %v354 = vld [vmem:[%s1 + $0x514] sm:$0xf]
    %v355 = vld [vmem:[%s1 + $0x518] sm:$0xf]
    %v356 = vld [vmem:[%s1 + $0x51c] sm:$0xf]
    %v357 = vld [vmem:[%s1 + $0x520] sm:$0xf]
    %v358 = vld [vmem:[%s1 + $0x524] sm:$0xf]
    %v359 = vld [vmem:[%s1 + $0x528] sm:$0xf]
    %v360 = vld [vmem:[%s1 + $0x52c] sm:$0xf]
    %v361 = vld [vmem:[%s1 + $0x530] sm:$0xf]
    %v362 = vld [vmem:[%s1 + $0x534] sm:$0xf]
    %v363 = vld [vmem:[%s1 + $0x538] sm:$0xf]
    %v364 = vld [vmem:[%s1 + $0x53c] sm:$0xf]
    %v365 = vld [vmem:[%s1 + $0x540] sm:$0xf]
    %v366 = vld [vmem:[%s1 + $0x544] sm:$0xf]
    %v367 = vld [vmem:[%s1 + $0x548] sm:$0xf]
    %v368 = vld [vmem:[%s1 + $0x54c] sm:$0xf]
    %v369 = vld [vmem:[%s1 + $0x550] sm:$0xf]
    %v370 = vld [vmem:[%s1 + $0x554] sm:$0xf]
    %v371 = vld [vmem:[%s1 + $0x558] sm:$0xf]
    %v372 = vld [vmem:[%s1 + $0x55c] sm:$0xf]
    %v373 = vld [vmem:[%s1 + $0x560] sm:$0xf]
    %v374 = vld [vmem:[%s1 + $0x564] sm:$0xf]
    %v375 = vld [vmem:[%s1 + $0x568] sm:$0xf]
    %v376 = vld [vmem:[%s1 + $0x56c] sm:$0xf]
    %v377 = vld [vmem:[%s1 + $0x570] sm:$0xf]
    %v378 = vld [vmem:[%s1 + $0x574] sm:$0xf]
    %v379 = vld [vmem:[%s1 + $0x578] sm:$0xf]
    %v380 = vld [vmem:[%s1 + $0x57c] sm:$0xf]
    %v381 = vld [vmem:[%s1 + $0x580] sm:$0xf]
    %v382 = vld [vmem:[%s1 + $0x584] sm:$0xf]
    %v383 = vld [vmem:[%s1 + $0x588] sm:$0xf]
    %v384 = vld [vmem:[%s1 + $0x58c] sm:$0xf]
    %v385 = vld [vmem:[%s1 + $0x590] sm:$0xf]
    %v386 = vld [vmem:[%s1 + $0x594] sm:$0xf]
    %v387 = vld [vmem:[%s1 + $0x598] sm:$0xf]
    %v388 = vld [vmem:[%s1 + $0x59c] sm:$0xf]
    %v389 = vld [vmem:[%s1 + $0x5a0] sm:$0xf]
    %v390 = vld [vmem:[%s1 + $0x5a4] sm:$0xf]
    %v391 = vld [vmem:[%s1 + $0x5a8] sm:$0xf]
    %v392 = vld [vmem:[%s1 + $0x5ac] sm:$0xf]
    %v393 = vld [vmem:[%s1 + $0x5b0] sm:$0xf]
    %v394 = vld [vmem:[%s1 + $0x5b4] sm:$0xf]
    %v395 = vld [vmem:[%s1 + $0x5b8] sm:$0xf]
    %v396 = vld [vmem:[%s1 + $0x5bc] sm:$0xf]
    %v397 = vld [vmem:[%s1 + $0x5c0] sm:$0xf]
    %v398 = vld [vmem:[%s1 + $0x5c4] sm:$0xf]
    %v399 = vld [vmem:[%s1 + $0x5c8] sm:$0xf]
    %v400 = vld [vmem:[%s1 + $0x5cc] sm:$0xf]
    %v401 = vld [vmem:[%s1 + $0x5d0] sm:$0xf]
    %v402 = vld [vmem:[%s1 + $0x5d4] sm:$0xf]
    %v403 = vld [vmem:[%s1 + $0x5d8] sm:$0xf]
    %v404 = vld [vmem:[%s1 + $0x5dc] sm:$0xf]
    %v405 = vld [vmem:[%s1 + $0x5e0] sm:$0xf]
    %v406 = vld [vmem:[%s1 + $0x5e4] sm:$0xf]
    %v407 = vld [vmem:[%s1 + $0x5e8] sm:$0xf]
    %v408 = vld [vmem:[%s1 + $0x5ec] sm:$0xf]
    %v409 = vld [vmem:[%s1 + $0x5f0] sm:$0xf]
    %v410 = vld [vmem:[%s1 + $0x5f4] sm:$0xf]
    %v411 = vld [vmem:[%s1 + $0x5f8] sm:$0xf]
    %v412 = vld [vmem:[%s1 + $0x5fc] sm:$0xf]
    %v413 = vld [vmem:[%s1 + $0x600] sm:$0xf]
    %v414 = vld [vmem:[%s1 + $0x604] sm:$0xf]
    %v415 = vld [vmem:[%s1 + $0x608] sm:$0xf]
    %v416 = vld [vmem:[%s1 + $0x60c] sm:$0xf]
    %v417 = vld [vmem:[%s1 + $0x610] sm:$0xf]
    %v418 = vld [vmem:[%s1 + $0x614] sm:$0xf]
    %v419 = vld [vmem:[%s1 + $0x618] sm:$0xf]
    %v420 = vld [vmem:[%s1 + $0x61c] sm:$0xf]
    %v421 = vld [vmem:[%s1 + $0x620] sm:$0xf]
    %v422 = vld [vmem:[%s1 + $0x624] sm:$0xf]
    %v423 = vld [vmem:[%s1 + $0x628] sm:$0xf]
    %v424 = vld [vmem:[%s1 + $0x62c] sm:$0xf]
    %v425 = vld [vmem:[%s1 + $0x630] sm:$0xf]
    %v426 = vld [vmem:[%s1 + $0x634] sm:$0xf]
    %v427 = vld [vmem:[%s1 + $0x638] sm:$0xf]
    %v428 = vld [vmem:[%s1 + $0x63c] sm:$0xf]
    %v429 = vld [vmem:[%s1 + $0x640] sm:$0xf]
    %v430 = vld [vmem:[%s1 + $0x644] sm:$0xf]
    %v431 = vld [vmem:[%s1 + $0x648] sm:$0xf]
    %v432 = vld [vmem:[%s1 + $0x64c] sm:$0xf]
    %v433 = vld [vmem:[%s1 + $0x650] sm:$0xf]
    %v434 = vld [vmem:[%s1 + $0x654] sm:$0xf]
    %v435 = vld [vmem:[%s1 + $0x658] sm:$0xf]
    %v436 = vld [vmem:[%s1 + $0x65c] sm:$0xf]
    %v437 = vld [vmem:[%s1 + $0x660] sm:$0xf]
    %v438 = vld [vmem:[%s1 + $0x664] sm:$0xf]
    %v439 = vld [vmem:[%s1 + $0x668] sm:$0xf]
    %v440 = vld [vmem:[%s1 + $0x66c] sm:$0xf]
    %v441 = vld [vmem:[%s1 + $0x670] sm:$0xf]
    %v442 = vld [vmem:[%s1 + $0x674] sm:$0xf]
    %v443 = vld [vmem:[%s1 + $0x678] sm:$0xf]
    %v444 = vld [vmem:[%s1 + $0x67c] sm:$0xf]
    %v445 = vld [vmem:[%s1 + $0x680] sm:$0xf]
    %v446 = vld [vmem:[%s1 + $0x684] sm:$0xf]
    %v447 = vld [vmem:[%s1 + $0x688] sm:$0xf]
    %v448 = vld [vmem:[%s1 + $0x68c] sm:$0xf]
    %v449 = vld [vmem:[%s1 + $0x690] sm:$0xf]
    %v450 = vld [vmem:[%s1 + $0x694] sm:$0xf]
    %v451 = vld [vmem:[%s1 + $0x698] sm:$0xf]
    %v452 = vld [vmem:[%s1 + $0x69c] sm:$0xf]
    %v453 = vld [vmem:[%s1 + $0x6a0] sm:$0xf]
    %v454 = vld [vmem:[%s1 + $0x6a4] sm:$0xf]
    %v455 = vld [vmem:[%s1 + $0x6a8] sm:$0xf]
    %v456 = vld [vmem:[%s1 + $0x6ac] sm:$0xf]
    %v457 = vld [vmem:[%s1 + $0x6b0] sm:$0xf]
    %v458 = vld [vmem:[%s1 + $0x6b4] sm:$0xf]
    %v459 = vld [vmem:[%s1 + $0x6b8] sm:$0xf]
    %v460 = vld [vmem:[%s1 + $0x6bc] sm:$0xf]
    %v461 = vld [vmem:[%s1 + $0x6c0] sm:$0xf]
    %v462 = vld [vmem:[%s1 + $0x6c4] sm:$0xf]
    %v463 = vld [vmem:[%s1 + $0x6c8] sm:$0xf]
    %v464 = vld [vmem:[%s1 + $0x6cc] sm:$0xf]
    %v465 = vld [vmem:[%s1 + $0x6d0] sm:$0xf]
    %v466 = vld [vmem:[%s1 + $0x6d4] sm:$0xf]
    %v467 = vld [vmem:[%s1 + $0x6d8] sm:$0xf]
    %v468 = vld [vmem:[%s1 + $0x6dc] sm:$0xf]
    %v469 = vld [vmem:[%s1 + $0x6e0] sm:$0xf]
    %v470 = vld [vmem:[%s1 + $0x6e4] sm:$0xf]
    %v471 = vld [vmem:[%s1 + $0x6e8] sm:$0xf]
    %v472 = vld [vmem:[%s1 + $0x6ec] sm:$0xf]
    %v473 = vld [vmem:[%s1 + $0x6f0] sm:$0xf]
    %v474 = vld [vmem:[%s1 + $0x6f4] sm:$0xf]
    %v475 = vld [vmem:[%s1 + $0x6f8] sm:$0xf]
    %v476 = vld [vmem:[%s1 + $0x6fc] sm:$0xf]
    %v477 = vld [vmem:[%s1 + $0x700] sm:$0xf]
    %v478 = vld [vmem:[%s1 + $0x704] sm:$0xf]
    %v479 = vld [vmem:[%s1 + $0x708] sm:$0xf]
    %v480 = vld [vmem:[%s1 + $0x70c] sm:$0xf]
    %v481 = vld [vmem:[%s1 + $0x710] sm:$0xf]
    %v482 = vld [vmem:[%s1 + $0x714] sm:$0xf]
    %v483 = vld [vmem:[%s1 + $0x718] sm:$0xf]
    %v484 = vld [vmem:[%s1 + $0x71c] sm:$0xf]
    %v485 = vld [vmem:[%s1 + $0x720] sm:$0xf]
    %v486 = vld [vmem:[%s1 + $0x724] sm:$0xf]
    %v487 = vld [vmem:[%s1 + $0x728] sm:$0xf]
    %v488 = vld [vmem:[%s1 + $0x72c] sm:$0xf]
    %v489 = vld [vmem:[%s1 + $0x730] sm:$0xf]
    %v490 = vld [vmem:[%s1 + $0x734] sm:$0xf]
    %v491 = vld [vmem:[%s1 + $0x738] sm:$0xf]
    %v492 = vld [vmem:[%s1 + $0x73c] sm:$0xf]
    %v493 = vld [vmem:[%s1 + $0x740] sm:$0xf]
    %v494 = vld [vmem:[%s1 + $0x744] sm:$0xf]
    %v495 = vld [vmem:[%s1 + $0x748] sm:$0xf]
    %v496 = vld [vmem:[%s1 + $0x74c] sm:$0xf]
    %v497 = vld [vmem:[%s1 + $0x750] sm:$0xf]
    %v498 = vld [vmem:[%s1 + $0x754] sm:$0xf]
    %v499 = vld [vmem:[%s1 + $0x758] sm:$0xf]
    %v500 = vld [vmem:[%s1 + $0x75c] sm:$0xf]
    %v501 = vld [vmem:[%s1 + $0x760] sm:$0xf]
    %v502 = vld [vmem:[%s1 + $0x764] sm:$0xf]
    %v503 = vld [vmem:[%s1 + $0x768] sm:$0xf]
    %v504 = vld [vmem:[%s1 + $0x76c] sm:$0xf]
    %v505 = vld [vmem:[%s1 + $0x770] sm:$0xf]
    %v506 = vld [vmem:[%s1 + $0x774] sm:$0xf]
    %v507 = vld [vmem:[%s1 + $0x778] sm:$0xf]
    %v508 = vld [vmem:[%s1 + $0x77c] sm:$0xf]
    %v509 = vld [vmem:[%s1 + $0x780] sm:$0xf]
    %v510 = vld [vmem:[%s1 + $0x784] sm:$0xf]
    %v511 = vld [vmem:[%s1 + $0x788] sm:$0xf]
    %v512 = vld [vmem:[%s1 + $0x78c] sm:$0xf]
    %v513 = vld [vmem:[%s1 + $0x790] sm:$0xf]
    %v514 = vld [vmem:[%s1 + $0x794] sm:$0xf]
    %v515 = vld [vmem:[%s1 + $0x798] sm:$0xf]
    %v516 = vld [vmem:[%s1 + $0x79c] sm:$0xf]
    %v517 = vld [vmem:[%s1 + $0x7a0] sm:$0xf]
    %v518 = vld [vmem:[%s1 + $0x7a4] sm:$0xf]
    %v519 = vld [vmem:[%s1 + $0x7a8] sm:$0xf]
    %v520 = vld [vmem:[%s1 + $0x7ac] sm:$0xf]
    %v521 = vld [vmem:[%s1 + $0x7b0] sm:$0xf]
    %v522 = vld [vmem:[%s1 + $0x7b4] sm:$0xf]
    %v523 = vld [vmem:[%s1 + $0x7b8] sm:$0xf]
    %v524 = vld [vmem:[%s1 + $0x7bc] sm:$0xf]
    %v525 = vld [vmem:[%s1 + $0x7c0] sm:$0xf]
    %v526 = vld [vmem:[%s1 + $0x7c4] sm:$0xf]
    %v527 = vld [vmem:[%s1 + $0x7c8] sm:$0xf]
    %v528 = vld [vmem:[%s1 + $0x7cc] sm:$0xf]
    %v529 = vld [vmem:[%s1 + $0x7d0] sm:$0xf]
    %v530 = vld [vmem:[%s1 + $0x7d4] sm:$0xf]
    %v531 = vld [vmem:[%s1 + $0x7d8] sm:$0xf]
    %v532 = vld [vmem:[%s1 + $0x7dc] sm:$0xf]
    %v533 = vld [vmem:[%s1 + $0x7e0] sm:$0xf]
    %v534 = vld [vmem:[%s1 + $0x7e4] sm:$0xf]
    %v535 = vld [vmem:[%s1 + $0x7e8] sm:$0xf]
    %v536 = vld [vmem:[%s1 + $0x7ec] sm:$0xf]
    %v537 = vld [vmem:[%s1 + $0x7f0] sm:$0xf]
    %v538 = vld [vmem:[%s1 + $0x7f4] sm:$0xf]
    %v539 = vld [vmem:[%s1 + $0x7f8] sm:$0xf]
    %v540 = vld [vmem:[%s1 + $0x7fc] sm:$0xf]
    %v541 = vld [vmem:[%s1 + $0x800] sm:$0xf]
    %v542 = vld [vmem:[%s1 + $0x804] sm:$0xf]
    %v543 = vld [vmem:[%s1 + $0x808] sm:$0xf]
    %v544 = vld [vmem:[%s1 + $0x80c] sm:$0xf]
    %v545 = vld [vmem:[%s1 + $0x810] sm:$0xf]
    %v546 = vld [vmem:[%s1 + $0x814] sm:$0xf]
    %v547 = vld [vmem:[%s1 + $0x818] sm:$0xf]
    %v548 = vld [vmem:[%s1 + $0x81c] sm:$0xf]
    %v549 = vld [vmem:[%s1 + $0x820] sm:$0xf]
    %v550 = vld [vmem:[%s1 + $0x824] sm:$0xf]
    %v551 = vld [vmem:[%s1 + $0x828] sm:$0xf]
    %v552 = vld [vmem:[%s1 + $0x82c] sm:$0xf]
    %v553 = vld [vmem:[%s1 + $0x830] sm:$0xf]
    %v554 = vld [vmem:[%s1 + $0x834] sm:$0xf]
    %v555 = vld [vmem:[%s1 + $0x838] sm:$0xf]
    %v556 = vld [vmem:[%s1 + $0x83c] sm:$0xf]
    %v557 = vld [vmem:[%s1 + $0x840] sm:$0xf]
    %v558 = vld [vmem:[%s1 + $0x844] sm:$0xf]
    %v559 = vld [vmem:[%s1 + $0x848] sm:$0xf]
    %v560 = vld [vmem:[%s1 + $0x84c] sm:$0xf]
    %v561 = vld [vmem:[%s1 + $0x850] sm:$0xf]
    %v562 = vld [vmem:[%s1 + $0x854] sm:$0xf]
    %v563 = vld [vmem:[%s1 + $0x858] sm:$0xf]
    %v564 = vld [vmem:[%s1 + $0x85c] sm:$0xf]
    %v565 = vld [vmem:[%s1 + $0x860] sm:$0xf]
    %v566 = vld [vmem:[%s1 + $0x864] sm:$0xf]
    %v567 = vld [vmem:[%s1 + $0x868] sm:$0xf]
    %v568 = vld [vmem:[%s1 + $0x86c] sm:$0xf]
    %v569 = vld [vmem:[%s1 + $0x870] sm:$0xf]
    %v570 = vld [vmem:[%s1 + $0x874] sm:$0xf]
    %v571 = vld [vmem:[%s1 + $0x878] sm:$0xf]
    %v572 = vld [vmem:[%s1 + $0x87c] sm:$0xf]
    %v573 = vld [vmem:[%s1 + $0x880] sm:$0xf]
    %v574 = vld [vmem:[%s1 + $0x884] sm:$0xf]
    %v575 = vld [vmem:[%s1 + $0x888] sm:$0xf]
    %v576 = vld [vmem:[%s1 + $0x88c] sm:$0xf]
    %v577 = vld [vmem:[%s1 + $0x890] sm:$0xf]
    %v578 = vld [vmem:[%s1 + $0x894] sm:$0xf]
    %v579 = vld [vmem:[%s1 + $0x898] sm:$0xf]
    %v580 = vld [vmem:[%s1 + $0x89c] sm:$0xf]
    %v581 = vld [vmem:[%s1 + $0x8a0] sm:$0xf]
    %v582 = vld [vmem:[%s1 + $0x8a4] sm:$0xf]
    %v583 = vld [vmem:[%s1 + $0x8a8] sm:$0xf]
    %v584 = vld [vmem:[%s1 + $0x8ac] sm:$0xf]
    %v585 = vld [vmem:[%s1 + $0x8b0] sm:$0xf]
    %v586 = vld [vmem:[%s1 + $0x8b4] sm:$0xf]
    %v587 = vld [vmem:[%s1 + $0x8b8] sm:$0xf]
    %v588 = vld [vmem:[%s1 + $0x8bc] sm:$0xf]
    %v589 = vld [vmem:[%s1 + $0x8c0] sm:$0xf]
    %v590 = vld [vmem:[%s1 + $0x8c4] sm:$0xf]
    %v591 = vld [vmem:[%s1 + $0x8c8] sm:$0xf]
    %v592 = vld [vmem:[%s1 + $0x8cc] sm:$0xf]
    %v593 = vld [vmem:[%s1 + $0x8d0] sm:$0xf]
    %v594 = vld [vmem:[%s1 + $0x8d4] sm:$0xf]
    %v595 = vld [vmem:[%s1 + $0x8d8] sm:$0xf]
    %v596 = vld [vmem:[%s1 + $0x8dc] sm:$0xf]
    %v597 = vld [vmem:[%s1 + $0x8e0] sm:$0xf]
    %v598 = vld [vmem:[%s1 + $0x8e4] sm:$0xf]
    %v599 = vld [vmem:[%s1 + $0x8e8] sm:$0xf]
    %v600 = vld [vmem:[%s1 + $0x8ec] sm:$0xf]
    %v601 = vld [vmem:[%s1 + $0x8f0] sm:$0xf]
    %v602 = vld [vmem:[%s1 + $0x8f4] sm:$0xf]
    %v603 = vld [vmem:[%s1 + $0x8f8] sm:$0xf]
    %v604 = vld [vmem:[%s1 + $0x8fc] sm:$0xf]
    %v605 = vld [vmem:[%s1 + $0x900] sm:$0xf]
    %v606 = vld [vmem:[%s1 + $0x904] sm:$0xf]
    %v607 = vld [vmem:[%s1 + $0x908] sm:$0xf]
    %v608 = vld [vmem:[%s1 + $0x90c] sm:$0xf]
    %v609 = vld [vmem:[%s1 + $0x910] sm:$0xf]
    %v610 = vld [vmem:[%s1 + $0x914] sm:$0xf]
    %v611 = vld [vmem:[%s1 + $0x918] sm:$0xf]
    %v612 = vld [vmem:[%s1 + $0x91c] sm:$0xf]
    %v613 = vld [vmem:[%s1 + $0x920] sm:$0xf]
    %v614 = vld [vmem:[%s1 + $0x924] sm:$0xf]
    %v615 = vld [vmem:[%s1 + $0x928] sm:$0xf]
    %v616 = vld [vmem:[%s1 + $0x92c] sm:$0xf]
    %v617 = vld [vmem:[%s1 + $0x930] sm:$0xf]
    %v618 = vld [vmem:[%s1 + $0x934] sm:$0xf]
    %v619 = vld [vmem:[%s1 + $0x938] sm:$0xf]
    %v620 = vld [vmem:[%s1 + $0x93c] sm:$0xf]
    %v621 = vld [vmem:[%s1 + $0x940] sm:$0xf]
    %v622 = vld [vmem:[%s1 + $0x944] sm:$0xf]
    %v623 = vld [vmem:[%s1 + $0x948] sm:$0xf]
    %v624 = vld [vmem:[%s1 + $0x94c] sm:$0xf]
    %v625 = vld [vmem:[%s1 + $0x950] sm:$0xf]
    %v626 = vld [vmem:[%s1 + $0x954] sm:$0xf]
    %v627 = vld [vmem:[%s1 + $0x958] sm:$0xf]
    %v628 = vld [vmem:[%s1 + $0x95c] sm:$0xf]
    %v629 = vld [vmem:[%s1 + $0x960] sm:$0xf]
    %v630 = vld [vmem:[%s1 + $0x964] sm:$0xf]
    %v631 = vld [vmem:[%s1 + $0x968] sm:$0xf]
    %v632 = vld [vmem:[%s1 + $0x96c] sm:$0xf]
    %v633 = vld [vmem:[%s1 + $0x970] sm:$0xf]
    %v634 = vld [vmem:[%s1 + $0x974] sm:$0xf]
    %v635 = vld [vmem:[%s1 + $0x978] sm:$0xf]
    %v636 = vld [vmem:[%s1 + $0x97c] sm:$0xf]
    %v637 = vld [vmem:[%s1 + $0x980] sm:$0xf]
    %v638 = vld [vmem:[%s1 + $0x984] sm:$0xf]
    %v639 = vld [vmem:[%s1 + $0x988] sm:$0xf]
    %v640 = vld [vmem:[%s1 + $0x98c] sm:$0xf]
    %v641 = vld [vmem:[%s1 + $0x990] sm:$0xf]
    %v642 = vld [vmem:[%s1 + $0x994] sm:$0xf]
    %v643 = vld [vmem:[%s1 + $0x998] sm:$0xf]
    %v644 = vld [vmem:[%s1 + $0x99c] sm:$0xf]
    %v645 = vld [vmem:[%s1 + $0x9a0] sm:$0xf]
    %v646 = vld [vmem:[%s1 + $0x9a4] sm:$0xf]
    %v647 = vld [vmem:[%s1 + $0x9a8] sm:$0xf]
    %v648 = vld [vmem:[%s1 + $0x9ac] sm:$0xf]
    %v649 = vld [vmem:[%s1 + $0x9b0] sm:$0xf]
    %v650 = vld [vmem:[%s1 + $0x9b4] sm:$0xf]
    %v651 = vld [vmem:[%s1 + $0x9b8] sm:$0xf]
    %v652 = vld [vmem:[%s1 + $0x9bc] sm:$0xf]
    %v653 = vld [vmem:[%s1 + $0x9c0] sm:$0xf]
    %v654 = vld [vmem:[%s1 + $0x9c4] sm:$0xf]
    %v655 = vld [vmem:[%s1 + $0x9c8] sm:$0xf]
    %v656 = vld [vmem:[%s1 + $0x9cc] sm:$0xf]
    %v657 = vld [vmem:[%s1 + $0x9d0] sm:$0xf]
    %v658 = vld [vmem:[%s1 + $0x9d4] sm:$0xf]
    %v659 = vld [vmem:[%s1 + $0x9d8] sm:$0xf]
    %v660 = vld [vmem:[%s1 + $0x9dc] sm:$0xf]
    %v661 = vld [vmem:[%s1 + $0x9e0] sm:$0xf]
    %v662 = vld [vmem:[%s1 + $0x9e4] sm:$0xf]
    %v663 = vld [vmem:[%s1 + $0x9e8] sm:$0xf]
    %v664 = vld [vmem:[%s1 + $0x9ec] sm:$0xf]
    %v665 = vld [vmem:[%s1 + $0x9f0] sm:$0xf]
    %v666 = vld [vmem:[%s1 + $0x9f4] sm:$0xf]
    %v667 = vld [vmem:[%s1 + $0x9f8] sm:$0xf]
    %v668 = vld [vmem:[%s1 + $0x9fc] sm:$0xf]
    %v669 = vld [vmem:[%s1 + $0xa00] sm:$0xf]
    %v670 = vld [vmem:[%s1 + $0xa04] sm:$0xf]
    %v671 = vld [vmem:[%s1 + $0xa08] sm:$0xf]
    %v672 = vld [vmem:[%s1 + $0xa0c] sm:$0xf]
    %v673 = vld [vmem:[%s1 + $0xa10] sm:$0xf]
    %v674 = vld [vmem:[%s1 + $0xa14] sm:$0xf]
    %v675 = vld [vmem:[%s1 + $0xa18] sm:$0xf]
    %v676 = vld [vmem:[%s1 + $0xa1c] sm:$0xf]
    %v677 = vld [vmem:[%s1 + $0xa20] sm:$0xf]
    %v678 = vld [vmem:[%s1 + $0xa24] sm:$0xf]
    %v679 = vld [vmem:[%s1 + $0xa28] sm:$0xf]
    %v680 = vld [vmem:[%s1 + $0xa2c] sm:$0xf]
    %v681 = vld [vmem:[%s1 + $0xa30] sm:$0xf]
    %v682 = vld [vmem:[%s1 + $0xa34] sm:$0xf]
    %v683 = vld [vmem:[%s1 + $0xa38] sm:$0xf]
    %v684 = vld [vmem:[%s1 + $0xa3c] sm:$0xf]
    %v685 = vld [vmem:[%s1 + $0xa40] sm:$0xf]
    %v686 = vld [vmem:[%s1 + $0xa44] sm:$0xf]
    %v687 = vld [vmem:[%s1 + $0xa48] sm:$0xf]
    %v688 = vld [vmem:[%s1 + $0xa4c] sm:$0xf]
    %v689 = vld [vmem:[%s1 + $0xa50] sm:$0xf]
    %v690 = vld [vmem:[%s1 + $0xa54] sm:$0xf]
    %v691 = vld [vmem:[%s1 + $0xa58] sm:$0xf]
    %v692 = vld [vmem:[%s1 + $0xa5c] sm:$0xf]
    %v693 = vld [vmem:[%s1 + $0xa60] sm:$0xf]
    %v694 = vld [vmem:[%s1 + $0xa64] sm:$0xf]
    %v695 = vld [vmem:[%s1 + $0xa68] sm:$0xf]
    %v696 = vld [vmem:[%s1 + $0xa6c] sm:$0xf]
    %v697 = vld [vmem:[%s1 + $0xa70] sm:$0xf]
    %v698 = vld [vmem:[%s1 + $0xa74] sm:$0xf]
    %v699 = vld [vmem:[%s1 + $0xa78] sm:$0xf]
    %v700 = vld [vmem:[%s1 + $0xa7c] sm:$0xf]
    %v701 = vld [vmem:[%s1 + $0xa80] sm:$0xf]
    %v702 = vld [vmem:[%s1 + $0xa84] sm:$0xf]
    %v703 = vld [vmem:[%s1 + $0xa88] sm:$0xf]
    %v704 = vld [vmem:[%s1 + $0xa8c] sm:$0xf]
    %v705 = vld [vmem:[%s1 + $0xa90] sm:$0xf]
    %v706 = vld [vmem:[%s1 + $0xa94] sm:$0xf]
    %v707 = vld [vmem:[%s1 + $0xa98] sm:$0xf]
    %v708 = vld [vmem:[%s1 + $0xa9c] sm:$0xf]
    %v709 = vld [vmem:[%s1 + $0xaa0] sm:$0xf]
    %v710 = vld [vmem:[%s1 + $0xaa4] sm:$0xf]
    %v711 = vld [vmem:[%s1 + $0xaa8] sm:$0xf]
    %v712 = vld [vmem:[%s1 + $0xaac] sm:$0xf]
    %v713 = vld [vmem:[%s1 + $0xab0] sm:$0xf]
    %v714 = vld [vmem:[%s1 + $0xab4] sm:$0xf]
    %v715 = vld [vmem:[%s1 + $0xab8] sm:$0xf]
    %v716 = vld [vmem:[%s1 + $0xabc] sm:$0xf]
    %v717 = vld [vmem:[%s1 + $0xac0] sm:$0xf]
    %v718 = vld [vmem:[%s1 + $0xac4] sm:$0xf]
    %v719 = vld [vmem:[%s1 + $0xac8] sm:$0xf]
    %v720 = vld [vmem:[%s1 + $0xacc] sm:$0xf]
    %v721 = vld [vmem:[%s1 + $0xad0] sm:$0xf]
    %v722 = vld [vmem:[%s1 + $0xad4] sm:$0xf]
    %v723 = vld [vmem:[%s1 + $0xad8] sm:$0xf]
    %v724 = vld [vmem:[%s1 + $0xadc] sm:$0xf]
    %v725 = vld [vmem:[%s1 + $0xae0] sm:$0xf]
    %v726 = vld [vmem:[%s1 + $0xae4] sm:$0xf]
    %v727 = vld [vmem:[%s1 + $0xae8] sm:$0xf]
    %v728 = vld [vmem:[%s1 + $0xaec] sm:$0xf]
    %v729 = vld [vmem:[%s1 + $0xaf0] sm:$0xf]
    %v730 = vld [vmem:[%s1 + $0xaf4] sm:$0xf]
    %v731 = vld [vmem:[%s1 + $0xaf8] sm:$0xf]
    %v732 = vld [vmem:[%s1 + $0xafc] sm:$0xf]
    %v733 = vld [vmem:[%s1 + $0xb00] sm:$0xf]
    %v734 = vld [vmem:[%s1 + $0xb04] sm:$0xf]
    %v735 = vld [vmem:[%s1 + $0xb08] sm:$0xf]
    %v736 = vld [vmem:[%s1 + $0xb0c] sm:$0xf]
    %v737 = vld [vmem:[%s1 + $0xb10] sm:$0xf]
    %v738 = vld [vmem:[%s1 + $0xb14] sm:$0xf]
    %v739 = vld [vmem:[%s1 + $0xb18] sm:$0xf]
    %v740 = vld [vmem:[%s1 + $0xb1c] sm:$0xf]
    %v741 = vld [vmem:[%s1 + $0xb20] sm:$0xf]
    %v742 = vld [vmem:[%s1 + $0xb24] sm:$0xf]
    %v743 = vld [vmem:[%s1 + $0xb28] sm:$0xf]
    %v744 = vld [vmem:[%s1 + $0xb2c] sm:$0xf]
    %v745 = vld [vmem:[%s1 + $0xb30] sm:$0xf]
    %v746 = vld [vmem:[%s1 + $0xb34] sm:$0xf]
    %v747 = vld [vmem:[%s1 + $0xb38] sm:$0xf]
    %v748 = vld [vmem:[%s1 + $0xb3c] sm:$0xf]
    %v749 = vld [vmem:[%s1 + $0xb40] sm:$0xf]
    %v750 = vld [vmem:[%s1 + $0xb44] sm:$0xf]
    %v751 = vld [vmem:[%s1 + $0xb48] sm:$0xf]
    %v752 = vld [vmem:[%s1 + $0xb4c] sm:$0xf]
    %v753 = vld [vmem:[%s1 + $0xb50] sm:$0xf]
    %v754 = vld [vmem:[%s1 + $0xb54] sm:$0xf]
    %v755 = vld [vmem:[%s1 + $0xb58] sm:$0xf]
    %v756 = vld [vmem:[%s1 + $0xb5c] sm:$0xf]
    %v757 = vld [vmem:[%s1 + $0xb60] sm:$0xf]
    %v758 = vld [vmem:[%s1 + $0xb64] sm:$0xf]
    %v759 = vld [vmem:[%s1 + $0xb68] sm:$0xf]
    %v760 = vld [vmem:[%s1 + $0xb6c] sm:$0xf]
    %v761 = vld [vmem:[%s1 + $0xb70] sm:$0xf]
    %v762 = vld [vmem:[%s1 + $0xb74] sm:$0xf]
    %v763 = vld [vmem:[%s1 + $0xb78] sm:$0xf]
    %v764 = vld [vmem:[%s1 + $0xb7c] sm:$0xf]
    %v765 = vld [vmem:[%s1 + $0xb80] sm:$0xf]
    %v766 = vld [vmem:[%s1 + $0xb84] sm:$0xf]
    %v767 = vld [vmem:[%s1 + $0xb88] sm:$0xf]
    %v768 = vld [vmem:[%s1 + $0xb8c] sm:$0xf]
    %v769 = vld [vmem:[%s1 + $0xb90] sm:$0xf]
    %v770 = vld [vmem:[%s1 + $0xb94] sm:$0xf]
    %v771 = vld [vmem:[%s1 + $0xb98] sm:$0xf]
    %v772 = vld [vmem:[%s1 + $0xb9c] sm:$0xf]
    %v773 = vld [vmem:[%s1 + $0xba0] sm:$0xf]
    %v774 = vld [vmem:[%s1 + $0xba4] sm:$0xf]
    %v775 = vld [vmem:[%s1 + $0xba8] sm:$0xf]
    %v776 = vld [vmem:[%s1 + $0xbac] sm:$0xf]
    %v777 = vld [vmem:[%s1 + $0xbb0] sm:$0xf]
    %v778 = vld [vmem:[%s1 + $0xbb4] sm:$0xf]
    %v779 = vld [vmem:[%s1 + $0xbb8] sm:$0xf]
    %v780 = vld [vmem:[%s1 + $0xbbc] sm:$0xf]
    %v781 = vld [vmem:[%s1 + $0xbc0] sm:$0xf]
    %v782 = vld [vmem:[%s1 + $0xbc4] sm:$0xf]
    %v783 = vld [vmem:[%s1 + $0xbc8] sm:$0xf]
    %v784 = vld [vmem:[%s1 + $0xbcc] sm:$0xf]
    %v785 = vld [vmem:[%s1 + $0xbd0] sm:$0xf]
    %v786 = vld [vmem:[%s1 + $0xbd4] sm:$0xf]
    %v787 = vld [vmem:[%s1 + $0xbd8] sm:$0xf]
    %v788 = vld [vmem:[%s1 + $0xbdc] sm:$0xf]
    %v789 = vld [vmem:[%s1 + $0xbe0] sm:$0xf]
    %v790 = vld [vmem:[%s1 + $0xbe4] sm:$0xf]
    %v791 = vld [vmem:[%s1 + $0xbe8] sm:$0xf]
    %v792 = vld [vmem:[%s1 + $0xbec] sm:$0xf]
    %v793 = vld [vmem:[%s1 + $0xbf0] sm:$0xf]
    %v794 = vld [vmem:[%s1 + $0xbf4] sm:$0xf]
    %v795 = vld [vmem:[%s1 + $0xbf8] sm:$0xf]
    %v796 = vld [vmem:[%s1 + $0xbfc] sm:$0xf]
    %v797 = vld [vmem:[%s1 + $0xc00] sm:$0xf]
    %v798 = vld [vmem:[%s1 + $0xc04] sm:$0xf]
    %v799 = vld [vmem:[%s1 + $0xc08] sm:$0xf]
    %v800 = vld [vmem:[%s1 + $0xc0c] sm:$0xf]
    %v801 = vld [vmem:[%s1 + $0xc10] sm:$0xf]
    %v802 = vld [vmem:[%s1 + $0xc14] sm:$0xf]
    %v803 = vld [vmem:[%s1 + $0xc18] sm:$0xf]
    %v804 = vld [vmem:[%s1 + $0xc1c] sm:$0xf]
    %v805 = vld [vmem:[%s1 + $0xc20] sm:$0xf]
    %v806 = vld [vmem:[%s1 + $0xc24] sm:$0xf]
    %v807 = vld [vmem:[%s1 + $0xc28] sm:$0xf]
    %v808 = vld [vmem:[%s1 + $0xc2c] sm:$0xf]
    %v809 = vld [vmem:[%s1 + $0xc30] sm:$0xf]
    %v810 = vld [vmem:[%s1 + $0xc34] sm:$0xf]
    %v811 = vld [vmem:[%s1 + $0xc38] sm:$0xf]
    %v812 = vld [vmem:[%s1 + $0xc3c] sm:$0xf]
    %v813 = vld [vmem:[%s1 + $0xc40] sm:$0xf]
    %v814 = vld [vmem:[%s1 + $0xc44] sm:$0xf]
    %v815 = vld [vmem:[%s1 + $0xc48] sm:$0xf]
    %v816 = vld [vmem:[%s1 + $0xc4c] sm:$0xf]
    %v817 = vld [vmem:[%s1 + $0xc50] sm:$0xf]
    %v818 = vld [vmem:[%s1 + $0xc54] sm:$0xf]
    %v819 = vld [vmem:[%s1 + $0xc58] sm:$0xf]
    %v820 = vld [vmem:[%s1 + $0xc5c] sm:$0xf]
    %v821 = vld [vmem:[%s1 + $0xc60] sm:$0xf]
    %v822 = vld [vmem:[%s1 + $0xc64] sm:$0xf]
    %v823 = vld [vmem:[%s1 + $0xc68] sm:$0xf]
    %v824 = vld [vmem:[%s1 + $0xc6c] sm:$0xf]
    %v825 = vld [vmem:[%s1 + $0xc70] sm:$0xf]
    %v826 = vld [vmem:[%s1 + $0xc74] sm:$0xf]
    %v827 = vld [vmem:[%s1 + $0xc78] sm:$0xf]
    %v828 = vld [vmem:[%s1 + $0xc7c] sm:$0xf]
    %v829 = vld [vmem:[%s1 + $0xc80] sm:$0xf]
    %v830 = vld [vmem:[%s1 + $0xc84] sm:$0xf]
    %v831 = vld [vmem:[%s1 + $0xc88] sm:$0xf]
    %v832 = vld [vmem:[%s1 + $0xc8c] sm:$0xf]
    %v833 = vld [vmem:[%s1 + $0xc90] sm:$0xf]
    %v834 = vld [vmem:[%s1 + $0xc94] sm:$0xf]
    %v835 = vld [vmem:[%s1 + $0xc98] sm:$0xf]
    %v836 = vld [vmem:[%s1 + $0xc9c] sm:$0xf]
    %v837 = vld [vmem:[%s1 + $0xca0] sm:$0xf]
    %v838 = vld [vmem:[%s1 + $0xca4] sm:$0xf]
    %v839 = vld [vmem:[%s1 + $0xca8] sm:$0xf]
    %v840 = vld [vmem:[%s1 + $0xcac] sm:$0xf]
    %v841 = vld [vmem:[%s1 + $0xcb0] sm:$0xf]
    %v842 = vld [vmem:[%s1 + $0xcb4] sm:$0xf]
    %v843 = vld [vmem:[%s1 + $0xcb8] sm:$0xf]
    %v844 = vld [vmem:[%s1 + $0xcbc] sm:$0xf]
    %v845 = vld [vmem:[%s1 + $0xcc0] sm:$0xf]
    %v846 = vld [vmem:[%s1 + $0xcc4] sm:$0xf]
    %v847 = vld [vmem:[%s1 + $0xcc8] sm:$0xf]
    %v848 = vld [vmem:[%s1 + $0xccc] sm:$0xf]
    %v849 = vld [vmem:[%s1 + $0xcd0] sm:$0xf]
    %v850 = vld [vmem:[%s1 + $0xcd4] sm:$0xf]
    %v851 = vld [vmem:[%s1 + $0xcd8] sm:$0xf]
    %v852 = vld [vmem:[%s1 + $0xcdc] sm:$0xf]
    %v853 = vld [vmem:[%s1 + $0xce0] sm:$0xf]
    %v854 = vld [vmem:[%s1 + $0xce4] sm:$0xf]
    %v855 = vld [vmem:[%s1 + $0xce8] sm:$0xf]
    %v856 = vld [vmem:[%s1 + $0xcec] sm:$0xf]
    %v857 = vld [vmem:[%s1 + $0xcf0] sm:$0xf]
    %v858 = vld [vmem:[%s1 + $0xcf4] sm:$0xf]
    %v859 = vld [vmem:[%s1 + $0xcf8] sm:$0xf]
    %v860 = vld [vmem:[%s1 + $0xcfc] sm:$0xf]
    %v861 = vld [vmem:[%s1 + $0xd00] sm:$0xf]
    %v862 = vld [vmem:[%s1 + $0xd04] sm:$0xf]
    %v863 = vld [vmem:[%s1 + $0xd08] sm:$0xf]
    %v864 = vld [vmem:[%s1 + $0xd0c] sm:$0xf]
    %v865 = vld [vmem:[%s1 + $0xd10] sm:$0xf]
    %v866 = vld [vmem:[%s1 + $0xd14] sm:$0xf]
    %v867 = vld [vmem:[%s1 + $0xd18] sm:$0xf]
    %v868 = vld [vmem:[%s1 + $0xd1c] sm:$0xf]
    %v869 = vld [vmem:[%s1 + $0xd20] sm:$0xf]
    %v870 = vld [vmem:[%s1 + $0xd24] sm:$0xf]
    %v871 = vld [vmem:[%s1 + $0xd28] sm:$0xf]
    %v872 = vld [vmem:[%s1 + $0xd2c] sm:$0xf]
    %v873 = vld [vmem:[%s1 + $0xd30] sm:$0xf]
    %v874 = vld [vmem:[%s1 + $0xd34] sm:$0xf]
    %v875 = vld [vmem:[%s1 + $0xd38] sm:$0xf]
    %v876 = vld [vmem:[%s1 + $0xd3c] sm:$0xf]
    %v877 = vld [vmem:[%s1 + $0xd40] sm:$0xf]
    %v878 = vld [vmem:[%s1 + $0xd44] sm:$0xf]
    %v879 = vld [vmem:[%s1 + $0xd48] sm:$0xf]
    %v880 = vld [vmem:[%s1 + $0xd4c] sm:$0xf]
    %v881 = vld [vmem:[%s1 + $0xd50] sm:$0xf]
    %v882 = vld [vmem:[%s1 + $0xd54] sm:$0xf]
    %v883 = vld [vmem:[%s1 + $0xd58] sm:$0xf]
    %v884 = vld [vmem:[%s1 + $0xd5c] sm:$0xf]
    %v885 = vld [vmem:[%s1 + $0xd60] sm:$0xf]
    %v886 = vld [vmem:[%s1 + $0xd64] sm:$0xf]
    %v887 = vld [vmem:[%s1 + $0xd68] sm:$0xf]
    %v888 = vld [vmem:[%s1 + $0xd6c] sm:$0xf]
    %v889 = vld [vmem:[%s1 + $0xd70] sm:$0xf]
    %v890 = vld [vmem:[%s1 + $0xd74] sm:$0xf]
    %v891 = vld [vmem:[%s1 + $0xd78] sm:$0xf]
    %v892 = vld [vmem:[%s1 + $0xd7c] sm:$0xf]
    %v893 = vld [vmem:[%s1 + $0xd80] sm:$0xf]
    %v894 = vld [vmem:[%s1 + $0xd84] sm:$0xf]
    %v895 = vld [vmem:[%s1 + $0xd88] sm:$0xf]
    %v896 = vld [vmem:[%s1 + $0xd8c] sm:$0xf]
    %v897 = vld [vmem:[%s1 + $0xd90] sm:$0xf]
    %v898 = vld [vmem:[%s1 + $0xd94] sm:$0xf]
    %v899 = vld [vmem:[%s1 + $0xd98] sm:$0xf]
    %v900 = vld [vmem:[%s1 + $0xd9c] sm:$0xf]
    %v901 = vld [vmem:[%s1 + $0xda0] sm:$0xf]
    %v902 = vld [vmem:[%s1 + $0xda4] sm:$0xf]
    %v903 = vld [vmem:[%s1 + $0xda8] sm:$0xf]
    %v904 = vld [vmem:[%s1 + $0xdac] sm:$0xf]
    %v905 = vld [vmem:[%s1 + $0xdb0] sm:$0xf]
    %v906 = vld [vmem:[%s1 + $0xdb4] sm:$0xf]
    %v907 = vld [vmem:[%s1 + $0xdb8] sm:$0xf]
    %v908 = vld [vmem:[%s1 + $0xdbc] sm:$0xf]
    %v909 = vld [vmem:[%s1 + $0xdc0] sm:$0xf]
    %v910 = vld [vmem:[%s1 + $0xdc4] sm:$0xf]
    %v911 = vld [vmem:[%s2] sm:$0x1]
    %v913 = vlaneseq
    %v914 = vshrl.u32 %v913, 7
    %v915 = vsub.s32 0, %v914
    %v916 = vrot.slane %v911, %v915
    %v925 = vcombine.high %v22, %v22
    %v927 = vunpack.c.l.s4 1966171168
    %v928 = vunpack.c.0.s8 %v927
    %v929 = vlaneseq
    %v930 = vshrl.u32 %v929, 7
    %v931 = vsub.s32 %v928, %v930
    %v932 = vrot.slane %v22, %v931
    %v934 = vunpack.c.l.s4 1966171168
    %v935 = vunpack.c.0.s8 %v934
    %v936 = vlaneseq
    %v937 = vshrl.u32 %v936, 7
    %v938 = vsub.s32 %v935, %v937
    %v939 = vrot.slane %v925, %v938
    %v940 = vcombine.high %v932, %v932
    %v941 = vcombine.high %v939, %v939
    %v943 = vunpack.c.l.s4 1966171168
    %v944 = vunpack.c.0.s8 %v943
    %v945 = vlaneseq
    %v946 = vshrl.u32 %v945, 7
    %v947 = vsub.s32 %v944, %v946
    %v948 = vrot.slane %v932, %v947
    %v950 = vunpack.c.l.s4 1966171168
    %v951 = vunpack.c.0.s8 %v950
    %v952 = vlaneseq
    %v953 = vshrl.u32 %v952, 7
    %v954 = vsub.s32 %v951, %v953
    %v955 = vrot.slane %v939, %v954
    %v957 = vunpack.c.l.s4 1966171168
    %v958 = vunpack.c.0.s8 %v957
    %v959 = vlaneseq
    %v960 = vshrl.u32 %v959, 7
    %v961 = vsub.s32 %v958, %v960
    %v962 = vrot.slane %v940, %v961
    %v964 = vunpack.c.l.s4 1966171168
    %v965 = vunpack.c.0.s8 %v964
    %v966 = vlaneseq
    %v967 = vshrl.u32 %v966, 7
    %v968 = vsub.s32 %v965, %v967
    %v969 = vrot.slane %v941, %v968
    %v970 = vcombine.high %v948, %v948
    %v971 = vcombine.high %v955, %v955
    %v972 = vcombine.high %v962, %v962
    %v973 = vcombine.high %v969, %v969
    %v974 = vcombine.high %v23, %v23
    %v976 = vunpack.c.l.s4 1966171168
    %v977 = vunpack.c.0.s8 %v976
    %v978 = vlaneseq
    %v979 = vshrl.u32 %v978, 7
    %v980 = vsub.s32 %v977, %v979
    %v981 = vrot.slane %v23, %v980
    %v983 = vunpack.c.l.s4 1966171168
    %v984 = vunpack.c.0.s8 %v983
    %v985 = vlaneseq
    %v986 = vshrl.u32 %v985, 7
    %v987 = vsub.s32 %v984, %v986
    %v988 = vrot.slane %v974, %v987
    %v989 = vcombine.high %v981, %v981
    %v990 = vcombine.high %v988, %v988
    %v992 = vunpack.c.l.s4 1966171168
    %v993 = vunpack.c.0.s8 %v992
    %v994 = vlaneseq
    %v995 = vshrl.u32 %v994, 7
    %v996 = vsub.s32 %v993, %v995
    %v997 = vrot.slane %v981, %v996
    %v999 = vunpack.c.l.s4 1966171168
    %v1000 = vunpack.c.0.s8 %v999
    %v1001 = vlaneseq
    %v1002 = vshrl.u32 %v1001, 7
    %v1003 = vsub.s32 %v1000, %v1002
    %v1004 = vrot.slane %v988, %v1003
    %v1006 = vunpack.c.l.s4 1966171168
    %v1007 = vunpack.c.0.s8 %v1006
    %v1008 = vlaneseq
    %v1009 = vshrl.u32 %v1008, 7
    %v1010 = vsub.s32 %v1007, %v1009
    %v1011 = vrot.slane %v989, %v1010
    %v1013 = vunpack.c.l.s4 1966171168
    %v1014 = vunpack.c.0.s8 %v1013
    %v1015 = vlaneseq
    %v1016 = vshrl.u32 %v1015, 7
    %v1017 = vsub.s32 %v1014, %v1016
    %v1018 = vrot.slane %v990, %v1017
    %v1019 = vcombine.high %v997, %v997
    %v1020 = vcombine.high %v1004, %v1004
    %v1021 = vcombine.high %v1011, %v1011
    %v1022 = vcombine.high %v1018, %v1018
    %v1023 = vcombine.high %v24, %v24
    %v1025 = vunpack.c.l.s4 1966171168
    %v1026 = vunpack.c.0.s8 %v1025
    %v1027 = vlaneseq
    %v1028 = vshrl.u32 %v1027, 7
    %v1029 = vsub.s32 %v1026, %v1028
    %v1030 = vrot.slane %v24, %v1029
    %v1032 = vunpack.c.l.s4 1966171168
    %v1033 = vunpack.c.0.s8 %v1032
    %v1034 = vlaneseq
    %v1035 = vshrl.u32 %v1034, 7
    %v1036 = vsub.s32 %v1033, %v1035
    %v1037 = vrot.slane %v1023, %v1036
    %v1038 = vcombine.high %v1030, %v1030
    %v1039 = vcombine.high %v1037, %v1037
    %v1041 = vunpack.c.l.s4 1966171168
    %v1042 = vunpack.c.0.s8 %v1041
    %v1043 = vlaneseq
    %v1044 = vshrl.u32 %v1043, 7
    %v1045 = vsub.s32 %v1042, %v1044
    %v1046 = vrot.slane %v1030, %v1045
    %v1048 = vunpack.c.l.s4 1966171168
    %v1049 = vunpack.c.0.s8 %v1048
    %v1050 = vlaneseq
    %v1051 = vshrl.u32 %v1050, 7
    %v1052 = vsub.s32 %v1049, %v1051
    %v1053 = vrot.slane %v1037, %v1052
    %v1055 = vunpack.c.l.s4 1966171168
    %v1056 = vunpack.c.0.s8 %v1055
    %v1057 = vlaneseq
    %v1058 = vshrl.u32 %v1057, 7
    %v1059 = vsub.s32 %v1056, %v1058
    %v1060 = vrot.slane %v1038, %v1059
    %v1062 = vunpack.c.l.s4 1966171168
    %v1063 = vunpack.c.0.s8 %v1062
    %v1064 = vlaneseq
    %v1065 = vshrl.u32 %v1064, 7
    %v1066 = vsub.s32 %v1063, %v1065
    %v1067 = vrot.slane %v1039, %v1066
    %v1068 = vcombine.high %v1046, %v1046
    %v1069 = vcombine.high %v1053, %v1053
    %v1070 = vcombine.high %v1060, %v1060
    %v1071 = vcombine.high %v1067, %v1067
    %v1072 = vcombine.high %v25, %v25
    %v1074 = vunpack.c.l.s4 1966171168
    %v1075 = vunpack.c.0.s8 %v1074
    %v1076 = vlaneseq
    %v1077 = vshrl.u32 %v1076, 7
    %v1078 = vsub.s32 %v1075, %v1077
    %v1079 = vrot.slane %v25, %v1078
    %v1081 = vunpack.c.l.s4 1966171168
    %v1082 = vunpack.c.0.s8 %v1081
    %v1083 = vlaneseq
    %v1084 = vshrl.u32 %v1083, 7
    %v1085 = vsub.s32 %v1082, %v1084
    %v1086 = vrot.slane %v1072, %v1085
    %v1087 = vcombine.high %v1079, %v1079
    %v1088 = vcombine.high %v1086, %v1086
    %v1090 = vunpack.c.l.s4 1966171168
    %v1091 = vunpack.c.0.s8 %v1090
    %v1092 = vlaneseq
    %v1093 = vshrl.u32 %v1092, 7
    %v1094 = vsub.s32 %v1091, %v1093
    %v1095 = vrot.slane %v1079, %v1094
    %v1097 = vunpack.c.l.s4 1966171168
    %v1098 = vunpack.c.0.s8 %v1097
    %v1099 = vlaneseq
    %v1100 = vshrl.u32 %v1099, 7
    %v1101 = vsub.s32 %v1098, %v1100
    %v1102 = vrot.slane %v1086, %v1101
    %v1104 = vunpack.c.l.s4 1966171168
    %v1105 = vunpack.c.0.s8 %v1104
    %v1106 = vlaneseq
    %v1107 = vshrl.u32 %v1106, 7
    %v1108 = vsub.s32 %v1105, %v1107
    %v1109 = vrot.slane %v1087, %v1108
    %v1111 = vunpack.c.l.s4 1966171168
    %v1112 = vunpack.c.0.s8 %v1111
    %v1113 = vlaneseq
    %v1114 = vshrl.u32 %v1113, 7
    %v1115 = vsub.s32 %v1112, %v1114
    %v1116 = vrot.slane %v1088, %v1115
    %v1117 = vcombine.high %v1095, %v1095
    %v1118 = vcombine.high %v1102, %v1102
    %v1119 = vcombine.high %v1109, %v1109
    %v1120 = vcombine.high %v1116, %v1116
    %v1121 = vcombine.high %v26, %v26
    %v1123 = vunpack.c.l.s4 1966171168
    %v1124 = vunpack.c.0.s8 %v1123
    %v1125 = vlaneseq
    %v1126 = vshrl.u32 %v1125, 7
    %v1127 = vsub.s32 %v1124, %v1126
    %v1128 = vrot.slane %v26, %v1127
    %v1130 = vunpack.c.l.s4 1966171168
    %v1131 = vunpack.c.0.s8 %v1130
    %v1132 = vlaneseq
    %v1133 = vshrl.u32 %v1132, 7
    %v1134 = vsub.s32 %v1131, %v1133
    %v1135 = vrot.slane %v1121, %v1134
    %v1136 = vcombine.high %v1128, %v1128
    %v1137 = vcombine.high %v1135, %v1135
    %v1139 = vunpack.c.l.s4 1966171168
    %v1140 = vunpack.c.0.s8 %v1139
    %v1141 = vlaneseq
    %v1142 = vshrl.u32 %v1141, 7
    %v1143 = vsub.s32 %v1140, %v1142
    %v1144 = vrot.slane %v1128, %v1143
    %v1146 = vunpack.c.l.s4 1966171168
    %v1147 = vunpack.c.0.s8 %v1146
    %v1148 = vlaneseq
    %v1149 = vshrl.u32 %v1148, 7
    %v1150 = vsub.s32 %v1147, %v1149
    %v1151 = vrot.slane %v1135, %v1150
    %v1153 = vunpack.c.l.s4 1966171168
    %v1154 = vunpack.c.0.s8 %v1153
    %v1155 = vlaneseq
    %v1156 = vshrl.u32 %v1155, 7
    %v1157 = vsub.s32 %v1154, %v1156
    %v1158 = vrot.slane %v1136, %v1157
    %v1160 = vunpack.c.l.s4 1966171168
    %v1161 = vunpack.c.0.s8 %v1160
    %v1162 = vlaneseq
    %v1163 = vshrl.u32 %v1162, 7
    %v1164 = vsub.s32 %v1161, %v1163
    %v1165 = vrot.slane %v1137, %v1164
    %v1166 = vcombine.high %v1144, %v1144
    %v1167 = vcombine.high %v1151, %v1151
    %v1168 = vcombine.high %v1158, %v1158
    %v1169 = vcombine.high %v1165, %v1165
    %v1170 = vcombine.high %v27, %v27
    %v1172 = vunpack.c.l.s4 1966171168
    %v1173 = vunpack.c.0.s8 %v1172
    %v1174 = vlaneseq
    %v1175 = vshrl.u32 %v1174, 7
    %v1176 = vsub.s32 %v1173, %v1175
    %v1177 = vrot.slane %v27, %v1176
    %v1179 = vunpack.c.l.s4 1966171168
    %v1180 = vunpack.c.0.s8 %v1179
    %v1181 = vlaneseq
    %v1182 = vshrl.u32 %v1181, 7
    %v1183 = vsub.s32 %v1180, %v1182
    %v1184 = vrot.slane %v1170, %v1183
    %v1185 = vcombine.high %v1177, %v1177
    %v1186 = vcombine.high %v1184, %v1184
    %v1188 = vunpack.c.l.s4 1966171168
    %v1189 = vunpack.c.0.s8 %v1188
    %v1190 = vlaneseq
    %v1191 = vshrl.u32 %v1190, 7
    %v1192 = vsub.s32 %v1189, %v1191
    %v1193 = vrot.slane %v1177, %v1192
    %v1195 = vunpack.c.l.s4 1966171168
    %v1196 = vunpack.c.0.s8 %v1195
    %v1197 = vlaneseq
    %v1198 = vshrl.u32 %v1197, 7
    %v1199 = vsub.s32 %v1196, %v1198
    %v1200 = vrot.slane %v1184, %v1199
    %v1202 = vunpack.c.l.s4 1966171168
    %v1203 = vunpack.c.0.s8 %v1202
    %v1204 = vlaneseq
    %v1205 = vshrl.u32 %v1204, 7
    %v1206 = vsub.s32 %v1203, %v1205
    %v1207 = vrot.slane %v1185, %v1206
    %v1209 = vunpack.c.l.s4 1966171168
    %v1210 = vunpack.c.0.s8 %v1209
    %v1211 = vlaneseq
    %v1212 = vshrl.u32 %v1211, 7
    %v1213 = vsub.s32 %v1210, %v1212
    %v1214 = vrot.slane %v1186, %v1213
    %v1215 = vcombine.high %v1193, %v1193
    %v1216 = vcombine.high %v1200, %v1200
    %v1217 = vcombine.high %v1207, %v1207
    %v1218 = vcombine.high %v1214, %v1214
    %v1219 = vcombine.high %v28, %v28
    %v1221 = vunpack.c.l.s4 1966171168
    %v1222 = vunpack.c.0.s8 %v1221
    %v1223 = vlaneseq
    %v1224 = vshrl.u32 %v1223, 7
    %v1225 = vsub.s32 %v1222, %v1224
    %v1226 = vrot.slane %v28, %v1225
    %v1228 = vunpack.c.l.s4 1966171168
    %v1229 = vunpack.c.0.s8 %v1228
    %v1230 = vlaneseq
    %v1231 = vshrl.u32 %v1230, 7
    %v1232 = vsub.s32 %v1229, %v1231
    %v1233 = vrot.slane %v1219, %v1232
    %v1234 = vcombine.high %v1226, %v1226
    %v1235 = vcombine.high %v1233, %v1233
    %v1237 = vunpack.c.l.s4 1966171168
    %v1238 = vunpack.c.0.s8 %v1237
    %v1239 = vlaneseq
    %v1240 = vshrl.u32 %v1239, 7
    %v1241 = vsub.s32 %v1238, %v1240
    %v1242 = vrot.slane %v1226, %v1241
    %v1244 = vunpack.c.l.s4 1966171168
    %v1245 = vunpack.c.0.s8 %v1244
    %v1246 = vlaneseq
    %v1247 = vshrl.u32 %v1246, 7
    %v1248 = vsub.s32 %v1245, %v1247
    %v1249 = vrot.slane %v1233, %v1248
    %v1251 = vunpack.c.l.s4 1966171168
    %v1252 = vunpack.c.0.s8 %v1251
    %v1253 = vlaneseq
    %v1254 = vshrl.u32 %v1253, 7
    %v1255 = vsub.s32 %v1252, %v1254
    %v1256 = vrot.slane %v1234, %v1255
    %v1258 = vunpack.c.l.s4 1966171168
    %v1259 = vunpack.c.0.s8 %v1258
    %v1260 = vlaneseq
    %v1261 = vshrl.u32 %v1260, 7
    %v1262 = vsub.s32 %v1259, %v1261
    %v1263 = vrot.slane %v1235, %v1262
    %v1264 = vcombine.high %v1242, %v1242
    %v1265 = vcombine.high %v1249, %v1249
    %v1266 = vcombine.high %v1256, %v1256
    %v1267 = vcombine.high %v1263, %v1263
    %v2205 = vunpack.c.l.b16 %v29
    %v2206 = vunpack.c.l.b16 %v30
    %v2207 = vunpack.c.l.b16 %v31
    %v2208 = vunpack.c.l.b16 %v32
    %v2209 = vunpack.c.l.b16 %v33
    %v2210 = vunpack.c.l.b16 %v34
    %v2211 = vunpack.c.l.b16 %v35
    %v2212 = vunpack.c.l.b16 %v36
    %v2213 = vunpack.c.l.b16 %v37
    %v2214 = vunpack.c.l.b16 %v38
    %v2215 = vunpack.c.l.b16 %v39
    %v2216 = vunpack.c.l.b16 %v40
    %v2217 = vunpack.c.l.b16 %v41
    %v2218 = vunpack.c.l.b16 %v42
    %v2219 = vunpack.c.l.b16 %v43
    %v2220 = vunpack.c.l.b16 %v44
    %v2221 = vunpack.c.l.b16 %v45
    %v2222 = vunpack.c.l.b16 %v46
    %v2223 = vunpack.c.l.b16 %v47
    %v2224 = vunpack.c.l.b16 %v48
    %v2225 = vunpack.c.l.b16 %v49
    %v2226 = vunpack.c.l.b16 %v50
    %v2227 = vunpack.c.l.b16 %v51
    %v2228 = vunpack.c.l.b16 %v52
    %v2229 = vunpack.c.l.b16 %v53
    %v2230 = vunpack.c.l.b16 %v54
    %v2231 = vunpack.c.l.b16 %v55
    %v2232 = vunpack.c.l.b16 %v56
    %v2233 = vunpack.c.l.b16 %v57
    %v2234 = vunpack.c.l.b16 %v58
    %v2235 = vunpack.c.l.b16 %v59
    %v2236 = vunpack.c.l.b16 %v60
    %v2237 = vunpack.c.l.b16 %v61
    %v2238 = vunpack.c.l.b16 %v62
    %v2239 = vunpack.c.l.b16 %v63
    %v2240 = vunpack.c.l.b16 %v64
    %v2241 = vunpack.c.l.b16 %v65
    %v2242 = vunpack.c.l.b16 %v66
    %v2243 = vunpack.c.l.b16 %v67
    %v2244 = vunpack.c.l.b16 %v68
    %v2245 = vunpack.c.l.b16 %v69
    %v2246 = vunpack.c.l.b16 %v70
    %v2247 = vunpack.c.l.b16 %v71
    %v2248 = vunpack.c.l.b16 %v72
    %v2249 = vunpack.c.l.b16 %v73
    %v2250 = vunpack.c.l.b16 %v74
    %v2251 = vunpack.c.l.b16 %v75
    %v2252 = vunpack.c.l.b16 %v76
    %v2253 = vunpack.c.l.b16 %v77
    %v2254 = vunpack.c.l.b16 %v78
    %v2255 = vunpack.c.l.b16 %v79
    %v2256 = vunpack.c.l.b16 %v80
    %v2257 = vunpack.c.l.b16 %v81
    %v2258 = vunpack.c.l.b16 %v82
    %v2259 = vunpack.c.l.b16 %v83
    %v2260 = vunpack.c.l.b16 %v84
    %v2261 = vunpack.c.l.b16 %v85
    %v2262 = vunpack.c.l.b16 %v86
    %v2263 = vunpack.c.l.b16 %v87
    %v2264 = vunpack.c.l.b16 %v88
    %v2265 = vunpack.c.l.b16 %v89
    %v2266 = vunpack.c.l.b16 %v90
    %v2267 = vunpack.c.l.b16 %v91
    %v2268 = vunpack.c.l.b16 %v92
    %v2269 = vunpack.c.l.b16 %v93
    %v2270 = vunpack.c.l.b16 %v94
    %v2271 = vunpack.c.l.b16 %v95
    %v2272 = vunpack.c.l.b16 %v96
    %v2273 = vunpack.c.l.b16 %v97
    %v2274 = vunpack.c.l.b16 %v98
    %v2275 = vunpack.c.l.b16 %v99
    %v2276 = vunpack.c.l.b16 %v100
    %v2277 = vunpack.c.l.b16 %v101
    %v2278 = vunpack.c.l.b16 %v102
    %v2279 = vunpack.c.l.b16 %v103
    %v2280 = vunpack.c.l.b16 %v104
    %v2281 = vunpack.c.l.b16 %v105
    %v2282 = vunpack.c.l.b16 %v106
    %v2283 = vunpack.c.l.b16 %v107
    %v2284 = vunpack.c.l.b16 %v108
    %v2285 = vunpack.c.l.b16 %v109
    %v2286 = vunpack.c.l.b16 %v110
    %v2287 = vunpack.c.l.b16 %v111
    %v2288 = vunpack.c.l.b16 %v112
    %v2289 = vunpack.c.l.b16 %v113
    %v2290 = vunpack.c.l.b16 %v114
    %v2291 = vunpack.c.l.b16 %v115
    %v2292 = vunpack.c.l.b16 %v116
    %v2293 = vunpack.c.l.b16 %v117
    %v2294 = vunpack.c.l.b16 %v118
    %v2295 = vunpack.c.l.b16 %v119
    %v2296 = vunpack.c.l.b16 %v120
    %v2297 = vunpack.c.l.b16 %v121
    %v2298 = vunpack.c.l.b16 %v122
    %v2299 = vunpack.c.l.b16 %v123
    %v2300 = vunpack.c.l.b16 %v124
    %v2301 = vunpack.c.l.b16 %v125
    %v2302 = vunpack.c.l.b16 %v126
    %v2303 = vunpack.c.l.b16 %v127
    %v2304 = vunpack.c.l.b16 %v128
    %v2305 = vunpack.c.l.b16 %v129
    %v2306 = vunpack.c.l.b16 %v130
    %v2307 = vunpack.c.l.b16 %v131
    %v2308 = vunpack.c.l.b16 %v132
    %v2309 = vunpack.c.l.b16 %v133
    %v2310 = vunpack.c.l.b16 %v134
    %v2311 = vunpack.c.l.b16 %v135
    %v2312 = vunpack.c.l.b16 %v136
    %v2313 = vunpack.c.l.b16 %v137
    %v2314 = vunpack.c.l.b16 %v138
    %v2315 = vunpack.c.l.b16 %v139
    %v2316 = vunpack.c.l.b16 %v140
    %v2317 = vunpack.c.l.b16 %v141
    %v2318 = vunpack.c.l.b16 %v142
    %v2319 = vunpack.c.l.b16 %v143
    %v2320 = vunpack.c.l.b16 %v144
    %v2321 = vunpack.c.l.b16 %v145
    %v2322 = vunpack.c.l.b16 %v146
    %v2323 = vunpack.c.l.b16 %v147
    %v2324 = vunpack.c.l.b16 %v148
    %v2325 = vunpack.c.l.b16 %v149
    %v2326 = vunpack.c.l.b16 %v150
    %v2327 = vunpack.c.l.b16 %v151
    %v2328 = vunpack.c.l.b16 %v152
    %v2329 = vunpack.c.l.b16 %v153
    %v2330 = vunpack.c.l.b16 %v154
    %v2331 = vunpack.c.l.b16 %v155
    %v2332 = vunpack.c.l.b16 %v156
    %v2333 = vunpack.c.l.b16 %v157
    %v2334 = vunpack.c.l.b16 %v158
    %v2335 = vunpack.c.l.b16 %v159
    %v2336 = vunpack.c.l.b16 %v160
    %v2337 = vunpack.c.l.b16 %v161
    %v2338 = vunpack.c.l.b16 %v162
    %v2339 = vunpack.c.l.b16 %v163
    %v2340 = vunpack.c.l.b16 %v164
    %v2341 = vunpack.c.l.b16 %v165
    %v2342 = vunpack.c.l.b16 %v166
    %v2343 = vunpack.c.l.b16 %v167
    %v2344 = vunpack.c.l.b16 %v168
    %v2345 = vunpack.c.l.b16 %v169
    %v2346 = vunpack.c.l.b16 %v170
    %v2347 = vunpack.c.l.b16 %v171
    %v2348 = vunpack.c.l.b16 %v172
    %v2349 = vunpack.c.l.b16 %v173
    %v2350 = vunpack.c.l.b16 %v174
    %v2351 = vunpack.c.l.b16 %v175
    %v2352 = vunpack.c.l.b16 %v176
    %v2353 = vunpack.c.l.b16 %v177
    %v2354 = vunpack.c.l.b16 %v178
    %v2355 = vunpack.c.l.b16 %v179
    %v2356 = vunpack.c.l.b16 %v180
    %v2357 = vunpack.c.l.b16 %v181
    %v2358 = vunpack.c.l.b16 %v182
    %v2359 = vunpack.c.l.b16 %v183
    %v2360 = vunpack.c.l.b16 %v184
    %v2361 = vunpack.c.l.b16 %v185
    %v2362 = vunpack.c.l.b16 %v186
    %v2363 = vunpack.c.l.b16 %v187
    %v2364 = vunpack.c.l.b16 %v188
    %v2365 = vunpack.c.l.b16 %v189
    %v2366 = vunpack.c.l.b16 %v190
    %v2367 = vunpack.c.l.b16 %v191
    %v2368 = vunpack.c.l.b16 %v192
    %v2369 = vunpack.c.l.b16 %v193
    %v2370 = vunpack.c.l.b16 %v194
    %v2371 = vunpack.c.l.b16 %v195
    %v2372 = vunpack.c.l.b16 %v196
    %v2373 = vunpack.c.l.b16 %v197
    %v2374 = vunpack.c.l.b16 %v198
    %v2375 = vunpack.c.l.b16 %v199
    %v2376 = vunpack.c.l.b16 %v200
    %v2377 = vunpack.c.l.b16 %v201
    %v2378 = vunpack.c.l.b16 %v202
    %v2379 = vunpack.c.l.b16 %v203
    %v2380 = vunpack.c.l.b16 %v204
    %v2381 = vunpack.c.l.b16 %v205
    %v2382 = vunpack.c.l.b16 %v206
    %v2383 = vunpack.c.l.b16 %v207
    %v2384 = vunpack.c.l.b16 %v208
    %v2385 = vunpack.c.l.b16 %v209
    %v2386 = vunpack.c.l.b16 %v210
    %v2387 = vunpack.c.l.b16 %v211
    %v2388 = vunpack.c.l.b16 %v212
    %v2389 = vunpack.c.l.b16 %v213
    %v2390 = vunpack.c.l.b16 %v214
    %v2391 = vunpack.c.l.b16 %v215
    %v2392 = vunpack.c.l.b16 %v216
    %v2393 = vunpack.c.l.b16 %v217
    %v2394 = vunpack.c.l.b16 %v218
    %v2395 = vunpack.c.l.b16 %v219
    %v2396 = vunpack.c.l.b16 %v220
    %v2397 = vunpack.c.l.b16 %v221
    %v2398 = vunpack.c.l.b16 %v222
    %v2399 = vunpack.c.l.b16 %v223
    %v2400 = vunpack.c.l.b16 %v224
    %v2401 = vunpack.c.l.b16 %v225
    %v2402 = vunpack.c.l.b16 %v226
    %v2403 = vunpack.c.l.b16 %v227
    %v2404 = vunpack.c.l.b16 %v228
    %v2405 = vunpack.c.l.b16 %v229
    %v2406 = vunpack.c.l.b16 %v230
    %v2407 = vunpack.c.l.b16 %v231
    %v2408 = vunpack.c.l.b16 %v232
    %v2409 = vunpack.c.l.b16 %v233
    %v2410 = vunpack.c.l.b16 %v234
    %v2411 = vunpack.c.l.b16 %v235
    %v2412 = vunpack.c.l.b16 %v236
    %v2413 = vunpack.c.l.b16 %v237
    %v2414 = vunpack.c.l.b16 %v238
    %v2415 = vunpack.c.l.b16 %v239
    %v2416 = vunpack.c.l.b16 %v240
    %v2417 = vunpack.c.l.b16 %v241
    %v2418 = vunpack.c.l.b16 %v242
    %v2419 = vunpack.c.l.b16 %v243
    %v2420 = vunpack.c.l.b16 %v244
    %v2421 = vunpack.c.l.b16 %v245
    %v2422 = vunpack.c.l.b16 %v246
    %v2423 = vunpack.c.l.b16 %v247
    %v2424 = vunpack.c.l.b16 %v248
    %v2425 = vunpack.c.l.b16 %v249
    %v2426 = vunpack.c.l.b16 %v250
    %v2427 = vunpack.c.l.b16 %v251
    %v2428 = vunpack.c.l.b16 %v252
    %v2429 = vunpack.c.l.b16 %v253
    %v2430 = vunpack.c.l.b16 %v254
    %v2431 = vunpack.c.l.b16 %v255
    %v2432 = vunpack.c.l.b16 %v256
    %v2433 = vunpack.c.l.b16 %v257
    %v2434 = vunpack.c.l.b16 %v258
    %v2435 = vunpack.c.l.b16 %v259
    %v2436 = vunpack.c.l.b16 %v260
    %v2437 = vunpack.c.l.b16 %v261
    %v2438 = vunpack.c.l.b16 %v262
    %v2439 = vunpack.c.l.b16 %v263
    %v2440 = vunpack.c.l.b16 %v264
    %v2441 = vunpack.c.l.b16 %v265
    %v2442 = vunpack.c.l.b16 %v266
    %v2443 = vunpack.c.l.b16 %v267
    %v2444 = vunpack.c.l.b16 %v268
    %v2445 = vunpack.c.l.b16 %v269
    %v2446 = vunpack.c.l.b16 %v270
    %v2447 = vunpack.c.l.b16 %v271
    %v2448 = vunpack.c.l.b16 %v272
    %v2449 = vunpack.c.l.b16 %v273
    %v2450 = vunpack.c.l.b16 %v274
    %v2451 = vunpack.c.l.b16 %v275
    %v2452 = vunpack.c.l.b16 %v276
    %v2453 = vunpack.c.l.b16 %v277
    %v2454 = vunpack.c.l.b16 %v278
    %v2455 = vunpack.c.l.b16 %v279
    %v2456 = vunpack.c.l.b16 %v280
    %v2457 = vunpack.c.l.b16 %v281
    %v2458 = vunpack.c.l.b16 %v282
    %v2459 = vunpack.c.l.b16 %v283
    %v2460 = vunpack.c.l.b16 %v284
    %v2461 = vunpack.c.l.b16 %v285
    %v2462 = vunpack.c.l.b16 %v286
    %v2463 = vunpack.c.l.b16 %v287
    %v2464 = vunpack.c.l.b16 %v288
    %v2465 = vunpack.c.l.b16 %v289
    %v2466 = vunpack.c.l.b16 %v290
    %v2467 = vunpack.c.l.b16 %v291
    %v2468 = vunpack.c.l.b16 %v292
    %v2469 = vunpack.c.l.b16 %v293
    %v2470 = vunpack.c.l.b16 %v294
    %v2471 = vunpack.c.l.b16 %v295
    %v2472 = vunpack.c.l.b16 %v296
    %v2473 = vunpack.c.l.b16 %v297
    %v2474 = vunpack.c.l.b16 %v298
    %v2475 = vunpack.c.l.b16 %v299
    %v2476 = vunpack.c.l.b16 %v300
    %v2477 = vunpack.c.l.b16 %v301
    %v2478 = vunpack.c.l.b16 %v302
    %v2479 = vunpack.c.l.b16 %v303
    %v2480 = vunpack.c.l.b16 %v304
    %v2481 = vunpack.c.l.b16 %v305
    %v2482 = vunpack.c.l.b16 %v306
    %v2483 = vunpack.c.l.b16 %v307
    %v2484 = vunpack.c.l.b16 %v308
    %v2485 = vunpack.c.l.b16 %v309
    %v2486 = vunpack.c.l.b16 %v310
    %v2487 = vunpack.c.l.b16 %v311
    %v2488 = vunpack.c.l.b16 %v312
    %v2489 = vunpack.c.l.b16 %v313
    %v2490 = vunpack.c.l.b16 %v314
    %v2491 = vunpack.c.l.b16 %v315
    %v2492 = vunpack.c.l.b16 %v316
    %v2493 = vunpack.c.l.b16 %v317
    %v2494 = vunpack.c.l.b16 %v318
    %v2495 = vunpack.c.l.b16 %v319
    %v2496 = vunpack.c.l.b16 %v320
    %v2497 = vunpack.c.l.b16 %v321
    %v2498 = vunpack.c.l.b16 %v322
    %v2499 = vunpack.c.l.b16 %v323
    %v2500 = vunpack.c.l.b16 %v324
    %v2501 = vunpack.c.l.b16 %v325
    %v2502 = vunpack.c.l.b16 %v326
    %v2503 = vunpack.c.l.b16 %v327
    %v2504 = vunpack.c.l.b16 %v328
    %v2505 = vunpack.c.l.b16 %v329
    %v2506 = vunpack.c.l.b16 %v330
    %v2507 = vunpack.c.l.b16 %v331
    %v2508 = vunpack.c.l.b16 %v332
    %v2509 = vunpack.c.l.b16 %v333
    %v2510 = vunpack.c.l.b16 %v334
    %v2511 = vunpack.c.l.b16 %v335
    %v2512 = vunpack.c.l.b16 %v336
    %v2513 = vunpack.c.l.b16 %v337
    %v2514 = vunpack.c.l.b16 %v338
    %v2515 = vunpack.c.l.b16 %v339
    %v2516 = vunpack.c.l.b16 %v340
    %v2517 = vunpack.c.l.b16 %v341
    %v2518 = vunpack.c.l.b16 %v342
    %v2519 = vunpack.c.l.b16 %v343
    %v2520 = vunpack.c.l.b16 %v344
    %v2521 = vunpack.c.l.b16 %v345
    %v2522 = vunpack.c.l.b16 %v346
    %v2523 = vunpack.c.l.b16 %v347
    %v2524 = vunpack.c.l.b16 %v348
    %v2525 = vunpack.c.l.b16 %v349
    %v2526 = vunpack.c.l.b16 %v350
    %v2527 = vunpack.c.l.b16 %v351
    %v2528 = vunpack.c.l.b16 %v352
    %v2529 = vunpack.c.l.b16 %v353
    %v2530 = vunpack.c.l.b16 %v354
    %v2531 = vunpack.c.l.b16 %v355
    %v2532 = vunpack.c.l.b16 %v356
    %v2533 = vunpack.c.l.b16 %v357
    %v2534 = vunpack.c.l.b16 %v358
    %v2535 = vunpack.c.l.b16 %v359
    %v2536 = vunpack.c.l.b16 %v360
    %v2537 = vunpack.c.l.b16 %v361
    %v2538 = vunpack.c.l.b16 %v362
    %v2539 = vunpack.c.l.b16 %v363
    %v2540 = vunpack.c.l.b16 %v364
    %v2541 = vunpack.c.l.b16 %v365
    %v2542 = vunpack.c.l.b16 %v366
    %v2543 = vunpack.c.l.b16 %v367
    %v2544 = vunpack.c.l.b16 %v368
    %v2545 = vunpack.c.l.b16 %v369
    %v2546 = vunpack.c.l.b16 %v370
    %v2547 = vunpack.c.l.b16 %v371
    %v2548 = vunpack.c.l.b16 %v372
    %v2549 = vunpack.c.l.b16 %v373
    %v2550 = vunpack.c.l.b16 %v374
    %v2551 = vunpack.c.l.b16 %v375
    %v2552 = vunpack.c.l.b16 %v376
    %v2553 = vunpack.c.l.b16 %v377
    %v2554 = vunpack.c.l.b16 %v378
    %v2555 = vunpack.c.l.b16 %v379
    %v2556 = vunpack.c.l.b16 %v380
    %v2557 = vunpack.c.l.b16 %v381
    %v2558 = vunpack.c.l.b16 %v382
    %v2559 = vunpack.c.l.b16 %v383
    %v2560 = vunpack.c.l.b16 %v384
    %v2561 = vunpack.c.l.b16 %v385
    %v2562 = vunpack.c.l.b16 %v386
    %v2563 = vunpack.c.l.b16 %v387
    %v2564 = vunpack.c.l.b16 %v388
    %v2565 = vunpack.c.l.b16 %v389
    %v2566 = vunpack.c.l.b16 %v390
    %v2567 = vunpack.c.l.b16 %v391
    %v2568 = vunpack.c.l.b16 %v392
    %v2569 = vunpack.c.l.b16 %v393
    %v2570 = vunpack.c.l.b16 %v394
    %v2571 = vunpack.c.l.b16 %v395
    %v2572 = vunpack.c.l.b16 %v396
    %v2573 = vunpack.c.l.b16 %v397
    %v2574 = vunpack.c.l.b16 %v398
    %v2575 = vunpack.c.l.b16 %v399
    %v2576 = vunpack.c.l.b16 %v400
    %v2577 = vunpack.c.l.b16 %v401
    %v2578 = vunpack.c.l.b16 %v402
    %v2579 = vunpack.c.l.b16 %v403
    %v2580 = vunpack.c.l.b16 %v404
    %v2581 = vunpack.c.l.b16 %v405
    %v2582 = vunpack.c.l.b16 %v406
    %v2583 = vunpack.c.l.b16 %v407
    %v2584 = vunpack.c.l.b16 %v408
    %v2585 = vunpack.c.l.b16 %v409
    %v2586 = vunpack.c.l.b16 %v410
    %v2587 = vunpack.c.l.b16 %v411
    %v2588 = vunpack.c.l.b16 %v412
    %v2589 = vunpack.c.l.b16 %v413
    %v2590 = vunpack.c.l.b16 %v414
    %v2591 = vunpack.c.l.b16 %v415
    %v2592 = vunpack.c.l.b16 %v416
    %v2593 = vunpack.c.l.b16 %v417
    %v2594 = vunpack.c.l.b16 %v418
    %v2595 = vunpack.c.l.b16 %v419
    %v2596 = vunpack.c.l.b16 %v420
    %v2597 = vunpack.c.l.b16 %v421
    %v2598 = vunpack.c.l.b16 %v422
    %v2599 = vunpack.c.l.b16 %v423
    %v2600 = vunpack.c.l.b16 %v424
    %v2601 = vunpack.c.l.b16 %v425
    %v2602 = vunpack.c.l.b16 %v426
    %v2603 = vunpack.c.l.b16 %v427
    %v2604 = vunpack.c.l.b16 %v428
    %v2605 = vunpack.c.l.b16 %v429
    %v2606 = vunpack.c.l.b16 %v430
    %v2607 = vunpack.c.l.b16 %v431
    %v2608 = vunpack.c.l.b16 %v432
    %v2609 = vunpack.c.l.b16 %v433
    %v2610 = vunpack.c.l.b16 %v434
    %v2611 = vunpack.c.l.b16 %v435
    %v2612 = vunpack.c.l.b16 %v436
    %v2613 = vunpack.c.l.b16 %v437
    %v2614 = vunpack.c.l.b16 %v438
    %v2615 = vunpack.c.l.b16 %v439
    %v2616 = vunpack.c.l.b16 %v440
    %v2617 = vunpack.c.l.b16 %v441
    %v2618 = vunpack.c.l.b16 %v442
    %v2619 = vunpack.c.l.b16 %v443
    %v2620 = vunpack.c.l.b16 %v444
    %v2621 = vunpack.c.l.b16 %v445
    %v2622 = vunpack.c.l.b16 %v446
    %v2623 = vunpack.c.l.b16 %v447
    %v2624 = vunpack.c.l.b16 %v448
    %v2625 = vunpack.c.l.b16 %v449
    %v2626 = vunpack.c.l.b16 %v450
    %v2627 = vunpack.c.l.b16 %v451
    %v2628 = vunpack.c.l.b16 %v452
    %v2629 = vunpack.c.l.b16 %v453
    %v2630 = vunpack.c.l.b16 %v454
    %v2631 = vunpack.c.l.b16 %v455
    %v2632 = vunpack.c.l.b16 %v456
    %v2633 = vunpack.c.l.b16 %v457
    %v2634 = vunpack.c.l.b16 %v458
    %v2635 = vunpack.c.l.b16 %v459
    %v2636 = vunpack.c.l.b16 %v460
    %v2637 = vunpack.c.l.b16 %v461
    %v2638 = vunpack.c.l.b16 %v462
    %v2639 = vunpack.c.l.b16 %v463
    %v2640 = vunpack.c.l.b16 %v464
    %v2641 = vunpack.c.l.b16 %v465
    %v2642 = vunpack.c.l.b16 %v466
    %v2643 = vunpack.c.l.b16 %v467
    %v2644 = vunpack.c.l.b16 %v468
    %v2645 = vunpack.c.l.b16 %v469
    %v2646 = vunpack.c.l.b16 %v470
    %v2647 = vunpack.c.l.b16 %v471
    %v2648 = vunpack.c.l.b16 %v472
    %v2649 = vunpack.c.l.b16 %v473
    %v2650 = vunpack.c.l.b16 %v474
    %v2651 = vunpack.c.l.b16 %v475
    %v2652 = vunpack.c.l.b16 %v476
    %v2653 = vunpack.c.l.b16 %v477
    %v2654 = vunpack.c.l.b16 %v478
    %v2655 = vunpack.c.l.b16 %v479
    %v2656 = vunpack.c.l.b16 %v480
    %v2657 = vunpack.c.l.b16 %v481
    %v2658 = vunpack.c.l.b16 %v482
    %v2659 = vunpack.c.l.b16 %v483
    %v2660 = vunpack.c.l.b16 %v484
    %v2661 = vunpack.c.l.b16 %v485
    %v2662 = vunpack.c.l.b16 %v486
    %v2663 = vunpack.c.l.b16 %v487
    %v2664 = vunpack.c.l.b16 %v488
    %v2665 = vunpack.c.l.b16 %v489
    %v2666 = vunpack.c.l.b16 %v490
    %v2667 = vunpack.c.l.b16 %v491
    %v2668 = vunpack.c.l.b16 %v492
    %v2669 = vunpack.c.l.b16 %v493
    %v2670 = vunpack.c.l.b16 %v494
    %v2671 = vunpack.c.l.b16 %v495
    %v2672 = vunpack.c.l.b16 %v496
    %v2673 = vunpack.c.l.b16 %v497
    %v2674 = vunpack.c.l.b16 %v498
    %v2675 = vunpack.c.l.b16 %v499
    %v2676 = vunpack.c.l.b16 %v500
    %v2677 = vunpack.c.l.b16 %v501
    %v2678 = vunpack.c.l.b16 %v502
    %v2679 = vunpack.c.l.b16 %v503
    %v2680 = vunpack.c.l.b16 %v504
    %v2681 = vunpack.c.l.b16 %v505
    %v2682 = vunpack.c.l.b16 %v506
    %v2683 = vunpack.c.l.b16 %v507
    %v2684 = vunpack.c.l.b16 %v508
    %v2685 = vunpack.c.l.b16 %v509
    %v2686 = vunpack.c.l.b16 %v510
    %v2687 = vunpack.c.l.b16 %v511
    %v2688 = vunpack.c.l.b16 %v512
    %v2689 = vunpack.c.l.b16 %v513
    %v2690 = vunpack.c.l.b16 %v514
    %v2691 = vunpack.c.l.b16 %v515
    %v2692 = vunpack.c.l.b16 %v516
    %v2693 = vunpack.c.l.b16 %v517
    %v2694 = vunpack.c.l.b16 %v518
    %v2695 = vunpack.c.l.b16 %v519
    %v2696 = vunpack.c.l.b16 %v520
    %v2697 = vunpack.c.l.b16 %v521
    %v2698 = vunpack.c.l.b16 %v522
    %v2699 = vunpack.c.l.b16 %v523
    %v2700 = vunpack.c.l.b16 %v524
    %v2701 = vunpack.c.l.b16 %v525
    %v2702 = vunpack.c.l.b16 %v526
    %v2703 = vunpack.c.l.b16 %v527
    %v2704 = vunpack.c.l.b16 %v528
    %v2705 = vunpack.c.l.b16 %v529
    %v2706 = vunpack.c.l.b16 %v530
    %v2707 = vunpack.c.l.b16 %v531
    %v2708 = vunpack.c.l.b16 %v532
    %v2709 = vunpack.c.l.b16 %v533
    %v2710 = vunpack.c.l.b16 %v534
    %v2711 = vunpack.c.l.b16 %v535
    %v2712 = vunpack.c.l.b16 %v536
    %v2713 = vunpack.c.l.b16 %v537
    %v2714 = vunpack.c.l.b16 %v538
    %v2715 = vunpack.c.l.b16 %v539
    %v2716 = vunpack.c.l.b16 %v540
    %v2717 = vunpack.c.l.b16 %v541
    %v2718 = vunpack.c.l.b16 %v542
    %v2719 = vunpack.c.l.b16 %v543
    %v2720 = vunpack.c.l.b16 %v544
    %v2721 = vunpack.c.l.b16 %v545
    %v2722 = vunpack.c.l.b16 %v546
    %v2723 = vunpack.c.l.b16 %v547
    %v2724 = vunpack.c.l.b16 %v548
    %v2725 = vunpack.c.l.b16 %v549
    %v2726 = vunpack.c.l.b16 %v550
    %v2727 = vunpack.c.l.b16 %v551
    %v2728 = vunpack.c.l.b16 %v552
    %v2729 = vunpack.c.l.b16 %v553
    %v2730 = vunpack.c.l.b16 %v554
    %v2731 = vunpack.c.l.b16 %v555
    %v2732 = vunpack.c.l.b16 %v556
    %v2733 = vunpack.c.l.b16 %v557
    %v2734 = vunpack.c.l.b16 %v558
    %v2735 = vunpack.c.l.b16 %v559
    %v2736 = vunpack.c.l.b16 %v560
    %v2737 = vunpack.c.l.b16 %v561
    %v2738 = vunpack.c.l.b16 %v562
    %v2739 = vunpack.c.l.b16 %v563
    %v2740 = vunpack.c.l.b16 %v564
    %v2741 = vunpack.c.l.b16 %v565
    %v2742 = vunpack.c.l.b16 %v566
    %v2743 = vunpack.c.l.b16 %v567
    %v2744 = vunpack.c.l.b16 %v568
    %v2745 = vunpack.c.l.b16 %v569
    %v2746 = vunpack.c.l.b16 %v570
    %v2747 = vunpack.c.l.b16 %v571
    %v2748 = vunpack.c.l.b16 %v572
    %v2749 = vunpack.c.l.b16 %v573
    %v2750 = vunpack.c.l.b16 %v574
    %v2751 = vunpack.c.l.b16 %v575
    %v2752 = vunpack.c.l.b16 %v576
    %v2753 = vunpack.c.l.b16 %v577
    %v2754 = vunpack.c.l.b16 %v578
    %v2755 = vunpack.c.l.b16 %v579
    %v2756 = vunpack.c.l.b16 %v580
    %v2757 = vunpack.c.l.b16 %v581
    %v2758 = vunpack.c.l.b16 %v582
    %v2759 = vunpack.c.l.b16 %v583
    %v2760 = vunpack.c.l.b16 %v584
    %v2761 = vunpack.c.l.b16 %v585
    %v2762 = vunpack.c.l.b16 %v586
    %v2763 = vunpack.c.l.b16 %v587
    %v2764 = vunpack.c.l.b16 %v588
    %v2765 = vunpack.c.l.b16 %v589
    %v2766 = vunpack.c.l.b16 %v590
    %v2767 = vunpack.c.l.b16 %v591
    %v2768 = vunpack.c.l.b16 %v592
    %v2769 = vunpack.c.l.b16 %v593
    %v2770 = vunpack.c.l.b16 %v594
    %v2771 = vunpack.c.l.b16 %v595
    %v2772 = vunpack.c.l.b16 %v596
    %v2773 = vunpack.c.l.b16 %v597
    %v2774 = vunpack.c.l.b16 %v598
    %v2775 = vunpack.c.l.b16 %v599
    %v2776 = vunpack.c.l.b16 %v600
    %v2777 = vunpack.c.l.b16 %v601
    %v2778 = vunpack.c.l.b16 %v602
    %v2779 = vunpack.c.l.b16 %v603
    %v2780 = vunpack.c.l.b16 %v604
    %v2781 = vunpack.c.l.b16 %v605
    %v2782 = vunpack.c.l.b16 %v606
    %v2783 = vunpack.c.l.b16 %v607
    %v2784 = vunpack.c.l.b16 %v608
    %v2785 = vunpack.c.l.b16 %v609
    %v2786 = vunpack.c.l.b16 %v610
    %v2787 = vunpack.c.l.b16 %v611
    %v2788 = vunpack.c.l.b16 %v612
    %v2789 = vunpack.c.l.b16 %v613
    %v2790 = vunpack.c.l.b16 %v614
    %v2791 = vunpack.c.l.b16 %v615
    %v2792 = vunpack.c.l.b16 %v616
    %v2793 = vunpack.c.l.b16 %v617
    %v2794 = vunpack.c.l.b16 %v618
    %v2795 = vunpack.c.l.b16 %v619
    %v2796 = vunpack.c.l.b16 %v620
    %v2797 = vunpack.c.l.b16 %v621
    %v2798 = vunpack.c.l.b16 %v622
    %v2799 = vunpack.c.l.b16 %v623
    %v2800 = vunpack.c.l.b16 %v624
    %v2801 = vunpack.c.l.b16 %v625
    %v2802 = vunpack.c.l.b16 %v626
    %v2803 = vunpack.c.l.b16 %v627
    %v2804 = vunpack.c.l.b16 %v628
    %v2805 = vunpack.c.l.b16 %v629
    %v2806 = vunpack.c.l.b16 %v630
    %v2807 = vunpack.c.l.b16 %v631
    %v2808 = vunpack.c.l.b16 %v632
    %v2809 = vunpack.c.l.b16 %v633
    %v2810 = vunpack.c.l.b16 %v634
    %v2811 = vunpack.c.l.b16 %v635
    %v2812 = vunpack.c.l.b16 %v636
    %v2813 = vunpack.c.l.b16 %v637
    %v2814 = vunpack.c.l.b16 %v638
    %v2815 = vunpack.c.l.b16 %v639
    %v2816 = vunpack.c.l.b16 %v640
    %v2817 = vunpack.c.l.b16 %v641
    %v2818 = vunpack.c.l.b16 %v642
    %v2819 = vunpack.c.l.b16 %v643
    %v2820 = vunpack.c.l.b16 %v644
    %v2821 = vunpack.c.l.b16 %v645
    %v2822 = vunpack.c.l.b16 %v646
    %v2823 = vunpack.c.l.b16 %v647
    %v2824 = vunpack.c.l.b16 %v648
    %v2825 = vunpack.c.l.b16 %v649
    %v2826 = vunpack.c.l.b16 %v650
    %v2827 = vunpack.c.l.b16 %v651
    %v2828 = vunpack.c.l.b16 %v652
    %v2829 = vunpack.c.l.b16 %v653
    %v2830 = vunpack.c.l.b16 %v654
    %v2831 = vunpack.c.l.b16 %v655
    %v2832 = vunpack.c.l.b16 %v656
    %v2833 = vunpack.c.l.b16 %v657
    %v2834 = vunpack.c.l.b16 %v658
    %v2835 = vunpack.c.l.b16 %v659
    %v2836 = vunpack.c.l.b16 %v660
    %v2837 = vunpack.c.l.b16 %v661
    %v2838 = vunpack.c.l.b16 %v662
    %v2839 = vunpack.c.l.b16 %v663
    %v2840 = vunpack.c.l.b16 %v664
    %v2841 = vunpack.c.l.b16 %v665
    %v2842 = vunpack.c.l.b16 %v666
    %v2843 = vunpack.c.l.b16 %v667
    %v2844 = vunpack.c.l.b16 %v668
    %v2845 = vunpack.c.l.b16 %v669
    %v2846 = vunpack.c.l.b16 %v670
    %v2847 = vunpack.c.l.b16 %v671
    %v2848 = vunpack.c.l.b16 %v672
    %v2849 = vunpack.c.l.b16 %v673
    %v2850 = vunpack.c.l.b16 %v674
    %v2851 = vunpack.c.l.b16 %v675
    %v2852 = vunpack.c.l.b16 %v676
    %v2853 = vunpack.c.l.b16 %v677
    %v2854 = vunpack.c.l.b16 %v678
    %v2855 = vunpack.c.l.b16 %v679
    %v2856 = vunpack.c.l.b16 %v680
    %v2857 = vunpack.c.l.b16 %v681
    %v2858 = vunpack.c.l.b16 %v682
    %v2859 = vunpack.c.l.b16 %v683
    %v2860 = vunpack.c.l.b16 %v684
    %v2861 = vunpack.c.l.b16 %v685
    %v2862 = vunpack.c.l.b16 %v686
    %v2863 = vunpack.c.l.b16 %v687
    %v2864 = vunpack.c.l.b16 %v688
    %v2865 = vunpack.c.l.b16 %v689
    %v2866 = vunpack.c.l.b16 %v690
    %v2867 = vunpack.c.l.b16 %v691
    %v2868 = vunpack.c.l.b16 %v692
    %v2869 = vunpack.c.l.b16 %v693
    %v2870 = vunpack.c.l.b16 %v694
    %v2871 = vunpack.c.l.b16 %v695
    %v2872 = vunpack.c.l.b16 %v696
    %v2873 = vunpack.c.l.b16 %v697
    %v2874 = vunpack.c.l.b16 %v698
    %v2875 = vunpack.c.l.b16 %v699
    %v2876 = vunpack.c.l.b16 %v700
    %v2877 = vunpack.c.l.b16 %v701
    %v2878 = vunpack.c.l.b16 %v702
    %v2879 = vunpack.c.l.b16 %v703
    %v2880 = vunpack.c.l.b16 %v704
    %v2881 = vunpack.c.l.b16 %v705
    %v2882 = vunpack.c.l.b16 %v706
    %v2883 = vunpack.c.l.b16 %v707
    %v2884 = vunpack.c.l.b16 %v708
    %v2885 = vunpack.c.l.b16 %v709
    %v2886 = vunpack.c.l.b16 %v710
    %v2887 = vunpack.c.l.b16 %v711
    %v2888 = vunpack.c.l.b16 %v712
    %v2889 = vunpack.c.l.b16 %v713
    %v2890 = vunpack.c.l.b16 %v714
    %v2891 = vunpack.c.l.b16 %v715
    %v2892 = vunpack.c.l.b16 %v716
    %v2893 = vunpack.c.l.b16 %v717
    %v2894 = vunpack.c.l.b16 %v718
    %v2895 = vunpack.c.l.b16 %v719
    %v2896 = vunpack.c.l.b16 %v720
    %v2897 = vunpack.c.l.b16 %v721
    %v2898 = vunpack.c.l.b16 %v722
    %v2899 = vunpack.c.l.b16 %v723
    %v2900 = vunpack.c.l.b16 %v724
    %v2901 = vunpack.c.l.b16 %v725
    %v2902 = vunpack.c.l.b16 %v726
    %v2903 = vunpack.c.l.b16 %v727
    %v2904 = vunpack.c.l.b16 %v728
    %v2905 = vunpack.c.l.b16 %v729
    %v2906 = vunpack.c.l.b16 %v730
    %v2907 = vunpack.c.l.b16 %v731
    %v2908 = vunpack.c.l.b16 %v732
    %v2909 = vunpack.c.l.b16 %v733
    %v2910 = vunpack.c.l.b16 %v734
    %v2911 = vunpack.c.l.b16 %v735
    %v2912 = vunpack.c.l.b16 %v736
    %v2913 = vunpack.c.l.b16 %v737
    %v2914 = vunpack.c.l.b16 %v738
    %v2915 = vunpack.c.l.b16 %v739
    %v2916 = vunpack.c.l.b16 %v740
    %v2917 = vunpack.c.l.b16 %v741
    %v2918 = vunpack.c.l.b16 %v742
    %v2919 = vunpack.c.l.b16 %v743
    %v2920 = vunpack.c.l.b16 %v744
    %v2921 = vunpack.c.l.b16 %v745
    %v2922 = vunpack.c.l.b16 %v746
    %v2923 = vunpack.c.l.b16 %v747
    %v2924 = vunpack.c.l.b16 %v748
    %v2925 = vunpack.c.l.b16 %v749
    %v2926 = vunpack.c.l.b16 %v750
    %v2927 = vunpack.c.l.b16 %v751
    %v2928 = vunpack.c.l.b16 %v752
    %v2929 = vunpack.c.l.b16 %v753
    %v2930 = vunpack.c.l.b16 %v754
    %v2931 = vunpack.c.l.b16 %v755
    %v2932 = vunpack.c.l.b16 %v756
    %v2933 = vunpack.c.l.b16 %v757
    %v2934 = vunpack.c.l.b16 %v758
    %v2935 = vunpack.c.l.b16 %v759
    %v2936 = vunpack.c.l.b16 %v760
    %v2937 = vunpack.c.l.b16 %v761
    %v2938 = vunpack.c.l.b16 %v762
    %v2939 = vunpack.c.l.b16 %v763
    %v2940 = vunpack.c.l.b16 %v764
    %v2941 = vunpack.c.l.b16 %v765
    %v2942 = vunpack.c.l.b16 %v766
    %v2943 = vunpack.c.l.b16 %v767
    %v2944 = vunpack.c.l.b16 %v768
    %v2945 = vunpack.c.l.b16 %v769
    %v2946 = vunpack.c.l.b16 %v770
    %v2947 = vunpack.c.l.b16 %v771
    %v2948 = vunpack.c.l.b16 %v772
    %v2949 = vunpack.c.l.b16 %v773
    %v2950 = vunpack.c.l.b16 %v774
    %v2951 = vunpack.c.l.b16 %v775
    %v2952 = vunpack.c.l.b16 %v776
    %v2953 = vunpack.c.l.b16 %v777
    %v2954 = vunpack.c.l.b16 %v778
    %v2955 = vunpack.c.l.b16 %v779
    %v2956 = vunpack.c.l.b16 %v780
    %v2957 = vunpack.c.l.b16 %v781
    %v2958 = vunpack.c.l.b16 %v782
    %v2959 = vunpack.c.l.b16 %v783
    %v2960 = vunpack.c.l.b16 %v784
    %v2961 = vunpack.c.l.b16 %v785
    %v2962 = vunpack.c.l.b16 %v786
    %v2963 = vunpack.c.l.b16 %v787
    %v2964 = vunpack.c.l.b16 %v788
    %v2965 = vunpack.c.l.b16 %v789
    %v2966 = vunpack.c.l.b16 %v790
    %v2967 = vunpack.c.l.b16 %v791
    %v2968 = vunpack.c.l.b16 %v792
    %v2969 = vunpack.c.l.b16 %v793
    %v2970 = vunpack.c.l.b16 %v794
    %v2971 = vunpack.c.l.b16 %v795
    %v2972 = vunpack.c.l.b16 %v796
    %v2973 = vunpack.c.l.b16 %v797
    %v2974 = vunpack.c.l.b16 %v798
    %v2975 = vunpack.c.l.b16 %v799
    %v2976 = vunpack.c.l.b16 %v800
    %v2977 = vunpack.c.l.b16 %v801
    %v2978 = vunpack.c.l.b16 %v802
    %v2979 = vunpack.c.l.b16 %v803
    %v2980 = vunpack.c.l.b16 %v804
    %v2981 = vunpack.c.l.b16 %v805
    %v2982 = vunpack.c.l.b16 %v806
    %v2983 = vunpack.c.l.b16 %v807
    %v2984 = vunpack.c.l.b16 %v808
    %v2985 = vunpack.c.l.b16 %v809
    %v2986 = vunpack.c.l.b16 %v810
    %v2987 = vunpack.c.l.b16 %v811
    %v2988 = vunpack.c.l.b16 %v812
    %v2989 = vunpack.c.l.b16 %v813
    %v2990 = vunpack.c.l.b16 %v814
    %v2991 = vunpack.c.l.b16 %v815
    %v2992 = vunpack.c.l.b16 %v816
    %v2993 = vunpack.c.l.b16 %v817
    %v2994 = vunpack.c.l.b16 %v818
    %v2995 = vunpack.c.l.b16 %v819
    %v2996 = vunpack.c.l.b16 %v820
    %v2997 = vunpack.c.l.b16 %v821
    %v2998 = vunpack.c.l.b16 %v822
    %v2999 = vunpack.c.l.b16 %v823
    %v3000 = vunpack.c.l.b16 %v824
    %v3001 = vunpack.c.l.b16 %v825
    %v3002 = vunpack.c.l.b16 %v826
    %v3003 = vunpack.c.l.b16 %v827
    %v3004 = vunpack.c.l.b16 %v828
    %v3005 = vunpack.c.l.b16 %v829
    %v3006 = vunpack.c.l.b16 %v830
    %v3007 = vunpack.c.l.b16 %v831
    %v3008 = vunpack.c.l.b16 %v832
    %v3009 = vunpack.c.l.b16 %v833
    %v3010 = vunpack.c.l.b16 %v834
    %v3011 = vunpack.c.l.b16 %v835
    %v3012 = vunpack.c.l.b16 %v836
    %v3013 = vunpack.c.l.b16 %v837
    %v3014 = vunpack.c.l.b16 %v838
    %v3015 = vunpack.c.l.b16 %v839
    %v3016 = vunpack.c.l.b16 %v840
    %v3017 = vunpack.c.l.b16 %v841
    %v3018 = vunpack.c.l.b16 %v842
    %v3019 = vunpack.c.l.b16 %v843
    %v3020 = vunpack.c.l.b16 %v844
    %v3021 = vunpack.c.l.b16 %v845
    %v3022 = vunpack.c.l.b16 %v846
    %v3023 = vunpack.c.l.b16 %v847
    %v3024 = vunpack.c.l.b16 %v848
    %v3025 = vunpack.c.l.b16 %v849
    %v3026 = vunpack.c.l.b16 %v850
    %v3027 = vunpack.c.l.b16 %v851
    %v3028 = vunpack.c.l.b16 %v852
    %v3029 = vunpack.c.l.b16 %v853
    %v3030 = vunpack.c.l.b16 %v854
    %v3031 = vunpack.c.l.b16 %v855
    %v3032 = vunpack.c.l.b16 %v856
    %v3033 = vunpack.c.l.b16 %v857
    %v3034 = vunpack.c.l.b16 %v858
    %v3035 = vunpack.c.l.b16 %v859
    %v3036 = vunpack.c.l.b16 %v860
    %v3037 = vunpack.c.l.b16 %v861
    %v3038 = vunpack.c.l.b16 %v862
    %v3039 = vunpack.c.l.b16 %v863
    %v3040 = vunpack.c.l.b16 %v864
    %v3041 = vunpack.c.l.b16 %v865
    %v3042 = vunpack.c.l.b16 %v866
    %v3043 = vunpack.c.l.b16 %v867
    %v3044 = vunpack.c.l.b16 %v868
    %v3045 = vunpack.c.l.b16 %v869
    %v3046 = vunpack.c.l.b16 %v870
    %v3047 = vunpack.c.l.b16 %v871
    %v3048 = vunpack.c.l.b16 %v872
    %v3049 = vunpack.c.l.b16 %v873
    %v3050 = vunpack.c.l.b16 %v874
    %v3051 = vunpack.c.l.b16 %v875
    %v3052 = vunpack.c.l.b16 %v876
    %v3053 = vunpack.c.l.b16 %v877
    %v3054 = vunpack.c.l.b16 %v878
    %v3055 = vunpack.c.l.b16 %v879
    %v3056 = vunpack.c.l.b16 %v880
    %v3057 = vunpack.c.l.b16 %v881
    %v3058 = vunpack.c.l.b16 %v882
    %v3059 = vunpack.c.l.b16 %v883
    %v3060 = vunpack.c.l.b16 %v884
    %v3061 = vunpack.c.l.b16 %v885
    %v3062 = vunpack.c.l.b16 %v886
    %v3063 = vunpack.c.l.b16 %v887
    %v3064 = vunpack.c.l.b16 %v888
    %v3065 = vunpack.c.l.b16 %v889
    %v3066 = vunpack.c.l.b16 %v890
    %v3067 = vunpack.c.l.b16 %v891
    %v3068 = vunpack.c.l.b16 %v892
    %v3069 = vunpack.c.l.b16 %v893
    %v3070 = vunpack.c.l.b16 %v894
    %v3071 = vunpack.c.l.b16 %v895
    %v3072 = vunpack.c.l.b16 %v896
    %v3073 = vunpack.c.l.b16 %v897
    %v3074 = vunpack.c.l.b16 %v898
    %v3075 = vunpack.c.l.b16 %v899
    %v3076 = vunpack.c.l.b16 %v900
    %v3077 = vunpack.c.l.b16 %v901
    %v3078 = vunpack.c.l.b16 %v902
    %v3079 = vunpack.c.l.b16 %v903
    %v3080 = vunpack.c.l.b16 %v904
    %v3081 = vunpack.c.l.b16 %v905
    %v3082 = vunpack.c.l.b16 %v906
    %v3083 = vunpack.c.l.b16 %v907
    %v3084 = vunpack.c.l.b16 %v908
    %v3085 = vunpack.c.l.b16 %v909
    %v3086 = vunpack.c.l.b16 %v910
    %v3087 = vpack.c.b16 %v2206, %v2205
    %v3088 = vpack.c.b16 %v2208, %v2207
    %v3089 = vpack.c.b16 %v2210, %v2209
    %v3090 = vpack.c.b16 %v2212, %v2211
    %v3091 = vpack.c.b16 %v2214, %v2213
    %v3092 = vpack.c.b16 %v2216, %v2215
    %v3093 = vpack.c.b16 %v2218, %v2217
    %v3094 = vpack.c.b16 %v2220, %v2219
    %v3095 = vpack.c.b16 %v2222, %v2221
    %v3096 = vpack.c.b16 %v2224, %v2223
    %v3097 = vpack.c.b16 %v2226, %v2225
    %v3098 = vpack.c.b16 %v2228, %v2227
    %v3099 = vpack.c.b16 %v2230, %v2229
    %v3100 = vpack.c.b16 %v2232, %v2231
    %v3101 = vpack.c.b16 %v2234, %v2233
    %v3102 = vpack.c.b16 %v2236, %v2235
    %v3103 = vpack.c.b16 %v2238, %v2237
    %v3104 = vpack.c.b16 %v2240, %v2239
    %v3105 = vpack.c.b16 %v2242, %v2241
    %v3106 = vpack.c.b16 %v2244, %v2243
    %v3107 = vpack.c.b16 %v2246, %v2245
    %v3108 = vpack.c.b16 %v2248, %v2247
    %v3109 = vpack.c.b16 %v2250, %v2249
    %v3110 = vpack.c.b16 %v2252, %v2251
    %v3111 = vpack.c.b16 %v2254, %v2253
    %v3112 = vpack.c.b16 %v2256, %v2255
    %v3113 = vpack.c.b16 %v2258, %v2257
    %v3114 = vpack.c.b16 %v2260, %v2259
    %v3115 = vpack.c.b16 %v2262, %v2261
    %v3116 = vpack.c.b16 %v2264, %v2263
    %v3117 = vpack.c.b16 %v2266, %v2265
    %v3118 = vpack.c.b16 %v2268, %v2267
    %v3119 = vpack.c.b16 %v2270, %v2269
    %v3120 = vpack.c.b16 %v2272, %v2271
    %v3121 = vpack.c.b16 %v2274, %v2273
    %v3122 = vpack.c.b16 %v2276, %v2275
    %v3123 = vpack.c.b16 %v2278, %v2277
    %v3124 = vpack.c.b16 %v2280, %v2279
    %v3125 = vpack.c.b16 %v2282, %v2281
    %v3126 = vpack.c.b16 %v2284, %v2283
    %v3127 = vpack.c.b16 %v2286, %v2285
    %v3128 = vpack.c.b16 %v2288, %v2287
    %v3129 = vpack.c.b16 %v2290, %v2289
    %v3130 = vpack.c.b16 %v2292, %v2291
    %v3131 = vpack.c.b16 %v2294, %v2293
    %v3132 = vpack.c.b16 %v2296, %v2295
    %v3133 = vpack.c.b16 %v2298, %v2297
    %v3134 = vpack.c.b16 %v2300, %v2299
    %v3135 = vpack.c.b16 %v2302, %v2301
    %v3136 = vpack.c.b16 %v2304, %v2303
    %v3137 = vpack.c.b16 %v2306, %v2305
    %v3138 = vpack.c.b16 %v2308, %v2307
    %v3139 = vpack.c.b16 %v2310, %v2309
    %v3140 = vpack.c.b16 %v2312, %v2311
    %v3141 = vpack.c.b16 %v2314, %v2313
    %v3142 = vpack.c.b16 %v2316, %v2315
    %v3143 = vpack.c.b16 %v2318, %v2317
    %v3144 = vpack.c.b16 %v2320, %v2319
    %v3145 = vpack.c.b16 %v2322, %v2321
    %v3146 = vpack.c.b16 %v2324, %v2323
    %v3147 = vpack.c.b16 %v2326, %v2325
    %v3148 = vpack.c.b16 %v2328, %v2327
    %v3149 = vpack.c.b16 %v2330, %v2329
    %v3150 = vpack.c.b16 %v2332, %v2331
    %v3151 = vpack.c.b16 %v2334, %v2333
    %v3152 = vpack.c.b16 %v2336, %v2335
    %v3153 = vpack.c.b16 %v2338, %v2337
    %v3154 = vpack.c.b16 %v2340, %v2339
    %v3155 = vpack.c.b16 %v2342, %v2341
    %v3156 = vpack.c.b16 %v2344, %v2343
    %v3157 = vpack.c.b16 %v2346, %v2345
    %v3158 = vpack.c.b16 %v2348, %v2347
    %v3159 = vpack.c.b16 %v2350, %v2349
    %v3160 = vpack.c.b16 %v2352, %v2351
    %v3161 = vpack.c.b16 %v2354, %v2353
    %v3162 = vpack.c.b16 %v2356, %v2355
    %v3163 = vpack.c.b16 %v2358, %v2357
    %v3164 = vpack.c.b16 %v2360, %v2359
    %v3165 = vpack.c.b16 %v2362, %v2361
    %v3166 = vpack.c.b16 %v2364, %v2363
    %v3167 = vpack.c.b16 %v2366, %v2365
    %v3168 = vpack.c.b16 %v2368, %v2367
    %v3169 = vpack.c.b16 %v2370, %v2369
    %v3170 = vpack.c.b16 %v2372, %v2371
    %v3171 = vpack.c.b16 %v2374, %v2373
    %v3172 = vpack.c.b16 %v2376, %v2375
    %v3173 = vpack.c.b16 %v2378, %v2377
    %v3174 = vpack.c.b16 %v2380, %v2379
    %v3175 = vpack.c.b16 %v2382, %v2381
    %v3176 = vpack.c.b16 %v2384, %v2383
    %v3177 = vpack.c.b16 %v2386, %v2385
    %v3178 = vpack.c.b16 %v2388, %v2387
    %v3179 = vpack.c.b16 %v2390, %v2389
    %v3180 = vpack.c.b16 %v2392, %v2391
    %v3181 = vpack.c.b16 %v2394, %v2393
    %v3182 = vpack.c.b16 %v2396, %v2395
    %v3183 = vpack.c.b16 %v2398, %v2397
    %v3184 = vpack.c.b16 %v2400, %v2399
    %v3185 = vpack.c.b16 %v2402, %v2401
    %v3186 = vpack.c.b16 %v2404, %v2403
    %v3187 = vpack.c.b16 %v2406, %v2405
    %v3188 = vpack.c.b16 %v2408, %v2407
    %v3189 = vpack.c.b16 %v2410, %v2409
    %v3190 = vpack.c.b16 %v2412, %v2411
    %v3191 = vpack.c.b16 %v2414, %v2413
    %v3192 = vpack.c.b16 %v2416, %v2415
    %v3193 = vpack.c.b16 %v2418, %v2417
    %v3194 = vpack.c.b16 %v2420, %v2419
    %v3195 = vpack.c.b16 %v2422, %v2421
    %v3196 = vpack.c.b16 %v2424, %v2423
    %v3197 = vpack.c.b16 %v2426, %v2425
    %v3198 = vpack.c.b16 %v2428, %v2427
    %v3199 = vpack.c.b16 %v2430, %v2429
    %v3200 = vpack.c.b16 %v2432, %v2431
    %v3201 = vpack.c.b16 %v2434, %v2433
    %v3202 = vpack.c.b16 %v2436, %v2435
    %v3203 = vpack.c.b16 %v2438, %v2437
    %v3204 = vpack.c.b16 %v2440, %v2439
    %v3205 = vpack.c.b16 %v2442, %v2441
    %v3206 = vpack.c.b16 %v2444, %v2443
    %v3207 = vpack.c.b16 %v2446, %v2445
    %v3208 = vpack.c.b16 %v2448, %v2447
    %v3209 = vpack.c.b16 %v2450, %v2449
    %v3210 = vpack.c.b16 %v2452, %v2451
    %v3211 = vpack.c.b16 %v2454, %v2453
    %v3212 = vpack.c.b16 %v2456, %v2455
    %v3213 = vpack.c.b16 %v2458, %v2457
    %v3214 = vpack.c.b16 %v2460, %v2459
    %v3215 = vpack.c.b16 %v2462, %v2461
    %v3216 = vpack.c.b16 %v2464, %v2463
    %v3217 = vpack.c.b16 %v2466, %v2465
    %v3218 = vpack.c.b16 %v2468, %v2467
    %v3219 = vpack.c.b16 %v2470, %v2469
    %v3220 = vpack.c.b16 %v2472, %v2471
    %v3221 = vpack.c.b16 %v2474, %v2473
    %v3222 = vpack.c.b16 %v2476, %v2475
    %v3223 = vpack.c.b16 %v2478, %v2477
    %v3224 = vpack.c.b16 %v2480, %v2479
    %v3225 = vpack.c.b16 %v2482, %v2481
    %v3226 = vpack.c.b16 %v2484, %v2483
    %v3227 = vpack.c.b16 %v2486, %v2485
    %v3228 = vpack.c.b16 %v2488, %v2487
    %v3229 = vpack.c.b16 %v2490, %v2489
    %v3230 = vpack.c.b16 %v2492, %v2491
    %v3231 = vpack.c.b16 %v2494, %v2493
    %v3232 = vpack.c.b16 %v2496, %v2495
    %v3233 = vpack.c.b16 %v2498, %v2497
    %v3234 = vpack.c.b16 %v2500, %v2499
    %v3235 = vpack.c.b16 %v2502, %v2501
    %v3236 = vpack.c.b16 %v2504, %v2503
    %v3237 = vpack.c.b16 %v2506, %v2505
    %v3238 = vpack.c.b16 %v2508, %v2507
    %v3239 = vpack.c.b16 %v2510, %v2509
    %v3240 = vpack.c.b16 %v2512, %v2511
    %v3241 = vpack.c.b16 %v2514, %v2513
    %v3242 = vpack.c.b16 %v2516, %v2515
    %v3243 = vpack.c.b16 %v2518, %v2517
    %v3244 = vpack.c.b16 %v2520, %v2519
    %v3245 = vpack.c.b16 %v2522, %v2521
    %v3246 = vpack.c.b16 %v2524, %v2523
    %v3247 = vpack.c.b16 %v2526, %v2525
    %v3248 = vpack.c.b16 %v2528, %v2527
    %v3249 = vpack.c.b16 %v2530, %v2529
    %v3250 = vpack.c.b16 %v2532, %v2531
    %v3251 = vpack.c.b16 %v2534, %v2533
    %v3252 = vpack.c.b16 %v2536, %v2535
    %v3253 = vpack.c.b16 %v2538, %v2537
    %v3254 = vpack.c.b16 %v2540, %v2539
    %v3255 = vpack.c.b16 %v2542, %v2541
    %v3256 = vpack.c.b16 %v2544, %v2543
    %v3257 = vpack.c.b16 %v2546, %v2545
    %v3258 = vpack.c.b16 %v2548, %v2547
    %v3259 = vpack.c.b16 %v2550, %v2549
    %v3260 = vpack.c.b16 %v2552, %v2551
    %v3261 = vpack.c.b16 %v2554, %v2553
    %v3262 = vpack.c.b16 %v2556, %v2555
    %v3263 = vpack.c.b16 %v2558, %v2557
    %v3264 = vpack.c.b16 %v2560, %v2559
    %v3265 = vpack.c.b16 %v2562, %v2561
    %v3266 = vpack.c.b16 %v2564, %v2563
    %v3267 = vpack.c.b16 %v2566, %v2565
    %v3268 = vpack.c.b16 %v2568, %v2567
    %v3269 = vpack.c.b16 %v2570, %v2569
    %v3270 = vpack.c.b16 %v2572, %v2571
    %v3271 = vpack.c.b16 %v2574, %v2573
    %v3272 = vpack.c.b16 %v2576, %v2575
    %v3273 = vpack.c.b16 %v2578, %v2577
    %v3274 = vpack.c.b16 %v2580, %v2579
    %v3275 = vpack.c.b16 %v2582, %v2581
    %v3276 = vpack.c.b16 %v2584, %v2583
    %v3277 = vpack.c.b16 %v2586, %v2585
    %v3278 = vpack.c.b16 %v2588, %v2587
    %v3279 = vpack.c.b16 %v2590, %v2589
    %v3280 = vpack.c.b16 %v2592, %v2591
    %v3281 = vpack.c.b16 %v2594, %v2593
    %v3282 = vpack.c.b16 %v2596, %v2595
    %v3283 = vpack.c.b16 %v2598, %v2597
    %v3284 = vpack.c.b16 %v2600, %v2599
    %v3285 = vpack.c.b16 %v2602, %v2601
    %v3286 = vpack.c.b16 %v2604, %v2603
    %v3287 = vpack.c.b16 %v2606, %v2605
    %v3288 = vpack.c.b16 %v2608, %v2607
    %v3289 = vpack.c.b16 %v2610, %v2609
    %v3290 = vpack.c.b16 %v2612, %v2611
    %v3291 = vpack.c.b16 %v2614, %v2613
    %v3292 = vpack.c.b16 %v2616, %v2615
    %v3293 = vpack.c.b16 %v2618, %v2617
    %v3294 = vpack.c.b16 %v2620, %v2619
    %v3295 = vpack.c.b16 %v2622, %v2621
    %v3296 = vpack.c.b16 %v2624, %v2623
    %v3297 = vpack.c.b16 %v2626, %v2625
    %v3298 = vpack.c.b16 %v2628, %v2627
    %v3299 = vpack.c.b16 %v2630, %v2629
    %v3300 = vpack.c.b16 %v2632, %v2631
    %v3301 = vpack.c.b16 %v2634, %v2633
    %v3302 = vpack.c.b16 %v2636, %v2635
    %v3303 = vpack.c.b16 %v2638, %v2637
    %v3304 = vpack.c.b16 %v2640, %v2639
    %v3305 = vpack.c.b16 %v2642, %v2641
    %v3306 = vpack.c.b16 %v2644, %v2643
    %v3307 = vpack.c.b16 %v2646, %v2645
    %v3308 = vpack.c.b16 %v2648, %v2647
    %v3309 = vpack.c.b16 %v2650, %v2649
    %v3310 = vpack.c.b16 %v2652, %v2651
    %v3311 = vpack.c.b16 %v2654, %v2653
    %v3312 = vpack.c.b16 %v2656, %v2655
    %v3313 = vpack.c.b16 %v2658, %v2657
    %v3314 = vpack.c.b16 %v2660, %v2659
    %v3315 = vpack.c.b16 %v2662, %v2661
    %v3316 = vpack.c.b16 %v2664, %v2663
    %v3317 = vpack.c.b16 %v2666, %v2665
    %v3318 = vpack.c.b16 %v2668, %v2667
    %v3319 = vpack.c.b16 %v2670, %v2669
    %v3320 = vpack.c.b16 %v2672, %v2671
    %v3321 = vpack.c.b16 %v2674, %v2673
    %v3322 = vpack.c.b16 %v2676, %v2675
    %v3323 = vpack.c.b16 %v2678, %v2677
    %v3324 = vpack.c.b16 %v2680, %v2679
    %v3325 = vpack.c.b16 %v2682, %v2681
    %v3326 = vpack.c.b16 %v2684, %v2683
    %v3327 = vpack.c.b16 %v2686, %v2685
    %v3328 = vpack.c.b16 %v2688, %v2687
    %v3329 = vpack.c.b16 %v2690, %v2689
    %v3330 = vpack.c.b16 %v2692, %v2691
    %v3331 = vpack.c.b16 %v2694, %v2693
    %v3332 = vpack.c.b16 %v2696, %v2695
    %v3333 = vpack.c.b16 %v2698, %v2697
    %v3334 = vpack.c.b16 %v2700, %v2699
    %v3335 = vpack.c.b16 %v2702, %v2701
    %v3336 = vpack.c.b16 %v2704, %v2703
    %v3337 = vpack.c.b16 %v2706, %v2705
    %v3338 = vpack.c.b16 %v2708, %v2707
    %v3339 = vpack.c.b16 %v2710, %v2709
    %v3340 = vpack.c.b16 %v2712, %v2711
    %v3341 = vpack.c.b16 %v2714, %v2713
    %v3342 = vpack.c.b16 %v2716, %v2715
    %v3343 = vpack.c.b16 %v2718, %v2717
    %v3344 = vpack.c.b16 %v2720, %v2719
    %v3345 = vpack.c.b16 %v2722, %v2721
    %v3346 = vpack.c.b16 %v2724, %v2723
    %v3347 = vpack.c.b16 %v2726, %v2725
    %v3348 = vpack.c.b16 %v2728, %v2727
    %v3349 = vpack.c.b16 %v2730, %v2729
    %v3350 = vpack.c.b16 %v2732, %v2731
    %v3351 = vpack.c.b16 %v2734, %v2733
    %v3352 = vpack.c.b16 %v2736, %v2735
    %v3353 = vpack.c.b16 %v2738, %v2737
    %v3354 = vpack.c.b16 %v2740, %v2739
    %v3355 = vpack.c.b16 %v2742, %v2741
    %v3356 = vpack.c.b16 %v2744, %v2743
    %v3357 = vpack.c.b16 %v2746, %v2745
    %v3358 = vpack.c.b16 %v2748, %v2747
    %v3359 = vpack.c.b16 %v2750, %v2749
    %v3360 = vpack.c.b16 %v2752, %v2751
    %v3361 = vpack.c.b16 %v2754, %v2753
    %v3362 = vpack.c.b16 %v2756, %v2755
    %v3363 = vpack.c.b16 %v2758, %v2757
    %v3364 = vpack.c.b16 %v2760, %v2759
    %v3365 = vpack.c.b16 %v2762, %v2761
    %v3366 = vpack.c.b16 %v2764, %v2763
    %v3367 = vpack.c.b16 %v2766, %v2765
    %v3368 = vpack.c.b16 %v2768, %v2767
    %v3369 = vpack.c.b16 %v2770, %v2769
    %v3370 = vpack.c.b16 %v2772, %v2771
    %v3371 = vpack.c.b16 %v2774, %v2773
    %v3372 = vpack.c.b16 %v2776, %v2775
    %v3373 = vpack.c.b16 %v2778, %v2777
    %v3374 = vpack.c.b16 %v2780, %v2779
    %v3375 = vpack.c.b16 %v2782, %v2781
    %v3376 = vpack.c.b16 %v2784, %v2783
    %v3377 = vpack.c.b16 %v2786, %v2785
    %v3378 = vpack.c.b16 %v2788, %v2787
    %v3379 = vpack.c.b16 %v2790, %v2789
    %v3380 = vpack.c.b16 %v2792, %v2791
    %v3381 = vpack.c.b16 %v2794, %v2793
    %v3382 = vpack.c.b16 %v2796, %v2795
    %v3383 = vpack.c.b16 %v2798, %v2797
    %v3384 = vpack.c.b16 %v2800, %v2799
    %v3385 = vpack.c.b16 %v2802, %v2801
    %v3386 = vpack.c.b16 %v2804, %v2803
    %v3387 = vpack.c.b16 %v2806, %v2805
    %v3388 = vpack.c.b16 %v2808, %v2807
    %v3389 = vpack.c.b16 %v2810, %v2809
    %v3390 = vpack.c.b16 %v2812, %v2811
    %v3391 = vpack.c.b16 %v2814, %v2813
    %v3392 = vpack.c.b16 %v2816, %v2815
    %v3393 = vpack.c.b16 %v2818, %v2817
    %v3394 = vpack.c.b16 %v2820, %v2819
    %v3395 = vpack.c.b16 %v2822, %v2821
    %v3396 = vpack.c.b16 %v2824, %v2823
    %v3397 = vpack.c.b16 %v2826, %v2825
    %v3398 = vpack.c.b16 %v2828, %v2827
    %v3399 = vpack.c.b16 %v2830, %v2829
    %v3400 = vpack.c.b16 %v2832, %v2831
    %v3401 = vpack.c.b16 %v2834, %v2833
    %v3402 = vpack.c.b16 %v2836, %v2835
    %v3403 = vpack.c.b16 %v2838, %v2837
    %v3404 = vpack.c.b16 %v2840, %v2839
    %v3405 = vpack.c.b16 %v2842, %v2841
    %v3406 = vpack.c.b16 %v2844, %v2843
    %v3407 = vpack.c.b16 %v2846, %v2845
    %v3408 = vpack.c.b16 %v2848, %v2847
    %v3409 = vpack.c.b16 %v2850, %v2849
    %v3410 = vpack.c.b16 %v2852, %v2851
    %v3411 = vpack.c.b16 %v2854, %v2853
    %v3412 = vpack.c.b16 %v2856, %v2855
    %v3413 = vpack.c.b16 %v2858, %v2857
    %v3414 = vpack.c.b16 %v2860, %v2859
    %v3415 = vpack.c.b16 %v2862, %v2861
    %v3416 = vpack.c.b16 %v2864, %v2863
    %v3417 = vpack.c.b16 %v2866, %v2865
    %v3418 = vpack.c.b16 %v2868, %v2867
    %v3419 = vpack.c.b16 %v2870, %v2869
    %v3420 = vpack.c.b16 %v2872, %v2871
    %v3421 = vpack.c.b16 %v2874, %v2873
    %v3422 = vpack.c.b16 %v2876, %v2875
    %v3423 = vpack.c.b16 %v2878, %v2877
    %v3424 = vpack.c.b16 %v2880, %v2879
    %v3425 = vpack.c.b16 %v2882, %v2881
    %v3426 = vpack.c.b16 %v2884, %v2883
    %v3427 = vpack.c.b16 %v2886, %v2885
    %v3428 = vpack.c.b16 %v2888, %v2887
    %v3429 = vpack.c.b16 %v2890, %v2889
    %v3430 = vpack.c.b16 %v2892, %v2891
    %v3431 = vpack.c.b16 %v2894, %v2893
    %v3432 = vpack.c.b16 %v2896, %v2895
    %v3433 = vpack.c.b16 %v2898, %v2897
    %v3434 = vpack.c.b16 %v2900, %v2899
    %v3435 = vpack.c.b16 %v2902, %v2901
    %v3436 = vpack.c.b16 %v2904, %v2903
    %v3437 = vpack.c.b16 %v2906, %v2905
    %v3438 = vpack.c.b16 %v2908, %v2907
    %v3439 = vpack.c.b16 %v2910, %v2909
    %v3440 = vpack.c.b16 %v2912, %v2911
    %v3441 = vpack.c.b16 %v2914, %v2913
    %v3442 = vpack.c.b16 %v2916, %v2915
    %v3443 = vpack.c.b16 %v2918, %v2917
    %v3444 = vpack.c.b16 %v2920, %v2919
    %v3445 = vpack.c.b16 %v2922, %v2921
    %v3446 = vpack.c.b16 %v2924, %v2923
    %v3447 = vpack.c.b16 %v2926, %v2925
    %v3448 = vpack.c.b16 %v2928, %v2927
    %v3449 = vpack.c.b16 %v2930, %v2929
    %v3450 = vpack.c.b16 %v2932, %v2931
    %v3451 = vpack.c.b16 %v2934, %v2933
    %v3452 = vpack.c.b16 %v2936, %v2935
    %v3453 = vpack.c.b16 %v2938, %v2937
    %v3454 = vpack.c.b16 %v2940, %v2939
    %v3455 = vpack.c.b16 %v2942, %v2941
    %v3456 = vpack.c.b16 %v2944, %v2943
    %v3457 = vpack.c.b16 %v2946, %v2945
    %v3458 = vpack.c.b16 %v2948, %v2947
    %v3459 = vpack.c.b16 %v2950, %v2949
    %v3460 = vpack.c.b16 %v2952, %v2951
    %v3461 = vpack.c.b16 %v2954, %v2953
    %v3462 = vpack.c.b16 %v2956, %v2955
    %v3463 = vpack.c.b16 %v2958, %v2957
    %v3464 = vpack.c.b16 %v2960, %v2959
    %v3465 = vpack.c.b16 %v2962, %v2961
    %v3466 = vpack.c.b16 %v2964, %v2963
    %v3467 = vpack.c.b16 %v2966, %v2965
    %v3468 = vpack.c.b16 %v2968, %v2967
    %v3469 = vpack.c.b16 %v2970, %v2969
    %v3470 = vpack.c.b16 %v2972, %v2971
    %v3471 = vpack.c.b16 %v2974, %v2973
    %v3472 = vpack.c.b16 %v2976, %v2975
    %v3473 = vpack.c.b16 %v2978, %v2977
    %v3474 = vpack.c.b16 %v2980, %v2979
    %v3475 = vpack.c.b16 %v2982, %v2981
    %v3476 = vpack.c.b16 %v2984, %v2983
    %v3477 = vpack.c.b16 %v2986, %v2985
    %v3478 = vpack.c.b16 %v2988, %v2987
    %v3479 = vpack.c.b16 %v2990, %v2989
    %v3480 = vpack.c.b16 %v2992, %v2991
    %v3481 = vpack.c.b16 %v2994, %v2993
    %v3482 = vpack.c.b16 %v2996, %v2995
    %v3483 = vpack.c.b16 %v2998, %v2997
    %v3484 = vpack.c.b16 %v3000, %v2999
    %v3485 = vpack.c.b16 %v3002, %v3001
    %v3486 = vpack.c.b16 %v3004, %v3003
    %v3487 = vpack.c.b16 %v3006, %v3005
    %v3488 = vpack.c.b16 %v3008, %v3007
    %v3489 = vpack.c.b16 %v3010, %v3009
    %v3490 = vpack.c.b16 %v3012, %v3011
    %v3491 = vpack.c.b16 %v3014, %v3013
    %v3492 = vpack.c.b16 %v3016, %v3015
    %v3493 = vpack.c.b16 %v3018, %v3017
    %v3494 = vpack.c.b16 %v3020, %v3019
    %v3495 = vpack.c.b16 %v3022, %v3021
    %v3496 = vpack.c.b16 %v3024, %v3023
    %v3497 = vpack.c.b16 %v3026, %v3025
    %v3498 = vpack.c.b16 %v3028, %v3027
    %v3499 = vpack.c.b16 %v3030, %v3029
    %v3500 = vpack.c.b16 %v3032, %v3031
    %v3501 = vpack.c.b16 %v3034, %v3033
    %v3502 = vpack.c.b16 %v3036, %v3035
    %v3503 = vpack.c.b16 %v3038, %v3037
    %v3504 = vpack.c.b16 %v3040, %v3039
    %v3505 = vpack.c.b16 %v3042, %v3041
    %v3506 = vpack.c.b16 %v3044, %v3043
    %v3507 = vpack.c.b16 %v3046, %v3045
    %v3508 = vpack.c.b16 %v3048, %v3047
    %v3509 = vpack.c.b16 %v3050, %v3049
    %v3510 = vpack.c.b16 %v3052, %v3051
    %v3511 = vpack.c.b16 %v3054, %v3053
    %v3512 = vpack.c.b16 %v3056, %v3055
    %v3513 = vpack.c.b16 %v3058, %v3057
    %v3514 = vpack.c.b16 %v3060, %v3059
    %v3515 = vpack.c.b16 %v3062, %v3061
    %v3516 = vpack.c.b16 %v3064, %v3063
    %v3517 = vpack.c.b16 %v3066, %v3065
    %v3518 = vpack.c.b16 %v3068, %v3067
    %v3519 = vpack.c.b16 %v3070, %v3069
    %v3520 = vpack.c.b16 %v3072, %v3071
    %v3521 = vpack.c.b16 %v3074, %v3073
    %v3522 = vpack.c.b16 %v3076, %v3075
    %v3523 = vpack.c.b16 %v3078, %v3077
    %v3524 = vpack.c.b16 %v3080, %v3079
    %v3525 = vpack.c.b16 %v3082, %v3081
    %v3526 = vpack.c.b16 %v3084, %v3083
    %v3527 = vpack.c.b16 %v3086, %v3085
    %vm3969 = vcmask 130048
    %v3971 = vsel %vm3969, %v1267, 0
    %3973 = vmatprep.subr.bf16.mxu0 0
    %3974 = vmatpush1.bf16.msra.mxu0 %v3094
    %3975 = vmatprep.subr.bf16.mxu0 0
    %3976 = vmatpush1.bf16.msra.mxu0 %v3093
    %3977 = vmatprep.subr.bf16.mxu0 0
    %3978 = vmatpush1.bf16.msra.mxu0 %v3092
    %3979 = vmatprep.subr.bf16.mxu0 0
    %3980 = vmatpush1.bf16.msra.mxu0 %v3091
    %3981 = vmatprep.subr.bf16.mxu0 0
    %3982 = vmatpush1.bf16.msra.mxu0 %v3090
    %3983 = vmatprep.subr.bf16.mxu0 0
    %3984 = vmatpush1.bf16.msra.mxu0 %v3089
    %3985 = vmatprep.subr.bf16.mxu0 0
    %3986 = vmatpush1.bf16.msra.mxu0 %v3088
    %3987 = vmatprep.subr.bf16.mxu0 0
    %3988 = vmatpush1.bf16.msra.mxu0 %v3087
    %3989 = vmatprep.subr.bf16.mxu0 0
    %3990 = vmatpush2.bf16.msra.mxu0 %v3102
    %3991 = vmatprep.subr.bf16.mxu0 0
    %3992 = vmatpush2.bf16.msra.mxu0 %v3101
    %3993 = vmatprep.subr.bf16.mxu0 0
    %3994 = vmatpush2.bf16.msra.mxu0 %v3100
    %3995 = vmatprep.subr.bf16.mxu0 0
    %3996 = vmatpush2.bf16.msra.mxu0 %v3099
    %3997 = vmatprep.subr.bf16.mxu0 0
    %3998 = vmatpush2.bf16.msra.mxu0 %v3098
    %3999 = vmatprep.subr.bf16.mxu0 0
    %4000 = vmatpush2.bf16.msra.mxu0 %v3097
    %4001 = vmatprep.subr.bf16.mxu0 0
    %4002 = vmatpush2.bf16.msra.mxu0 %v3096
    %4003 = vmatprep.subr.bf16.mxu0 0
    %4004 = vmatpush2.bf16.msra.mxu0 %v3095
    %4005 = vmatprep.mubr.bf16.mxu0 %v962
    %4006 = vmatmul.mubr.bf16.gmra.mxu0 %v948
    %v4007 = vpop.f32.mrf.mxu0
    %v4008 = vadd.f32 %v916, %v4007
    %v4009 = vpop.f32.mrf.mxu0
    %v4010 = vpop.f32.mrf.mxu0
    %v4011 = vpop.f32.mrf.mxu0
    %4012 = vdwg.mxu0
    %4013 = vmatprep.subr.bf16.mxu0 0
    %4014 = vmatpush1.bf16.msra.mxu0 %v3110
    %4015 = vmatprep.subr.bf16.mxu0 0
    %4016 = vmatpush1.bf16.msra.mxu0 %v3109
    %4017 = vmatprep.subr.bf16.mxu0 0
    %4018 = vmatpush1.bf16.msra.mxu0 %v3108
    %4019 = vmatprep.subr.bf16.mxu0 0
    %4020 = vmatpush1.bf16.msra.mxu0 %v3107
    %4021 = vmatprep.subr.bf16.mxu0 0
    %4022 = vmatpush1.bf16.msra.mxu0 %v3106
    %4023 = vmatprep.subr.bf16.mxu0 0
    %4024 = vmatpush1.bf16.msra.mxu0 %v3105
    %4025 = vmatprep.subr.bf16.mxu0 0
    %4026 = vmatpush1.bf16.msra.mxu0 %v3104
    %4027 = vmatprep.subr.bf16.mxu0 0
    %4028 = vmatpush1.bf16.msra.mxu0 %v3103
    %4029 = vmatprep.subr.bf16.mxu0 0
    %4030 = vmatpush2.bf16.msra.mxu0 %v3118
    %4031 = vmatprep.subr.bf16.mxu0 0
    %4032 = vmatpush2.bf16.msra.mxu0 %v3117
    %4033 = vmatprep.subr.bf16.mxu0 0
    %4034 = vmatpush2.bf16.msra.mxu0 %v3116
    %4035 = vmatprep.subr.bf16.mxu0 0
    %4036 = vmatpush2.bf16.msra.mxu0 %v3115
    %4037 = vmatprep.subr.bf16.mxu0 0
    %4038 = vmatpush2.bf16.msra.mxu0 %v3114
    %4039 = vmatprep.subr.bf16.mxu0 0
    %4040 = vmatpush2.bf16.msra.mxu0 %v3113
    %4041 = vmatprep.subr.bf16.mxu0 0
    %4042 = vmatpush2.bf16.msra.mxu0 %v3112
    %4043 = vmatprep.subr.bf16.mxu0 0
    %4044 = vmatpush2.bf16.msra.mxu0 %v3111
    %4045 = vmatprep.mubr.bf16.mxu0 %v972
    %4046 = vmatmul.mubr.bf16.gmra.mxu0 %v970
    %v4047 = vpop.f32.mrf.mxu0
    %v4048 = vadd.f32 %v4008, %v4047
    %v4049 = vpop.f32.mrf.mxu0
    %v4050 = vpop.f32.mrf.mxu0
    %v4051 = vpop.f32.mrf.mxu0
    %4052 = vdwg.mxu0
    %4053 = vmatprep.subr.bf16.mxu0 0
    %4054 = vmatpush1.bf16.msra.mxu0 %v3126
    %4055 = vmatprep.subr.bf16.mxu0 0
    %4056 = vmatpush1.bf16.msra.mxu0 %v3125
    %4057 = vmatprep.subr.bf16.mxu0 0
    %4058 = vmatpush1.bf16.msra.mxu0 %v3124
    %4059 = vmatprep.subr.bf16.mxu0 0
    %4060 = vmatpush1.bf16.msra.mxu0 %v3123
    %4061 = vmatprep.subr.bf16.mxu0 0
    %4062 = vmatpush1.bf16.msra.mxu0 %v3122
    %4063 = vmatprep.subr.bf16.mxu0 0
    %4064 = vmatpush1.bf16.msra.mxu0 %v3121
    %4065 = vmatprep.subr.bf16.mxu0 0
    %4066 = vmatpush1.bf16.msra.mxu0 %v3120
    %4067 = vmatprep.subr.bf16.mxu0 0
    %4068 = vmatpush1.bf16.msra.mxu0 %v3119
    %4069 = vmatprep.subr.bf16.mxu0 0
    %4070 = vmatpush2.bf16.msra.mxu0 %v3134
    %4071 = vmatprep.subr.bf16.mxu0 0
    %4072 = vmatpush2.bf16.msra.mxu0 %v3133
    %4073 = vmatprep.subr.bf16.mxu0 0
    %4074 = vmatpush2.bf16.msra.mxu0 %v3132
    %4075 = vmatprep.subr.bf16.mxu0 0
    %4076 = vmatpush2.bf16.msra.mxu0 %v3131
    %4077 = vmatprep.subr.bf16.mxu0 0
    %4078 = vmatpush2.bf16.msra.mxu0 %v3130
    %4079 = vmatprep.subr.bf16.mxu0 0
    %4080 = vmatpush2.bf16.msra.mxu0 %v3129
    %4081 = vmatprep.subr.bf16.mxu0 0
    %4082 = vmatpush2.bf16.msra.mxu0 %v3128
    %4083 = vmatprep.subr.bf16.mxu0 0
    %4084 = vmatpush2.bf16.msra.mxu0 %v3127
    %4085 = vmatprep.mubr.bf16.mxu0 %v969
    %4086 = vmatmul.mubr.bf16.gmra.mxu0 %v955
    %v4087 = vpop.f32.mrf.mxu0
    %v4088 = vadd.f32 %v4048, %v4087
    %v4089 = vpop.f32.mrf.mxu0
    %v4090 = vpop.f32.mrf.mxu0
    %v4091 = vpop.f32.mrf.mxu0
    %4092 = vdwg.mxu0
    %4093 = vmatprep.subr.bf16.mxu0 0
    %4094 = vmatpush1.bf16.msra.mxu0 %v3142
    %4095 = vmatprep.subr.bf16.mxu0 0
    %4096 = vmatpush1.bf16.msra.mxu0 %v3141
    %4097 = vmatprep.subr.bf16.mxu0 0
    %4098 = vmatpush1.bf16.msra.mxu0 %v3140
    %4099 = vmatprep.subr.bf16.mxu0 0
    %4100 = vmatpush1.bf16.msra.mxu0 %v3139
    %4101 = vmatprep.subr.bf16.mxu0 0
    %4102 = vmatpush1.bf16.msra.mxu0 %v3138
    %4103 = vmatprep.subr.bf16.mxu0 0
    %4104 = vmatpush1.bf16.msra.mxu0 %v3137
    %4105 = vmatprep.subr.bf16.mxu0 0
    %4106 = vmatpush1.bf16.msra.mxu0 %v3136
    %4107 = vmatprep.subr.bf16.mxu0 0
    %4108 = vmatpush1.bf16.msra.mxu0 %v3135
    %4109 = vmatprep.subr.bf16.mxu0 0
    %4110 = vmatpush2.bf16.msra.mxu0 %v3150
    %4111 = vmatprep.subr.bf16.mxu0 0
    %4112 = vmatpush2.bf16.msra.mxu0 %v3149
    %4113 = vmatprep.subr.bf16.mxu0 0
    %4114 = vmatpush2.bf16.msra.mxu0 %v3148
    %4115 = vmatprep.subr.bf16.mxu0 0
    %4116 = vmatpush2.bf16.msra.mxu0 %v3147
    %4117 = vmatprep.subr.bf16.mxu0 0
    %4118 = vmatpush2.bf16.msra.mxu0 %v3146
    %4119 = vmatprep.subr.bf16.mxu0 0
    %4120 = vmatpush2.bf16.msra.mxu0 %v3145
    %4121 = vmatprep.subr.bf16.mxu0 0
    %4122 = vmatpush2.bf16.msra.mxu0 %v3144
    %4123 = vmatprep.subr.bf16.mxu0 0
    %4124 = vmatpush2.bf16.msra.mxu0 %v3143
    %4125 = vmatprep.mubr.bf16.mxu0 %v973
    %4126 = vmatmul.mubr.bf16.gmra.mxu0 %v971
    %v4127 = vpop.f32.mrf.mxu0
    %v4128 = vadd.f32 %v4088, %v4127
    %v4129 = vpop.f32.mrf.mxu0
    %v4130 = vpop.f32.mrf.mxu0
    %v4131 = vpop.f32.mrf.mxu0
    %4132 = vdwg.mxu0
    %4133 = vmatprep.subr.bf16.mxu0 0
    %4134 = vmatpush1.bf16.msra.mxu0 %v3158
    %4135 = vmatprep.subr.bf16.mxu0 0
    %4136 = vmatpush1.bf16.msra.mxu0 %v3157
    %4137 = vmatprep.subr.bf16.mxu0 0
    %4138 = vmatpush1.bf16.msra.mxu0 %v3156
    %4139 = vmatprep.subr.bf16.mxu0 0
    %4140 = vmatpush1.bf16.msra.mxu0 %v3155
    %4141 = vmatprep.subr.bf16.mxu0 0
    %4142 = vmatpush1.bf16.msra.mxu0 %v3154
    %4143 = vmatprep.subr.bf16.mxu0 0
    %4144 = vmatpush1.bf16.msra.mxu0 %v3153
    %4145 = vmatprep.subr.bf16.mxu0 0
    %4146 = vmatpush1.bf16.msra.mxu0 %v3152
    %4147 = vmatprep.subr.bf16.mxu0 0
    %4148 = vmatpush1.bf16.msra.mxu0 %v3151
    %4149 = vmatprep.subr.bf16.mxu0 0
    %4150 = vmatpush2.bf16.msra.mxu0 %v3166
    %4151 = vmatprep.subr.bf16.mxu0 0
    %4152 = vmatpush2.bf16.msra.mxu0 %v3165
    %4153 = vmatprep.subr.bf16.mxu0 0
    %4154 = vmatpush2.bf16.msra.mxu0 %v3164
    %4155 = vmatprep.subr.bf16.mxu0 0
    %4156 = vmatpush2.bf16.msra.mxu0 %v3163
    %4157 = vmatprep.subr.bf16.mxu0 0
    %4158 = vmatpush2.bf16.msra.mxu0 %v3162
    %4159 = vmatprep.subr.bf16.mxu0 0
    %4160 = vmatpush2.bf16.msra.mxu0 %v3161
    %4161 = vmatprep.subr.bf16.mxu0 0
    %4162 = vmatpush2.bf16.msra.mxu0 %v3160
    %4163 = vmatprep.subr.bf16.mxu0 0
    %4164 = vmatpush2.bf16.msra.mxu0 %v3159
    %4165 = vmatprep.mubr.bf16.mxu0 %v1011
    %4166 = vmatmul.mubr.bf16.gmra.mxu0 %v997
    %v4167 = vpop.f32.mrf.mxu0
    %v4168 = vadd.f32 %v4128, %v4167
    %v4169 = vpop.f32.mrf.mxu0
    %v4170 = vpop.f32.mrf.mxu0
    %v4171 = vpop.f32.mrf.mxu0
    %4172 = vdwg.mxu0
    %4173 = vmatprep.subr.bf16.mxu0 0
    %4174 = vmatpush1.bf16.msra.mxu0 %v3174
    %4175 = vmatprep.subr.bf16.mxu0 0
    %4176 = vmatpush1.bf16.msra.mxu0 %v3173
    %4177 = vmatprep.subr.bf16.mxu0 0
    %4178 = vmatpush1.bf16.msra.mxu0 %v3172
    %4179 = vmatprep.subr.bf16.mxu0 0
    %4180 = vmatpush1.bf16.msra.mxu0 %v3171
    %4181 = vmatprep.subr.bf16.mxu0 0
    %4182 = vmatpush1.bf16.msra.mxu0 %v3170
    %4183 = vmatprep.subr.bf16.mxu0 0
    %4184 = vmatpush1.bf16.msra.mxu0 %v3169
    %4185 = vmatprep.subr.bf16.mxu0 0
    %4186 = vmatpush1.bf16.msra.mxu0 %v3168
    %4187 = vmatprep.subr.bf16.mxu0 0
    %4188 = vmatpush1.bf16.msra.mxu0 %v3167
    %4189 = vmatprep.subr.bf16.mxu0 0
    %4190 = vmatpush2.bf16.msra.mxu0 %v3182
    %4191 = vmatprep.subr.bf16.mxu0 0
    %4192 = vmatpush2.bf16.msra.mxu0 %v3181
    %4193 = vmatprep.subr.bf16.mxu0 0
    %4194 = vmatpush2.bf16.msra.mxu0 %v3180
    %4195 = vmatprep.subr.bf16.mxu0 0
    %4196 = vmatpush2.bf16.msra.mxu0 %v3179
    %4197 = vmatprep.subr.bf16.mxu0 0
    %4198 = vmatpush2.bf16.msra.mxu0 %v3178
    %4199 = vmatprep.subr.bf16.mxu0 0
    %4200 = vmatpush2.bf16.msra.mxu0 %v3177
    %4201 = vmatprep.subr.bf16.mxu0 0
    %4202 = vmatpush2.bf16.msra.mxu0 %v3176
    %4203 = vmatprep.subr.bf16.mxu0 0
    %4204 = vmatpush2.bf16.msra.mxu0 %v3175
    %4205 = vmatprep.mubr.bf16.mxu0 %v1021
    %4206 = vmatmul.mubr.bf16.gmra.mxu0 %v1019
    %v4207 = vpop.f32.mrf.mxu0
    %v4208 = vadd.f32 %v4168, %v4207
    %v4209 = vpop.f32.mrf.mxu0
    %v4210 = vpop.f32.mrf.mxu0
    %v4211 = vpop.f32.mrf.mxu0
    %4212 = vdwg.mxu0
    %4213 = vmatprep.subr.bf16.mxu0 0
    %4214 = vmatpush1.bf16.msra.mxu0 %v3190
    %4215 = vmatprep.subr.bf16.mxu0 0
    %4216 = vmatpush1.bf16.msra.mxu0 %v3189
    %4217 = vmatprep.subr.bf16.mxu0 0
    %4218 = vmatpush1.bf16.msra.mxu0 %v3188
    %4219 = vmatprep.subr.bf16.mxu0 0
    %4220 = vmatpush1.bf16.msra.mxu0 %v3187
    %4221 = vmatprep.subr.bf16.mxu0 0
    %4222 = vmatpush1.bf16.msra.mxu0 %v3186
    %4223 = vmatprep.subr.bf16.mxu0 0
    %4224 = vmatpush1.bf16.msra.mxu0 %v3185
    %4225 = vmatprep.subr.bf16.mxu0 0
    %4226 = vmatpush1.bf16.msra.mxu0 %v3184
    %4227 = vmatprep.subr.bf16.mxu0 0
    %4228 = vmatpush1.bf16.msra.mxu0 %v3183
    %4229 = vmatprep.subr.bf16.mxu0 0
    %4230 = vmatpush2.bf16.msra.mxu0 %v3198
    %4231 = vmatprep.subr.bf16.mxu0 0
    %4232 = vmatpush2.bf16.msra.mxu0 %v3197
    %4233 = vmatprep.subr.bf16.mxu0 0
    %4234 = vmatpush2.bf16.msra.mxu0 %v3196
    %4235 = vmatprep.subr.bf16.mxu0 0
    %4236 = vmatpush2.bf16.msra.mxu0 %v3195
    %4237 = vmatprep.subr.bf16.mxu0 0
    %4238 = vmatpush2.bf16.msra.mxu0 %v3194
    %4239 = vmatprep.subr.bf16.mxu0 0
    %4240 = vmatpush2.bf16.msra.mxu0 %v3193
    %4241 = vmatprep.subr.bf16.mxu0 0
    %4242 = vmatpush2.bf16.msra.mxu0 %v3192
    %4243 = vmatprep.subr.bf16.mxu0 0
    %4244 = vmatpush2.bf16.msra.mxu0 %v3191
    %4245 = vmatprep.mubr.bf16.mxu0 %v1018
    %4246 = vmatmul.mubr.bf16.gmra.mxu0 %v1004
    %v4247 = vpop.f32.mrf.mxu0
    %v4248 = vadd.f32 %v4208, %v4247
    %v4249 = vpop.f32.mrf.mxu0
    %v4250 = vpop.f32.mrf.mxu0
    %v4251 = vpop.f32.mrf.mxu0
    %4252 = vdwg.mxu0
    %4253 = vmatprep.subr.bf16.mxu0 0
    %4254 = vmatpush1.bf16.msra.mxu0 %v3206
    %4255 = vmatprep.subr.bf16.mxu0 0
    %4256 = vmatpush1.bf16.msra.mxu0 %v3205
    %4257 = vmatprep.subr.bf16.mxu0 0
    %4258 = vmatpush1.bf16.msra.mxu0 %v3204
    %4259 = vmatprep.subr.bf16.mxu0 0
    %4260 = vmatpush1.bf16.msra.mxu0 %v3203
    %4261 = vmatprep.subr.bf16.mxu0 0
    %4262 = vmatpush1.bf16.msra.mxu0 %v3202
    %4263 = vmatprep.subr.bf16.mxu0 0
    %4264 = vmatpush1.bf16.msra.mxu0 %v3201
    %4265 = vmatprep.subr.bf16.mxu0 0
    %4266 = vmatpush1.bf16.msra.mxu0 %v3200
    %4267 = vmatprep.subr.bf16.mxu0 0
    %4268 = vmatpush1.bf16.msra.mxu0 %v3199
    %4269 = vmatprep.subr.bf16.mxu0 0
    %4270 = vmatpush2.bf16.msra.mxu0 %v3214
    %4271 = vmatprep.subr.bf16.mxu0 0
    %4272 = vmatpush2.bf16.msra.mxu0 %v3213
    %4273 = vmatprep.subr.bf16.mxu0 0
    %4274 = vmatpush2.bf16.msra.mxu0 %v3212
    %4275 = vmatprep.subr.bf16.mxu0 0
    %4276 = vmatpush2.bf16.msra.mxu0 %v3211
    %4277 = vmatprep.subr.bf16.mxu0 0
    %4278 = vmatpush2.bf16.msra.mxu0 %v3210
    %4279 = vmatprep.subr.bf16.mxu0 0
    %4280 = vmatpush2.bf16.msra.mxu0 %v3209
    %4281 = vmatprep.subr.bf16.mxu0 0
    %4282 = vmatpush2.bf16.msra.mxu0 %v3208
    %4283 = vmatprep.subr.bf16.mxu0 0
    %4284 = vmatpush2.bf16.msra.mxu0 %v3207
    %4285 = vmatprep.mubr.bf16.mxu0 %v1022
    %4286 = vmatmul.mubr.bf16.gmra.mxu0 %v1020
    %v4287 = vpop.f32.mrf.mxu0
    %v4288 = vadd.f32 %v4248, %v4287
    %v4289 = vpop.f32.mrf.mxu0
    %v4290 = vpop.f32.mrf.mxu0
    %v4291 = vpop.f32.mrf.mxu0
    %4292 = vdwg.mxu0
    %4293 = vmatprep.subr.bf16.mxu0 0
    %4294 = vmatpush1.bf16.msra.mxu0 %v3222
    %4295 = vmatprep.subr.bf16.mxu0 0
    %4296 = vmatpush1.bf16.msra.mxu0 %v3221
    %4297 = vmatprep.subr.bf16.mxu0 0
    %4298 = vmatpush1.bf16.msra.mxu0 %v3220
    %4299 = vmatprep.subr.bf16.mxu0 0
    %4300 = vmatpush1.bf16.msra.mxu0 %v3219
    %4301 = vmatprep.subr.bf16.mxu0 0
    %4302 = vmatpush1.bf16.msra.mxu0 %v3218
    %4303 = vmatprep.subr.bf16.mxu0 0
    %4304 = vmatpush1.bf16.msra.mxu0 %v3217
    %4305 = vmatprep.subr.bf16.mxu0 0
    %4306 = vmatpush1.bf16.msra.mxu0 %v3216
    %4307 = vmatprep.subr.bf16.mxu0 0
    %4308 = vmatpush1.bf16.msra.mxu0 %v3215
    %4309 = vmatprep.subr.bf16.mxu0 0
    %4310 = vmatpush2.bf16.msra.mxu0 %v3230
    %4311 = vmatprep.subr.bf16.mxu0 0
    %4312 = vmatpush2.bf16.msra.mxu0 %v3229
    %4313 = vmatprep.subr.bf16.mxu0 0
    %4314 = vmatpush2.bf16.msra.mxu0 %v3228
    %4315 = vmatprep.subr.bf16.mxu0 0
    %4316 = vmatpush2.bf16.msra.mxu0 %v3227
    %4317 = vmatprep.subr.bf16.mxu0 0
    %4318 = vmatpush2.bf16.msra.mxu0 %v3226
    %4319 = vmatprep.subr.bf16.mxu0 0
    %4320 = vmatpush2.bf16.msra.mxu0 %v3225
    %4321 = vmatprep.subr.bf16.mxu0 0
    %4322 = vmatpush2.bf16.msra.mxu0 %v3224
    %4323 = vmatprep.subr.bf16.mxu0 0
    %4324 = vmatpush2.bf16.msra.mxu0 %v3223
    %4325 = vmatprep.mubr.bf16.mxu0 %v1060
    %4326 = vmatmul.mubr.bf16.gmra.mxu0 %v1046
    %v4327 = vpop.f32.mrf.mxu0
    %v4328 = vadd.f32 %v4288, %v4327
    %v4329 = vpop.f32.mrf.mxu0
    %v4330 = vpop.f32.mrf.mxu0
    %v4331 = vpop.f32.mrf.mxu0
    %4332 = vdwg.mxu0
    %4333 = vmatprep.subr.bf16.mxu0 0
    %4334 = vmatpush1.bf16.msra.mxu0 %v3238
    %4335 = vmatprep.subr.bf16.mxu0 0
    %4336 = vmatpush1.bf16.msra.mxu0 %v3237
    %4337 = vmatprep.subr.bf16.mxu0 0
    %4338 = vmatpush1.bf16.msra.mxu0 %v3236
    %4339 = vmatprep.subr.bf16.mxu0 0
    %4340 = vmatpush1.bf16.msra.mxu0 %v3235
    %4341 = vmatprep.subr.bf16.mxu0 0
    %4342 = vmatpush1.bf16.msra.mxu0 %v3234
    %4343 = vmatprep.subr.bf16.mxu0 0
    %4344 = vmatpush1.bf16.msra.mxu0 %v3233
    %4345 = vmatprep.subr.bf16.mxu0 0
    %4346 = vmatpush1.bf16.msra.mxu0 %v3232
    %4347 = vmatprep.subr.bf16.mxu0 0
    %4348 = vmatpush1.bf16.msra.mxu0 %v3231
    %4349 = vmatprep.subr.bf16.mxu0 0
    %4350 = vmatpush2.bf16.msra.mxu0 %v3246
    %4351 = vmatprep.subr.bf16.mxu0 0
    %4352 = vmatpush2.bf16.msra.mxu0 %v3245
    %4353 = vmatprep.subr.bf16.mxu0 0
    %4354 = vmatpush2.bf16.msra.mxu0 %v3244
    %4355 = vmatprep.subr.bf16.mxu0 0
    %4356 = vmatpush2.bf16.msra.mxu0 %v3243
    %4357 = vmatprep.subr.bf16.mxu0 0
    %4358 = vmatpush2.bf16.msra.mxu0 %v3242
    %4359 = vmatprep.subr.bf16.mxu0 0
    %4360 = vmatpush2.bf16.msra.mxu0 %v3241
    %4361 = vmatprep.subr.bf16.mxu0 0
    %4362 = vmatpush2.bf16.msra.mxu0 %v3240
    %4363 = vmatprep.subr.bf16.mxu0 0
    %4364 = vmatpush2.bf16.msra.mxu0 %v3239
    %4365 = vmatprep.mubr.bf16.mxu0 %v1070
    %4366 = vmatmul.mubr.bf16.gmra.mxu0 %v1068
    %v4367 = vpop.f32.mrf.mxu0
    %v4368 = vadd.f32 %v4328, %v4367
    %v4369 = vpop.f32.mrf.mxu0
    %v4370 = vpop.f32.mrf.mxu0
    %v4371 = vpop.f32.mrf.mxu0
    %4372 = vdwg.mxu0
    %4373 = vmatprep.subr.bf16.mxu0 0
    %4374 = vmatpush1.bf16.msra.mxu0 %v3254
    %4375 = vmatprep.subr.bf16.mxu0 0
    %4376 = vmatpush1.bf16.msra.mxu0 %v3253
    %4377 = vmatprep.subr.bf16.mxu0 0
    %4378 = vmatpush1.bf16.msra.mxu0 %v3252
    %4379 = vmatprep.subr.bf16.mxu0 0
    %4380 = vmatpush1.bf16.msra.mxu0 %v3251
    %4381 = vmatprep.subr.bf16.mxu0 0
    %4382 = vmatpush1.bf16.msra.mxu0 %v3250
    %4383 = vmatprep.subr.bf16.mxu0 0
    %4384 = vmatpush1.bf16.msra.mxu0 %v3249
    %4385 = vmatprep.subr.bf16.mxu0 0
    %4386 = vmatpush1.bf16.msra.mxu0 %v3248
    %4387 = vmatprep.subr.bf16.mxu0 0
    %4388 = vmatpush1.bf16.msra.mxu0 %v3247
    %4389 = vmatprep.subr.bf16.mxu0 0
    %4390 = vmatpush2.bf16.msra.mxu0 %v3262
    %4391 = vmatprep.subr.bf16.mxu0 0
    %4392 = vmatpush2.bf16.msra.mxu0 %v3261
    %4393 = vmatprep.subr.bf16.mxu0 0
    %4394 = vmatpush2.bf16.msra.mxu0 %v3260
    %4395 = vmatprep.subr.bf16.mxu0 0
    %4396 = vmatpush2.bf16.msra.mxu0 %v3259
    %4397 = vmatprep.subr.bf16.mxu0 0
    %4398 = vmatpush2.bf16.msra.mxu0 %v3258
    %4399 = vmatprep.subr.bf16.mxu0 0
    %4400 = vmatpush2.bf16.msra.mxu0 %v3257
    %4401 = vmatprep.subr.bf16.mxu0 0
    %4402 = vmatpush2.bf16.msra.mxu0 %v3256
    %4403 = vmatprep.subr.bf16.mxu0 0
    %4404 = vmatpush2.bf16.msra.mxu0 %v3255
    %4405 = vmatprep.mubr.bf16.mxu0 %v1067
    %4406 = vmatmul.mubr.bf16.gmra.mxu0 %v1053
    %v4407 = vpop.f32.mrf.mxu0
    %v4408 = vadd.f32 %v4368, %v4407
    %v4409 = vpop.f32.mrf.mxu0
    %v4410 = vpop.f32.mrf.mxu0
    %v4411 = vpop.f32.mrf.mxu0
    %4412 = vdwg.mxu0
    %4413 = vmatprep.subr.bf16.mxu0 0
    %4414 = vmatpush1.bf16.msra.mxu0 %v3270
    %4415 = vmatprep.subr.bf16.mxu0 0
    %4416 = vmatpush1.bf16.msra.mxu0 %v3269
    %4417 = vmatprep.subr.bf16.mxu0 0
    %4418 = vmatpush1.bf16.msra.mxu0 %v3268
    %4419 = vmatprep.subr.bf16.mxu0 0
    %4420 = vmatpush1.bf16.msra.mxu0 %v3267
    %4421 = vmatprep.subr.bf16.mxu0 0
    %4422 = vmatpush1.bf16.msra.mxu0 %v3266
    %4423 = vmatprep.subr.bf16.mxu0 0
    %4424 = vmatpush1.bf16.msra.mxu0 %v3265
    %4425 = vmatprep.subr.bf16.mxu0 0
    %4426 = vmatpush1.bf16.msra.mxu0 %v3264
    %4427 = vmatprep.subr.bf16.mxu0 0
    %4428 = vmatpush1.bf16.msra.mxu0 %v3263
    %4429 = vmatprep.subr.bf16.mxu0 0
    %4430 = vmatpush2.bf16.msra.mxu0 %v3278
    %4431 = vmatprep.subr.bf16.mxu0 0
    %4432 = vmatpush2.bf16.msra.mxu0 %v3277
    %4433 = vmatprep.subr.bf16.mxu0 0
    %4434 = vmatpush2.bf16.msra.mxu0 %v3276
    %4435 = vmatprep.subr.bf16.mxu0 0
    %4436 = vmatpush2.bf16.msra.mxu0 %v3275
    %4437 = vmatprep.subr.bf16.mxu0 0
    %4438 = vmatpush2.bf16.msra.mxu0 %v3274
    %4439 = vmatprep.subr.bf16.mxu0 0
    %4440 = vmatpush2.bf16.msra.mxu0 %v3273
    %4441 = vmatprep.subr.bf16.mxu0 0
    %4442 = vmatpush2.bf16.msra.mxu0 %v3272
    %4443 = vmatprep.subr.bf16.mxu0 0
    %4444 = vmatpush2.bf16.msra.mxu0 %v3271
    %4445 = vmatprep.mubr.bf16.mxu0 %v1071
    %4446 = vmatmul.mubr.bf16.gmra.mxu0 %v1069
    %v4447 = vpop.f32.mrf.mxu0
    %v4448 = vadd.f32 %v4408, %v4447
    %v4449 = vpop.f32.mrf.mxu0
    %v4450 = vpop.f32.mrf.mxu0
    %v4451 = vpop.f32.mrf.mxu0
    %4452 = vdwg.mxu0
    %4453 = vmatprep.subr.bf16.mxu0 0
    %4454 = vmatpush1.bf16.msra.mxu0 %v3286
    %4455 = vmatprep.subr.bf16.mxu0 0
    %4456 = vmatpush1.bf16.msra.mxu0 %v3285
    %4457 = vmatprep.subr.bf16.mxu0 0
    %4458 = vmatpush1.bf16.msra.mxu0 %v3284
    %4459 = vmatprep.subr.bf16.mxu0 0
    %4460 = vmatpush1.bf16.msra.mxu0 %v3283
    %4461 = vmatprep.subr.bf16.mxu0 0
    %4462 = vmatpush1.bf16.msra.mxu0 %v3282
    %4463 = vmatprep.subr.bf16.mxu0 0
    %4464 = vmatpush1.bf16.msra.mxu0 %v3281
    %4465 = vmatprep.subr.bf16.mxu0 0
    %4466 = vmatpush1.bf16.msra.mxu0 %v3280
    %4467 = vmatprep.subr.bf16.mxu0 0
    %4468 = vmatpush1.bf16.msra.mxu0 %v3279
    %4469 = vmatprep.subr.bf16.mxu0 0
    %4470 = vmatpush2.bf16.msra.mxu0 %v3294
    %4471 = vmatprep.subr.bf16.mxu0 0
    %4472 = vmatpush2.bf16.msra.mxu0 %v3293
    %4473 = vmatprep.subr.bf16.mxu0 0
    %4474 = vmatpush2.bf16.msra.mxu0 %v3292
    %4475 = vmatprep.subr.bf16.mxu0 0
    %4476 = vmatpush2.bf16.msra.mxu0 %v3291
    %4477 = vmatprep.subr.bf16.mxu0 0
    %4478 = vmatpush2.bf16.msra.mxu0 %v3290
    %4479 = vmatprep.subr.bf16.mxu0 0
    %4480 = vmatpush2.bf16.msra.mxu0 %v3289
    %4481 = vmatprep.subr.bf16.mxu0 0
    %4482 = vmatpush2.bf16.msra.mxu0 %v3288
    %4483 = vmatprep.subr.bf16.mxu0 0
    %4484 = vmatpush2.bf16.msra.mxu0 %v3287
    %4485 = vmatprep.mubr.bf16.mxu0 %v1109
    %4486 = vmatmul.mubr.bf16.gmra.mxu0 %v1095
    %v4487 = vpop.f32.mrf.mxu0
    %v4488 = vadd.f32 %v4448, %v4487
    %v4489 = vpop.f32.mrf.mxu0
    %v4490 = vpop.f32.mrf.mxu0
    %v4491 = vpop.f32.mrf.mxu0
    %4492 = vdwg.mxu0
    %4493 = vmatprep.subr.bf16.mxu0 0
    %4494 = vmatpush1.bf16.msra.mxu0 %v3302
    %4495 = vmatprep.subr.bf16.mxu0 0
    %4496 = vmatpush1.bf16.msra.mxu0 %v3301
    %4497 = vmatprep.subr.bf16.mxu0 0
    %4498 = vmatpush1.bf16.msra.mxu0 %v3300
    %4499 = vmatprep.subr.bf16.mxu0 0
    %4500 = vmatpush1.bf16.msra.mxu0 %v3299
    %4501 = vmatprep.subr.bf16.mxu0 0
    %4502 = vmatpush1.bf16.msra.mxu0 %v3298
    %4503 = vmatprep.subr.bf16.mxu0 0
    %4504 = vmatpush1.bf16.msra.mxu0 %v3297
    %4505 = vmatprep.subr.bf16.mxu0 0
    %4506 = vmatpush1.bf16.msra.mxu0 %v3296
    %4507 = vmatprep.subr.bf16.mxu0 0
    %4508 = vmatpush1.bf16.msra.mxu0 %v3295
    %4509 = vmatprep.subr.bf16.mxu0 0
    %4510 = vmatpush2.bf16.msra.mxu0 %v3310
    %4511 = vmatprep.subr.bf16.mxu0 0
    %4512 = vmatpush2.bf16.msra.mxu0 %v3309
    %4513 = vmatprep.subr.bf16.mxu0 0
    %4514 = vmatpush2.bf16.msra.mxu0 %v3308
    %4515 = vmatprep.subr.bf16.mxu0 0
    %4516 = vmatpush2.bf16.msra.mxu0 %v3307
    %4517 = vmatprep.subr.bf16.mxu0 0
    %4518 = vmatpush2.bf16.msra.mxu0 %v3306
    %4519 = vmatprep.subr.bf16.mxu0 0
    %4520 = vmatpush2.bf16.msra.mxu0 %v3305
    %4521 = vmatprep.subr.bf16.mxu0 0
    %4522 = vmatpush2.bf16.msra.mxu0 %v3304
    %4523 = vmatprep.subr.bf16.mxu0 0
    %4524 = vmatpush2.bf16.msra.mxu0 %v3303
    %4525 = vmatprep.mubr.bf16.mxu0 %v1119
    %4526 = vmatmul.mubr.bf16.gmra.mxu0 %v1117
    %v4527 = vpop.f32.mrf.mxu0
    %v4528 = vadd.f32 %v4488, %v4527
    %v4529 = vpop.f32.mrf.mxu0
    %v4530 = vpop.f32.mrf.mxu0
    %v4531 = vpop.f32.mrf.mxu0
    %4532 = vdwg.mxu0
    %4533 = vmatprep.subr.bf16.mxu0 0
    %4534 = vmatpush1.bf16.msra.mxu0 %v3318
    %4535 = vmatprep.subr.bf16.mxu0 0
    %4536 = vmatpush1.bf16.msra.mxu0 %v3317
    %4537 = vmatprep.subr.bf16.mxu0 0
    %4538 = vmatpush1.bf16.msra.mxu0 %v3316
    %4539 = vmatprep.subr.bf16.mxu0 0
    %4540 = vmatpush1.bf16.msra.mxu0 %v3315
    %4541 = vmatprep.subr.bf16.mxu0 0
    %4542 = vmatpush1.bf16.msra.mxu0 %v3314
    %4543 = vmatprep.subr.bf16.mxu0 0
    %4544 = vmatpush1.bf16.msra.mxu0 %v3313
    %4545 = vmatprep.subr.bf16.mxu0 0
    %4546 = vmatpush1.bf16.msra.mxu0 %v3312
    %4547 = vmatprep.subr.bf16.mxu0 0
    %4548 = vmatpush1.bf16.msra.mxu0 %v3311
    %4549 = vmatprep.subr.bf16.mxu0 0
    %4550 = vmatpush2.bf16.msra.mxu0 %v3326
    %4551 = vmatprep.subr.bf16.mxu0 0
    %4552 = vmatpush2.bf16.msra.mxu0 %v3325
    %4553 = vmatprep.subr.bf16.mxu0 0
    %4554 = vmatpush2.bf16.msra.mxu0 %v3324
    %4555 = vmatprep.subr.bf16.mxu0 0
    %4556 = vmatpush2.bf16.msra.mxu0 %v3323
    %4557 = vmatprep.subr.bf16.mxu0 0
    %4558 = vmatpush2.bf16.msra.mxu0 %v3322
    %4559 = vmatprep.subr.bf16.mxu0 0
    %4560 = vmatpush2.bf16.msra.mxu0 %v3321
    %4561 = vmatprep.subr.bf16.mxu0 0
    %4562 = vmatpush2.bf16.msra.mxu0 %v3320
    %4563 = vmatprep.subr.bf16.mxu0 0
    %4564 = vmatpush2.bf16.msra.mxu0 %v3319
    %4565 = vmatprep.mubr.bf16.mxu0 %v1116
    %4566 = vmatmul.mubr.bf16.gmra.mxu0 %v1102
    %v4567 = vpop.f32.mrf.mxu0
    %v4568 = vadd.f32 %v4528, %v4567
    %v4569 = vpop.f32.mrf.mxu0
    %v4570 = vpop.f32.mrf.mxu0
    %v4571 = vpop.f32.mrf.mxu0
    %4572 = vdwg.mxu0
    %4573 = vmatprep.subr.bf16.mxu0 0
    %4574 = vmatpush1.bf16.msra.mxu0 %v3334
    %4575 = vmatprep.subr.bf16.mxu0 0
    %4576 = vmatpush1.bf16.msra.mxu0 %v3333
    %4577 = vmatprep.subr.bf16.mxu0 0
    %4578 = vmatpush1.bf16.msra.mxu0 %v3332
    %4579 = vmatprep.subr.bf16.mxu0 0
    %4580 = vmatpush1.bf16.msra.mxu0 %v3331
    %4581 = vmatprep.subr.bf16.mxu0 0
    %4582 = vmatpush1.bf16.msra.mxu0 %v3330
    %4583 = vmatprep.subr.bf16.mxu0 0
    %4584 = vmatpush1.bf16.msra.mxu0 %v3329
    %4585 = vmatprep.subr.bf16.mxu0 0
    %4586 = vmatpush1.bf16.msra.mxu0 %v3328
    %4587 = vmatprep.subr.bf16.mxu0 0
    %4588 = vmatpush1.bf16.msra.mxu0 %v3327
    %4589 = vmatprep.subr.bf16.mxu0 0
    %4590 = vmatpush2.bf16.msra.mxu0 %v3342
    %4591 = vmatprep.subr.bf16.mxu0 0
    %4592 = vmatpush2.bf16.msra.mxu0 %v3341
    %4593 = vmatprep.subr.bf16.mxu0 0
    %4594 = vmatpush2.bf16.msra.mxu0 %v3340
    %4595 = vmatprep.subr.bf16.mxu0 0
    %4596 = vmatpush2.bf16.msra.mxu0 %v3339
    %4597 = vmatprep.subr.bf16.mxu0 0
    %4598 = vmatpush2.bf16.msra.mxu0 %v3338
    %4599 = vmatprep.subr.bf16.mxu0 0
    %4600 = vmatpush2.bf16.msra.mxu0 %v3337
    %4601 = vmatprep.subr.bf16.mxu0 0
    %4602 = vmatpush2.bf16.msra.mxu0 %v3336
    %4603 = vmatprep.subr.bf16.mxu0 0
    %4604 = vmatpush2.bf16.msra.mxu0 %v3335
    %4605 = vmatprep.mubr.bf16.mxu0 %v1120
    %4606 = vmatmul.mubr.bf16.gmra.mxu0 %v1118
    %v4607 = vpop.f32.mrf.mxu0
    %v4608 = vadd.f32 %v4568, %v4607
    %v4609 = vpop.f32.mrf.mxu0
    %v4610 = vpop.f32.mrf.mxu0
    %v4611 = vpop.f32.mrf.mxu0
    %4612 = vdwg.mxu0
    %4613 = vmatprep.subr.bf16.mxu0 0
    %4614 = vmatpush1.bf16.msra.mxu0 %v3350
    %4615 = vmatprep.subr.bf16.mxu0 0
    %4616 = vmatpush1.bf16.msra.mxu0 %v3349
    %4617 = vmatprep.subr.bf16.mxu0 0
    %4618 = vmatpush1.bf16.msra.mxu0 %v3348
    %4619 = vmatprep.subr.bf16.mxu0 0
    %4620 = vmatpush1.bf16.msra.mxu0 %v3347
    %4621 = vmatprep.subr.bf16.mxu0 0
    %4622 = vmatpush1.bf16.msra.mxu0 %v3346
    %4623 = vmatprep.subr.bf16.mxu0 0
    %4624 = vmatpush1.bf16.msra.mxu0 %v3345
    %4625 = vmatprep.subr.bf16.mxu0 0
    %4626 = vmatpush1.bf16.msra.mxu0 %v3344
    %4627 = vmatprep.subr.bf16.mxu0 0
    %4628 = vmatpush1.bf16.msra.mxu0 %v3343
    %4629 = vmatprep.subr.bf16.mxu0 0
    %4630 = vmatpush2.bf16.msra.mxu0 %v3358
    %4631 = vmatprep.subr.bf16.mxu0 0
    %4632 = vmatpush2.bf16.msra.mxu0 %v3357
    %4633 = vmatprep.subr.bf16.mxu0 0
    %4634 = vmatpush2.bf16.msra.mxu0 %v3356
    %4635 = vmatprep.subr.bf16.mxu0 0
    %4636 = vmatpush2.bf16.msra.mxu0 %v3355
    %4637 = vmatprep.subr.bf16.mxu0 0
    %4638 = vmatpush2.bf16.msra.mxu0 %v3354
    %4639 = vmatprep.subr.bf16.mxu0 0
    %4640 = vmatpush2.bf16.msra.mxu0 %v3353
    %4641 = vmatprep.subr.bf16.mxu0 0
    %4642 = vmatpush2.bf16.msra.mxu0 %v3352
    %4643 = vmatprep.subr.bf16.mxu0 0
    %4644 = vmatpush2.bf16.msra.mxu0 %v3351
    %4645 = vmatprep.mubr.bf16.mxu0 %v1158
    %4646 = vmatmul.mubr.bf16.gmra.mxu0 %v1144
    %v4647 = vpop.f32.mrf.mxu0
    %v4648 = vadd.f32 %v4608, %v4647
    %v4649 = vpop.f32.mrf.mxu0
    %v4650 = vpop.f32.mrf.mxu0
    %v4651 = vpop.f32.mrf.mxu0
    %4652 = vdwg.mxu0
    %4653 = vmatprep.subr.bf16.mxu0 0
    %4654 = vmatpush1.bf16.msra.mxu0 %v3366
    %4655 = vmatprep.subr.bf16.mxu0 0
    %4656 = vmatpush1.bf16.msra.mxu0 %v3365
    %4657 = vmatprep.subr.bf16.mxu0 0
    %4658 = vmatpush1.bf16.msra.mxu0 %v3364
    %4659 = vmatprep.subr.bf16.mxu0 0
    %4660 = vmatpush1.bf16.msra.mxu0 %v3363
    %4661 = vmatprep.subr.bf16.mxu0 0
    %4662 = vmatpush1.bf16.msra.mxu0 %v3362
    %4663 = vmatprep.subr.bf16.mxu0 0
    %4664 = vmatpush1.bf16.msra.mxu0 %v3361
    %4665 = vmatprep.subr.bf16.mxu0 0
    %4666 = vmatpush1.bf16.msra.mxu0 %v3360
    %4667 = vmatprep.subr.bf16.mxu0 0
    %4668 = vmatpush1.bf16.msra.mxu0 %v3359
    %4669 = vmatprep.subr.bf16.mxu0 0
    %4670 = vmatpush2.bf16.msra.mxu0 %v3374
    %4671 = vmatprep.subr.bf16.mxu0 0
    %4672 = vmatpush2.bf16.msra.mxu0 %v3373
    %4673 = vmatprep.subr.bf16.mxu0 0
    %4674 = vmatpush2.bf16.msra.mxu0 %v3372
    %4675 = vmatprep.subr.bf16.mxu0 0
    %4676 = vmatpush2.bf16.msra.mxu0 %v3371
    %4677 = vmatprep.subr.bf16.mxu0 0
    %4678 = vmatpush2.bf16.msra.mxu0 %v3370
    %4679 = vmatprep.subr.bf16.mxu0 0
    %4680 = vmatpush2.bf16.msra.mxu0 %v3369
    %4681 = vmatprep.subr.bf16.mxu0 0
    %4682 = vmatpush2.bf16.msra.mxu0 %v3368
    %4683 = vmatprep.subr.bf16.mxu0 0
    %4684 = vmatpush2.bf16.msra.mxu0 %v3367
    %4685 = vmatprep.mubr.bf16.mxu0 %v1168
    %4686 = vmatmul.mubr.bf16.gmra.mxu0 %v1166
    %v4687 = vpop.f32.mrf.mxu0
    %v4688 = vadd.f32 %v4648, %v4687
    %v4689 = vpop.f32.mrf.mxu0
    %v4690 = vpop.f32.mrf.mxu0
    %v4691 = vpop.f32.mrf.mxu0
    %4692 = vdwg.mxu0
    %4693 = vmatprep.subr.bf16.mxu0 0
    %4694 = vmatpush1.bf16.msra.mxu0 %v3382
    %4695 = vmatprep.subr.bf16.mxu0 0
    %4696 = vmatpush1.bf16.msra.mxu0 %v3381
    %4697 = vmatprep.subr.bf16.mxu0 0
    %4698 = vmatpush1.bf16.msra.mxu0 %v3380
    %4699 = vmatprep.subr.bf16.mxu0 0
    %4700 = vmatpush1.bf16.msra.mxu0 %v3379
    %4701 = vmatprep.subr.bf16.mxu0 0
    %4702 = vmatpush1.bf16.msra.mxu0 %v3378
    %4703 = vmatprep.subr.bf16.mxu0 0
    %4704 = vmatpush1.bf16.msra.mxu0 %v3377
    %4705 = vmatprep.subr.bf16.mxu0 0
    %4706 = vmatpush1.bf16.msra.mxu0 %v3376
    %4707 = vmatprep.subr.bf16.mxu0 0
    %4708 = vmatpush1.bf16.msra.mxu0 %v3375
    %4709 = vmatprep.subr.bf16.mxu0 0
    %4710 = vmatpush2.bf16.msra.mxu0 %v3390
    %4711 = vmatprep.subr.bf16.mxu0 0
    %4712 = vmatpush2.bf16.msra.mxu0 %v3389
    %4713 = vmatprep.subr.bf16.mxu0 0
    %4714 = vmatpush2.bf16.msra.mxu0 %v3388
    %4715 = vmatprep.subr.bf16.mxu0 0
    %4716 = vmatpush2.bf16.msra.mxu0 %v3387
    %4717 = vmatprep.subr.bf16.mxu0 0
    %4718 = vmatpush2.bf16.msra.mxu0 %v3386
    %4719 = vmatprep.subr.bf16.mxu0 0
    %4720 = vmatpush2.bf16.msra.mxu0 %v3385
    %4721 = vmatprep.subr.bf16.mxu0 0
    %4722 = vmatpush2.bf16.msra.mxu0 %v3384
    %4723 = vmatprep.subr.bf16.mxu0 0
    %4724 = vmatpush2.bf16.msra.mxu0 %v3383
    %4725 = vmatprep.mubr.bf16.mxu0 %v1165
    %4726 = vmatmul.mubr.bf16.gmra.mxu0 %v1151
    %v4727 = vpop.f32.mrf.mxu0
    %v4728 = vadd.f32 %v4688, %v4727
    %v4729 = vpop.f32.mrf.mxu0
    %v4730 = vpop.f32.mrf.mxu0
    %v4731 = vpop.f32.mrf.mxu0
    %4732 = vdwg.mxu0
    %4733 = vmatprep.subr.bf16.mxu0 0
    %4734 = vmatpush1.bf16.msra.mxu0 %v3398
    %4735 = vmatprep.subr.bf16.mxu0 0
    %4736 = vmatpush1.bf16.msra.mxu0 %v3397
    %4737 = vmatprep.subr.bf16.mxu0 0
    %4738 = vmatpush1.bf16.msra.mxu0 %v3396
    %4739 = vmatprep.subr.bf16.mxu0 0
    %4740 = vmatpush1.bf16.msra.mxu0 %v3395
    %4741 = vmatprep.subr.bf16.mxu0 0
    %4742 = vmatpush1.bf16.msra.mxu0 %v3394
    %4743 = vmatprep.subr.bf16.mxu0 0
    %4744 = vmatpush1.bf16.msra.mxu0 %v3393
    %4745 = vmatprep.subr.bf16.mxu0 0
    %4746 = vmatpush1.bf16.msra.mxu0 %v3392
    %4747 = vmatprep.subr.bf16.mxu0 0
    %4748 = vmatpush1.bf16.msra.mxu0 %v3391
    %4749 = vmatprep.subr.bf16.mxu0 0
    %4750 = vmatpush2.bf16.msra.mxu0 %v3406
    %4751 = vmatprep.subr.bf16.mxu0 0
    %4752 = vmatpush2.bf16.msra.mxu0 %v3405
    %4753 = vmatprep.subr.bf16.mxu0 0
    %4754 = vmatpush2.bf16.msra.mxu0 %v3404
    %4755 = vmatprep.subr.bf16.mxu0 0
    %4756 = vmatpush2.bf16.msra.mxu0 %v3403
    %4757 = vmatprep.subr.bf16.mxu0 0
    %4758 = vmatpush2.bf16.msra.mxu0 %v3402
    %4759 = vmatprep.subr.bf16.mxu0 0
    %4760 = vmatpush2.bf16.msra.mxu0 %v3401
    %4761 = vmatprep.subr.bf16.mxu0 0
    %4762 = vmatpush2.bf16.msra.mxu0 %v3400
    %4763 = vmatprep.subr.bf16.mxu0 0
    %4764 = vmatpush2.bf16.msra.mxu0 %v3399
    %4765 = vmatprep.mubr.bf16.mxu0 %v1169
    %4766 = vmatmul.mubr.bf16.gmra.mxu0 %v1167
    %v4767 = vpop.f32.mrf.mxu0
    %v4768 = vadd.f32 %v4728, %v4767
    %v4769 = vpop.f32.mrf.mxu0
    %v4770 = vpop.f32.mrf.mxu0
    %v4771 = vpop.f32.mrf.mxu0
    %4772 = vdwg.mxu0
    %4773 = vmatprep.subr.bf16.mxu0 0
    %4774 = vmatpush1.bf16.msra.mxu0 %v3414
    %4775 = vmatprep.subr.bf16.mxu0 0
    %4776 = vmatpush1.bf16.msra.mxu0 %v3413
    %4777 = vmatprep.subr.bf16.mxu0 0
    %4778 = vmatpush1.bf16.msra.mxu0 %v3412
    %4779 = vmatprep.subr.bf16.mxu0 0
    %4780 = vmatpush1.bf16.msra.mxu0 %v3411
    %4781 = vmatprep.subr.bf16.mxu0 0
    %4782 = vmatpush1.bf16.msra.mxu0 %v3410
    %4783 = vmatprep.subr.bf16.mxu0 0
    %4784 = vmatpush1.bf16.msra.mxu0 %v3409
    %4785 = vmatprep.subr.bf16.mxu0 0
    %4786 = vmatpush1.bf16.msra.mxu0 %v3408
    %4787 = vmatprep.subr.bf16.mxu0 0
    %4788 = vmatpush1.bf16.msra.mxu0 %v3407
    %4789 = vmatprep.subr.bf16.mxu0 0
    %4790 = vmatpush2.bf16.msra.mxu0 %v3422
    %4791 = vmatprep.subr.bf16.mxu0 0
    %4792 = vmatpush2.bf16.msra.mxu0 %v3421
    %4793 = vmatprep.subr.bf16.mxu0 0
    %4794 = vmatpush2.bf16.msra.mxu0 %v3420
    %4795 = vmatprep.subr.bf16.mxu0 0
    %4796 = vmatpush2.bf16.msra.mxu0 %v3419
    %4797 = vmatprep.subr.bf16.mxu0 0
    %4798 = vmatpush2.bf16.msra.mxu0 %v3418
    %4799 = vmatprep.subr.bf16.mxu0 0
    %4800 = vmatpush2.bf16.msra.mxu0 %v3417
    %4801 = vmatprep.subr.bf16.mxu0 0
    %4802 = vmatpush2.bf16.msra.mxu0 %v3416
    %4803 = vmatprep.subr.bf16.mxu0 0
    %4804 = vmatpush2.bf16.msra.mxu0 %v3415
    %4805 = vmatprep.mubr.bf16.mxu0 %v1207
    %4806 = vmatmul.mubr.bf16.gmra.mxu0 %v1193
    %v4807 = vpop.f32.mrf.mxu0
    %v4808 = vadd.f32 %v4768, %v4807
    %v4809 = vpop.f32.mrf.mxu0
    %v4810 = vpop.f32.mrf.mxu0
    %v4811 = vpop.f32.mrf.mxu0
    %4812 = vdwg.mxu0
    %4813 = vmatprep.subr.bf16.mxu0 0
    %4814 = vmatpush1.bf16.msra.mxu0 %v3430
    %4815 = vmatprep.subr.bf16.mxu0 0
    %4816 = vmatpush1.bf16.msra.mxu0 %v3429
    %4817 = vmatprep.subr.bf16.mxu0 0
    %4818 = vmatpush1.bf16.msra.mxu0 %v3428
    %4819 = vmatprep.subr.bf16.mxu0 0
    %4820 = vmatpush1.bf16.msra.mxu0 %v3427
    %4821 = vmatprep.subr.bf16.mxu0 0
    %4822 = vmatpush1.bf16.msra.mxu0 %v3426
    %4823 = vmatprep.subr.bf16.mxu0 0
    %4824 = vmatpush1.bf16.msra.mxu0 %v3425
    %4825 = vmatprep.subr.bf16.mxu0 0
    %4826 = vmatpush1.bf16.msra.mxu0 %v3424
    %4827 = vmatprep.subr.bf16.mxu0 0
    %4828 = vmatpush1.bf16.msra.mxu0 %v3423
    %4829 = vmatprep.subr.bf16.mxu0 0
    %4830 = vmatpush2.bf16.msra.mxu0 %v3438
    %4831 = vmatprep.subr.bf16.mxu0 0
    %4832 = vmatpush2.bf16.msra.mxu0 %v3437
    %4833 = vmatprep.subr.bf16.mxu0 0
    %4834 = vmatpush2.bf16.msra.mxu0 %v3436
    %4835 = vmatprep.subr.bf16.mxu0 0
    %4836 = vmatpush2.bf16.msra.mxu0 %v3435
    %4837 = vmatprep.subr.bf16.mxu0 0
    %4838 = vmatpush2.bf16.msra.mxu0 %v3434
    %4839 = vmatprep.subr.bf16.mxu0 0
    %4840 = vmatpush2.bf16.msra.mxu0 %v3433
    %4841 = vmatprep.subr.bf16.mxu0 0
    %4842 = vmatpush2.bf16.msra.mxu0 %v3432
    %4843 = vmatprep.subr.bf16.mxu0 0
    %4844 = vmatpush2.bf16.msra.mxu0 %v3431
    %4845 = vmatprep.mubr.bf16.mxu0 %v1217
    %4846 = vmatmul.mubr.bf16.gmra.mxu0 %v1215
    %v4847 = vpop.f32.mrf.mxu0
    %v4848 = vadd.f32 %v4808, %v4847
    %v4849 = vpop.f32.mrf.mxu0
    %v4850 = vpop.f32.mrf.mxu0
    %v4851 = vpop.f32.mrf.mxu0
    %4852 = vdwg.mxu0
    %4853 = vmatprep.subr.bf16.mxu0 0
    %4854 = vmatpush1.bf16.msra.mxu0 %v3446
    %4855 = vmatprep.subr.bf16.mxu0 0
    %4856 = vmatpush1.bf16.msra.mxu0 %v3445
    %4857 = vmatprep.subr.bf16.mxu0 0
    %4858 = vmatpush1.bf16.msra.mxu0 %v3444
    %4859 = vmatprep.subr.bf16.mxu0 0
    %4860 = vmatpush1.bf16.msra.mxu0 %v3443
    %4861 = vmatprep.subr.bf16.mxu0 0
    %4862 = vmatpush1.bf16.msra.mxu0 %v3442
    %4863 = vmatprep.subr.bf16.mxu0 0
    %4864 = vmatpush1.bf16.msra.mxu0 %v3441
    %4865 = vmatprep.subr.bf16.mxu0 0
    %4866 = vmatpush1.bf16.msra.mxu0 %v3440
    %4867 = vmatprep.subr.bf16.mxu0 0
    %4868 = vmatpush1.bf16.msra.mxu0 %v3439
    %4869 = vmatprep.subr.bf16.mxu0 0
    %4870 = vmatpush2.bf16.msra.mxu0 %v3454
    %4871 = vmatprep.subr.bf16.mxu0 0
    %4872 = vmatpush2.bf16.msra.mxu0 %v3453
    %4873 = vmatprep.subr.bf16.mxu0 0
    %4874 = vmatpush2.bf16.msra.mxu0 %v3452
    %4875 = vmatprep.subr.bf16.mxu0 0
    %4876 = vmatpush2.bf16.msra.mxu0 %v3451
    %4877 = vmatprep.subr.bf16.mxu0 0
    %4878 = vmatpush2.bf16.msra.mxu0 %v3450
    %4879 = vmatprep.subr.bf16.mxu0 0
    %4880 = vmatpush2.bf16.msra.mxu0 %v3449
    %4881 = vmatprep.subr.bf16.mxu0 0
    %4882 = vmatpush2.bf16.msra.mxu0 %v3448
    %4883 = vmatprep.subr.bf16.mxu0 0
    %4884 = vmatpush2.bf16.msra.mxu0 %v3447
    %4885 = vmatprep.mubr.bf16.mxu0 %v1214
    %4886 = vmatmul.mubr.bf16.gmra.mxu0 %v1200
    %v4887 = vpop.f32.mrf.mxu0
    %v4888 = vadd.f32 %v4848, %v4887
    %v4889 = vpop.f32.mrf.mxu0
    %v4890 = vpop.f32.mrf.mxu0
    %v4891 = vpop.f32.mrf.mxu0
    %4892 = vdwg.mxu0
    %4893 = vmatprep.subr.bf16.mxu0 0
    %4894 = vmatpush1.bf16.msra.mxu0 %v3462
    %4895 = vmatprep.subr.bf16.mxu0 0
    %4896 = vmatpush1.bf16.msra.mxu0 %v3461
    %4897 = vmatprep.subr.bf16.mxu0 0
    %4898 = vmatpush1.bf16.msra.mxu0 %v3460
    %4899 = vmatprep.subr.bf16.mxu0 0
    %4900 = vmatpush1.bf16.msra.mxu0 %v3459
    %4901 = vmatprep.subr.bf16.mxu0 0
    %4902 = vmatpush1.bf16.msra.mxu0 %v3458
    %4903 = vmatprep.subr.bf16.mxu0 0
    %4904 = vmatpush1.bf16.msra.mxu0 %v3457
    %4905 = vmatprep.subr.bf16.mxu0 0
    %4906 = vmatpush1.bf16.msra.mxu0 %v3456
    %4907 = vmatprep.subr.bf16.mxu0 0
    %4908 = vmatpush1.bf16.msra.mxu0 %v3455
    %4909 = vmatprep.subr.bf16.mxu0 0
    %4910 = vmatpush2.bf16.msra.mxu0 %v3470
    %4911 = vmatprep.subr.bf16.mxu0 0
    %4912 = vmatpush2.bf16.msra.mxu0 %v3469
    %4913 = vmatprep.subr.bf16.mxu0 0
    %4914 = vmatpush2.bf16.msra.mxu0 %v3468
    %4915 = vmatprep.subr.bf16.mxu0 0
    %4916 = vmatpush2.bf16.msra.mxu0 %v3467
    %4917 = vmatprep.subr.bf16.mxu0 0
    %4918 = vmatpush2.bf16.msra.mxu0 %v3466
    %4919 = vmatprep.subr.bf16.mxu0 0
    %4920 = vmatpush2.bf16.msra.mxu0 %v3465
    %4921 = vmatprep.subr.bf16.mxu0 0
    %4922 = vmatpush2.bf16.msra.mxu0 %v3464
    %4923 = vmatprep.subr.bf16.mxu0 0
    %4924 = vmatpush2.bf16.msra.mxu0 %v3463
    %4925 = vmatprep.mubr.bf16.mxu0 %v1218
    %4926 = vmatmul.mubr.bf16.gmra.mxu0 %v1216
    %v4927 = vpop.f32.mrf.mxu0
    %v4928 = vadd.f32 %v4888, %v4927
    %v4929 = vpop.f32.mrf.mxu0
    %v4930 = vpop.f32.mrf.mxu0
    %v4931 = vpop.f32.mrf.mxu0
    %4932 = vdwg.mxu0
    %4933 = vmatprep.subr.bf16.mxu0 0
    %4934 = vmatpush1.bf16.msra.mxu0 %v3478
    %4935 = vmatprep.subr.bf16.mxu0 0
    %4936 = vmatpush1.bf16.msra.mxu0 %v3477
    %4937 = vmatprep.subr.bf16.mxu0 0
    %4938 = vmatpush1.bf16.msra.mxu0 %v3476
    %4939 = vmatprep.subr.bf16.mxu0 0
    %4940 = vmatpush1.bf16.msra.mxu0 %v3475
    %4941 = vmatprep.subr.bf16.mxu0 0
    %4942 = vmatpush1.bf16.msra.mxu0 %v3474
    %4943 = vmatprep.subr.bf16.mxu0 0
    %4944 = vmatpush1.bf16.msra.mxu0 %v3473
    %4945 = vmatprep.subr.bf16.mxu0 0
    %4946 = vmatpush1.bf16.msra.mxu0 %v3472
    %4947 = vmatprep.subr.bf16.mxu0 0
    %4948 = vmatpush1.bf16.msra.mxu0 %v3471
    %4949 = vmatprep.subr.bf16.mxu0 0
    %4950 = vmatpush2.bf16.msra.mxu0 %v3486
    %4951 = vmatprep.subr.bf16.mxu0 0
    %4952 = vmatpush2.bf16.msra.mxu0 %v3485
    %4953 = vmatprep.subr.bf16.mxu0 0
    %4954 = vmatpush2.bf16.msra.mxu0 %v3484
    %4955 = vmatprep.subr.bf16.mxu0 0
    %4956 = vmatpush2.bf16.msra.mxu0 %v3483
    %4957 = vmatprep.subr.bf16.mxu0 0
    %4958 = vmatpush2.bf16.msra.mxu0 %v3482
    %4959 = vmatprep.subr.bf16.mxu0 0
    %4960 = vmatpush2.bf16.msra.mxu0 %v3481
    %4961 = vmatprep.subr.bf16.mxu0 0
    %4962 = vmatpush2.bf16.msra.mxu0 %v3480
    %4963 = vmatprep.subr.bf16.mxu0 0
    %4964 = vmatpush2.bf16.msra.mxu0 %v3479
    %4965 = vmatprep.mubr.bf16.mxu0 %v1256
    %4966 = vmatmul.mubr.bf16.gmra.mxu0 %v1242
    %v4967 = vpop.f32.mrf.mxu0
    %v4968 = vadd.f32 %v4928, %v4967
    %v4969 = vpop.f32.mrf.mxu0
    %v4970 = vpop.f32.mrf.mxu0
    %v4971 = vpop.f32.mrf.mxu0
    %4972 = vdwg.mxu0
    %4973 = vmatprep.subr.bf16.mxu0 0
    %4974 = vmatpush1.bf16.msra.mxu0 %v3494
    %4975 = vmatprep.subr.bf16.mxu0 0
    %4976 = vmatpush1.bf16.msra.mxu0 %v3493
    %4977 = vmatprep.subr.bf16.mxu0 0
    %4978 = vmatpush1.bf16.msra.mxu0 %v3492
    %4979 = vmatprep.subr.bf16.mxu0 0
    %4980 = vmatpush1.bf16.msra.mxu0 %v3491
    %4981 = vmatprep.subr.bf16.mxu0 0
    %4982 = vmatpush1.bf16.msra.mxu0 %v3490
    %4983 = vmatprep.subr.bf16.mxu0 0
    %4984 = vmatpush1.bf16.msra.mxu0 %v3489
    %4985 = vmatprep.subr.bf16.mxu0 0
    %4986 = vmatpush1.bf16.msra.mxu0 %v3488
    %4987 = vmatprep.subr.bf16.mxu0 0
    %4988 = vmatpush1.bf16.msra.mxu0 %v3487
    %4989 = vmatprep.subr.bf16.mxu0 0
    %4990 = vmatpush2.bf16.msra.mxu0 %v3502
    %4991 = vmatprep.subr.bf16.mxu0 0
    %4992 = vmatpush2.bf16.msra.mxu0 %v3501
    %4993 = vmatprep.subr.bf16.mxu0 0
    %4994 = vmatpush2.bf16.msra.mxu0 %v3500
    %4995 = vmatprep.subr.bf16.mxu0 0
    %4996 = vmatpush2.bf16.msra.mxu0 %v3499
    %4997 = vmatprep.subr.bf16.mxu0 0
    %4998 = vmatpush2.bf16.msra.mxu0 %v3498
    %4999 = vmatprep.subr.bf16.mxu0 0
    %5000 = vmatpush2.bf16.msra.mxu0 %v3497
    %5001 = vmatprep.subr.bf16.mxu0 0
    %5002 = vmatpush2.bf16.msra.mxu0 %v3496
    %5003 = vmatprep.subr.bf16.mxu0 0
    %5004 = vmatpush2.bf16.msra.mxu0 %v3495
    %5005 = vmatprep.mubr.bf16.mxu0 %v1266
    %5006 = vmatmul.mubr.bf16.gmra.mxu0 %v1264
    %v5007 = vpop.f32.mrf.mxu0
    %v5008 = vadd.f32 %v4968, %v5007
    %v5009 = vpop.f32.mrf.mxu0
    %v5010 = vpop.f32.mrf.mxu0
    %v5011 = vpop.f32.mrf.mxu0
    %5012 = vdwg.mxu0
    %5013 = vmatprep.subr.bf16.mxu0 0
    %5014 = vmatpush1.bf16.msra.mxu0 %v3510
    %5015 = vmatprep.subr.bf16.mxu0 0
    %5016 = vmatpush1.bf16.msra.mxu0 %v3509
    %5017 = vmatprep.subr.bf16.mxu0 0
    %5018 = vmatpush1.bf16.msra.mxu0 %v3508
    %5019 = vmatprep.subr.bf16.mxu0 0
    %5020 = vmatpush1.bf16.msra.mxu0 %v3507
    %5021 = vmatprep.subr.bf16.mxu0 0
    %5022 = vmatpush1.bf16.msra.mxu0 %v3506
    %5023 = vmatprep.subr.bf16.mxu0 0
    %5024 = vmatpush1.bf16.msra.mxu0 %v3505
    %5025 = vmatprep.subr.bf16.mxu0 0
    %5026 = vmatpush1.bf16.msra.mxu0 %v3504
    %5027 = vmatprep.subr.bf16.mxu0 0
    %5028 = vmatpush1.bf16.msra.mxu0 %v3503
    %5029 = vmatprep.subr.bf16.mxu0 0
    %5030 = vmatpush2.bf16.msra.mxu0 %v3518
    %5031 = vmatprep.subr.bf16.mxu0 0
    %5032 = vmatpush2.bf16.msra.mxu0 %v3517
    %5033 = vmatprep.subr.bf16.mxu0 0
    %5034 = vmatpush2.bf16.msra.mxu0 %v3516
    %5035 = vmatprep.subr.bf16.mxu0 0
    %5036 = vmatpush2.bf16.msra.mxu0 %v3515
    %5037 = vmatprep.subr.bf16.mxu0 0
    %5038 = vmatpush2.bf16.msra.mxu0 %v3514
    %5039 = vmatprep.subr.bf16.mxu0 0
    %5040 = vmatpush2.bf16.msra.mxu0 %v3513
    %5041 = vmatprep.subr.bf16.mxu0 0
    %5042 = vmatpush2.bf16.msra.mxu0 %v3512
    %5043 = vmatprep.subr.bf16.mxu0 0
    %5044 = vmatpush2.bf16.msra.mxu0 %v3511
    %5045 = vmatprep.mubr.bf16.mxu0 %v1263
    %5046 = vmatmul.mubr.bf16.gmra.mxu0 %v1249
    %v5047 = vpop.f32.mrf.mxu0
    %v5048 = vadd.f32 %v5008, %v5047
    %v5049 = vpop.f32.mrf.mxu0
    %v5050 = vpop.f32.mrf.mxu0
    %v5051 = vpop.f32.mrf.mxu0
    %5052 = vdwg.mxu0
    %5053 = vmatprep.subr.bf16.mxu0 0
    %5054 = vmatpush1.bf16.msra.mxu0 %v3526
    %5055 = vmatprep.subr.bf16.mxu0 0
    %5056 = vmatpush1.bf16.msra.mxu0 %v3525
    %5057 = vmatprep.subr.bf16.mxu0 0
    %5058 = vmatpush1.bf16.msra.mxu0 %v3524
    %5059 = vmatprep.subr.bf16.mxu0 0
    %5060 = vmatpush1.bf16.msra.mxu0 %v3523
    %5061 = vmatprep.subr.bf16.mxu0 0
    %5062 = vmatpush1.bf16.msra.mxu0 %v3522
    %5063 = vmatprep.subr.bf16.mxu0 0
    %5064 = vmatpush1.bf16.msra.mxu0 %v3521
    %5065 = vmatprep.subr.bf16.mxu0 0
    %5066 = vmatpush1.bf16.msra.mxu0 %v3520
    %5067 = vmatprep.subr.bf16.mxu0 0
    %5068 = vmatpush1.bf16.msra.mxu0 %v3519
    %5069 = vmatprep.subr.bf16.mxu0 0
    %5070 = vmatpush2.bf16.msra.mxu0 0
    %5071 = vmatprep.subr.bf16.mxu0 0
    %5072 = vmatpush2.bf16.msra.mxu0 0
    %5073 = vmatprep.subr.bf16.mxu0 0
    %5074 = vmatpush2.bf16.msra.mxu0 0
    %5075 = vmatprep.subr.bf16.mxu0 0
    %5076 = vmatpush2.bf16.msra.mxu0 0
    %5077 = vmatprep.subr.bf16.mxu0 0
    %5078 = vmatpush2.bf16.msra.mxu0 0
    %5079 = vmatprep.subr.bf16.mxu0 0
    %5080 = vmatpush2.bf16.msra.mxu0 0
    %5081 = vmatprep.subr.bf16.mxu0 0
    %5082 = vmatpush2.bf16.msra.mxu0 0
    %5083 = vmatprep.subr.bf16.mxu0 0
    %5084 = vmatpush2.bf16.msra.mxu0 %v3527
    %5085 = vmatprep.mubr.bf16.mxu0 %v3971
    %5086 = vmatmul.mubr.bf16.gmra.mxu0 %v1265
    %v5087 = vpop.f32.mrf.mxu0
    %v5088 = vadd.f32 %v5048, %v5087
    %v5089 = vpop.f32.mrf.mxu0
    %v5090 = vpop.f32.mrf.mxu0
    %v5091 = vpop.f32.mrf.mxu0
    %5092 = vdwg.mxu0
    %v5093 = vmax.f32 %v5088, 0.0
    %v5094 = vpack.c.bf16 %v5093, %v5093
    %v5095 = vld [vmem:[%s3] sm:$0xf]
    %v5096 = vld [vmem:[%s3 + $0x4] sm:$0xf]
    %v5097 = vld [vmem:[%s3 + $0x8] sm:$0xf]
    %v5098 = vld [vmem:[%s3 + $0xc] sm:$0xf]
    %v5099 = vld [vmem:[%s4] sm:$0x1]
    %v5101 = vlaneseq
    %v5102 = vshrl.u32 %v5101, 7
    %v5103 = vsub.s32 0, %v5102
    %v5104 = vrot.slane %v5099, %v5103
    %v5110 = vunpack.c.l.b16 %v5095
    %v5111 = vunpack.c.l.b16 %v5096
    %v5112 = vunpack.c.l.b16 %v5097
    %v5113 = vunpack.c.l.b16 %v5098
    %v5114 = vpack.c.b16 %v5111, %v5110
    %v5115 = vpack.c.b16 %v5113, %v5112
    %vm5118 = vcmask 261120
    %v5120 = vsel %vm5118, %v5094, 0
    %5122 = vmatprep.subr.bf16.mxu0 0
    %5123 = vmatpush1.bf16.msra.mxu0 0
    %5124 = vmatprep.subr.bf16.mxu0 0
    %5125 = vmatpush1.bf16.msra.mxu0 0
    %5126 = vmatprep.subr.bf16.mxu0 0
    %5127 = vmatpush1.bf16.msra.mxu0 0
    %5128 = vmatprep.subr.bf16.mxu0 0
    %5129 = vmatpush1.bf16.msra.mxu0 0
    %5130 = vmatprep.subr.bf16.mxu0 0
    %5131 = vmatpush1.bf16.msra.mxu0 0
    %5132 = vmatprep.subr.bf16.mxu0 0
    %5133 = vmatpush1.bf16.msra.mxu0 0
    %5134 = vmatprep.subr.bf16.mxu0 0
    %5135 = vmatpush1.bf16.msra.mxu0 %v5115
    %5136 = vmatprep.subr.bf16.mxu0 0
    %5137 = vmatpush1.bf16.msra.mxu0 %v5114
    %5138 = vmatprep.subr.bf16.mxu0 0
    %5139 = vmatpush2.bf16.msra.mxu0 0
    %5140 = vmatprep.subr.bf16.mxu0 0
    %5141 = vmatpush2.bf16.msra.mxu0 0
    %5142 = vmatprep.subr.bf16.mxu0 0
    %5143 = vmatpush2.bf16.msra.mxu0 0
    %5144 = vmatprep.subr.bf16.mxu0 0
    %5145 = vmatpush2.bf16.msra.mxu0 0
    %5146 = vmatprep.subr.bf16.mxu0 0
    %5147 = vmatpush2.bf16.msra.mxu0 0
    %5148 = vmatprep.subr.bf16.mxu0 0
    %5149 = vmatpush2.bf16.msra.mxu0 0
    %5150 = vmatprep.subr.bf16.mxu0 0
    %5151 = vmatpush2.bf16.msra.mxu0 0
    %5152 = vmatprep.subr.bf16.mxu0 0
    %5153 = vmatpush2.bf16.msra.mxu0 0
    %5154 = vmatprep.mubr.bf16.mxu0 0
    %5155 = vmatmul.mubr.bf16.gmra.mxu0 %v5120
    %v5156 = vpop.f32.mrf.mxu0
    %v5157 = vadd.f32 %v5104, %v5156
    %v5158 = vpop.f32.mrf.mxu0
    %v5159 = vpop.f32.mrf.mxu0
    %v5160 = vpop.f32.mrf.mxu0
    %5161 = vdwg.mxu0
    %vm5162 = vcmask 74752
    %5163 = vst.msk [vmem:[#allocation2] sm:$0x3] %vm5162, %v5157
    // Predicated region
    $region22: #{forward.5} parent=1 // pred_check
      _
    $region23: #{forward.5} parent=1 // pred_check_branch
      %5165 = sbr.rel (0) target = $region25
    $region24: #{forward.5} parent=1 // pred_region
      %s5167 = ssub.s32 32, 32
      %5168 = vsyncadd [#allocation3], %s5167
      %s5170 = sshll.u32 [#allocation2], 4
      %s5171 = int_to_ptr.vmem [resolvable:$true] %s5170
      %5173 = dma.vmem_to_hbm [thread:$0]  %s5171, 32, %s5, [#allocation3]
    $region25: #{forward.5} parent=1 // pred_fallthru
      _
    // Predicated region
    $region26: #{forward.5} parent=1 // pred_check
      _
    $region27: #{forward.5} parent=1 // pred_check_branch
      %5175 = sbr.rel (0) target = $region29
    $region28: #{forward.5} parent=1 // pred_region
      %5176 = dma.done [#allocation3], 32
    $region29: #{forward.5} parent=1 // pred_fallthru
      _
    %5177 = vsyncpa [#allocation3], 1

</llo_original>
